<compile_context>
chip_gen: v7x
topology: tpu7x:2x2x1
jax: 0.10.0
libtpu: 0.0.40
codegen_flags: <defaults>
</compile_context>

<pallas_src>
import jax
import jax.numpy as jnp
from jax.experimental import pallas as pl
from jax.experimental.pallas import tpu as pltpu

C_PAD = 128  # channel dim padded to one full lane width -> aligned im2col concat, deep K


def _conv3x3_relu(xp_ref, w_ref, b_ref):
    """3x3 stride-1 'same' conv + bias + ReLU, reading a zero-padded VMEM scratch.

    xp_ref: (N, H+2, W+2, C_PAD) f32 padded input (channels >= real Cin are zero)
    w_ref : (9*C_PAD, Cout) bf16 weights, taps flattened in (dy, dx, cin) order
    b_ref : (1, Cout) f32 bias
    returns (N*H*W, Cout) f32
    """
    N, Hp, Wp, Cp = xp_ref.shape
    H, W = Hp - 2, Wp - 2
    M = N * H * W
    taps = []
    for dy in range(3):
        for dx in range(3):
            taps.append(
                xp_ref[:, dy:dy + H, dx:dx + W, :].reshape(M, Cp).astype(jnp.bfloat16))
    slab = jnp.concatenate(taps, axis=-1)                 # (M, 9*C_PAD) im2col, 128-lane aligned
    acc = jnp.dot(slab, w_ref[...], preferred_element_type=jnp.float32)  # single big-K matmul
    acc = acc + b_ref[...]                                # f32 epilogue
    return jnp.maximum(acc, 0.0)


def _vgg_head_kernel(x_ref, w1_ref, b1_ref, w2_ref, b2_ref, w3_ref, b3_ref,
                     w4_ref, b4_ref, o_ref, xp1, xp2, h2, xp3, xp4):
    N, H, W, Cin = x_ref.shape
    Hh, Wh = H // 2, W // 2
    c1 = w1_ref.shape[-1]
    c2 = w2_ref.shape[-1]
    c3 = w3_ref.shape[-1]
    c4 = w4_ref.shape[-1]

    # ---- stage1 conv1: 3 -> 64, ReLU ----
    xp1[...] = jnp.zeros_like(xp1)                        # in-kernel zero padding
    xp1[:, 1:H + 1, 1:W + 1, 0:Cin] = x_ref[...]
    h1 = _conv3x3_relu(xp1, w1_ref, b1_ref)               # (N*H*W, 64) f32

    # ---- stage1 conv2: 64 -> 64, ReLU ----
    xp2[...] = jnp.zeros_like(xp2)
    xp2[:, 1:H + 1, 1:W + 1, 0:c1] = h1.reshape(N, H, W, c1)
    h2[...] = _conv3x3_relu(xp2, w2_ref, b2_ref).reshape(N, H, W, c2)

    # ---- stage2 maxpool 2x2 / stride 2: strided VMEM reads + VPU max ----
    p00 = h2[:, pl.ds(0, Hh, stride=2), pl.ds(0, Wh, stride=2), :]
    p01 = h2[:, pl.ds(0, Hh, stride=2), pl.ds(1, Wh, stride=2), :]
    p10 = h2[:, pl.ds(1, Hh, stride=2), pl.ds(0, Wh, stride=2), :]
    p11 = h2[:, pl.ds(1, Hh, stride=2), pl.ds(1, Wh, stride=2), :]
    pooled = jnp.maximum(jnp.maximum(p00, p01), jnp.maximum(p10, p11))

    # ---- stage2 conv3: 64 -> 128, ReLU ----
    xp3[...] = jnp.zeros_like(xp3)
    xp3[:, 1:Hh + 1, 1:Wh + 1, 0:c2] = pooled
    h3 = _conv3x3_relu(xp3, w3_ref, b3_ref)               # (N*Hh*Wh, 128)

    # ---- stage2 conv4: 128 -> 128, ReLU ----
    xp4[...] = jnp.zeros_like(xp4)
    xp4[:, 1:Hh + 1, 1:Wh + 1, 0:c3] = h3.reshape(N, Hh, Wh, c3)
    h4 = _conv3x3_relu(xp4, w4_ref, b4_ref)               # (N*Hh*Wh, 128)

    o_ref[...] = h4.reshape(N, Hh, Wh, c4).astype(o_ref.dtype)  # lane-dense (.., 8, 128) store


def _prep_w(w):
    """(3,3,Cin,Cout) HWIO -> zero-pad Cin to C_PAD -> (9*C_PAD, Cout) bf16 for the MXU."""
    kh, kw, cin, cout = w.shape
    w = jnp.pad(w, ((0, 0), (0, 0), (0, C_PAD - cin), (0, 0)))
    return w.reshape(kh * kw * C_PAD, cout).astype(jnp.bfloat16)


def _prep_b(b):
    return b.reshape(1, -1).astype(jnp.float32)


def vgg16_head_nhwc(x_nhwc, params):
    N, H, W, Cin = x_nhwc.shape
    assert H % 2 == 0 and W % 2 == 0, "maxpool2x2 requires even spatial dims"
    Hh, Wh = H // 2, W // 2
    (w1, b1), (w2, b2), (w3, b3), (w4, b4) = params
    c2 = w2.shape[-1]
    c4 = w4.shape[-1]

    args = (x_nhwc.astype(jnp.float32),
            _prep_w(w1), _prep_b(b1), _prep_w(w2), _prep_b(b2),
            _prep_w(w3), _prep_b(b3), _prep_w(w4), _prep_b(b4))

    vmem = pl.BlockSpec(memory_space=pltpu.MemorySpace.VMEM)
    return pl.pallas_call(
        _vgg_head_kernel,
        out_shape=jax.ShapeDtypeStruct((N, Hh, Wh, c4), jnp.float32),
        in_specs=[vmem] * len(args),
        out_specs=vmem,
        scratch_shapes=[
            pltpu.VMEM((N, H + 2, W + 2, C_PAD), jnp.float32),    # padded input
            pltpu.VMEM((N, H + 2, W + 2, C_PAD), jnp.float32),    # padded h_relu1_1
            pltpu.VMEM((N, H, W, c2), jnp.float32),               # h_relu1_2 (pre-pool)
            pltpu.VMEM((N, Hh + 2, Wh + 2, C_PAD), jnp.float32),  # padded pooled
            pltpu.VMEM((N, Hh + 2, Wh + 2, C_PAD), jnp.float32),  # padded h_relu2_1
        ],
        compiler_params=pltpu.CompilerParams(vmem_limit_bytes=32 * 1024 * 1024),
    )(*args)


def init_vgg16_head_params(key):
    """Deterministic synthetic parameters for vgg16.features[0..8] (HWIO layout).
    # TODO(synk): torchvision pretrained VGG16 weights are replaced by deterministic random
    # init (no file/network I/O); layer shapes and forward semantics are exact."""
    shapes = [(3, 3, 3, 64), (3, 3, 64, 64), (3, 3, 64, 128), (3, 3, 128, 128)]
    params = []
    for s in shapes:
        key, kw, kb = jax.random.split(key, 3)
        fan_in = s[0] * s[1] * s[2]
        w = jax.random.normal(kw, s, jnp.float32) * (2.0 / fan_in) ** 0.5
        b = jax.random.normal(kb, (s[3],), jnp.float32) * 0.01
        params.append((w, b))
    return params


@jax.jit
def vgg16_head_forward(x_nchw, params):
    # NCHW <-> NHWC boundary transposes are tiny glue (6 KB in / 64 KB out); all heavy work
    # runs NHWC inside the single fused Pallas kernel.
    x = jnp.transpose(x_nchw, (0, 2, 3, 1))
    y = vgg16_head_nhwc(x, params)
    return jnp.transpose(y, (0, 3, 1, 2))                 # match PyTorch NCHW output


if __name__ == "__main__":
    key = jax.random.PRNGKey(0)
    kx, kp = jax.random.split(key)
    x = jax.random.normal(kx, (2, 3, 16, 16), jnp.float32)   # NCHW, 3 input channels (VGG)
    params = init_vgg16_head_params(kp)
    out = jax.block_until_ready(vgg16_head_forward(x, params))
    assert out.shape == (2, 128, 8, 8), out.shape
    assert bool(jnp.all(out >= 0.0))                         # final ReLU
    print("KERNEL_OK")
</pallas_src>

<mosaic_0001>
module attributes {stable_mosaic.version = 11 : i64} {
  func.func @_vgg_head_kernel(%arg0: memref<2x16x16x3xf32, #tpu.memory_space<vmem>>, %arg1: memref<1152x64xbf16, #tpu.memory_space<vmem>>, %arg2: memref<1x64xf32, #tpu.memory_space<vmem>>, %arg3: memref<1152x64xbf16, #tpu.memory_space<vmem>>, %arg4: memref<1x64xf32, #tpu.memory_space<vmem>>, %arg5: memref<1152x128xbf16, #tpu.memory_space<vmem>>, %arg6: memref<1x128xf32, #tpu.memory_space<vmem>>, %arg7: memref<1152x128xbf16, #tpu.memory_space<vmem>>, %arg8: memref<1x128xf32, #tpu.memory_space<vmem>>, %arg9: memref<2x8x8x128xf32, #tpu.memory_space<vmem>>, %arg10: memref<2x18x18x128xf32, #tpu.memory_space<vmem>>, %arg11: memref<2x18x18x128xf32, #tpu.memory_space<vmem>>, %arg12: memref<2x16x16x64xf32, #tpu.memory_space<vmem>>, %arg13: memref<2x10x10x128xf32, #tpu.memory_space<vmem>>, %arg14: memref<2x10x10x128xf32, #tpu.memory_space<vmem>>) attributes {dimension_semantics = [], scalar_prefetch = 0 : i64, scratch_operands = 5 : i64, tpu.core_type = #tpu.core_type<tc>} {
    %cst = arith.constant 0.000000e+00 : f32
    %0 = vector.broadcast %cst : f32 to vector<2x18x18x128xf32>
    %c0 = arith.constant 0 : index
    %c0_0 = arith.constant 0 : index
    %c0_1 = arith.constant 0 : index
    %c0_2 = arith.constant 0 : index
    %1 = vector.load %arg10[%c0, %c0_0, %c0_1, %c0_2] : memref<2x18x18x128xf32, #tpu.memory_space<vmem>>, vector<2x18x18x128xf32>
    tpu.vector_store %arg10[%c0, %c0_0, %c0_1, %c0_2], %0 {strides = array<i32>} : memref<2x18x18x128xf32, #tpu.memory_space<vmem>>, vector<2x18x18x128xf32>,
    %c0_3 = arith.constant 0 : index
    %c0_4 = arith.constant 0 : index
    %c0_5 = arith.constant 0 : index
    %c0_6 = arith.constant 0 : index
    %2 = vector.load %arg0[%c0_3, %c0_4, %c0_5, %c0_6] : memref<2x16x16x3xf32, #tpu.memory_space<vmem>>, vector<2x16x16x3xf32>
    %c0_7 = arith.constant 0 : index
    %c1 = arith.constant 1 : index
    %c1_8 = arith.constant 1 : index
    %c0_9 = arith.constant 0 : index
    %3 = vector.load %arg10[%c0_7, %c1, %c1_8, %c0_9] : memref<2x18x18x128xf32, #tpu.memory_space<vmem>>, vector<2x16x16x3xf32>
    tpu.vector_store %arg10[%c0_7, %c1, %c1_8, %c0_9], %2 {strides = array<i32>} : memref<2x18x18x128xf32, #tpu.memory_space<vmem>>, vector<2x16x16x3xf32>,
    %c0_10 = arith.constant 0 : index
    %c0_11 = arith.constant 0 : index
    %c0_12 = arith.constant 0 : index
    %c0_13 = arith.constant 0 : index
    %4 = vector.load %arg10[%c0_10, %c0_11, %c0_12, %c0_13] : memref<2x18x18x128xf32, #tpu.memory_space<vmem>>, vector<2x16x16x128xf32>
    %5 = vector.shape_cast %4 : vector<2x16x16x128xf32> to vector<512x128xf32>
    %6 = arith.truncf %5 : vector<512x128xf32> to vector<512x128xbf16>
    %c0_14 = arith.constant 0 : index
    %c0_15 = arith.constant 0 : index
    %c1_16 = arith.constant 1 : index
    %c0_17 = arith.constant 0 : index
    %7 = vector.load %arg10[%c0_14, %c0_15, %c1_16, %c0_17] : memref<2x18x18x128xf32, #tpu.memory_space<vmem>>, vector<2x16x16x128xf32>
    %8 = vector.shape_cast %7 : vector<2x16x16x128xf32> to vector<512x128xf32>
    %9 = arith.truncf %8 : vector<512x128xf32> to vector<512x128xbf16>
    %c0_18 = arith.constant 0 : index
    %c0_19 = arith.constant 0 : index
    %c2 = arith.constant 2 : index
    %c0_20 = arith.constant 0 : index
    %10 = vector.load %arg10[%c0_18, %c0_19, %c2, %c0_20] : memref<2x18x18x128xf32, #tpu.memory_space<vmem>>, vector<2x16x16x128xf32>
    %11 = vector.shape_cast %10 : vector<2x16x16x128xf32> to vector<512x128xf32>
    %12 = arith.truncf %11 : vector<512x128xf32> to vector<512x128xbf16>
    %c0_21 = arith.constant 0 : index
    %c1_22 = arith.constant 1 : index
    %c0_23 = arith.constant 0 : index
    %c0_24 = arith.constant 0 : index
    %13 = vector.load %arg10[%c0_21, %c1_22, %c0_23, %c0_24] : memref<2x18x18x128xf32, #tpu.memory_space<vmem>>, vector<2x16x16x128xf32>
    %14 = vector.shape_cast %13 : vector<2x16x16x128xf32> to vector<512x128xf32>
    %15 = arith.truncf %14 : vector<512x128xf32> to vector<512x128xbf16>
    %c0_25 = arith.constant 0 : index
    %c1_26 = arith.constant 1 : index
    %c1_27 = arith.constant 1 : index
    %c0_28 = arith.constant 0 : index
    %16 = vector.load %arg10[%c0_25, %c1_26, %c1_27, %c0_28] : memref<2x18x18x128xf32, #tpu.memory_space<vmem>>, vector<2x16x16x128xf32>
    %17 = vector.shape_cast %16 : vector<2x16x16x128xf32> to vector<512x128xf32>
    %18 = arith.truncf %17 : vector<512x128xf32> to vector<512x128xbf16>
    %c0_29 = arith.constant 0 : index
    %c1_30 = arith.constant 1 : index
    %c2_31 = arith.constant 2 : index
    %c0_32 = arith.constant 0 : index
    %19 = vector.load %arg10[%c0_29, %c1_30, %c2_31, %c0_32] : memref<2x18x18x128xf32, #tpu.memory_space<vmem>>, vector<2x16x16x128xf32>
    %20 = vector.shape_cast %19 : vector<2x16x16x128xf32> to vector<512x128xf32>
    %21 = arith.truncf %20 : vector<512x128xf32> to vector<512x128xbf16>
    %c0_33 = arith.constant 0 : index
    %c2_34 = arith.constant 2 : index
    %c0_35 = arith.constant 0 : index
    %c0_36 = arith.constant 0 : index
    %22 = vector.load %arg10[%c0_33, %c2_34, %c0_35, %c0_36] : memref<2x18x18x128xf32, #tpu.memory_space<vmem>>, vector<2x16x16x128xf32>
    %23 = vector.shape_cast %22 : vector<2x16x16x128xf32> to vector<512x128xf32>
    %24 = arith.truncf %23 : vector<512x128xf32> to vector<512x128xbf16>
    %c0_37 = arith.constant 0 : index
    %c2_38 = arith.constant 2 : index
    %c1_39 = arith.constant 1 : index
    %c0_40 = arith.constant 0 : index
    %25 = vector.load %arg10[%c0_37, %c2_38, %c1_39, %c0_40] : memref<2x18x18x128xf32, #tpu.memory_space<vmem>>, vector<2x16x16x128xf32>
    %26 = vector.shape_cast %25 : vector<2x16x16x128xf32> to vector<512x128xf32>
    %27 = arith.truncf %26 : vector<512x128xf32> to vector<512x128xbf16>
    %c0_41 = arith.constant 0 : index
    %c2_42 = arith.constant 2 : index
    %c2_43 = arith.constant 2 : index
    %c0_44 = arith.constant 0 : index
    %28 = vector.load %arg10[%c0_41, %c2_42, %c2_43, %c0_44] : memref<2x18x18x128xf32, #tpu.memory_space<vmem>>, vector<2x16x16x128xf32>
    %29 = vector.shape_cast %28 : vector<2x16x16x128xf32> to vector<512x128xf32>
    %30 = arith.truncf %29 : vector<512x128xf32> to vector<512x128xbf16>
    %31 = tpu.concatenate %6, %9, %12, %15, %18, %21, %24, %27, %30 in 1 : vector<512x128xbf16>, vector<512x128xbf16>, vector<512x128xbf16>, vector<512x128xbf16>, vector<512x128xbf16>, vector<512x128xbf16>, vector<512x128xbf16>, vector<512x128xbf16>, vector<512x128xbf16> -> vector<512x1152xbf16>
    %c0_45 = arith.constant 0 : index
    %c0_46 = arith.constant 0 : index
    %32 = vector.load %arg1[%c0_45, %c0_46] : memref<1152x64xbf16, #tpu.memory_space<vmem>>, vector<1152x64xbf16>
    %cst_47 = arith.constant dense<0.000000e+00> : vector<512x64xf32>
    %33 = tpu.matmul %31, %32, %cst_47 {dimension_numbers = #tpu.dot_dimension_numbers<[1], [0], [0], [1], [0, 0, 1, 1], [], []>} : vector<512x1152xbf16>, vector<1152x64xbf16>, vector<512x64xf32> -> vector<512x64xf32>
    %c0_48 = arith.constant 0 : index
    %c0_49 = arith.constant 0 : index
    %34 = vector.load %arg2[%c0_48, %c0_49] : memref<1x64xf32, #tpu.memory_space<vmem>>, vector<1x64xf32>
    %35 = vector.broadcast %34 : vector<1x64xf32> to vector<512x64xf32>
    %36 = arith.addf %33, %35 : vector<512x64xf32>
    %cst_50 = arith.constant 0.000000e+00 : f32
    %37 = vector.broadcast %cst_50 : f32 to vector<512x64xf32>
    %38 = arith.maximumf %36, %37 : vector<512x64xf32>
    %cst_51 = arith.constant 0.000000e+00 : f32
    %39 = vector.broadcast %cst_51 : f32 to vector<2x18x18x128xf32>
    %c0_52 = arith.constant 0 : index
    %c0_53 = arith.constant 0 : index
    %c0_54 = arith.constant 0 : index
    %c0_55 = arith.constant 0 : index
    %40 = vector.load %arg11[%c0_52, %c0_53, %c0_54, %c0_55] : memref<2x18x18x128xf32, #tpu.memory_space<vmem>>, vector<2x18x18x128xf32>
    tpu.vector_store %arg11[%c0_52, %c0_53, %c0_54, %c0_55], %39 {strides = array<i32>} : memref<2x18x18x128xf32, #tpu.memory_space<vmem>>, vector<2x18x18x128xf32>,
    %41 = vector.shape_cast %38 : vector<512x64xf32> to vector<2x16x16x64xf32>
    %c0_56 = arith.constant 0 : index
    %c1_57 = arith.constant 1 : index
    %c1_58 = arith.constant 1 : index
    %c0_59 = arith.constant 0 : index
    %42 = vector.load %arg11[%c0_56, %c1_57, %c1_58, %c0_59] : memref<2x18x18x128xf32, #tpu.memory_space<vmem>>, vector<2x16x16x64xf32>
    tpu.vector_store %arg11[%c0_56, %c1_57, %c1_58, %c0_59], %41 {strides = array<i32>} : memref<2x18x18x128xf32, #tpu.memory_space<vmem>>, vector<2x16x16x64xf32>,
    %c0_60 = arith.constant 0 : index
    %c0_61 = arith.constant 0 : index
    %c0_62 = arith.constant 0 : index
    %c0_63 = arith.constant 0 : index
    %43 = vector.load %arg11[%c0_60, %c0_61, %c0_62, %c0_63] : memref<2x18x18x128xf32, #tpu.memory_space<vmem>>, vector<2x16x16x128xf32>
    %44 = vector.shape_cast %43 : vector<2x16x16x128xf32> to vector<512x128xf32>
    %45 = arith.truncf %44 : vector<512x128xf32> to vector<512x128xbf16>
    %c0_64 = arith.constant 0 : index
    %c0_65 = arith.constant 0 : index
    %c1_66 = arith.constant 1 : index
    %c0_67 = arith.constant 0 : index
    %46 = vector.load %arg11[%c0_64, %c0_65, %c1_66, %c0_67] : memref<2x18x18x128xf32, #tpu.memory_space<vmem>>, vector<2x16x16x128xf32>
    %47 = vector.shape_cast %46 : vector<2x16x16x128xf32> to vector<512x128xf32>
    %48 = arith.truncf %47 : vector<512x128xf32> to vector<512x128xbf16>
    %c0_68 = arith.constant 0 : index
    %c0_69 = arith.constant 0 : index
    %c2_70 = arith.constant 2 : index
    %c0_71 = arith.constant 0 : index
    %49 = vector.load %arg11[%c0_68, %c0_69, %c2_70, %c0_71] : memref<2x18x18x128xf32, #tpu.memory_space<vmem>>, vector<2x16x16x128xf32>
    %50 = vector.shape_cast %49 : vector<2x16x16x128xf32> to vector<512x128xf32>
    %51 = arith.truncf %50 : vector<512x128xf32> to vector<512x128xbf16>
    %c0_72 = arith.constant 0 : index
    %c1_73 = arith.constant 1 : index
    %c0_74 = arith.constant 0 : index
    %c0_75 = arith.constant 0 : index
    %52 = vector.load %arg11[%c0_72, %c1_73, %c0_74, %c0_75] : memref<2x18x18x128xf32, #tpu.memory_space<vmem>>, vector<2x16x16x128xf32>
    %53 = vector.shape_cast %52 : vector<2x16x16x128xf32> to vector<512x128xf32>
    %54 = arith.truncf %53 : vector<512x128xf32> to vector<512x128xbf16>
    %c0_76 = arith.constant 0 : index
    %c1_77 = arith.constant 1 : index
    %c1_78 = arith.constant 1 : index
    %c0_79 = arith.constant 0 : index
    %55 = vector.load %arg11[%c0_76, %c1_77, %c1_78, %c0_79] : memref<2x18x18x128xf32, #tpu.memory_space<vmem>>, vector<2x16x16x128xf32>
    %56 = vector.shape_cast %55 : vector<2x16x16x128xf32> to vector<512x128xf32>
    %57 = arith.truncf %56 : vector<512x128xf32> to vector<512x128xbf16>
    %c0_80 = arith.constant 0 : index
    %c1_81 = arith.constant 1 : index
    %c2_82 = arith.constant 2 : index
    %c0_83 = arith.constant 0 : index
    %58 = vector.load %arg11[%c0_80, %c1_81, %c2_82, %c0_83] : memref<2x18x18x128xf32, #tpu.memory_space<vmem>>, vector<2x16x16x128xf32>
    %59 = vector.shape_cast %58 : vector<2x16x16x128xf32> to vector<512x128xf32>
    %60 = arith.truncf %59 : vector<512x128xf32> to vector<512x128xbf16>
    %c0_84 = arith.constant 0 : index
    %c2_85 = arith.constant 2 : index
    %c0_86 = arith.constant 0 : index
    %c0_87 = arith.constant 0 : index
    %61 = vector.load %arg11[%c0_84, %c2_85, %c0_86, %c0_87] : memref<2x18x18x128xf32, #tpu.memory_space<vmem>>, vector<2x16x16x128xf32>
    %62 = vector.shape_cast %61 : vector<2x16x16x128xf32> to vector<512x128xf32>
    %63 = arith.truncf %62 : vector<512x128xf32> to vector<512x128xbf16>
    %c0_88 = arith.constant 0 : index
    %c2_89 = arith.constant 2 : index
    %c1_90 = arith.constant 1 : index
    %c0_91 = arith.constant 0 : index
    %64 = vector.load %arg11[%c0_88, %c2_89, %c1_90, %c0_91] : memref<2x18x18x128xf32, #tpu.memory_space<vmem>>, vector<2x16x16x128xf32>
    %65 = vector.shape_cast %64 : vector<2x16x16x128xf32> to vector<512x128xf32>
    %66 = arith.truncf %65 : vector<512x128xf32> to vector<512x128xbf16>
    %c0_92 = arith.constant 0 : index
    %c2_93 = arith.constant 2 : index
    %c2_94 = arith.constant 2 : index
    %c0_95 = arith.constant 0 : index
    %67 = vector.load %arg11[%c0_92, %c2_93, %c2_94, %c0_95] : memref<2x18x18x128xf32, #tpu.memory_space<vmem>>, vector<2x16x16x128xf32>
    %68 = vector.shape_cast %67 : vector<2x16x16x128xf32> to vector<512x128xf32>
    %69 = arith.truncf %68 : vector<512x128xf32> to vector<512x128xbf16>
    %70 = tpu.concatenate %45, %48, %51, %54, %57, %60, %63, %66, %69 in 1 : vector<512x128xbf16>, vector<512x128xbf16>, vector<512x128xbf16>, vector<512x128xbf16>, vector<512x128xbf16>, vector<512x128xbf16>, vector<512x128xbf16>, vector<512x128xbf16>, vector<512x128xbf16> -> vector<512x1152xbf16>
    %c0_96 = arith.constant 0 : index
    %c0_97 = arith.constant 0 : index
    %71 = vector.load %arg3[%c0_96, %c0_97] : memref<1152x64xbf16, #tpu.memory_space<vmem>>, vector<1152x64xbf16>
    %cst_98 = arith.constant dense<0.000000e+00> : vector<512x64xf32>
    %72 = tpu.matmul %70, %71, %cst_98 {dimension_numbers = #tpu.dot_dimension_numbers<[1], [0], [0], [1], [0, 0, 1, 1], [], []>} : vector<512x1152xbf16>, vector<1152x64xbf16>, vector<512x64xf32> -> vector<512x64xf32>
    %c0_99 = arith.constant 0 : index
    %c0_100 = arith.constant 0 : index
    %73 = vector.load %arg4[%c0_99, %c0_100] : memref<1x64xf32, #tpu.memory_space<vmem>>, vector<1x64xf32>
    %74 = vector.broadcast %73 : vector<1x64xf32> to vector<512x64xf32>
    %75 = arith.addf %72, %74 : vector<512x64xf32>
    %cst_101 = arith.constant 0.000000e+00 : f32
    %76 = vector.broadcast %cst_101 : f32 to vector<512x64xf32>
    %77 = arith.maximumf %75, %76 : vector<512x64xf32>
    %78 = vector.shape_cast %77 : vector<512x64xf32> to vector<2x16x16x64xf32>
    %c0_102 = arith.constant 0 : index
    %c0_103 = arith.constant 0 : index
    %c0_104 = arith.constant 0 : index
    %c0_105 = arith.constant 0 : index
    %79 = vector.load %arg12[%c0_102, %c0_103, %c0_104, %c0_105] : memref<2x16x16x64xf32, #tpu.memory_space<vmem>>, vector<2x16x16x64xf32>
    tpu.vector_store %arg12[%c0_102, %c0_103, %c0_104, %c0_105], %78 {strides = array<i32>} : memref<2x16x16x64xf32, #tpu.memory_space<vmem>>, vector<2x16x16x64xf32>,
    %c0_106 = arith.constant 0 : index
    %c0_107 = arith.constant 0 : index
    %c0_108 = arith.constant 0 : index
    %c0_109 = arith.constant 0 : index
    %80 = tpu.strided_load %arg12[%c0_106, %c0_107, %c0_108, %c0_109] {strides = array<i32: 1, 2, 2, 1>} : memref<2x16x16x64xf32, #tpu.memory_space<vmem>>, vector<2x8x8x64xf32>
    %c0_110 = arith.constant 0 : index
    %c0_111 = arith.constant 0 : index
    %c1_112 = arith.constant 1 : index
    %c0_113 = arith.constant 0 : index
    %81 = tpu.strided_load %arg12[%c0_110, %c0_111, %c1_112, %c0_113] {strides = array<i32: 1, 2, 2, 1>} : memref<2x16x16x64xf32, #tpu.memory_space<vmem>>, vector<2x8x8x64xf32>
    %c0_114 = arith.constant 0 : index
    %c1_115 = arith.constant 1 : index
    %c0_116 = arith.constant 0 : index
    %c0_117 = arith.constant 0 : index
    %82 = tpu.strided_load %arg12[%c0_114, %c1_115, %c0_116, %c0_117] {strides = array<i32: 1, 2, 2, 1>} : memref<2x16x16x64xf32, #tpu.memory_space<vmem>>, vector<2x8x8x64xf32>
    %c0_118 = arith.constant 0 : index
    %c1_119 = arith.constant 1 : index
    %c1_120 = arith.constant 1 : index
    %c0_121 = arith.constant 0 : index
    %83 = tpu.strided_load %arg12[%c0_118, %c1_119, %c1_120, %c0_121] {strides = array<i32: 1, 2, 2, 1>} : memref<2x16x16x64xf32, #tpu.memory_space<vmem>>, vector<2x8x8x64xf32>
    %84 = arith.maximumf %80, %81 : vector<2x8x8x64xf32>
    %85 = arith.maximumf %82, %83 : vector<2x8x8x64xf32>
    %86 = arith.maximumf %84, %85 : vector<2x8x8x64xf32>
    %cst_122 = arith.constant 0.000000e+00 : f32
    %87 = vector.broadcast %cst_122 : f32 to vector<2x10x10x128xf32>
    %c0_123 = arith.constant 0 : index
    %c0_124 = arith.constant 0 : index
    %c0_125 = arith.constant 0 : index
    %c0_126 = arith.constant 0 : index
    %88 = vector.load %arg13[%c0_123, %c0_124, %c0_125, %c0_126] : memref<2x10x10x128xf32, #tpu.memory_space<vmem>>, vector<2x10x10x128xf32>
    tpu.vector_store %arg13[%c0_123, %c0_124, %c0_125, %c0_126], %87 {strides = array<i32>} : memref<2x10x10x128xf32, #tpu.memory_space<vmem>>, vector<2x10x10x128xf32>,
    %c0_127 = arith.constant 0 : index
    %c1_128 = arith.constant 1 : index
    %c1_129 = arith.constant 1 : index
    %c0_130 = arith.constant 0 : index
    %89 = vector.load %arg13[%c0_127, %c1_128, %c1_129, %c0_130] : memref<2x10x10x128xf32, #tpu.memory_space<vmem>>, vector<2x8x8x64xf32>
    tpu.vector_store %arg13[%c0_127, %c1_128, %c1_129, %c0_130], %86 {strides = array<i32>} : memref<2x10x10x128xf32, #tpu.memory_space<vmem>>, vector<2x8x8x64xf32>,
    %c0_131 = arith.constant 0 : index
    %c0_132 = arith.constant 0 : index
    %c0_133 = arith.constant 0 : index
    %c0_134 = arith.constant 0 : index
    %90 = vector.load %arg13[%c0_131, %c0_132, %c0_133, %c0_134] : memref<2x10x10x128xf32, #tpu.memory_space<vmem>>, vector<2x8x8x128xf32>
    %91 = vector.shape_cast %90 : vector<2x8x8x128xf32> to vector<128x128xf32>
    %92 = arith.truncf %91 : vector<128x128xf32> to vector<128x128xbf16>
    %c0_135 = arith.constant 0 : index
    %c0_136 = arith.constant 0 : index
    %c1_137 = arith.constant 1 : index
    %c0_138 = arith.constant 0 : index
    %93 = vector.load %arg13[%c0_135, %c0_136, %c1_137, %c0_138] : memref<2x10x10x128xf32, #tpu.memory_space<vmem>>, vector<2x8x8x128xf32>
    %94 = vector.shape_cast %93 : vector<2x8x8x128xf32> to vector<128x128xf32>
    %95 = arith.truncf %94 : vector<128x128xf32> to vector<128x128xbf16>
    %c0_139 = arith.constant 0 : index
    %c0_140 = arith.constant 0 : index
    %c2_141 = arith.constant 2 : index
    %c0_142 = arith.constant 0 : index
    %96 = vector.load %arg13[%c0_139, %c0_140, %c2_141, %c0_142] : memref<2x10x10x128xf32, #tpu.memory_space<vmem>>, vector<2x8x8x128xf32>
    %97 = vector.shape_cast %96 : vector<2x8x8x128xf32> to vector<128x128xf32>
    %98 = arith.truncf %97 : vector<128x128xf32> to vector<128x128xbf16>
    %c0_143 = arith.constant 0 : index
    %c1_144 = arith.constant 1 : index
    %c0_145 = arith.constant 0 : index
    %c0_146 = arith.constant 0 : index
    %99 = vector.load %arg13[%c0_143, %c1_144, %c0_145, %c0_146] : memref<2x10x10x128xf32, #tpu.memory_space<vmem>>, vector<2x8x8x128xf32>
    %100 = vector.shape_cast %99 : vector<2x8x8x128xf32> to vector<128x128xf32>
    %101 = arith.truncf %100 : vector<128x128xf32> to vector<128x128xbf16>
    %c0_147 = arith.constant 0 : index
    %c1_148 = arith.constant 1 : index
    %c1_149 = arith.constant 1 : index
    %c0_150 = arith.constant 0 : index
    %102 = vector.load %arg13[%c0_147, %c1_148, %c1_149, %c0_150] : memref<2x10x10x128xf32, #tpu.memory_space<vmem>>, vector<2x8x8x128xf32>
    %103 = vector.shape_cast %102 : vector<2x8x8x128xf32> to vector<128x128xf32>
    %104 = arith.truncf %103 : vector<128x128xf32> to vector<128x128xbf16>
    %c0_151 = arith.constant 0 : index
    %c1_152 = arith.constant 1 : index
    %c2_153 = arith.constant 2 : index
    %c0_154 = arith.constant 0 : index
    %105 = vector.load %arg13[%c0_151, %c1_152, %c2_153, %c0_154] : memref<2x10x10x128xf32, #tpu.memory_space<vmem>>, vector<2x8x8x128xf32>
    %106 = vector.shape_cast %105 : vector<2x8x8x128xf32> to vector<128x128xf32>
    %107 = arith.truncf %106 : vector<128x128xf32> to vector<128x128xbf16>
    %c0_155 = arith.constant 0 : index
    %c2_156 = arith.constant 2 : index
    %c0_157 = arith.constant 0 : index
    %c0_158 = arith.constant 0 : index
    %108 = vector.load %arg13[%c0_155, %c2_156, %c0_157, %c0_158] : memref<2x10x10x128xf32, #tpu.memory_space<vmem>>, vector<2x8x8x128xf32>
    %109 = vector.shape_cast %108 : vector<2x8x8x128xf32> to vector<128x128xf32>
    %110 = arith.truncf %109 : vector<128x128xf32> to vector<128x128xbf16>
    %c0_159 = arith.constant 0 : index
    %c2_160 = arith.constant 2 : index
    %c1_161 = arith.constant 1 : index
    %c0_162 = arith.constant 0 : index
    %111 = vector.load %arg13[%c0_159, %c2_160, %c1_161, %c0_162] : memref<2x10x10x128xf32, #tpu.memory_space<vmem>>, vector<2x8x8x128xf32>
    %112 = vector.shape_cast %111 : vector<2x8x8x128xf32> to vector<128x128xf32>
    %113 = arith.truncf %112 : vector<128x128xf32> to vector<128x128xbf16>
    %c0_163 = arith.constant 0 : index
    %c2_164 = arith.constant 2 : index
    %c2_165 = arith.constant 2 : index
    %c0_166 = arith.constant 0 : index
    %114 = vector.load %arg13[%c0_163, %c2_164, %c2_165, %c0_166] : memref<2x10x10x128xf32, #tpu.memory_space<vmem>>, vector<2x8x8x128xf32>
    %115 = vector.shape_cast %114 : vector<2x8x8x128xf32> to vector<128x128xf32>
    %116 = arith.truncf %115 : vector<128x128xf32> to vector<128x128xbf16>
    %117 = tpu.concatenate %92, %95, %98, %101, %104, %107, %110, %113, %116 in 1 : vector<128x128xbf16>, vector<128x128xbf16>, vector<128x128xbf16>, vector<128x128xbf16>, vector<128x128xbf16>, vector<128x128xbf16>, vector<128x128xbf16>, vector<128x128xbf16>, vector<128x128xbf16> -> vector<128x1152xbf16>
    %c0_167 = arith.constant 0 : index
    %c0_168 = arith.constant 0 : index
    %118 = vector.load %arg5[%c0_167, %c0_168] : memref<1152x128xbf16, #tpu.memory_space<vmem>>, vector<1152x128xbf16>
    %cst_169 = arith.constant dense<0.000000e+00> : vector<128x128xf32>
    %119 = tpu.matmul %117, %118, %cst_169 {dimension_numbers = #tpu.dot_dimension_numbers<[1], [0], [0], [1], [0, 0, 1, 1], [], []>} : vector<128x1152xbf16>, vector<1152x128xbf16>, vector<128x128xf32> -> vector<128x128xf32>
    %c0_170 = arith.constant 0 : index
    %c0_171 = arith.constant 0 : index
    %120 = vector.load %arg6[%c0_170, %c0_171] : memref<1x128xf32, #tpu.memory_space<vmem>>, vector<1x128xf32>
    %121 = vector.broadcast %120 : vector<1x128xf32> to vector<128x128xf32>
    %122 = arith.addf %119, %121 : vector<128x128xf32>
    %cst_172 = arith.constant 0.000000e+00 : f32
    %123 = vector.broadcast %cst_172 : f32 to vector<128x128xf32>
    %124 = arith.maximumf %122, %123 : vector<128x128xf32>
    %cst_173 = arith.constant 0.000000e+00 : f32
    %125 = vector.broadcast %cst_173 : f32 to vector<2x10x10x128xf32>
    %c0_174 = arith.constant 0 : index
    %c0_175 = arith.constant 0 : index
    %c0_176 = arith.constant 0 : index
    %c0_177 = arith.constant 0 : index
    %126 = vector.load %arg14[%c0_174, %c0_175, %c0_176, %c0_177] : memref<2x10x10x128xf32, #tpu.memory_space<vmem>>, vector<2x10x10x128xf32>
    tpu.vector_store %arg14[%c0_174, %c0_175, %c0_176, %c0_177], %125 {strides = array<i32>} : memref<2x10x10x128xf32, #tpu.memory_space<vmem>>, vector<2x10x10x128xf32>,
    %127 = vector.shape_cast %124 : vector<128x128xf32> to vector<2x8x8x128xf32>
    %c0_178 = arith.constant 0 : index
    %c1_179 = arith.constant 1 : index
    %c1_180 = arith.constant 1 : index
    %c0_181 = arith.constant 0 : index
    %128 = vector.load %arg14[%c0_178, %c1_179, %c1_180, %c0_181] : memref<2x10x10x128xf32, #tpu.memory_space<vmem>>, vector<2x8x8x128xf32>
    tpu.vector_store %arg14[%c0_178, %c1_179, %c1_180, %c0_181], %127 {strides = array<i32>} : memref<2x10x10x128xf32, #tpu.memory_space<vmem>>, vector<2x8x8x128xf32>,
    %c0_182 = arith.constant 0 : index
    %c0_183 = arith.constant 0 : index
    %c0_184 = arith.constant 0 : index
    %c0_185 = arith.constant 0 : index
    %129 = vector.load %arg14[%c0_182, %c0_183, %c0_184, %c0_185] : memref<2x10x10x128xf32, #tpu.memory_space<vmem>>, vector<2x8x8x128xf32>
    %130 = vector.shape_cast %129 : vector<2x8x8x128xf32> to vector<128x128xf32>
    %131 = arith.truncf %130 : vector<128x128xf32> to vector<128x128xbf16>
    %c0_186 = arith.constant 0 : index
    %c0_187 = arith.constant 0 : index
    %c1_188 = arith.constant 1 : index
    %c0_189 = arith.constant 0 : index
    %132 = vector.load %arg14[%c0_186, %c0_187, %c1_188, %c0_189] : memref<2x10x10x128xf32, #tpu.memory_space<vmem>>, vector<2x8x8x128xf32>
    %133 = vector.shape_cast %132 : vector<2x8x8x128xf32> to vector<128x128xf32>
    %134 = arith.truncf %133 : vector<128x128xf32> to vector<128x128xbf16>
    %c0_190 = arith.constant 0 : index
    %c0_191 = arith.constant 0 : index
    %c2_192 = arith.constant 2 : index
    %c0_193 = arith.constant 0 : index
    %135 = vector.load %arg14[%c0_190, %c0_191, %c2_192, %c0_193] : memref<2x10x10x128xf32, #tpu.memory_space<vmem>>, vector<2x8x8x128xf32>
    %136 = vector.shape_cast %135 : vector<2x8x8x128xf32> to vector<128x128xf32>
    %137 = arith.truncf %136 : vector<128x128xf32> to vector<128x128xbf16>
    %c0_194 = arith.constant 0 : index
    %c1_195 = arith.constant 1 : index
    %c0_196 = arith.constant 0 : index
    %c0_197 = arith.constant 0 : index
    %138 = vector.load %arg14[%c0_194, %c1_195, %c0_196, %c0_197] : memref<2x10x10x128xf32, #tpu.memory_space<vmem>>, vector<2x8x8x128xf32>
    %139 = vector.shape_cast %138 : vector<2x8x8x128xf32> to vector<128x128xf32>
    %140 = arith.truncf %139 : vector<128x128xf32> to vector<128x128xbf16>
    %c0_198 = arith.constant 0 : index
    %c1_199 = arith.constant 1 : index
    %c1_200 = arith.constant 1 : index
    %c0_201 = arith.constant 0 : index
    %141 = vector.load %arg14[%c0_198, %c1_199, %c1_200, %c0_201] : memref<2x10x10x128xf32, #tpu.memory_space<vmem>>, vector<2x8x8x128xf32>
    %142 = vector.shape_cast %141 : vector<2x8x8x128xf32> to vector<128x128xf32>
    %143 = arith.truncf %142 : vector<128x128xf32> to vector<128x128xbf16>
    %c0_202 = arith.constant 0 : index
    %c1_203 = arith.constant 1 : index
    %c2_204 = arith.constant 2 : index
    %c0_205 = arith.constant 0 : index
    %144 = vector.load %arg14[%c0_202, %c1_203, %c2_204, %c0_205] : memref<2x10x10x128xf32, #tpu.memory_space<vmem>>, vector<2x8x8x128xf32>
    %145 = vector.shape_cast %144 : vector<2x8x8x128xf32> to vector<128x128xf32>
    %146 = arith.truncf %145 : vector<128x128xf32> to vector<128x128xbf16>
    %c0_206 = arith.constant 0 : index
    %c2_207 = arith.constant 2 : index
    %c0_208 = arith.constant 0 : index
    %c0_209 = arith.constant 0 : index
    %147 = vector.load %arg14[%c0_206, %c2_207, %c0_208, %c0_209] : memref<2x10x10x128xf32, #tpu.memory_space<vmem>>, vector<2x8x8x128xf32>
    %148 = vector.shape_cast %147 : vector<2x8x8x128xf32> to vector<128x128xf32>
    %149 = arith.truncf %148 : vector<128x128xf32> to vector<128x128xbf16>
    %c0_210 = arith.constant 0 : index
    %c2_211 = arith.constant 2 : index
    %c1_212 = arith.constant 1 : index
    %c0_213 = arith.constant 0 : index
    %150 = vector.load %arg14[%c0_210, %c2_211, %c1_212, %c0_213] : memref<2x10x10x128xf32, #tpu.memory_space<vmem>>, vector<2x8x8x128xf32>
    %151 = vector.shape_cast %150 : vector<2x8x8x128xf32> to vector<128x128xf32>
    %152 = arith.truncf %151 : vector<128x128xf32> to vector<128x128xbf16>
    %c0_214 = arith.constant 0 : index
    %c2_215 = arith.constant 2 : index
    %c2_216 = arith.constant 2 : index
    %c0_217 = arith.constant 0 : index
    %153 = vector.load %arg14[%c0_214, %c2_215, %c2_216, %c0_217] : memref<2x10x10x128xf32, #tpu.memory_space<vmem>>, vector<2x8x8x128xf32>
    %154 = vector.shape_cast %153 : vector<2x8x8x128xf32> to vector<128x128xf32>
    %155 = arith.truncf %154 : vector<128x128xf32> to vector<128x128xbf16>
    %156 = tpu.concatenate %131, %134, %137, %140, %143, %146, %149, %152, %155 in 1 : vector<128x128xbf16>, vector<128x128xbf16>, vector<128x128xbf16>, vector<128x128xbf16>, vector<128x128xbf16>, vector<128x128xbf16>, vector<128x128xbf16>, vector<128x128xbf16>, vector<128x128xbf16> -> vector<128x1152xbf16>
    %c0_218 = arith.constant 0 : index
    %c0_219 = arith.constant 0 : index
    %157 = vector.load %arg7[%c0_218, %c0_219] : memref<1152x128xbf16, #tpu.memory_space<vmem>>, vector<1152x128xbf16>
    %cst_220 = arith.constant dense<0.000000e+00> : vector<128x128xf32>
    %158 = tpu.matmul %156, %157, %cst_220 {dimension_numbers = #tpu.dot_dimension_numbers<[1], [0], [0], [1], [0, 0, 1, 1], [], []>} : vector<128x1152xbf16>, vector<1152x128xbf16>, vector<128x128xf32> -> vector<128x128xf32>
    %c0_221 = arith.constant 0 : index
    %c0_222 = arith.constant 0 : index
    %159 = vector.load %arg8[%c0_221, %c0_222] : memref<1x128xf32, #tpu.memory_space<vmem>>, vector<1x128xf32>
    %160 = vector.broadcast %159 : vector<1x128xf32> to vector<128x128xf32>
    %161 = arith.addf %158, %160 : vector<128x128xf32>
    %cst_223 = arith.constant 0.000000e+00 : f32
    %162 = vector.broadcast %cst_223 : f32 to vector<128x128xf32>
    %163 = arith.maximumf %161, %162 : vector<128x128xf32>
    %164 = vector.shape_cast %163 : vector<128x128xf32> to vector<2x8x8x128xf32>
    %c0_224 = arith.constant 0 : index
    %c0_225 = arith.constant 0 : index
    %c0_226 = arith.constant 0 : index
    %c0_227 = arith.constant 0 : index
    %165 = vector.load %arg9[%c0_224, %c0_225, %c0_226, %c0_227] : memref<2x8x8x128xf32, #tpu.memory_space<vmem>>, vector<2x8x8x128xf32>
    tpu.vector_store %arg9[%c0_224, %c0_225, %c0_226, %c0_227], %164 {strides = array<i32>} : memref<2x8x8x128xf32, #tpu.memory_space<vmem>>, vector<2x8x8x128xf32>,
    return
  }
}

</mosaic_0001>

<llo_original>
// kernel: vgg16_head_forward.1
$region0: #{vgg16_head_forward.1}
  #allocation0 [shape = 'u32[]', space=smem, size = 0x4, offset = 0x4, fixed_abs, tag = 'smem constant byte address 0x4 - core index']
  #allocation1 [shape = 'u32[144,128]{1,0:T(1,128)}', space=vmem, size = 0x12000, scoped, tag = 'internal scratch']
  #allocation2 [shape = 'f32[2,18,18,128]{3,2,1,0:T(8,128)}', space=vmem, size = 0x6c000, scoped, tag = 'scratch operand']
  #allocation3 [shape = 'f32[2,18,18,128]{3,2,1,0:T(8,128)}', space=vmem, size = 0x6c000, scoped, tag = 'scratch operand']
  #allocation4 [shape = 'f32[2,16,16,64]{3,2,1,0:T(8,128)}', space=vmem, size = 0x40000, scoped, tag = 'scratch operand']
  #allocation5 [shape = 'f32[2,10,10,128]{3,2,1,0:T(8,128)}', space=vmem, size = 0x28000, scoped, tag = 'scratch operand']
  #allocation6 [shape = 'f32[2,10,10,128]{3,2,1,0:T(8,128)}', space=vmem, size = 0x28000, scoped, tag = 'scratch operand']
  %s0 = inlined_call_operand.vmem [shape: f32[2,16,16,3], index: 0, kind: input, shape index: {}]
  %s1 = inlined_call_operand.vmem [shape: bf16[1152,64], index: 1, kind: input, shape index: {}]
  %s2 = inlined_call_operand.vmem [shape: f32[1,64], index: 2, kind: input, shape index: {}]
  %s3 = inlined_call_operand.vmem [shape: bf16[1152,64], index: 3, kind: input, shape index: {}]
  %s4 = inlined_call_operand.vmem [shape: f32[1,64], index: 4, kind: input, shape index: {}]
  %s5 = inlined_call_operand.vmem [shape: bf16[1152,128], index: 5, kind: input, shape index: {}]
  %s6 = inlined_call_operand.vmem [shape: f32[1,128], index: 6, kind: input, shape index: {}]
  %s7 = inlined_call_operand.vmem [shape: bf16[1152,128], index: 7, kind: input, shape index: {}]
  %s8 = inlined_call_operand.vmem [shape: f32[1,128], index: 8, kind: input, shape index: {}]
  %s9 = inlined_call_operand.hbm [shape: f32[2,8,8,128], index: 9, kind: output, shape index: {}]
  %s10 = sld [smem:[#allocation0]]
  $region46: #{vgg16_head_forward.1} parent=0
    _
  %s12 = ssub.s32 1, %s10
  %s13 = scalar_select 0, %s12, %s10
  $region1: #{vgg16_head_forward.1} parent=0
    #allocation7 [shape = 'u8[65536]{0}', space=vmem, size = 0x10000, scoped, tag = 'output window, operand 0, single buffered']
    #allocation8 [shape = 's32[1]{0}', space=sflag, size = 0x4, scoped, tag = 'scoped memory for vgg16_head_forward.1']
    %14 = vsyncpa [#allocation8], 0
    // Predicated region
    $region2: #{vgg16_head_forward.1} parent=1 // pred_check
      _
    $region3: #{vgg16_head_forward.1} parent=1 // pred_check_branch
      %16 = sbr.rel (0) target = $region5
    $region4: #{vgg16_head_forward.1} parent=1 // pred_region
      _
    $region5: #{vgg16_head_forward.1} parent=1 // pred_fallthru
      _
    // Predicated region
    $region6: #{vgg16_head_forward.1} parent=1 // pred_check
      _
    $region7: #{vgg16_head_forward.1} parent=1 // pred_check_branch
      %18 = sbr.rel (0) target = $region9
    $region8: #{vgg16_head_forward.1} parent=1 // pred_region
      _
    $region9: #{vgg16_head_forward.1} parent=1 // pred_fallthru
      _
    // Predicated region
    $region10: #{vgg16_head_forward.1} parent=1 // pred_check
      _
    $region11: #{vgg16_head_forward.1} parent=1 // pred_check_branch
      %20 = sbr.rel (0) target = $region13
    $region12: #{vgg16_head_forward.1} parent=1 // pred_region
      _
    $region13: #{vgg16_head_forward.1} parent=1 // pred_fallthru
      _
    // Predicated region
    $region14: #{vgg16_head_forward.1} parent=1 // pred_check
      _
    $region15: #{vgg16_head_forward.1} parent=1 // pred_check_branch
      %22 = sbr.rel (0) target = $region17
    $region16: #{vgg16_head_forward.1} parent=1 // pred_region
      _
    $region17: #{vgg16_head_forward.1} parent=1 // pred_fallthru
      _
    // Predicated region
    $region18: #{vgg16_head_forward.1} parent=1 // pred_check
      _
    $region19: #{vgg16_head_forward.1} parent=1 // pred_check_branch
      %24 = sbr.rel (0) target = $region21
    $region20: #{vgg16_head_forward.1} parent=1 // pred_region
      _
    $region21: #{vgg16_head_forward.1} parent=1 // pred_fallthru
      _
    // Predicated region
    $region22: #{vgg16_head_forward.1} parent=1 // pred_check
      _
    $region23: #{vgg16_head_forward.1} parent=1 // pred_check_branch
      %26 = sbr.rel (0) target = $region25
    $region24: #{vgg16_head_forward.1} parent=1 // pred_region
      _
    $region25: #{vgg16_head_forward.1} parent=1 // pred_fallthru
      _
    // Predicated region
    $region26: #{vgg16_head_forward.1} parent=1 // pred_check
      _
    $region27: #{vgg16_head_forward.1} parent=1 // pred_check_branch
      %28 = sbr.rel (0) target = $region29
    $region28: #{vgg16_head_forward.1} parent=1 // pred_region
      _
    $region29: #{vgg16_head_forward.1} parent=1 // pred_fallthru
      _
    // Predicated region
    $region30: #{vgg16_head_forward.1} parent=1 // pred_check
      _
    $region31: #{vgg16_head_forward.1} parent=1 // pred_check_branch
      %30 = sbr.rel (0) target = $region33
    $region32: #{vgg16_head_forward.1} parent=1 // pred_region
      _
    $region33: #{vgg16_head_forward.1} parent=1 // pred_fallthru
      _
    // Predicated region
    $region34: #{vgg16_head_forward.1} parent=1 // pred_check
      _
    $region35: #{vgg16_head_forward.1} parent=1 // pred_check_branch
      %32 = sbr.rel (0) target = $region37
    $region36: #{vgg16_head_forward.1} parent=1 // pred_region
      _
    $region37: #{vgg16_head_forward.1} parent=1 // pred_fallthru
      _
    %34 = vst [vmem:[#allocation2] sm:$0xff] 0.0
    %35 = vst [vmem:[#allocation2 + $0x8] sm:$0xff] 0.0
    %36 = vst [vmem:[#allocation2 + $0x10] sm:$0x3] 0.0
    %37 = vst [vmem:[#allocation2 + $0x18] sm:$0xff] 0.0
    %38 = vst [vmem:[#allocation2 + $0x20] sm:$0xff] 0.0
    %39 = vst [vmem:[#allocation2 + $0x28] sm:$0x3] 0.0
    %40 = vst [vmem:[#allocation2 + $0x30] sm:$0xff] 0.0
    %41 = vst [vmem:[#allocation2 + $0x38] sm:$0xff] 0.0
    %42 = vst [vmem:[#allocation2 + $0x40] sm:$0x3] 0.0
    %43 = vst [vmem:[#allocation2 + $0x48] sm:$0xff] 0.0
    %44 = vst [vmem:[#allocation2 + $0x50] sm:$0xff] 0.0
    %45 = vst [vmem:[#allocation2 + $0x58] sm:$0x3] 0.0
    %46 = vst [vmem:[#allocation2 + $0x60] sm:$0xff] 0.0
    %47 = vst [vmem:[#allocation2 + $0x68] sm:$0xff] 0.0
    %48 = vst [vmem:[#allocation2 + $0x70] sm:$0x3] 0.0
    %49 = vst [vmem:[#allocation2 + $0x78] sm:$0xff] 0.0
    %50 = vst [vmem:[#allocation2 + $0x80] sm:$0xff] 0.0
    %51 = vst [vmem:[#allocation2 + $0x88] sm:$0x3] 0.0
    %52 = vst [vmem:[#allocation2 + $0x90] sm:$0xff] 0.0
    %53 = vst [vmem:[#allocation2 + $0x98] sm:$0xff] 0.0
    %54 = vst [vmem:[#allocation2 + $0xa0] sm:$0x3] 0.0
    %55 = vst [vmem:[#allocation2 + $0xa8] sm:$0xff] 0.0
    %56 = vst [vmem:[#allocation2 + $0xb0] sm:$0xff] 0.0
    %57 = vst [vmem:[#allocation2 + $0xb8] sm:$0x3] 0.0
    %58 = vst [vmem:[#allocation2 + $0xc0] sm:$0xff] 0.0
    %59 = vst [vmem:[#allocation2 + $0xc8] sm:$0xff] 0.0
    %60 = vst [vmem:[#allocation2 + $0xd0] sm:$0x3] 0.0
    %61 = vst [vmem:[#allocation2 + $0xd8] sm:$0xff] 0.0
    %62 = vst [vmem:[#allocation2 + $0xe0] sm:$0xff] 0.0
    %63 = vst [vmem:[#allocation2 + $0xe8] sm:$0x3] 0.0
    %64 = vst [vmem:[#allocation2 + $0xf0] sm:$0xff] 0.0
    %65 = vst [vmem:[#allocation2 + $0xf8] sm:$0xff] 0.0
    %66 = vst [vmem:[#allocation2 + $0x100] sm:$0x3] 0.0
    %67 = vst [vmem:[#allocation2 + $0x108] sm:$0xff] 0.0
    %68 = vst [vmem:[#allocation2 + $0x110] sm:$0xff] 0.0
    %69 = vst [vmem:[#allocation2 + $0x118] sm:$0x3] 0.0
    %70 = vst [vmem:[#allocation2 + $0x120] sm:$0xff] 0.0
    %71 = vst [vmem:[#allocation2 + $0x128] sm:$0xff] 0.0
    %72 = vst [vmem:[#allocation2 + $0x130] sm:$0x3] 0.0
    %73 = vst [vmem:[#allocation2 + $0x138] sm:$0xff] 0.0
    %74 = vst [vmem:[#allocation2 + $0x140] sm:$0xff] 0.0
    %75 = vst [vmem:[#allocation2 + $0x148] sm:$0x3] 0.0
    %76 = vst [vmem:[#allocation2 + $0x150] sm:$0xff] 0.0
    %77 = vst [vmem:[#allocation2 + $0x158] sm:$0xff] 0.0
    %78 = vst [vmem:[#allocation2 + $0x160] sm:$0x3] 0.0
    %79 = vst [vmem:[#allocation2 + $0x168] sm:$0xff] 0.0
    %80 = vst [vmem:[#allocation2 + $0x170] sm:$0xff] 0.0
    %81 = vst [vmem:[#allocation2 + $0x178] sm:$0x3] 0.0
    %82 = vst [vmem:[#allocation2 + $0x180] sm:$0xff] 0.0
    %83 = vst [vmem:[#allocation2 + $0x188] sm:$0xff] 0.0
    %84 = vst [vmem:[#allocation2 + $0x190] sm:$0x3] 0.0
    %85 = vst [vmem:[#allocation2 + $0x198] sm:$0xff] 0.0
    %86 = vst [vmem:[#allocation2 + $0x1a0] sm:$0xff] 0.0
    %87 = vst [vmem:[#allocation2 + $0x1a8] sm:$0x3] 0.0
    %88 = vst [vmem:[#allocation2 + $0x1b0] sm:$0xff] 0.0
    %89 = vst [vmem:[#allocation2 + $0x1b8] sm:$0xff] 0.0
    %90 = vst [vmem:[#allocation2 + $0x1c0] sm:$0x3] 0.0
    %91 = vst [vmem:[#allocation2 + $0x1c8] sm:$0xff] 0.0
    %92 = vst [vmem:[#allocation2 + $0x1d0] sm:$0xff] 0.0
    %93 = vst [vmem:[#allocation2 + $0x1d8] sm:$0x3] 0.0
    %94 = vst [vmem:[#allocation2 + $0x1e0] sm:$0xff] 0.0
    %95 = vst [vmem:[#allocation2 + $0x1e8] sm:$0xff] 0.0
    %96 = vst [vmem:[#allocation2 + $0x1f0] sm:$0x3] 0.0
    %97 = vst [vmem:[#allocation2 + $0x1f8] sm:$0xff] 0.0
    %98 = vst [vmem:[#allocation2 + $0x200] sm:$0xff] 0.0
    %99 = vst [vmem:[#allocation2 + $0x208] sm:$0x3] 0.0
    %100 = vst [vmem:[#allocation2 + $0x210] sm:$0xff] 0.0
    %101 = vst [vmem:[#allocation2 + $0x218] sm:$0xff] 0.0
    %102 = vst [vmem:[#allocation2 + $0x220] sm:$0x3] 0.0
    %103 = vst [vmem:[#allocation2 + $0x228] sm:$0xff] 0.0
    %104 = vst [vmem:[#allocation2 + $0x230] sm:$0xff] 0.0
    %105 = vst [vmem:[#allocation2 + $0x238] sm:$0x3] 0.0
    %106 = vst [vmem:[#allocation2 + $0x240] sm:$0xff] 0.0
    %107 = vst [vmem:[#allocation2 + $0x248] sm:$0xff] 0.0
    %108 = vst [vmem:[#allocation2 + $0x250] sm:$0x3] 0.0
    %109 = vst [vmem:[#allocation2 + $0x258] sm:$0xff] 0.0
    %110 = vst [vmem:[#allocation2 + $0x260] sm:$0xff] 0.0
    %111 = vst [vmem:[#allocation2 + $0x268] sm:$0x3] 0.0
    %112 = vst [vmem:[#allocation2 + $0x270] sm:$0xff] 0.0
    %113 = vst [vmem:[#allocation2 + $0x278] sm:$0xff] 0.0
    %114 = vst [vmem:[#allocation2 + $0x280] sm:$0x3] 0.0
    %115 = vst [vmem:[#allocation2 + $0x288] sm:$0xff] 0.0
    %116 = vst [vmem:[#allocation2 + $0x290] sm:$0xff] 0.0
    %117 = vst [vmem:[#allocation2 + $0x298] sm:$0x3] 0.0
    %118 = vst [vmem:[#allocation2 + $0x2a0] sm:$0xff] 0.0
    %119 = vst [vmem:[#allocation2 + $0x2a8] sm:$0xff] 0.0
    %120 = vst [vmem:[#allocation2 + $0x2b0] sm:$0x3] 0.0
    %121 = vst [vmem:[#allocation2 + $0x2b8] sm:$0xff] 0.0
    %122 = vst [vmem:[#allocation2 + $0x2c0] sm:$0xff] 0.0
    %123 = vst [vmem:[#allocation2 + $0x2c8] sm:$0x3] 0.0
    %124 = vst [vmem:[#allocation2 + $0x2d0] sm:$0xff] 0.0
    %125 = vst [vmem:[#allocation2 + $0x2d8] sm:$0xff] 0.0
    %126 = vst [vmem:[#allocation2 + $0x2e0] sm:$0x3] 0.0
    %127 = vst [vmem:[#allocation2 + $0x2e8] sm:$0xff] 0.0
    %128 = vst [vmem:[#allocation2 + $0x2f0] sm:$0xff] 0.0
    %129 = vst [vmem:[#allocation2 + $0x2f8] sm:$0x3] 0.0
    %130 = vst [vmem:[#allocation2 + $0x300] sm:$0xff] 0.0
    %131 = vst [vmem:[#allocation2 + $0x308] sm:$0xff] 0.0
    %132 = vst [vmem:[#allocation2 + $0x310] sm:$0x3] 0.0
    %133 = vst [vmem:[#allocation2 + $0x318] sm:$0xff] 0.0
    %134 = vst [vmem:[#allocation2 + $0x320] sm:$0xff] 0.0
    %135 = vst [vmem:[#allocation2 + $0x328] sm:$0x3] 0.0
    %136 = vst [vmem:[#allocation2 + $0x330] sm:$0xff] 0.0
    %137 = vst [vmem:[#allocation2 + $0x338] sm:$0xff] 0.0
    %138 = vst [vmem:[#allocation2 + $0x340] sm:$0x3] 0.0
    %139 = vst [vmem:[#allocation2 + $0x348] sm:$0xff] 0.0
    %140 = vst [vmem:[#allocation2 + $0x350] sm:$0xff] 0.0
    %141 = vst [vmem:[#allocation2 + $0x358] sm:$0x3] 0.0
    %v142 = vld [vmem:[%s0] sm:$0xff]
    %v143 = vld [vmem:[%s0 + $0x8] sm:$0xff]
    %v144 = vld [vmem:[%s0 + $0x10] sm:$0xff]
    %v145 = vld [vmem:[%s0 + $0x18] sm:$0xff]
    %v146 = vld [vmem:[%s0 + $0x20] sm:$0xff]
    %v147 = vld [vmem:[%s0 + $0x28] sm:$0xff]
    %v148 = vld [vmem:[%s0 + $0x30] sm:$0xff]
    %v149 = vld [vmem:[%s0 + $0x38] sm:$0xff]
    %v150 = vld [vmem:[%s0 + $0x40] sm:$0xff]
    %v151 = vld [vmem:[%s0 + $0x48] sm:$0xff]
    %v152 = vld [vmem:[%s0 + $0x50] sm:$0xff]
    %v153 = vld [vmem:[%s0 + $0x58] sm:$0xff]
    %v154 = vld [vmem:[%s0 + $0x60] sm:$0xff]
    %v155 = vld [vmem:[%s0 + $0x68] sm:$0xff]
    %v156 = vld [vmem:[%s0 + $0x70] sm:$0xff]
    %v157 = vld [vmem:[%s0 + $0x78] sm:$0xff]
    %v158 = vld [vmem:[%s0 + $0x80] sm:$0xff]
    %v159 = vld [vmem:[%s0 + $0x88] sm:$0xff]
    %v160 = vld [vmem:[%s0 + $0x90] sm:$0xff]
    %v161 = vld [vmem:[%s0 + $0x98] sm:$0xff]
    %v162 = vld [vmem:[%s0 + $0xa0] sm:$0xff]
    %v163 = vld [vmem:[%s0 + $0xa8] sm:$0xff]
    %v164 = vld [vmem:[%s0 + $0xb0] sm:$0xff]
    %v165 = vld [vmem:[%s0 + $0xb8] sm:$0xff]
    %v166 = vld [vmem:[%s0 + $0xc0] sm:$0xff]
    %v167 = vld [vmem:[%s0 + $0xc8] sm:$0xff]
    %v168 = vld [vmem:[%s0 + $0xd0] sm:$0xff]
    %v169 = vld [vmem:[%s0 + $0xd8] sm:$0xff]
    %v170 = vld [vmem:[%s0 + $0xe0] sm:$0xff]
    %v171 = vld [vmem:[%s0 + $0xe8] sm:$0xff]
    %v172 = vld [vmem:[%s0 + $0xf0] sm:$0xff]
    %v173 = vld [vmem:[%s0 + $0xf8] sm:$0xff]
    %v174 = vld [vmem:[%s0 + $0x100] sm:$0xff]
    %v175 = vld [vmem:[%s0 + $0x108] sm:$0xff]
    %v176 = vld [vmem:[%s0 + $0x110] sm:$0xff]
    %v177 = vld [vmem:[%s0 + $0x118] sm:$0xff]
    %v178 = vld [vmem:[%s0 + $0x120] sm:$0xff]
    %v179 = vld [vmem:[%s0 + $0x128] sm:$0xff]
    %v180 = vld [vmem:[%s0 + $0x130] sm:$0xff]
    %v181 = vld [vmem:[%s0 + $0x138] sm:$0xff]
    %v182 = vld [vmem:[%s0 + $0x140] sm:$0xff]
    %v183 = vld [vmem:[%s0 + $0x148] sm:$0xff]
    %v184 = vld [vmem:[%s0 + $0x150] sm:$0xff]
    %v185 = vld [vmem:[%s0 + $0x158] sm:$0xff]
    %v186 = vld [vmem:[%s0 + $0x160] sm:$0xff]
    %v187 = vld [vmem:[%s0 + $0x168] sm:$0xff]
    %v188 = vld [vmem:[%s0 + $0x170] sm:$0xff]
    %v189 = vld [vmem:[%s0 + $0x178] sm:$0xff]
    %v190 = vld [vmem:[%s0 + $0x180] sm:$0xff]
    %v191 = vld [vmem:[%s0 + $0x188] sm:$0xff]
    %v192 = vld [vmem:[%s0 + $0x190] sm:$0xff]
    %v193 = vld [vmem:[%s0 + $0x198] sm:$0xff]
    %v194 = vld [vmem:[%s0 + $0x1a0] sm:$0xff]
    %v195 = vld [vmem:[%s0 + $0x1a8] sm:$0xff]
    %v196 = vld [vmem:[%s0 + $0x1b0] sm:$0xff]
    %v197 = vld [vmem:[%s0 + $0x1b8] sm:$0xff]
    %v198 = vld [vmem:[%s0 + $0x1c0] sm:$0xff]
    %v199 = vld [vmem:[%s0 + $0x1c8] sm:$0xff]
    %v200 = vld [vmem:[%s0 + $0x1d0] sm:$0xff]
    %v201 = vld [vmem:[%s0 + $0x1d8] sm:$0xff]
    %v202 = vld [vmem:[%s0 + $0x1e0] sm:$0xff]
    %v203 = vld [vmem:[%s0 + $0x1e8] sm:$0xff]
    %v204 = vld [vmem:[%s0 + $0x1f0] sm:$0xff]
    %v205 = vld [vmem:[%s0 + $0x1f8] sm:$0xff]
    %s206 = scalar_lea.vmem [#allocation2], 24
    %vm207 = vcmask 23552
    %208 = vst.msk [vmem:[%s206 + $0x1] sm:$0xff] %vm207, %v142
    %209 = vst.msk [vmem:[%s206 + $0x9] sm:$0xff] %vm207, %v143
    %210 = vst.msk [vmem:[%s206 + $0x19] sm:$0xff] %vm207, %v144
    %211 = vst.msk [vmem:[%s206 + $0x21] sm:$0xff] %vm207, %v145
    %212 = vst.msk [vmem:[%s206 + $0x31] sm:$0xff] %vm207, %v146
    %213 = vst.msk [vmem:[%s206 + $0x39] sm:$0xff] %vm207, %v147
    %214 = vst.msk [vmem:[%s206 + $0x49] sm:$0xff] %vm207, %v148
    %215 = vst.msk [vmem:[%s206 + $0x51] sm:$0xff] %vm207, %v149
    %216 = vst.msk [vmem:[%s206 + $0x61] sm:$0xff] %vm207, %v150
    %217 = vst.msk [vmem:[%s206 + $0x69] sm:$0xff] %vm207, %v151
    %218 = vst.msk [vmem:[%s206 + $0x79] sm:$0xff] %vm207, %v152
    %219 = vst.msk [vmem:[%s206 + $0x81] sm:$0xff] %vm207, %v153
    %220 = vst.msk [vmem:[%s206 + $0x91] sm:$0xff] %vm207, %v154
    %221 = vst.msk [vmem:[%s206 + $0x99] sm:$0xff] %vm207, %v155
    %222 = vst.msk [vmem:[%s206 + $0xa9] sm:$0xff] %vm207, %v156
    %223 = vst.msk [vmem:[%s206 + $0xb1] sm:$0xff] %vm207, %v157
    %224 = vst.msk [vmem:[%s206 + $0xc1] sm:$0xff] %vm207, %v158
    %225 = vst.msk [vmem:[%s206 + $0xc9] sm:$0xff] %vm207, %v159
    %226 = vst.msk [vmem:[%s206 + $0xd9] sm:$0xff] %vm207, %v160
    %227 = vst.msk [vmem:[%s206 + $0xe1] sm:$0xff] %vm207, %v161
    %228 = vst.msk [vmem:[%s206 + $0xf1] sm:$0xff] %vm207, %v162
    %229 = vst.msk [vmem:[%s206 + $0xf9] sm:$0xff] %vm207, %v163
    %230 = vst.msk [vmem:[%s206 + $0x109] sm:$0xff] %vm207, %v164
    %231 = vst.msk [vmem:[%s206 + $0x111] sm:$0xff] %vm207, %v165
    %232 = vst.msk [vmem:[%s206 + $0x121] sm:$0xff] %vm207, %v166
    %233 = vst.msk [vmem:[%s206 + $0x129] sm:$0xff] %vm207, %v167
    %234 = vst.msk [vmem:[%s206 + $0x139] sm:$0xff] %vm207, %v168
    %235 = vst.msk [vmem:[%s206 + $0x141] sm:$0xff] %vm207, %v169
    %236 = vst.msk [vmem:[%s206 + $0x151] sm:$0xff] %vm207, %v170
    %237 = vst.msk [vmem:[%s206 + $0x159] sm:$0xff] %vm207, %v171
    %238 = vst.msk [vmem:[%s206 + $0x169] sm:$0xff] %vm207, %v172
    %239 = vst.msk [vmem:[%s206 + $0x171] sm:$0xff] %vm207, %v173
    %240 = vst.msk [vmem:[%s206 + $0x1b1] sm:$0xff] %vm207, %v174
    %241 = vst.msk [vmem:[%s206 + $0x1b9] sm:$0xff] %vm207, %v175
    %242 = vst.msk [vmem:[%s206 + $0x1c9] sm:$0xff] %vm207, %v176
    %243 = vst.msk [vmem:[%s206 + $0x1d1] sm:$0xff] %vm207, %v177
    %244 = vst.msk [vmem:[%s206 + $0x1e1] sm:$0xff] %vm207, %v178
    %245 = vst.msk [vmem:[%s206 + $0x1e9] sm:$0xff] %vm207, %v179
    %246 = vst.msk [vmem:[%s206 + $0x1f9] sm:$0xff] %vm207, %v180
    %247 = vst.msk [vmem:[%s206 + $0x201] sm:$0xff] %vm207, %v181
    %248 = vst.msk [vmem:[%s206 + $0x211] sm:$0xff] %vm207, %v182
    %249 = vst.msk [vmem:[%s206 + $0x219] sm:$0xff] %vm207, %v183
    %250 = vst.msk [vmem:[%s206 + $0x229] sm:$0xff] %vm207, %v184
    %251 = vst.msk [vmem:[%s206 + $0x231] sm:$0xff] %vm207, %v185
    %252 = vst.msk [vmem:[%s206 + $0x241] sm:$0xff] %vm207, %v186
    %253 = vst.msk [vmem:[%s206 + $0x249] sm:$0xff] %vm207, %v187
    %254 = vst.msk [vmem:[%s206 + $0x259] sm:$0xff] %vm207, %v188
    %255 = vst.msk [vmem:[%s206 + $0x261] sm:$0xff] %vm207, %v189
    %256 = vst.msk [vmem:[%s206 + $0x271] sm:$0xff] %vm207, %v190
    %257 = vst.msk [vmem:[%s206 + $0x279] sm:$0xff] %vm207, %v191
    %258 = vst.msk [vmem:[%s206 + $0x289] sm:$0xff] %vm207, %v192
    %259 = vst.msk [vmem:[%s206 + $0x291] sm:$0xff] %vm207, %v193
    %260 = vst.msk [vmem:[%s206 + $0x2a1] sm:$0xff] %vm207, %v194
    %261 = vst.msk [vmem:[%s206 + $0x2a9] sm:$0xff] %vm207, %v195
    %262 = vst.msk [vmem:[%s206 + $0x2b9] sm:$0xff] %vm207, %v196
    %263 = vst.msk [vmem:[%s206 + $0x2c1] sm:$0xff] %vm207, %v197
    %264 = vst.msk [vmem:[%s206 + $0x2d1] sm:$0xff] %vm207, %v198
    %265 = vst.msk [vmem:[%s206 + $0x2d9] sm:$0xff] %vm207, %v199
    %266 = vst.msk [vmem:[%s206 + $0x2e9] sm:$0xff] %vm207, %v200
    %267 = vst.msk [vmem:[%s206 + $0x2f1] sm:$0xff] %vm207, %v201
    %268 = vst.msk [vmem:[%s206 + $0x301] sm:$0xff] %vm207, %v202
    %269 = vst.msk [vmem:[%s206 + $0x309] sm:$0xff] %vm207, %v203
    %270 = vst.msk [vmem:[%s206 + $0x319] sm:$0xff] %vm207, %v204
    %271 = vst.msk [vmem:[%s206 + $0x321] sm:$0xff] %vm207, %v205
    %v272 = vld [vmem:[#allocation2] sm:$0xff]
    %v273 = vld [vmem:[#allocation2 + $0x8] sm:$0xff]
    %v274 = vld [vmem:[#allocation2 + $0x18] sm:$0xff]
    %v275 = vld [vmem:[#allocation2 + $0x20] sm:$0xff]
    %v276 = vld [vmem:[#allocation2 + $0x30] sm:$0xff]
    %v277 = vld [vmem:[#allocation2 + $0x38] sm:$0xff]
    %v278 = vld [vmem:[#allocation2 + $0x48] sm:$0xff]
    %v279 = vld [vmem:[#allocation2 + $0x50] sm:$0xff]
    %v280 = vld [vmem:[#allocation2 + $0x60] sm:$0xff]
    %v281 = vld [vmem:[#allocation2 + $0x68] sm:$0xff]
    %v282 = vld [vmem:[#allocation2 + $0x78] sm:$0xff]
    %v283 = vld [vmem:[#allocation2 + $0x80] sm:$0xff]
    %v284 = vld [vmem:[#allocation2 + $0x90] sm:$0xff]
    %v285 = vld [vmem:[#allocation2 + $0x98] sm:$0xff]
    %v286 = vld [vmem:[#allocation2 + $0xa8] sm:$0xff]
    %v287 = vld [vmem:[#allocation2 + $0xb0] sm:$0xff]
    %v288 = vld [vmem:[#allocation2 + $0xc0] sm:$0xff]
    %v289 = vld [vmem:[#allocation2 + $0xc8] sm:$0xff]
    %v290 = vld [vmem:[#allocation2 + $0xd8] sm:$0xff]
    %v291 = vld [vmem:[#allocation2 + $0xe0] sm:$0xff]
    %v292 = vld [vmem:[#allocation2 + $0xf0] sm:$0xff]
    %v293 = vld [vmem:[#allocation2 + $0xf8] sm:$0xff]
    %v294 = vld [vmem:[#allocation2 + $0x108] sm:$0xff]
    %v295 = vld [vmem:[#allocation2 + $0x110] sm:$0xff]
    %v296 = vld [vmem:[#allocation2 + $0x120] sm:$0xff]
    %v297 = vld [vmem:[#allocation2 + $0x128] sm:$0xff]
    %v298 = vld [vmem:[#allocation2 + $0x138] sm:$0xff]
    %v299 = vld [vmem:[#allocation2 + $0x140] sm:$0xff]
    %v300 = vld [vmem:[#allocation2 + $0x150] sm:$0xff]
    %v301 = vld [vmem:[#allocation2 + $0x158] sm:$0xff]
    %v302 = vld [vmem:[#allocation2 + $0x168] sm:$0xff]
    %v303 = vld [vmem:[#allocation2 + $0x170] sm:$0xff]
    %v304 = vld [vmem:[#allocation2 + $0x1b0] sm:$0xff]
    %v305 = vld [vmem:[#allocation2 + $0x1b8] sm:$0xff]
    %v306 = vld [vmem:[#allocation2 + $0x1c8] sm:$0xff]
    %v307 = vld [vmem:[#allocation2 + $0x1d0] sm:$0xff]
    %v308 = vld [vmem:[#allocation2 + $0x1e0] sm:$0xff]
    %v309 = vld [vmem:[#allocation2 + $0x1e8] sm:$0xff]
    %v310 = vld [vmem:[#allocation2 + $0x1f8] sm:$0xff]
    %v311 = vld [vmem:[#allocation2 + $0x200] sm:$0xff]
    %v312 = vld [vmem:[#allocation2 + $0x210] sm:$0xff]
    %v313 = vld [vmem:[#allocation2 + $0x218] sm:$0xff]
    %v314 = vld [vmem:[#allocation2 + $0x228] sm:$0xff]
    %v315 = vld [vmem:[#allocation2 + $0x230] sm:$0xff]
    %v316 = vld [vmem:[#allocation2 + $0x240] sm:$0xff]
    %v317 = vld [vmem:[#allocation2 + $0x248] sm:$0xff]
    %v318 = vld [vmem:[#allocation2 + $0x258] sm:$0xff]
    %v319 = vld [vmem:[#allocation2 + $0x260] sm:$0xff]
    %v320 = vld [vmem:[#allocation2 + $0x270] sm:$0xff]
    %v321 = vld [vmem:[#allocation2 + $0x278] sm:$0xff]
    %v322 = vld [vmem:[#allocation2 + $0x288] sm:$0xff]
    %v323 = vld [vmem:[#allocation2 + $0x290] sm:$0xff]
    %v324 = vld [vmem:[#allocation2 + $0x2a0] sm:$0xff]
    %v325 = vld [vmem:[#allocation2 + $0x2a8] sm:$0xff]
    %v326 = vld [vmem:[#allocation2 + $0x2b8] sm:$0xff]
    %v327 = vld [vmem:[#allocation2 + $0x2c0] sm:$0xff]
    %v328 = vld [vmem:[#allocation2 + $0x2d0] sm:$0xff]
    %v329 = vld [vmem:[#allocation2 + $0x2d8] sm:$0xff]
    %v330 = vld [vmem:[#allocation2 + $0x2e8] sm:$0xff]
    %v331 = vld [vmem:[#allocation2 + $0x2f0] sm:$0xff]
    %v332 = vld [vmem:[#allocation2 + $0x300] sm:$0xff]
    %v333 = vld [vmem:[#allocation2 + $0x308] sm:$0xff]
    %v334 = vld [vmem:[#allocation2 + $0x318] sm:$0xff]
    %v335 = vld [vmem:[#allocation2 + $0x320] sm:$0xff]
    %v336 = vpack.c.bf16 %v273, %v272
    %v337 = vpack.c.bf16 %v275, %v274
    %v338 = vpack.c.bf16 %v277, %v276
    %v339 = vpack.c.bf16 %v279, %v278
    %v340 = vpack.c.bf16 %v281, %v280
    %v341 = vpack.c.bf16 %v283, %v282
    %v342 = vpack.c.bf16 %v285, %v284
    %v343 = vpack.c.bf16 %v287, %v286
    %v344 = vpack.c.bf16 %v289, %v288
    %v345 = vpack.c.bf16 %v291, %v290
    %v346 = vpack.c.bf16 %v293, %v292
    %v347 = vpack.c.bf16 %v295, %v294
    %v348 = vpack.c.bf16 %v297, %v296
    %v349 = vpack.c.bf16 %v299, %v298
    %v350 = vpack.c.bf16 %v301, %v300
    %v351 = vpack.c.bf16 %v303, %v302
    %v352 = vpack.c.bf16 %v305, %v304
    %v353 = vpack.c.bf16 %v307, %v306
    %v354 = vpack.c.bf16 %v309, %v308
    %v355 = vpack.c.bf16 %v311, %v310
    %v356 = vpack.c.bf16 %v313, %v312
    %v357 = vpack.c.bf16 %v315, %v314
    %v358 = vpack.c.bf16 %v317, %v316
    %v359 = vpack.c.bf16 %v319, %v318
    %v360 = vpack.c.bf16 %v321, %v320
    %v361 = vpack.c.bf16 %v323, %v322
    %v362 = vpack.c.bf16 %v325, %v324
    %v363 = vpack.c.bf16 %v327, %v326
    %v364 = vpack.c.bf16 %v329, %v328
    %v365 = vpack.c.bf16 %v331, %v330
    %v366 = vpack.c.bf16 %v333, %v332
    %v367 = vpack.c.bf16 %v335, %v334
    %v368 = vld [vmem:[#allocation2 + $0x1] sm:$0xff]
    %v369 = vld [vmem:[#allocation2 + $0x9] sm:$0xff]
    %v370 = vld [vmem:[#allocation2 + $0x19] sm:$0xff]
    %v371 = vld [vmem:[#allocation2 + $0x21] sm:$0xff]
    %v372 = vld [vmem:[#allocation2 + $0x31] sm:$0xff]
    %v373 = vld [vmem:[#allocation2 + $0x39] sm:$0xff]
    %v374 = vld [vmem:[#allocation2 + $0x49] sm:$0xff]
    %v375 = vld [vmem:[#allocation2 + $0x51] sm:$0xff]
    %v376 = vld [vmem:[#allocation2 + $0x61] sm:$0xff]
    %v377 = vld [vmem:[#allocation2 + $0x69] sm:$0xff]
    %v378 = vld [vmem:[#allocation2 + $0x79] sm:$0xff]
    %v379 = vld [vmem:[#allocation2 + $0x81] sm:$0xff]
    %v380 = vld [vmem:[#allocation2 + $0x91] sm:$0xff]
    %v381 = vld [vmem:[#allocation2 + $0x99] sm:$0xff]
    %v382 = vld [vmem:[#allocation2 + $0xa9] sm:$0xff]
    %v383 = vld [vmem:[#allocation2 + $0xb1] sm:$0xff]
    %v384 = vld [vmem:[#allocation2 + $0xc1] sm:$0xff]
    %v385 = vld [vmem:[#allocation2 + $0xc9] sm:$0xff]
    %v386 = vld [vmem:[#allocation2 + $0xd9] sm:$0xff]
    %v387 = vld [vmem:[#allocation2 + $0xe1] sm:$0xff]
    %v388 = vld [vmem:[#allocation2 + $0xf1] sm:$0xff]
    %v389 = vld [vmem:[#allocation2 + $0xf9] sm:$0xff]
    %v390 = vld [vmem:[#allocation2 + $0x109] sm:$0xff]
    %v391 = vld [vmem:[#allocation2 + $0x111] sm:$0xff]
    %v392 = vld [vmem:[#allocation2 + $0x121] sm:$0xff]
    %v393 = vld [vmem:[#allocation2 + $0x129] sm:$0xff]
    %v394 = vld [vmem:[#allocation2 + $0x139] sm:$0xff]
    %v395 = vld [vmem:[#allocation2 + $0x141] sm:$0xff]
    %v396 = vld [vmem:[#allocation2 + $0x151] sm:$0xff]
    %v397 = vld [vmem:[#allocation2 + $0x159] sm:$0xff]
    %v398 = vld [vmem:[#allocation2 + $0x169] sm:$0xff]
    %v399 = vld [vmem:[#allocation2 + $0x171] sm:$0xff]
    %v400 = vld [vmem:[#allocation2 + $0x1b1] sm:$0xff]
    %v401 = vld [vmem:[#allocation2 + $0x1b9] sm:$0xff]
    %v402 = vld [vmem:[#allocation2 + $0x1c9] sm:$0xff]
    %v403 = vld [vmem:[#allocation2 + $0x1d1] sm:$0xff]
    %v404 = vld [vmem:[#allocation2 + $0x1e1] sm:$0xff]
    %v405 = vld [vmem:[#allocation2 + $0x1e9] sm:$0xff]
    %v406 = vld [vmem:[#allocation2 + $0x1f9] sm:$0xff]
    %v407 = vld [vmem:[#allocation2 + $0x201] sm:$0xff]
    %v408 = vld [vmem:[#allocation2 + $0x211] sm:$0xff]
    %v409 = vld [vmem:[#allocation2 + $0x219] sm:$0xff]
    %v410 = vld [vmem:[#allocation2 + $0x229] sm:$0xff]
    %v411 = vld [vmem:[#allocation2 + $0x231] sm:$0xff]
    %v412 = vld [vmem:[#allocation2 + $0x241] sm:$0xff]
    %v413 = vld [vmem:[#allocation2 + $0x249] sm:$0xff]
    %v414 = vld [vmem:[#allocation2 + $0x259] sm:$0xff]
    %v415 = vld [vmem:[#allocation2 + $0x261] sm:$0xff]
    %v416 = vld [vmem:[#allocation2 + $0x271] sm:$0xff]
    %v417 = vld [vmem:[#allocation2 + $0x279] sm:$0xff]
    %v418 = vld [vmem:[#allocation2 + $0x289] sm:$0xff]
    %v419 = vld [vmem:[#allocation2 + $0x291] sm:$0xff]
    %v420 = vld [vmem:[#allocation2 + $0x2a1] sm:$0xff]
    %v421 = vld [vmem:[#allocation2 + $0x2a9] sm:$0xff]
    %v422 = vld [vmem:[#allocation2 + $0x2b9] sm:$0xff]
    %v423 = vld [vmem:[#allocation2 + $0x2c1] sm:$0xff]
    %v424 = vld [vmem:[#allocation2 + $0x2d1] sm:$0xff]
    %v425 = vld [vmem:[#allocation2 + $0x2d9] sm:$0xff]
    %v426 = vld [vmem:[#allocation2 + $0x2e9] sm:$0xff]
    %v427 = vld [vmem:[#allocation2 + $0x2f1] sm:$0xff]
    %v428 = vld [vmem:[#allocation2 + $0x301] sm:$0xff]
    %v429 = vld [vmem:[#allocation2 + $0x309] sm:$0xff]
    %v430 = vld [vmem:[#allocation2 + $0x319] sm:$0xff]
    %v431 = vld [vmem:[#allocation2 + $0x321] sm:$0xff]
    %v432 = vpack.c.bf16 %v369, %v368
    %v433 = vpack.c.bf16 %v371, %v370
    %v434 = vpack.c.bf16 %v373, %v372
    %v435 = vpack.c.bf16 %v375, %v374
    %v436 = vpack.c.bf16 %v377, %v376
    %v437 = vpack.c.bf16 %v379, %v378
    %v438 = vpack.c.bf16 %v381, %v380
    %v439 = vpack.c.bf16 %v383, %v382
    %v440 = vpack.c.bf16 %v385, %v384
    %v441 = vpack.c.bf16 %v387, %v386
    %v442 = vpack.c.bf16 %v389, %v388
    %v443 = vpack.c.bf16 %v391, %v390
    %v444 = vpack.c.bf16 %v393, %v392
    %v445 = vpack.c.bf16 %v395, %v394
    %v446 = vpack.c.bf16 %v397, %v396
    %v447 = vpack.c.bf16 %v399, %v398
    %v448 = vpack.c.bf16 %v401, %v400
    %v449 = vpack.c.bf16 %v403, %v402
    %v450 = vpack.c.bf16 %v405, %v404
    %v451 = vpack.c.bf16 %v407, %v406
    %v452 = vpack.c.bf16 %v409, %v408
    %v453 = vpack.c.bf16 %v411, %v410
    %v454 = vpack.c.bf16 %v413, %v412
    %v455 = vpack.c.bf16 %v415, %v414
    %v456 = vpack.c.bf16 %v417, %v416
    %v457 = vpack.c.bf16 %v419, %v418
    %v458 = vpack.c.bf16 %v421, %v420
    %v459 = vpack.c.bf16 %v423, %v422
    %v460 = vpack.c.bf16 %v425, %v424
    %v461 = vpack.c.bf16 %v427, %v426
    %v462 = vpack.c.bf16 %v429, %v428
    %v463 = vpack.c.bf16 %v431, %v430
    %v464 = vld [vmem:[#allocation2 + $0x2] sm:$0xff]
    %v465 = vld [vmem:[#allocation2 + $0xa] sm:$0xff]
    %v466 = vld [vmem:[#allocation2 + $0x1a] sm:$0xff]
    %v467 = vld [vmem:[#allocation2 + $0x22] sm:$0xff]
    %v468 = vld [vmem:[#allocation2 + $0x32] sm:$0xff]
    %v469 = vld [vmem:[#allocation2 + $0x3a] sm:$0xff]
    %v470 = vld [vmem:[#allocation2 + $0x4a] sm:$0xff]
    %v471 = vld [vmem:[#allocation2 + $0x52] sm:$0xff]
    %v472 = vld [vmem:[#allocation2 + $0x62] sm:$0xff]
    %v473 = vld [vmem:[#allocation2 + $0x6a] sm:$0xff]
    %v474 = vld [vmem:[#allocation2 + $0x7a] sm:$0xff]
    %v475 = vld [vmem:[#allocation2 + $0x82] sm:$0xff]
    %v476 = vld [vmem:[#allocation2 + $0x92] sm:$0xff]
    %v477 = vld [vmem:[#allocation2 + $0x9a] sm:$0xff]
    %v478 = vld [vmem:[#allocation2 + $0xaa] sm:$0xff]
    %v479 = vld [vmem:[#allocation2 + $0xb2] sm:$0xff]
    %v480 = vld [vmem:[#allocation2 + $0xc2] sm:$0xff]
    %v481 = vld [vmem:[#allocation2 + $0xca] sm:$0xff]
    %v482 = vld [vmem:[#allocation2 + $0xda] sm:$0xff]
    %v483 = vld [vmem:[#allocation2 + $0xe2] sm:$0xff]
    %v484 = vld [vmem:[#allocation2 + $0xf2] sm:$0xff]
    %v485 = vld [vmem:[#allocation2 + $0xfa] sm:$0xff]
    %v486 = vld [vmem:[#allocation2 + $0x10a] sm:$0xff]
    %v487 = vld [vmem:[#allocation2 + $0x112] sm:$0xff]
    %v488 = vld [vmem:[#allocation2 + $0x122] sm:$0xff]
    %v489 = vld [vmem:[#allocation2 + $0x12a] sm:$0xff]
    %v490 = vld [vmem:[#allocation2 + $0x13a] sm:$0xff]
    %v491 = vld [vmem:[#allocation2 + $0x142] sm:$0xff]
    %v492 = vld [vmem:[#allocation2 + $0x152] sm:$0xff]
    %v493 = vld [vmem:[#allocation2 + $0x15a] sm:$0xff]
    %v494 = vld [vmem:[#allocation2 + $0x16a] sm:$0xff]
    %v495 = vld [vmem:[#allocation2 + $0x172] sm:$0xff]
    %v496 = vld [vmem:[#allocation2 + $0x1b2] sm:$0xff]
    %v497 = vld [vmem:[#allocation2 + $0x1ba] sm:$0xff]
    %v498 = vld [vmem:[#allocation2 + $0x1ca] sm:$0xff]
    %v499 = vld [vmem:[#allocation2 + $0x1d2] sm:$0xff]
    %v500 = vld [vmem:[#allocation2 + $0x1e2] sm:$0xff]
    %v501 = vld [vmem:[#allocation2 + $0x1ea] sm:$0xff]
    %v502 = vld [vmem:[#allocation2 + $0x1fa] sm:$0xff]
    %v503 = vld [vmem:[#allocation2 + $0x202] sm:$0xff]
    %v504 = vld [vmem:[#allocation2 + $0x212] sm:$0xff]
    %v505 = vld [vmem:[#allocation2 + $0x21a] sm:$0xff]
    %v506 = vld [vmem:[#allocation2 + $0x22a] sm:$0xff]
    %v507 = vld [vmem:[#allocation2 + $0x232] sm:$0xff]
    %v508 = vld [vmem:[#allocation2 + $0x242] sm:$0xff]
    %v509 = vld [vmem:[#allocation2 + $0x24a] sm:$0xff]
    %v510 = vld [vmem:[#allocation2 + $0x25a] sm:$0xff]
    %v511 = vld [vmem:[#allocation2 + $0x262] sm:$0xff]
    %v512 = vld [vmem:[#allocation2 + $0x272] sm:$0xff]
    %v513 = vld [vmem:[#allocation2 + $0x27a] sm:$0xff]
    %v514 = vld [vmem:[#allocation2 + $0x28a] sm:$0xff]
    %v515 = vld [vmem:[#allocation2 + $0x292] sm:$0xff]
    %v516 = vld [vmem:[#allocation2 + $0x2a2] sm:$0xff]
    %v517 = vld [vmem:[#allocation2 + $0x2aa] sm:$0xff]
    %v518 = vld [vmem:[#allocation2 + $0x2ba] sm:$0xff]
    %v519 = vld [vmem:[#allocation2 + $0x2c2] sm:$0xff]
    %v520 = vld [vmem:[#allocation2 + $0x2d2] sm:$0xff]
    %v521 = vld [vmem:[#allocation2 + $0x2da] sm:$0xff]
    %v522 = vld [vmem:[#allocation2 + $0x2ea] sm:$0xff]
    %v523 = vld [vmem:[#allocation2 + $0x2f2] sm:$0xff]
    %v524 = vld [vmem:[#allocation2 + $0x302] sm:$0xff]
    %v525 = vld [vmem:[#allocation2 + $0x30a] sm:$0xff]
    %v526 = vld [vmem:[#allocation2 + $0x31a] sm:$0xff]
    %v527 = vld [vmem:[#allocation2 + $0x322] sm:$0xff]
    %v528 = vpack.c.bf16 %v465, %v464
    %v529 = vpack.c.bf16 %v467, %v466
    %v530 = vpack.c.bf16 %v469, %v468
    %v531 = vpack.c.bf16 %v471, %v470
    %v532 = vpack.c.bf16 %v473, %v472
    %v533 = vpack.c.bf16 %v475, %v474
    %v534 = vpack.c.bf16 %v477, %v476
    %v535 = vpack.c.bf16 %v479, %v478
    %v536 = vpack.c.bf16 %v481, %v480
    %v537 = vpack.c.bf16 %v483, %v482
    %v538 = vpack.c.bf16 %v485, %v484
    %v539 = vpack.c.bf16 %v487, %v486
    %v540 = vpack.c.bf16 %v489, %v488
    %v541 = vpack.c.bf16 %v491, %v490
    %v542 = vpack.c.bf16 %v493, %v492
    %v543 = vpack.c.bf16 %v495, %v494
    %v544 = vpack.c.bf16 %v497, %v496
    %v545 = vpack.c.bf16 %v499, %v498
    %v546 = vpack.c.bf16 %v501, %v500
    %v547 = vpack.c.bf16 %v503, %v502
    %v548 = vpack.c.bf16 %v505, %v504
    %v549 = vpack.c.bf16 %v507, %v506
    %v550 = vpack.c.bf16 %v509, %v508
    %v551 = vpack.c.bf16 %v511, %v510
    %v552 = vpack.c.bf16 %v513, %v512
    %v553 = vpack.c.bf16 %v515, %v514
    %v554 = vpack.c.bf16 %v517, %v516
    %v555 = vpack.c.bf16 %v519, %v518
    %v556 = vpack.c.bf16 %v521, %v520
    %v557 = vpack.c.bf16 %v523, %v522
    %v558 = vpack.c.bf16 %v525, %v524
    %v559 = vpack.c.bf16 %v527, %v526
    %v560 = vld [vmem:[%s206] sm:$0xff]
    %v561 = vld [vmem:[%s206 + $0x8] sm:$0xff]
    %v562 = vld [vmem:[%s206 + $0x18] sm:$0xff]
    %v563 = vld [vmem:[%s206 + $0x20] sm:$0xff]
    %v564 = vld [vmem:[%s206 + $0x30] sm:$0xff]
    %v565 = vld [vmem:[%s206 + $0x38] sm:$0xff]
    %v566 = vld [vmem:[%s206 + $0x48] sm:$0xff]
    %v567 = vld [vmem:[%s206 + $0x50] sm:$0xff]
    %v568 = vld [vmem:[%s206 + $0x60] sm:$0xff]
    %v569 = vld [vmem:[%s206 + $0x68] sm:$0xff]
    %v570 = vld [vmem:[%s206 + $0x78] sm:$0xff]
    %v571 = vld [vmem:[%s206 + $0x80] sm:$0xff]
    %v572 = vld [vmem:[%s206 + $0x90] sm:$0xff]
    %v573 = vld [vmem:[%s206 + $0x98] sm:$0xff]
    %v574 = vld [vmem:[%s206 + $0xa8] sm:$0xff]
    %v575 = vld [vmem:[%s206 + $0xb0] sm:$0xff]
    %v576 = vld [vmem:[%s206 + $0xc0] sm:$0xff]
    %v577 = vld [vmem:[%s206 + $0xc8] sm:$0xff]
    %v578 = vld [vmem:[%s206 + $0xd8] sm:$0xff]
    %v579 = vld [vmem:[%s206 + $0xe0] sm:$0xff]
    %v580 = vld [vmem:[%s206 + $0xf0] sm:$0xff]
    %v581 = vld [vmem:[%s206 + $0xf8] sm:$0xff]
    %v582 = vld [vmem:[%s206 + $0x108] sm:$0xff]
    %v583 = vld [vmem:[%s206 + $0x110] sm:$0xff]
    %v584 = vld [vmem:[%s206 + $0x120] sm:$0xff]
    %v585 = vld [vmem:[%s206 + $0x128] sm:$0xff]
    %v586 = vld [vmem:[%s206 + $0x138] sm:$0xff]
    %v587 = vld [vmem:[%s206 + $0x140] sm:$0xff]
    %v588 = vld [vmem:[%s206 + $0x150] sm:$0xff]
    %v589 = vld [vmem:[%s206 + $0x158] sm:$0xff]
    %v590 = vld [vmem:[%s206 + $0x168] sm:$0xff]
    %v591 = vld [vmem:[%s206 + $0x170] sm:$0xff]
    %v592 = vld [vmem:[%s206 + $0x1b0] sm:$0xff]
    %v593 = vld [vmem:[%s206 + $0x1b8] sm:$0xff]
    %v594 = vld [vmem:[%s206 + $0x1c8] sm:$0xff]
    %v595 = vld [vmem:[%s206 + $0x1d0] sm:$0xff]
    %v596 = vld [vmem:[%s206 + $0x1e0] sm:$0xff]
    %v597 = vld [vmem:[%s206 + $0x1e8] sm:$0xff]
    %v598 = vld [vmem:[%s206 + $0x1f8] sm:$0xff]
    %v599 = vld [vmem:[%s206 + $0x200] sm:$0xff]
    %v600 = vld [vmem:[%s206 + $0x210] sm:$0xff]
    %v601 = vld [vmem:[%s206 + $0x218] sm:$0xff]
    %v602 = vld [vmem:[%s206 + $0x228] sm:$0xff]
    %v603 = vld [vmem:[%s206 + $0x230] sm:$0xff]
    %v604 = vld [vmem:[%s206 + $0x240] sm:$0xff]
    %v605 = vld [vmem:[%s206 + $0x248] sm:$0xff]
    %v606 = vld [vmem:[%s206 + $0x258] sm:$0xff]
    %v607 = vld [vmem:[%s206 + $0x260] sm:$0xff]
    %v608 = vld [vmem:[%s206 + $0x270] sm:$0xff]
    %v609 = vld [vmem:[%s206 + $0x278] sm:$0xff]
    %v610 = vld [vmem:[%s206 + $0x288] sm:$0xff]
    %v611 = vld [vmem:[%s206 + $0x290] sm:$0xff]
    %v612 = vld [vmem:[%s206 + $0x2a0] sm:$0xff]
    %v613 = vld [vmem:[%s206 + $0x2a8] sm:$0xff]
    %v614 = vld [vmem:[%s206 + $0x2b8] sm:$0xff]
    %v615 = vld [vmem:[%s206 + $0x2c0] sm:$0xff]
    %v616 = vld [vmem:[%s206 + $0x2d0] sm:$0xff]
    %v617 = vld [vmem:[%s206 + $0x2d8] sm:$0xff]
    %v618 = vld [vmem:[%s206 + $0x2e8] sm:$0xff]
    %v619 = vld [vmem:[%s206 + $0x2f0] sm:$0xff]
    %v620 = vld [vmem:[%s206 + $0x300] sm:$0xff]
    %v621 = vld [vmem:[%s206 + $0x308] sm:$0xff]
    %v622 = vld [vmem:[%s206 + $0x318] sm:$0xff]
    %v623 = vld [vmem:[%s206 + $0x320] sm:$0xff]
    %v624 = vpack.c.bf16 %v561, %v560
    %v625 = vpack.c.bf16 %v563, %v562
    %v626 = vpack.c.bf16 %v565, %v564
    %v627 = vpack.c.bf16 %v567, %v566
    %v628 = vpack.c.bf16 %v569, %v568
    %v629 = vpack.c.bf16 %v571, %v570
    %v630 = vpack.c.bf16 %v573, %v572
    %v631 = vpack.c.bf16 %v575, %v574
    %v632 = vpack.c.bf16 %v577, %v576
    %v633 = vpack.c.bf16 %v579, %v578
    %v634 = vpack.c.bf16 %v581, %v580
    %v635 = vpack.c.bf16 %v583, %v582
    %v636 = vpack.c.bf16 %v585, %v584
    %v637 = vpack.c.bf16 %v587, %v586
    %v638 = vpack.c.bf16 %v589, %v588
    %v639 = vpack.c.bf16 %v591, %v590
    %v640 = vpack.c.bf16 %v593, %v592
    %v641 = vpack.c.bf16 %v595, %v594
    %v642 = vpack.c.bf16 %v597, %v596
    %v643 = vpack.c.bf16 %v599, %v598
    %v644 = vpack.c.bf16 %v601, %v600
    %v645 = vpack.c.bf16 %v603, %v602
    %v646 = vpack.c.bf16 %v605, %v604
    %v647 = vpack.c.bf16 %v607, %v606
    %v648 = vpack.c.bf16 %v609, %v608
    %v649 = vpack.c.bf16 %v611, %v610
    %v650 = vpack.c.bf16 %v613, %v612
    %v651 = vpack.c.bf16 %v615, %v614
    %v652 = vpack.c.bf16 %v617, %v616
    %v653 = vpack.c.bf16 %v619, %v618
    %v654 = vpack.c.bf16 %v621, %v620
    %v655 = vpack.c.bf16 %v623, %v622
    %v656 = vld [vmem:[%s206 + $0x1] sm:$0xff]
    %v657 = vld [vmem:[%s206 + $0x9] sm:$0xff]
    %v658 = vld [vmem:[%s206 + $0x19] sm:$0xff]
    %v659 = vld [vmem:[%s206 + $0x21] sm:$0xff]
    %v660 = vld [vmem:[%s206 + $0x31] sm:$0xff]
    %v661 = vld [vmem:[%s206 + $0x39] sm:$0xff]
    %v662 = vld [vmem:[%s206 + $0x49] sm:$0xff]
    %v663 = vld [vmem:[%s206 + $0x51] sm:$0xff]
    %v664 = vld [vmem:[%s206 + $0x61] sm:$0xff]
    %v665 = vld [vmem:[%s206 + $0x69] sm:$0xff]
    %v666 = vld [vmem:[%s206 + $0x79] sm:$0xff]
    %v667 = vld [vmem:[%s206 + $0x81] sm:$0xff]
    %v668 = vld [vmem:[%s206 + $0x91] sm:$0xff]
    %v669 = vld [vmem:[%s206 + $0x99] sm:$0xff]
    %v670 = vld [vmem:[%s206 + $0xa9] sm:$0xff]
    %v671 = vld [vmem:[%s206 + $0xb1] sm:$0xff]
    %v672 = vld [vmem:[%s206 + $0xc1] sm:$0xff]
    %v673 = vld [vmem:[%s206 + $0xc9] sm:$0xff]
    %v674 = vld [vmem:[%s206 + $0xd9] sm:$0xff]
    %v675 = vld [vmem:[%s206 + $0xe1] sm:$0xff]
    %v676 = vld [vmem:[%s206 + $0xf1] sm:$0xff]
    %v677 = vld [vmem:[%s206 + $0xf9] sm:$0xff]
    %v678 = vld [vmem:[%s206 + $0x109] sm:$0xff]
    %v679 = vld [vmem:[%s206 + $0x111] sm:$0xff]
    %v680 = vld [vmem:[%s206 + $0x121] sm:$0xff]
    %v681 = vld [vmem:[%s206 + $0x129] sm:$0xff]
    %v682 = vld [vmem:[%s206 + $0x139] sm:$0xff]
    %v683 = vld [vmem:[%s206 + $0x141] sm:$0xff]
    %v684 = vld [vmem:[%s206 + $0x151] sm:$0xff]
    %v685 = vld [vmem:[%s206 + $0x159] sm:$0xff]
    %v686 = vld [vmem:[%s206 + $0x169] sm:$0xff]
    %v687 = vld [vmem:[%s206 + $0x171] sm:$0xff]
    %v688 = vld [vmem:[%s206 + $0x1b1] sm:$0xff]
    %v689 = vld [vmem:[%s206 + $0x1b9] sm:$0xff]
    %v690 = vld [vmem:[%s206 + $0x1c9] sm:$0xff]
    %v691 = vld [vmem:[%s206 + $0x1d1] sm:$0xff]
    %v692 = vld [vmem:[%s206 + $0x1e1] sm:$0xff]
    %v693 = vld [vmem:[%s206 + $0x1e9] sm:$0xff]
    %v694 = vld [vmem:[%s206 + $0x1f9] sm:$0xff]
    %v695 = vld [vmem:[%s206 + $0x201] sm:$0xff]
    %v696 = vld [vmem:[%s206 + $0x211] sm:$0xff]
    %v697 = vld [vmem:[%s206 + $0x219] sm:$0xff]
    %v698 = vld [vmem:[%s206 + $0x229] sm:$0xff]
    %v699 = vld [vmem:[%s206 + $0x231] sm:$0xff]
    %v700 = vld [vmem:[%s206 + $0x241] sm:$0xff]
    %v701 = vld [vmem:[%s206 + $0x249] sm:$0xff]
    %v702 = vld [vmem:[%s206 + $0x259] sm:$0xff]
    %v703 = vld [vmem:[%s206 + $0x261] sm:$0xff]
    %v704 = vld [vmem:[%s206 + $0x271] sm:$0xff]
    %v705 = vld [vmem:[%s206 + $0x279] sm:$0xff]
    %v706 = vld [vmem:[%s206 + $0x289] sm:$0xff]
    %v707 = vld [vmem:[%s206 + $0x291] sm:$0xff]
    %v708 = vld [vmem:[%s206 + $0x2a1] sm:$0xff]
    %v709 = vld [vmem:[%s206 + $0x2a9] sm:$0xff]
    %v710 = vld [vmem:[%s206 + $0x2b9] sm:$0xff]
    %v711 = vld [vmem:[%s206 + $0x2c1] sm:$0xff]
    %v712 = vld [vmem:[%s206 + $0x2d1] sm:$0xff]
    %v713 = vld [vmem:[%s206 + $0x2d9] sm:$0xff]
    %v714 = vld [vmem:[%s206 + $0x2e9] sm:$0xff]
    %v715 = vld [vmem:[%s206 + $0x2f1] sm:$0xff]
    %v716 = vld [vmem:[%s206 + $0x301] sm:$0xff]
    %v717 = vld [vmem:[%s206 + $0x309] sm:$0xff]
    %v718 = vld [vmem:[%s206 + $0x319] sm:$0xff]
    %v719 = vld [vmem:[%s206 + $0x321] sm:$0xff]
    %v720 = vpack.c.bf16 %v657, %v656
    %v721 = vpack.c.bf16 %v659, %v658
    %v722 = vpack.c.bf16 %v661, %v660
    %v723 = vpack.c.bf16 %v663, %v662
    %v724 = vpack.c.bf16 %v665, %v664
    %v725 = vpack.c.bf16 %v667, %v666
    %v726 = vpack.c.bf16 %v669, %v668
    %v727 = vpack.c.bf16 %v671, %v670
    %v728 = vpack.c.bf16 %v673, %v672
    %v729 = vpack.c.bf16 %v675, %v674
    %v730 = vpack.c.bf16 %v677, %v676
    %v731 = vpack.c.bf16 %v679, %v678
    %v732 = vpack.c.bf16 %v681, %v680
    %v733 = vpack.c.bf16 %v683, %v682
    %v734 = vpack.c.bf16 %v685, %v684
    %v735 = vpack.c.bf16 %v687, %v686
    %v736 = vpack.c.bf16 %v689, %v688
    %v737 = vpack.c.bf16 %v691, %v690
    %v738 = vpack.c.bf16 %v693, %v692
    %v739 = vpack.c.bf16 %v695, %v694
    %v740 = vpack.c.bf16 %v697, %v696
    %v741 = vpack.c.bf16 %v699, %v698
    %v742 = vpack.c.bf16 %v701, %v700
    %v743 = vpack.c.bf16 %v703, %v702
    %v744 = vpack.c.bf16 %v705, %v704
    %v745 = vpack.c.bf16 %v707, %v706
    %v746 = vpack.c.bf16 %v709, %v708
    %v747 = vpack.c.bf16 %v711, %v710
    %v748 = vpack.c.bf16 %v713, %v712
    %v749 = vpack.c.bf16 %v715, %v714
    %v750 = vpack.c.bf16 %v717, %v716
    %v751 = vpack.c.bf16 %v719, %v718
    %v752 = vld [vmem:[%s206 + $0x2] sm:$0xff]
    %v753 = vld [vmem:[%s206 + $0xa] sm:$0xff]
    %v754 = vld [vmem:[%s206 + $0x1a] sm:$0xff]
    %v755 = vld [vmem:[%s206 + $0x22] sm:$0xff]
    %v756 = vld [vmem:[%s206 + $0x32] sm:$0xff]
    %v757 = vld [vmem:[%s206 + $0x3a] sm:$0xff]
    %v758 = vld [vmem:[%s206 + $0x4a] sm:$0xff]
    %v759 = vld [vmem:[%s206 + $0x52] sm:$0xff]
    %v760 = vld [vmem:[%s206 + $0x62] sm:$0xff]
    %v761 = vld [vmem:[%s206 + $0x6a] sm:$0xff]
    %v762 = vld [vmem:[%s206 + $0x7a] sm:$0xff]
    %v763 = vld [vmem:[%s206 + $0x82] sm:$0xff]
    %v764 = vld [vmem:[%s206 + $0x92] sm:$0xff]
    %v765 = vld [vmem:[%s206 + $0x9a] sm:$0xff]
    %v766 = vld [vmem:[%s206 + $0xaa] sm:$0xff]
    %v767 = vld [vmem:[%s206 + $0xb2] sm:$0xff]
    %v768 = vld [vmem:[%s206 + $0xc2] sm:$0xff]
    %v769 = vld [vmem:[%s206 + $0xca] sm:$0xff]
    %v770 = vld [vmem:[%s206 + $0xda] sm:$0xff]
    %v771 = vld [vmem:[%s206 + $0xe2] sm:$0xff]
    %v772 = vld [vmem:[%s206 + $0xf2] sm:$0xff]
    %v773 = vld [vmem:[%s206 + $0xfa] sm:$0xff]
    %v774 = vld [vmem:[%s206 + $0x10a] sm:$0xff]
    %v775 = vld [vmem:[%s206 + $0x112] sm:$0xff]
    %v776 = vld [vmem:[%s206 + $0x122] sm:$0xff]
    %v777 = vld [vmem:[%s206 + $0x12a] sm:$0xff]
    %v778 = vld [vmem:[%s206 + $0x13a] sm:$0xff]
    %v779 = vld [vmem:[%s206 + $0x142] sm:$0xff]
    %v780 = vld [vmem:[%s206 + $0x152] sm:$0xff]
    %v781 = vld [vmem:[%s206 + $0x15a] sm:$0xff]
    %v782 = vld [vmem:[%s206 + $0x16a] sm:$0xff]
    %v783 = vld [vmem:[%s206 + $0x172] sm:$0xff]
    %v784 = vld [vmem:[%s206 + $0x1b2] sm:$0xff]
    %v785 = vld [vmem:[%s206 + $0x1ba] sm:$0xff]
    %v786 = vld [vmem:[%s206 + $0x1ca] sm:$0xff]
    %v787 = vld [vmem:[%s206 + $0x1d2] sm:$0xff]
    %v788 = vld [vmem:[%s206 + $0x1e2] sm:$0xff]
    %v789 = vld [vmem:[%s206 + $0x1ea] sm:$0xff]
    %v790 = vld [vmem:[%s206 + $0x1fa] sm:$0xff]
    %v791 = vld [vmem:[%s206 + $0x202] sm:$0xff]
    %v792 = vld [vmem:[%s206 + $0x212] sm:$0xff]
    %v793 = vld [vmem:[%s206 + $0x21a] sm:$0xff]
    %v794 = vld [vmem:[%s206 + $0x22a] sm:$0xff]
    %v795 = vld [vmem:[%s206 + $0x232] sm:$0xff]
    %v796 = vld [vmem:[%s206 + $0x242] sm:$0xff]
    %v797 = vld [vmem:[%s206 + $0x24a] sm:$0xff]
    %v798 = vld [vmem:[%s206 + $0x25a] sm:$0xff]
    %v799 = vld [vmem:[%s206 + $0x262] sm:$0xff]
    %v800 = vld [vmem:[%s206 + $0x272] sm:$0xff]
    %v801 = vld [vmem:[%s206 + $0x27a] sm:$0xff]
    %v802 = vld [vmem:[%s206 + $0x28a] sm:$0xff]
    %v803 = vld [vmem:[%s206 + $0x292] sm:$0xff]
    %v804 = vld [vmem:[%s206 + $0x2a2] sm:$0xff]
    %v805 = vld [vmem:[%s206 + $0x2aa] sm:$0xff]
    %v806 = vld [vmem:[%s206 + $0x2ba] sm:$0xff]
    %v807 = vld [vmem:[%s206 + $0x2c2] sm:$0xff]
    %v808 = vld [vmem:[%s206 + $0x2d2] sm:$0xff]
    %v809 = vld [vmem:[%s206 + $0x2da] sm:$0xff]
    %v810 = vld [vmem:[%s206 + $0x2ea] sm:$0xff]
    %v811 = vld [vmem:[%s206 + $0x2f2] sm:$0xff]
    %v812 = vld [vmem:[%s206 + $0x302] sm:$0xff]
    %v813 = vld [vmem:[%s206 + $0x30a] sm:$0xff]
    %v814 = vld [vmem:[%s206 + $0x31a] sm:$0xff]
    %v815 = vld [vmem:[%s206 + $0x322] sm:$0xff]
    %v816 = vpack.c.bf16 %v753, %v752
    %v817 = vpack.c.bf16 %v755, %v754
    %v818 = vpack.c.bf16 %v757, %v756
    %v819 = vpack.c.bf16 %v759, %v758
    %v820 = vpack.c.bf16 %v761, %v760
    %v821 = vpack.c.bf16 %v763, %v762
    %v822 = vpack.c.bf16 %v765, %v764
    %v823 = vpack.c.bf16 %v767, %v766
    %v824 = vpack.c.bf16 %v769, %v768
    %v825 = vpack.c.bf16 %v771, %v770
    %v826 = vpack.c.bf16 %v773, %v772
    %v827 = vpack.c.bf16 %v775, %v774
    %v828 = vpack.c.bf16 %v777, %v776
    %v829 = vpack.c.bf16 %v779, %v778
    %v830 = vpack.c.bf16 %v781, %v780
    %v831 = vpack.c.bf16 %v783, %v782
    %v832 = vpack.c.bf16 %v785, %v784
    %v833 = vpack.c.bf16 %v787, %v786
    %v834 = vpack.c.bf16 %v789, %v788
    %v835 = vpack.c.bf16 %v791, %v790
    %v836 = vpack.c.bf16 %v793, %v792
    %v837 = vpack.c.bf16 %v795, %v794
    %v838 = vpack.c.bf16 %v797, %v796
    %v839 = vpack.c.bf16 %v799, %v798
    %v840 = vpack.c.bf16 %v801, %v800
    %v841 = vpack.c.bf16 %v803, %v802
    %v842 = vpack.c.bf16 %v805, %v804
    %v843 = vpack.c.bf16 %v807, %v806
    %v844 = vpack.c.bf16 %v809, %v808
    %v845 = vpack.c.bf16 %v811, %v810
    %v846 = vpack.c.bf16 %v813, %v812
    %v847 = vpack.c.bf16 %v815, %v814
    %s848 = scalar_lea.vmem [#allocation2], 48
    %v849 = vld [vmem:[%s848] sm:$0xff]
    %v850 = vld [vmem:[%s848 + $0x8] sm:$0xff]
    %v851 = vld [vmem:[%s848 + $0x18] sm:$0xff]
    %v852 = vld [vmem:[%s848 + $0x20] sm:$0xff]
    %v853 = vld [vmem:[%s848 + $0x30] sm:$0xff]
    %v854 = vld [vmem:[%s848 + $0x38] sm:$0xff]
    %v855 = vld [vmem:[%s848 + $0x48] sm:$0xff]
    %v856 = vld [vmem:[%s848 + $0x50] sm:$0xff]
    %v857 = vld [vmem:[%s848 + $0x60] sm:$0xff]
    %v858 = vld [vmem:[%s848 + $0x68] sm:$0xff]
    %v859 = vld [vmem:[%s848 + $0x78] sm:$0xff]
    %v860 = vld [vmem:[%s848 + $0x80] sm:$0xff]
    %v861 = vld [vmem:[%s848 + $0x90] sm:$0xff]
    %v862 = vld [vmem:[%s848 + $0x98] sm:$0xff]
    %v863 = vld [vmem:[%s848 + $0xa8] sm:$0xff]
    %v864 = vld [vmem:[%s848 + $0xb0] sm:$0xff]
    %v865 = vld [vmem:[%s848 + $0xc0] sm:$0xff]
    %v866 = vld [vmem:[%s848 + $0xc8] sm:$0xff]
    %v867 = vld [vmem:[%s848 + $0xd8] sm:$0xff]
    %v868 = vld [vmem:[%s848 + $0xe0] sm:$0xff]
    %v869 = vld [vmem:[%s848 + $0xf0] sm:$0xff]
    %v870 = vld [vmem:[%s848 + $0xf8] sm:$0xff]
    %v871 = vld [vmem:[%s848 + $0x108] sm:$0xff]
    %v872 = vld [vmem:[%s848 + $0x110] sm:$0xff]
    %v873 = vld [vmem:[%s848 + $0x120] sm:$0xff]
    %v874 = vld [vmem:[%s848 + $0x128] sm:$0xff]
    %v875 = vld [vmem:[%s848 + $0x138] sm:$0xff]
    %v876 = vld [vmem:[%s848 + $0x140] sm:$0xff]
    %v877 = vld [vmem:[%s848 + $0x150] sm:$0xff]
    %v878 = vld [vmem:[%s848 + $0x158] sm:$0xff]
    %v879 = vld [vmem:[%s848 + $0x168] sm:$0xff]
    %v880 = vld [vmem:[%s848 + $0x170] sm:$0xff]
    %v881 = vld [vmem:[%s848 + $0x1b0] sm:$0xff]
    %v882 = vld [vmem:[%s848 + $0x1b8] sm:$0xff]
    %v883 = vld [vmem:[%s848 + $0x1c8] sm:$0xff]
    %v884 = vld [vmem:[%s848 + $0x1d0] sm:$0xff]
    %v885 = vld [vmem:[%s848 + $0x1e0] sm:$0xff]
    %v886 = vld [vmem:[%s848 + $0x1e8] sm:$0xff]
    %v887 = vld [vmem:[%s848 + $0x1f8] sm:$0xff]
    %v888 = vld [vmem:[%s848 + $0x200] sm:$0xff]
    %v889 = vld [vmem:[%s848 + $0x210] sm:$0xff]
    %v890 = vld [vmem:[%s848 + $0x218] sm:$0xff]
    %v891 = vld [vmem:[%s848 + $0x228] sm:$0xff]
    %v892 = vld [vmem:[%s848 + $0x230] sm:$0xff]
    %v893 = vld [vmem:[%s848 + $0x240] sm:$0xff]
    %v894 = vld [vmem:[%s848 + $0x248] sm:$0xff]
    %v895 = vld [vmem:[%s848 + $0x258] sm:$0xff]
    %v896 = vld [vmem:[%s848 + $0x260] sm:$0xff]
    %v897 = vld [vmem:[%s848 + $0x270] sm:$0xff]
    %v898 = vld [vmem:[%s848 + $0x278] sm:$0xff]
    %v899 = vld [vmem:[%s848 + $0x288] sm:$0xff]
    %v900 = vld [vmem:[%s848 + $0x290] sm:$0xff]
    %v901 = vld [vmem:[%s848 + $0x2a0] sm:$0xff]
    %v902 = vld [vmem:[%s848 + $0x2a8] sm:$0xff]
    %v903 = vld [vmem:[%s848 + $0x2b8] sm:$0xff]
    %v904 = vld [vmem:[%s848 + $0x2c0] sm:$0xff]
    %v905 = vld [vmem:[%s848 + $0x2d0] sm:$0xff]
    %v906 = vld [vmem:[%s848 + $0x2d8] sm:$0xff]
    %v907 = vld [vmem:[%s848 + $0x2e8] sm:$0xff]
    %v908 = vld [vmem:[%s848 + $0x2f0] sm:$0xff]
    %v909 = vld [vmem:[%s848 + $0x300] sm:$0xff]
    %v910 = vld [vmem:[%s848 + $0x308] sm:$0xff]
    %v911 = vld [vmem:[%s848 + $0x318] sm:$0xff]
    %v912 = vld [vmem:[%s848 + $0x320] sm:$0xff]
    %v913 = vpack.c.bf16 %v850, %v849
    %v914 = vpack.c.bf16 %v852, %v851
    %v915 = vpack.c.bf16 %v854, %v853
    %v916 = vpack.c.bf16 %v856, %v855
    %v917 = vpack.c.bf16 %v858, %v857
    %v918 = vpack.c.bf16 %v860, %v859
    %v919 = vpack.c.bf16 %v862, %v861
    %v920 = vpack.c.bf16 %v864, %v863
    %v921 = vpack.c.bf16 %v866, %v865
    %v922 = vpack.c.bf16 %v868, %v867
    %v923 = vpack.c.bf16 %v870, %v869
    %v924 = vpack.c.bf16 %v872, %v871
    %v925 = vpack.c.bf16 %v874, %v873
    %v926 = vpack.c.bf16 %v876, %v875
    %v927 = vpack.c.bf16 %v878, %v877
    %v928 = vpack.c.bf16 %v880, %v879
    %v929 = vpack.c.bf16 %v882, %v881
    %v930 = vpack.c.bf16 %v884, %v883
    %v931 = vpack.c.bf16 %v886, %v885
    %v932 = vpack.c.bf16 %v888, %v887
    %v933 = vpack.c.bf16 %v890, %v889
    %v934 = vpack.c.bf16 %v892, %v891
    %v935 = vpack.c.bf16 %v894, %v893
    %v936 = vpack.c.bf16 %v896, %v895
    %v937 = vpack.c.bf16 %v898, %v897
    %v938 = vpack.c.bf16 %v900, %v899
    %v939 = vpack.c.bf16 %v902, %v901
    %v940 = vpack.c.bf16 %v904, %v903
    %v941 = vpack.c.bf16 %v906, %v905
    %v942 = vpack.c.bf16 %v908, %v907
    %v943 = vpack.c.bf16 %v910, %v909
    %v944 = vpack.c.bf16 %v912, %v911
    %v945 = vld [vmem:[%s848 + $0x1] sm:$0xff]
    %v946 = vld [vmem:[%s848 + $0x9] sm:$0xff]
    %v947 = vld [vmem:[%s848 + $0x19] sm:$0xff]
    %v948 = vld [vmem:[%s848 + $0x21] sm:$0xff]
    %v949 = vld [vmem:[%s848 + $0x31] sm:$0xff]
    %v950 = vld [vmem:[%s848 + $0x39] sm:$0xff]
    %v951 = vld [vmem:[%s848 + $0x49] sm:$0xff]
    %v952 = vld [vmem:[%s848 + $0x51] sm:$0xff]
    %v953 = vld [vmem:[%s848 + $0x61] sm:$0xff]
    %v954 = vld [vmem:[%s848 + $0x69] sm:$0xff]
    %v955 = vld [vmem:[%s848 + $0x79] sm:$0xff]
    %v956 = vld [vmem:[%s848 + $0x81] sm:$0xff]
    %v957 = vld [vmem:[%s848 + $0x91] sm:$0xff]
    %v958 = vld [vmem:[%s848 + $0x99] sm:$0xff]
    %v959 = vld [vmem:[%s848 + $0xa9] sm:$0xff]
    %v960 = vld [vmem:[%s848 + $0xb1] sm:$0xff]
    %v961 = vld [vmem:[%s848 + $0xc1] sm:$0xff]
    %v962 = vld [vmem:[%s848 + $0xc9] sm:$0xff]
    %v963 = vld [vmem:[%s848 + $0xd9] sm:$0xff]
    %v964 = vld [vmem:[%s848 + $0xe1] sm:$0xff]
    %v965 = vld [vmem:[%s848 + $0xf1] sm:$0xff]
    %v966 = vld [vmem:[%s848 + $0xf9] sm:$0xff]
    %v967 = vld [vmem:[%s848 + $0x109] sm:$0xff]
    %v968 = vld [vmem:[%s848 + $0x111] sm:$0xff]
    %v969 = vld [vmem:[%s848 + $0x121] sm:$0xff]
    %v970 = vld [vmem:[%s848 + $0x129] sm:$0xff]
    %v971 = vld [vmem:[%s848 + $0x139] sm:$0xff]
    %v972 = vld [vmem:[%s848 + $0x141] sm:$0xff]
    %v973 = vld [vmem:[%s848 + $0x151] sm:$0xff]
    %v974 = vld [vmem:[%s848 + $0x159] sm:$0xff]
    %v975 = vld [vmem:[%s848 + $0x169] sm:$0xff]
    %v976 = vld [vmem:[%s848 + $0x171] sm:$0xff]
    %v977 = vld [vmem:[%s848 + $0x1b1] sm:$0xff]
    %v978 = vld [vmem:[%s848 + $0x1b9] sm:$0xff]
    %v979 = vld [vmem:[%s848 + $0x1c9] sm:$0xff]
    %v980 = vld [vmem:[%s848 + $0x1d1] sm:$0xff]
    %v981 = vld [vmem:[%s848 + $0x1e1] sm:$0xff]
    %v982 = vld [vmem:[%s848 + $0x1e9] sm:$0xff]
    %v983 = vld [vmem:[%s848 + $0x1f9] sm:$0xff]
    %v984 = vld [vmem:[%s848 + $0x201] sm:$0xff]
    %v985 = vld [vmem:[%s848 + $0x211] sm:$0xff]
    %v986 = vld [vmem:[%s848 + $0x219] sm:$0xff]
    %v987 = vld [vmem:[%s848 + $0x229] sm:$0xff]
    %v988 = vld [vmem:[%s848 + $0x231] sm:$0xff]
    %v989 = vld [vmem:[%s848 + $0x241] sm:$0xff]
    %v990 = vld [vmem:[%s848 + $0x249] sm:$0xff]
    %v991 = vld [vmem:[%s848 + $0x259] sm:$0xff]
    %v992 = vld [vmem:[%s848 + $0x261] sm:$0xff]
    %v993 = vld [vmem:[%s848 + $0x271] sm:$0xff]
    %v994 = vld [vmem:[%s848 + $0x279] sm:$0xff]
    %v995 = vld [vmem:[%s848 + $0x289] sm:$0xff]
    %v996 = vld [vmem:[%s848 + $0x291] sm:$0xff]
    %v997 = vld [vmem:[%s848 + $0x2a1] sm:$0xff]
    %v998 = vld [vmem:[%s848 + $0x2a9] sm:$0xff]
    %v999 = vld [vmem:[%s848 + $0x2b9] sm:$0xff]
    %v1000 = vld [vmem:[%s848 + $0x2c1] sm:$0xff]
    %v1001 = vld [vmem:[%s848 + $0x2d1] sm:$0xff]
    %v1002 = vld [vmem:[%s848 + $0x2d9] sm:$0xff]
    %v1003 = vld [vmem:[%s848 + $0x2e9] sm:$0xff]
    %v1004 = vld [vmem:[%s848 + $0x2f1] sm:$0xff]
    %v1005 = vld [vmem:[%s848 + $0x301] sm:$0xff]
    %v1006 = vld [vmem:[%s848 + $0x309] sm:$0xff]
    %v1007 = vld [vmem:[%s848 + $0x319] sm:$0xff]
    %v1008 = vld [vmem:[%s848 + $0x321] sm:$0xff]
    %v1009 = vpack.c.bf16 %v946, %v945
    %v1010 = vpack.c.bf16 %v948, %v947
    %v1011 = vpack.c.bf16 %v950, %v949
    %v1012 = vpack.c.bf16 %v952, %v951
    %v1013 = vpack.c.bf16 %v954, %v953
    %v1014 = vpack.c.bf16 %v956, %v955
    %v1015 = vpack.c.bf16 %v958, %v957
    %v1016 = vpack.c.bf16 %v960, %v959
    %v1017 = vpack.c.bf16 %v962, %v961
    %v1018 = vpack.c.bf16 %v964, %v963
    %v1019 = vpack.c.bf16 %v966, %v965
    %v1020 = vpack.c.bf16 %v968, %v967
    %v1021 = vpack.c.bf16 %v970, %v969
    %v1022 = vpack.c.bf16 %v972, %v971
    %v1023 = vpack.c.bf16 %v974, %v973
    %v1024 = vpack.c.bf16 %v976, %v975
    %v1025 = vpack.c.bf16 %v978, %v977
    %v1026 = vpack.c.bf16 %v980, %v979
    %v1027 = vpack.c.bf16 %v982, %v981
    %v1028 = vpack.c.bf16 %v984, %v983
    %v1029 = vpack.c.bf16 %v986, %v985
    %v1030 = vpack.c.bf16 %v988, %v987
    %v1031 = vpack.c.bf16 %v990, %v989
    %v1032 = vpack.c.bf16 %v992, %v991
    %v1033 = vpack.c.bf16 %v994, %v993
    %v1034 = vpack.c.bf16 %v996, %v995
    %v1035 = vpack.c.bf16 %v998, %v997
    %v1036 = vpack.c.bf16 %v1000, %v999
    %v1037 = vpack.c.bf16 %v1002, %v1001
    %v1038 = vpack.c.bf16 %v1004, %v1003
    %v1039 = vpack.c.bf16 %v1006, %v1005
    %v1040 = vpack.c.bf16 %v1008, %v1007
    %v1041 = vld [vmem:[%s848 + $0x2] sm:$0xff]
    %v1042 = vld [vmem:[%s848 + $0xa] sm:$0xff]
    %v1043 = vld [vmem:[%s848 + $0x1a] sm:$0xff]
    %v1044 = vld [vmem:[%s848 + $0x22] sm:$0xff]
    %v1045 = vld [vmem:[%s848 + $0x32] sm:$0xff]
    %v1046 = vld [vmem:[%s848 + $0x3a] sm:$0xff]
    %v1047 = vld [vmem:[%s848 + $0x4a] sm:$0xff]
    %v1048 = vld [vmem:[%s848 + $0x52] sm:$0xff]
    %v1049 = vld [vmem:[%s848 + $0x62] sm:$0xff]
    %v1050 = vld [vmem:[%s848 + $0x6a] sm:$0xff]
    %v1051 = vld [vmem:[%s848 + $0x7a] sm:$0xff]
    %v1052 = vld [vmem:[%s848 + $0x82] sm:$0xff]
    %v1053 = vld [vmem:[%s848 + $0x92] sm:$0xff]
    %v1054 = vld [vmem:[%s848 + $0x9a] sm:$0xff]
    %v1055 = vld [vmem:[%s848 + $0xaa] sm:$0xff]
    %v1056 = vld [vmem:[%s848 + $0xb2] sm:$0xff]
    %v1057 = vld [vmem:[%s848 + $0xc2] sm:$0xff]
    %v1058 = vld [vmem:[%s848 + $0xca] sm:$0xff]
    %v1059 = vld [vmem:[%s848 + $0xda] sm:$0xff]
    %v1060 = vld [vmem:[%s848 + $0xe2] sm:$0xff]
    %v1061 = vld [vmem:[%s848 + $0xf2] sm:$0xff]
    %v1062 = vld [vmem:[%s848 + $0xfa] sm:$0xff]
    %v1063 = vld [vmem:[%s848 + $0x10a] sm:$0xff]
    %v1064 = vld [vmem:[%s848 + $0x112] sm:$0xff]
    %v1065 = vld [vmem:[%s848 + $0x122] sm:$0xff]
    %v1066 = vld [vmem:[%s848 + $0x12a] sm:$0xff]
    %v1067 = vld [vmem:[%s848 + $0x13a] sm:$0xff]
    %v1068 = vld [vmem:[%s848 + $0x142] sm:$0xff]
    %v1069 = vld [vmem:[%s848 + $0x152] sm:$0xff]
    %v1070 = vld [vmem:[%s848 + $0x15a] sm:$0xff]
    %v1071 = vld [vmem:[%s848 + $0x16a] sm:$0xff]
    %v1072 = vld [vmem:[%s848 + $0x172] sm:$0xff]
    %v1073 = vld [vmem:[%s848 + $0x1b2] sm:$0xff]
    %v1074 = vld [vmem:[%s848 + $0x1ba] sm:$0xff]
    %v1075 = vld [vmem:[%s848 + $0x1ca] sm:$0xff]
    %v1076 = vld [vmem:[%s848 + $0x1d2] sm:$0xff]
    %v1077 = vld [vmem:[%s848 + $0x1e2] sm:$0xff]
    %v1078 = vld [vmem:[%s848 + $0x1ea] sm:$0xff]
    %v1079 = vld [vmem:[%s848 + $0x1fa] sm:$0xff]
    %v1080 = vld [vmem:[%s848 + $0x202] sm:$0xff]
    %v1081 = vld [vmem:[%s848 + $0x212] sm:$0xff]
    %v1082 = vld [vmem:[%s848 + $0x21a] sm:$0xff]
    %v1083 = vld [vmem:[%s848 + $0x22a] sm:$0xff]
    %v1084 = vld [vmem:[%s848 + $0x232] sm:$0xff]
    %v1085 = vld [vmem:[%s848 + $0x242] sm:$0xff]
    %v1086 = vld [vmem:[%s848 + $0x24a] sm:$0xff]
    %v1087 = vld [vmem:[%s848 + $0x25a] sm:$0xff]
    %v1088 = vld [vmem:[%s848 + $0x262] sm:$0xff]
    %v1089 = vld [vmem:[%s848 + $0x272] sm:$0xff]
    %v1090 = vld [vmem:[%s848 + $0x27a] sm:$0xff]
    %v1091 = vld [vmem:[%s848 + $0x28a] sm:$0xff]
    %v1092 = vld [vmem:[%s848 + $0x292] sm:$0xff]
    %v1093 = vld [vmem:[%s848 + $0x2a2] sm:$0xff]
    %v1094 = vld [vmem:[%s848 + $0x2aa] sm:$0xff]
    %v1095 = vld [vmem:[%s848 + $0x2ba] sm:$0xff]
    %v1096 = vld [vmem:[%s848 + $0x2c2] sm:$0xff]
    %v1097 = vld [vmem:[%s848 + $0x2d2] sm:$0xff]
    %v1098 = vld [vmem:[%s848 + $0x2da] sm:$0xff]
    %v1099 = vld [vmem:[%s848 + $0x2ea] sm:$0xff]
    %v1100 = vld [vmem:[%s848 + $0x2f2] sm:$0xff]
    %v1101 = vld [vmem:[%s848 + $0x302] sm:$0xff]
    %v1102 = vld [vmem:[%s848 + $0x30a] sm:$0xff]
    %v1103 = vld [vmem:[%s848 + $0x31a] sm:$0xff]
    %v1104 = vld [vmem:[%s848 + $0x322] sm:$0xff]
    %v1105 = vpack.c.bf16 %v1042, %v1041
    %v1106 = vpack.c.bf16 %v1044, %v1043
    %v1107 = vpack.c.bf16 %v1046, %v1045
    %v1108 = vpack.c.bf16 %v1048, %v1047
    %v1109 = vpack.c.bf16 %v1050, %v1049
    %v1110 = vpack.c.bf16 %v1052, %v1051
    %v1111 = vpack.c.bf16 %v1054, %v1053
    %v1112 = vpack.c.bf16 %v1056, %v1055
    %v1113 = vpack.c.bf16 %v1058, %v1057
    %v1114 = vpack.c.bf16 %v1060, %v1059
    %v1115 = vpack.c.bf16 %v1062, %v1061
    %v1116 = vpack.c.bf16 %v1064, %v1063
    %v1117 = vpack.c.bf16 %v1066, %v1065
    %v1118 = vpack.c.bf16 %v1068, %v1067
    %v1119 = vpack.c.bf16 %v1070, %v1069
    %v1120 = vpack.c.bf16 %v1072, %v1071
    %v1121 = vpack.c.bf16 %v1074, %v1073
    %v1122 = vpack.c.bf16 %v1076, %v1075
    %v1123 = vpack.c.bf16 %v1078, %v1077
    %v1124 = vpack.c.bf16 %v1080, %v1079
    %v1125 = vpack.c.bf16 %v1082, %v1081
    %v1126 = vpack.c.bf16 %v1084, %v1083
    %v1127 = vpack.c.bf16 %v1086, %v1085
    %v1128 = vpack.c.bf16 %v1088, %v1087
    %v1129 = vpack.c.bf16 %v1090, %v1089
    %v1130 = vpack.c.bf16 %v1092, %v1091
    %v1131 = vpack.c.bf16 %v1094, %v1093
    %v1132 = vpack.c.bf16 %v1096, %v1095
    %v1133 = vpack.c.bf16 %v1098, %v1097
    %v1134 = vpack.c.bf16 %v1100, %v1099
    %v1135 = vpack.c.bf16 %v1102, %v1101
    %v1136 = vpack.c.bf16 %v1104, %v1103
    %v1137 = vld [vmem:[%s1] sm:$0xf]
    %v1138 = vld [vmem:[%s1 + $0x4] sm:$0xf]
    %v1139 = vld [vmem:[%s1 + $0x8] sm:$0xf]
    %v1140 = vld [vmem:[%s1 + $0xc] sm:$0xf]
    %v1141 = vld [vmem:[%s1 + $0x10] sm:$0xf]
    %v1142 = vld [vmem:[%s1 + $0x14] sm:$0xf]
    %v1143 = vld [vmem:[%s1 + $0x18] sm:$0xf]
    %v1144 = vld [vmem:[%s1 + $0x1c] sm:$0xf]
    %v1145 = vld [vmem:[%s1 + $0x20] sm:$0xf]
    %v1146 = vld [vmem:[%s1 + $0x24] sm:$0xf]
    %v1147 = vld [vmem:[%s1 + $0x28] sm:$0xf]
    %v1148 = vld [vmem:[%s1 + $0x2c] sm:$0xf]
    %v1149 = vld [vmem:[%s1 + $0x30] sm:$0xf]
    %v1150 = vld [vmem:[%s1 + $0x34] sm:$0xf]
    %v1151 = vld [vmem:[%s1 + $0x38] sm:$0xf]
    %v1152 = vld [vmem:[%s1 + $0x3c] sm:$0xf]
    %v1153 = vld [vmem:[%s1 + $0x40] sm:$0xf]
    %v1154 = vld [vmem:[%s1 + $0x44] sm:$0xf]
    %v1155 = vld [vmem:[%s1 + $0x48] sm:$0xf]
    %v1156 = vld [vmem:[%s1 + $0x4c] sm:$0xf]
    %v1157 = vld [vmem:[%s1 + $0x50] sm:$0xf]
    %v1158 = vld [vmem:[%s1 + $0x54] sm:$0xf]
    %v1159 = vld [vmem:[%s1 + $0x58] sm:$0xf]
    %v1160 = vld [vmem:[%s1 + $0x5c] sm:$0xf]
    %v1161 = vld [vmem:[%s1 + $0x60] sm:$0xf]
    %v1162 = vld [vmem:[%s1 + $0x64] sm:$0xf]
    %v1163 = vld [vmem:[%s1 + $0x68] sm:$0xf]
    %v1164 = vld [vmem:[%s1 + $0x6c] sm:$0xf]
    %v1165 = vld [vmem:[%s1 + $0x70] sm:$0xf]
    %v1166 = vld [vmem:[%s1 + $0x74] sm:$0xf]
    %v1167 = vld [vmem:[%s1 + $0x78] sm:$0xf]
    %v1168 = vld [vmem:[%s1 + $0x7c] sm:$0xf]
    %v1169 = vld [vmem:[%s1 + $0x80] sm:$0xf]
    %v1170 = vld [vmem:[%s1 + $0x84] sm:$0xf]
    %v1171 = vld [vmem:[%s1 + $0x88] sm:$0xf]
    %v1172 = vld [vmem:[%s1 + $0x8c] sm:$0xf]
    %v1173 = vld [vmem:[%s1 + $0x90] sm:$0xf]
    %v1174 = vld [vmem:[%s1 + $0x94] sm:$0xf]
    %v1175 = vld [vmem:[%s1 + $0x98] sm:$0xf]
    %v1176 = vld [vmem:[%s1 + $0x9c] sm:$0xf]
    %v1177 = vld [vmem:[%s1 + $0xa0] sm:$0xf]
    %v1178 = vld [vmem:[%s1 + $0xa4] sm:$0xf]
    %v1179 = vld [vmem:[%s1 + $0xa8] sm:$0xf]
    %v1180 = vld [vmem:[%s1 + $0xac] sm:$0xf]
    %v1181 = vld [vmem:[%s1 + $0xb0] sm:$0xf]
    %v1182 = vld [vmem:[%s1 + $0xb4] sm:$0xf]
    %v1183 = vld [vmem:[%s1 + $0xb8] sm:$0xf]
    %v1184 = vld [vmem:[%s1 + $0xbc] sm:$0xf]
    %v1185 = vld [vmem:[%s1 + $0xc0] sm:$0xf]
    %v1186 = vld [vmem:[%s1 + $0xc4] sm:$0xf]
    %v1187 = vld [vmem:[%s1 + $0xc8] sm:$0xf]
    %v1188 = vld [vmem:[%s1 + $0xcc] sm:$0xf]
    %v1189 = vld [vmem:[%s1 + $0xd0] sm:$0xf]
    %v1190 = vld [vmem:[%s1 + $0xd4] sm:$0xf]
    %v1191 = vld [vmem:[%s1 + $0xd8] sm:$0xf]
    %v1192 = vld [vmem:[%s1 + $0xdc] sm:$0xf]
    %v1193 = vld [vmem:[%s1 + $0xe0] sm:$0xf]
    %v1194 = vld [vmem:[%s1 + $0xe4] sm:$0xf]
    %v1195 = vld [vmem:[%s1 + $0xe8] sm:$0xf]
    %v1196 = vld [vmem:[%s1 + $0xec] sm:$0xf]
    %v1197 = vld [vmem:[%s1 + $0xf0] sm:$0xf]
    %v1198 = vld [vmem:[%s1 + $0xf4] sm:$0xf]
    %v1199 = vld [vmem:[%s1 + $0xf8] sm:$0xf]
    %v1200 = vld [vmem:[%s1 + $0xfc] sm:$0xf]
    %v1201 = vld [vmem:[%s1 + $0x100] sm:$0xf]
    %v1202 = vld [vmem:[%s1 + $0x104] sm:$0xf]
    %v1203 = vld [vmem:[%s1 + $0x108] sm:$0xf]
    %v1204 = vld [vmem:[%s1 + $0x10c] sm:$0xf]
    %v1205 = vld [vmem:[%s1 + $0x110] sm:$0xf]
    %v1206 = vld [vmem:[%s1 + $0x114] sm:$0xf]
    %v1207 = vld [vmem:[%s1 + $0x118] sm:$0xf]
    %v1208 = vld [vmem:[%s1 + $0x11c] sm:$0xf]
    %v1209 = vld [vmem:[%s1 + $0x120] sm:$0xf]
    %v1210 = vld [vmem:[%s1 + $0x124] sm:$0xf]
    %v1211 = vld [vmem:[%s1 + $0x128] sm:$0xf]
    %v1212 = vld [vmem:[%s1 + $0x12c] sm:$0xf]
    %v1213 = vld [vmem:[%s1 + $0x130] sm:$0xf]
    %v1214 = vld [vmem:[%s1 + $0x134] sm:$0xf]
    %v1215 = vld [vmem:[%s1 + $0x138] sm:$0xf]
    %v1216 = vld [vmem:[%s1 + $0x13c] sm:$0xf]
    %v1217 = vld [vmem:[%s1 + $0x140] sm:$0xf]
    %v1218 = vld [vmem:[%s1 + $0x144] sm:$0xf]
    %v1219 = vld [vmem:[%s1 + $0x148] sm:$0xf]
    %v1220 = vld [vmem:[%s1 + $0x14c] sm:$0xf]
    %v1221 = vld [vmem:[%s1 + $0x150] sm:$0xf]
    %v1222 = vld [vmem:[%s1 + $0x154] sm:$0xf]
    %v1223 = vld [vmem:[%s1 + $0x158] sm:$0xf]
    %v1224 = vld [vmem:[%s1 + $0x15c] sm:$0xf]
    %v1225 = vld [vmem:[%s1 + $0x160] sm:$0xf]
    %v1226 = vld [vmem:[%s1 + $0x164] sm:$0xf]
    %v1227 = vld [vmem:[%s1 + $0x168] sm:$0xf]
    %v1228 = vld [vmem:[%s1 + $0x16c] sm:$0xf]
    %v1229 = vld [vmem:[%s1 + $0x170] sm:$0xf]
    %v1230 = vld [vmem:[%s1 + $0x174] sm:$0xf]
    %v1231 = vld [vmem:[%s1 + $0x178] sm:$0xf]
    %v1232 = vld [vmem:[%s1 + $0x17c] sm:$0xf]
    %v1233 = vld [vmem:[%s1 + $0x180] sm:$0xf]
    %v1234 = vld [vmem:[%s1 + $0x184] sm:$0xf]
    %v1235 = vld [vmem:[%s1 + $0x188] sm:$0xf]
    %v1236 = vld [vmem:[%s1 + $0x18c] sm:$0xf]
    %v1237 = vld [vmem:[%s1 + $0x190] sm:$0xf]
    %v1238 = vld [vmem:[%s1 + $0x194] sm:$0xf]
    %v1239 = vld [vmem:[%s1 + $0x198] sm:$0xf]
    %v1240 = vld [vmem:[%s1 + $0x19c] sm:$0xf]
    %v1241 = vld [vmem:[%s1 + $0x1a0] sm:$0xf]
    %v1242 = vld [vmem:[%s1 + $0x1a4] sm:$0xf]
    %v1243 = vld [vmem:[%s1 + $0x1a8] sm:$0xf]
    %v1244 = vld [vmem:[%s1 + $0x1ac] sm:$0xf]
    %v1245 = vld [vmem:[%s1 + $0x1b0] sm:$0xf]
    %v1246 = vld [vmem:[%s1 + $0x1b4] sm:$0xf]
    %v1247 = vld [vmem:[%s1 + $0x1b8] sm:$0xf]
    %v1248 = vld [vmem:[%s1 + $0x1bc] sm:$0xf]
    %v1249 = vld [vmem:[%s1 + $0x1c0] sm:$0xf]
    %v1250 = vld [vmem:[%s1 + $0x1c4] sm:$0xf]
    %v1251 = vld [vmem:[%s1 + $0x1c8] sm:$0xf]
    %v1252 = vld [vmem:[%s1 + $0x1cc] sm:$0xf]
    %v1253 = vld [vmem:[%s1 + $0x1d0] sm:$0xf]
    %v1254 = vld [vmem:[%s1 + $0x1d4] sm:$0xf]
    %v1255 = vld [vmem:[%s1 + $0x1d8] sm:$0xf]
    %v1256 = vld [vmem:[%s1 + $0x1dc] sm:$0xf]
    %v1257 = vld [vmem:[%s1 + $0x1e0] sm:$0xf]
    %v1258 = vld [vmem:[%s1 + $0x1e4] sm:$0xf]
    %v1259 = vld [vmem:[%s1 + $0x1e8] sm:$0xf]
    %v1260 = vld [vmem:[%s1 + $0x1ec] sm:$0xf]
    %v1261 = vld [vmem:[%s1 + $0x1f0] sm:$0xf]
    %v1262 = vld [vmem:[%s1 + $0x1f4] sm:$0xf]
    %v1263 = vld [vmem:[%s1 + $0x1f8] sm:$0xf]
    %v1264 = vld [vmem:[%s1 + $0x1fc] sm:$0xf]
    %v1265 = vld [vmem:[%s1 + $0x200] sm:$0xf]
    %v1266 = vld [vmem:[%s1 + $0x204] sm:$0xf]
    %v1267 = vld [vmem:[%s1 + $0x208] sm:$0xf]
    %v1268 = vld [vmem:[%s1 + $0x20c] sm:$0xf]
    %v1269 = vld [vmem:[%s1 + $0x210] sm:$0xf]
    %v1270 = vld [vmem:[%s1 + $0x214] sm:$0xf]
    %v1271 = vld [vmem:[%s1 + $0x218] sm:$0xf]
    %v1272 = vld [vmem:[%s1 + $0x21c] sm:$0xf]
    %v1273 = vld [vmem:[%s1 + $0x220] sm:$0xf]
    %v1274 = vld [vmem:[%s1 + $0x224] sm:$0xf]
    %v1275 = vld [vmem:[%s1 + $0x228] sm:$0xf]
    %v1276 = vld [vmem:[%s1 + $0x22c] sm:$0xf]
    %v1277 = vld [vmem:[%s1 + $0x230] sm:$0xf]
    %v1278 = vld [vmem:[%s1 + $0x234] sm:$0xf]
    %v1279 = vld [vmem:[%s1 + $0x238] sm:$0xf]
    %v1280 = vld [vmem:[%s1 + $0x23c] sm:$0xf]
    %v1281 = vld [vmem:[%s2] sm:$0x1]
    %v1283 = vlaneseq
    %v1284 = vshrl.u32 %v1283, 7
    %v1285 = vsub.s32 0, %v1284
    %v1286 = vrot.slane %v1281, %v1285
    %v1432 = vunpack.c.l.b16 %v1137
    %v1433 = vunpack.c.l.b16 %v1138
    %v1434 = vunpack.c.l.b16 %v1139
    %v1435 = vunpack.c.l.b16 %v1140
    %v1436 = vunpack.c.l.b16 %v1141
    %v1437 = vunpack.c.l.b16 %v1142
    %v1438 = vunpack.c.l.b16 %v1143
    %v1439 = vunpack.c.l.b16 %v1144
    %v1440 = vunpack.c.l.b16 %v1145
    %v1441 = vunpack.c.l.b16 %v1146
    %v1442 = vunpack.c.l.b16 %v1147
    %v1443 = vunpack.c.l.b16 %v1148
    %v1444 = vunpack.c.l.b16 %v1149
    %v1445 = vunpack.c.l.b16 %v1150
    %v1446 = vunpack.c.l.b16 %v1151
    %v1447 = vunpack.c.l.b16 %v1152
    %v1448 = vunpack.c.l.b16 %v1153
    %v1449 = vunpack.c.l.b16 %v1154
    %v1450 = vunpack.c.l.b16 %v1155
    %v1451 = vunpack.c.l.b16 %v1156
    %v1452 = vunpack.c.l.b16 %v1157
    %v1453 = vunpack.c.l.b16 %v1158
    %v1454 = vunpack.c.l.b16 %v1159
    %v1455 = vunpack.c.l.b16 %v1160
    %v1456 = vunpack.c.l.b16 %v1161
    %v1457 = vunpack.c.l.b16 %v1162
    %v1458 = vunpack.c.l.b16 %v1163
    %v1459 = vunpack.c.l.b16 %v1164
    %v1460 = vunpack.c.l.b16 %v1165
    %v1461 = vunpack.c.l.b16 %v1166
    %v1462 = vunpack.c.l.b16 %v1167
    %v1463 = vunpack.c.l.b16 %v1168
    %v1464 = vunpack.c.l.b16 %v1169
    %v1465 = vunpack.c.l.b16 %v1170
    %v1466 = vunpack.c.l.b16 %v1171
    %v1467 = vunpack.c.l.b16 %v1172
    %v1468 = vunpack.c.l.b16 %v1173
    %v1469 = vunpack.c.l.b16 %v1174
    %v1470 = vunpack.c.l.b16 %v1175
    %v1471 = vunpack.c.l.b16 %v1176
    %v1472 = vunpack.c.l.b16 %v1177
    %v1473 = vunpack.c.l.b16 %v1178
    %v1474 = vunpack.c.l.b16 %v1179
    %v1475 = vunpack.c.l.b16 %v1180
    %v1476 = vunpack.c.l.b16 %v1181
    %v1477 = vunpack.c.l.b16 %v1182
    %v1478 = vunpack.c.l.b16 %v1183
    %v1479 = vunpack.c.l.b16 %v1184
    %v1480 = vunpack.c.l.b16 %v1185
    %v1481 = vunpack.c.l.b16 %v1186
    %v1482 = vunpack.c.l.b16 %v1187
    %v1483 = vunpack.c.l.b16 %v1188
    %v1484 = vunpack.c.l.b16 %v1189
    %v1485 = vunpack.c.l.b16 %v1190
    %v1486 = vunpack.c.l.b16 %v1191
    %v1487 = vunpack.c.l.b16 %v1192
    %v1488 = vunpack.c.l.b16 %v1193
    %v1489 = vunpack.c.l.b16 %v1194
    %v1490 = vunpack.c.l.b16 %v1195
    %v1491 = vunpack.c.l.b16 %v1196
    %v1492 = vunpack.c.l.b16 %v1197
    %v1493 = vunpack.c.l.b16 %v1198
    %v1494 = vunpack.c.l.b16 %v1199
    %v1495 = vunpack.c.l.b16 %v1200
    %v1496 = vunpack.c.l.b16 %v1201
    %v1497 = vunpack.c.l.b16 %v1202
    %v1498 = vunpack.c.l.b16 %v1203
    %v1499 = vunpack.c.l.b16 %v1204
    %v1500 = vunpack.c.l.b16 %v1205
    %v1501 = vunpack.c.l.b16 %v1206
    %v1502 = vunpack.c.l.b16 %v1207
    %v1503 = vunpack.c.l.b16 %v1208
    %v1504 = vunpack.c.l.b16 %v1209
    %v1505 = vunpack.c.l.b16 %v1210
    %v1506 = vunpack.c.l.b16 %v1211
    %v1507 = vunpack.c.l.b16 %v1212
    %v1508 = vunpack.c.l.b16 %v1213
    %v1509 = vunpack.c.l.b16 %v1214
    %v1510 = vunpack.c.l.b16 %v1215
    %v1511 = vunpack.c.l.b16 %v1216
    %v1512 = vunpack.c.l.b16 %v1217
    %v1513 = vunpack.c.l.b16 %v1218
    %v1514 = vunpack.c.l.b16 %v1219
    %v1515 = vunpack.c.l.b16 %v1220
    %v1516 = vunpack.c.l.b16 %v1221
    %v1517 = vunpack.c.l.b16 %v1222
    %v1518 = vunpack.c.l.b16 %v1223
    %v1519 = vunpack.c.l.b16 %v1224
    %v1520 = vunpack.c.l.b16 %v1225
    %v1521 = vunpack.c.l.b16 %v1226
    %v1522 = vunpack.c.l.b16 %v1227
    %v1523 = vunpack.c.l.b16 %v1228
    %v1524 = vunpack.c.l.b16 %v1229
    %v1525 = vunpack.c.l.b16 %v1230
    %v1526 = vunpack.c.l.b16 %v1231
    %v1527 = vunpack.c.l.b16 %v1232
    %v1528 = vunpack.c.l.b16 %v1233
    %v1529 = vunpack.c.l.b16 %v1234
    %v1530 = vunpack.c.l.b16 %v1235
    %v1531 = vunpack.c.l.b16 %v1236
    %v1532 = vunpack.c.l.b16 %v1237
    %v1533 = vunpack.c.l.b16 %v1238
    %v1534 = vunpack.c.l.b16 %v1239
    %v1535 = vunpack.c.l.b16 %v1240
    %v1536 = vunpack.c.l.b16 %v1241
    %v1537 = vunpack.c.l.b16 %v1242
    %v1538 = vunpack.c.l.b16 %v1243
    %v1539 = vunpack.c.l.b16 %v1244
    %v1540 = vunpack.c.l.b16 %v1245
    %v1541 = vunpack.c.l.b16 %v1246
    %v1542 = vunpack.c.l.b16 %v1247
    %v1543 = vunpack.c.l.b16 %v1248
    %v1544 = vunpack.c.l.b16 %v1249
    %v1545 = vunpack.c.l.b16 %v1250
    %v1546 = vunpack.c.l.b16 %v1251
    %v1547 = vunpack.c.l.b16 %v1252
    %v1548 = vunpack.c.l.b16 %v1253
    %v1549 = vunpack.c.l.b16 %v1254
    %v1550 = vunpack.c.l.b16 %v1255
    %v1551 = vunpack.c.l.b16 %v1256
    %v1552 = vunpack.c.l.b16 %v1257
    %v1553 = vunpack.c.l.b16 %v1258
    %v1554 = vunpack.c.l.b16 %v1259
    %v1555 = vunpack.c.l.b16 %v1260
    %v1556 = vunpack.c.l.b16 %v1261
    %v1557 = vunpack.c.l.b16 %v1262
    %v1558 = vunpack.c.l.b16 %v1263
    %v1559 = vunpack.c.l.b16 %v1264
    %v1560 = vunpack.c.l.b16 %v1265
    %v1561 = vunpack.c.l.b16 %v1266
    %v1562 = vunpack.c.l.b16 %v1267
    %v1563 = vunpack.c.l.b16 %v1268
    %v1564 = vunpack.c.l.b16 %v1269
    %v1565 = vunpack.c.l.b16 %v1270
    %v1566 = vunpack.c.l.b16 %v1271
    %v1567 = vunpack.c.l.b16 %v1272
    %v1568 = vunpack.c.l.b16 %v1273
    %v1569 = vunpack.c.l.b16 %v1274
    %v1570 = vunpack.c.l.b16 %v1275
    %v1571 = vunpack.c.l.b16 %v1276
    %v1572 = vunpack.c.l.b16 %v1277
    %v1573 = vunpack.c.l.b16 %v1278
    %v1574 = vunpack.c.l.b16 %v1279
    %v1575 = vunpack.c.l.b16 %v1280
    %v1576 = vpack.c.b16 %v1433, %v1432
    %v1577 = vpack.c.b16 %v1435, %v1434
    %v1578 = vpack.c.b16 %v1437, %v1436
    %v1579 = vpack.c.b16 %v1439, %v1438
    %v1580 = vpack.c.b16 %v1441, %v1440
    %v1581 = vpack.c.b16 %v1443, %v1442
    %v1582 = vpack.c.b16 %v1445, %v1444
    %v1583 = vpack.c.b16 %v1447, %v1446
    %v1584 = vpack.c.b16 %v1449, %v1448
    %v1585 = vpack.c.b16 %v1451, %v1450
    %v1586 = vpack.c.b16 %v1453, %v1452
    %v1587 = vpack.c.b16 %v1455, %v1454
    %v1588 = vpack.c.b16 %v1457, %v1456
    %v1589 = vpack.c.b16 %v1459, %v1458
    %v1590 = vpack.c.b16 %v1461, %v1460
    %v1591 = vpack.c.b16 %v1463, %v1462
    %v1592 = vpack.c.b16 %v1465, %v1464
    %v1593 = vpack.c.b16 %v1467, %v1466
    %v1594 = vpack.c.b16 %v1469, %v1468
    %v1595 = vpack.c.b16 %v1471, %v1470
    %v1596 = vpack.c.b16 %v1473, %v1472
    %v1597 = vpack.c.b16 %v1475, %v1474
    %v1598 = vpack.c.b16 %v1477, %v1476
    %v1599 = vpack.c.b16 %v1479, %v1478
    %v1600 = vpack.c.b16 %v1481, %v1480
    %v1601 = vpack.c.b16 %v1483, %v1482
    %v1602 = vpack.c.b16 %v1485, %v1484
    %v1603 = vpack.c.b16 %v1487, %v1486
    %v1604 = vpack.c.b16 %v1489, %v1488
    %v1605 = vpack.c.b16 %v1491, %v1490
    %v1606 = vpack.c.b16 %v1493, %v1492
    %v1607 = vpack.c.b16 %v1495, %v1494
    %v1608 = vpack.c.b16 %v1497, %v1496
    %v1609 = vpack.c.b16 %v1499, %v1498
    %v1610 = vpack.c.b16 %v1501, %v1500
    %v1611 = vpack.c.b16 %v1503, %v1502
    %v1612 = vpack.c.b16 %v1505, %v1504
    %v1613 = vpack.c.b16 %v1507, %v1506
    %v1614 = vpack.c.b16 %v1509, %v1508
    %v1615 = vpack.c.b16 %v1511, %v1510
    %v1616 = vpack.c.b16 %v1513, %v1512
    %v1617 = vpack.c.b16 %v1515, %v1514
    %v1618 = vpack.c.b16 %v1517, %v1516
    %v1619 = vpack.c.b16 %v1519, %v1518
    %v1620 = vpack.c.b16 %v1521, %v1520
    %v1621 = vpack.c.b16 %v1523, %v1522
    %v1622 = vpack.c.b16 %v1525, %v1524
    %v1623 = vpack.c.b16 %v1527, %v1526
    %v1624 = vpack.c.b16 %v1529, %v1528
    %v1625 = vpack.c.b16 %v1531, %v1530
    %v1626 = vpack.c.b16 %v1533, %v1532
    %v1627 = vpack.c.b16 %v1535, %v1534
    %v1628 = vpack.c.b16 %v1537, %v1536
    %v1629 = vpack.c.b16 %v1539, %v1538
    %v1630 = vpack.c.b16 %v1541, %v1540
    %v1631 = vpack.c.b16 %v1543, %v1542
    %v1632 = vpack.c.b16 %v1545, %v1544
    %v1633 = vpack.c.b16 %v1547, %v1546
    %v1634 = vpack.c.b16 %v1549, %v1548
    %v1635 = vpack.c.b16 %v1551, %v1550
    %v1636 = vpack.c.b16 %v1553, %v1552
    %v1637 = vpack.c.b16 %v1555, %v1554
    %v1638 = vpack.c.b16 %v1557, %v1556
    %v1639 = vpack.c.b16 %v1559, %v1558
    %v1640 = vpack.c.b16 %v1561, %v1560
    %v1641 = vpack.c.b16 %v1563, %v1562
    %v1642 = vpack.c.b16 %v1565, %v1564
    %v1643 = vpack.c.b16 %v1567, %v1566
    %v1644 = vpack.c.b16 %v1569, %v1568
    %v1645 = vpack.c.b16 %v1571, %v1570
    %v1646 = vpack.c.b16 %v1573, %v1572
    %v1647 = vpack.c.b16 %v1575, %v1574
    %1720 = vmatprep.subr.bf16.mxu0 0
    %1721 = vmatpush1.bf16.msra.mxu0 %v1576
    %1722 = vmatprep.subr.bf16.mxu0 0
    %1723 = vmatpush1.bf16.msra.mxu0 %v1577
    %1724 = vmatprep.subr.bf16.mxu0 0
    %1725 = vmatpush1.bf16.msra.mxu0 %v1578
    %1726 = vmatprep.subr.bf16.mxu0 0
    %1727 = vmatpush1.bf16.msra.mxu0 %v1579
    %1728 = vmatprep.subr.bf16.mxu0 0
    %1729 = vmatpush1.bf16.msra.mxu0 %v1580
    %1730 = vmatprep.subr.bf16.mxu0 0
    %1731 = vmatpush1.bf16.msra.mxu0 %v1581
    %1732 = vmatprep.subr.bf16.mxu0 0
    %1733 = vmatpush1.bf16.msra.mxu0 %v1582
    %1734 = vmatprep.subr.bf16.mxu0 0
    %1735 = vmatpush1.bf16.msra.mxu0 %v1583
    %1736 = vmatprep.subr.bf16.mxu0 0
    %1737 = vmatpush1.bf16.msra.mxu0 %v1584
    %1738 = vmatprep.subr.bf16.mxu0 0
    %1739 = vmatpush1.bf16.msra.mxu0 %v1585
    %1740 = vmatprep.subr.bf16.mxu0 0
    %1741 = vmatpush1.bf16.msra.mxu0 %v1586
    %1742 = vmatprep.subr.bf16.mxu0 0
    %1743 = vmatpush1.bf16.msra.mxu0 %v1587
    %1744 = vmatprep.subr.bf16.mxu0 0
    %1745 = vmatpush1.bf16.msra.mxu0 %v1588
    %1746 = vmatprep.subr.bf16.mxu0 0
    %1747 = vmatpush1.bf16.msra.mxu0 %v1589
    %1748 = vmatprep.subr.bf16.mxu0 0
    %1749 = vmatpush1.bf16.msra.mxu0 %v1590
    %1750 = vmatprep.subr.bf16.mxu0 0
    %1751 = vmatpush1.bf16.msra.mxu0 %v1591
    %1752 = vmatprep.mubr.bf16.mxu0 %v432
    %1753 = vmatmul.mubr.bf16.gmra.mrb[0].mxu0 %v336
    %v1754 = vpop.f32.mrb[0].mxu0
    %v1755 = vadd.f32 %v1286, %v1754
    %v1756 = vpop.f32.mrb[0].mxu0
    %v1757 = vpop.f32.mrb[0].mxu0
    %v1758 = vadd.f32 %v1286, %v1757
    %v1759 = vpop.f32.mrb[0].mxu0
    %1760 = vmatprep.mubr.bf16.mxu0 %v433
    %1761 = vmatmul.mubr.bf16.gmra.mrb[0].mxu0 %v337
    %v1762 = vpop.f32.mrb[0].mxu0
    %v1763 = vadd.f32 %v1286, %v1762
    %v1764 = vpop.f32.mrb[0].mxu0
    %v1765 = vpop.f32.mrb[0].mxu0
    %v1766 = vadd.f32 %v1286, %v1765
    %v1767 = vpop.f32.mrb[0].mxu0
    %1768 = vmatprep.mubr.bf16.mxu0 %v434
    %1769 = vmatmul.mubr.bf16.gmra.mrb[0].mxu0 %v338
    %v1770 = vpop.f32.mrb[0].mxu0
    %v1771 = vadd.f32 %v1286, %v1770
    %v1772 = vpop.f32.mrb[0].mxu0
    %v1773 = vpop.f32.mrb[0].mxu0
    %v1774 = vadd.f32 %v1286, %v1773
    %v1775 = vpop.f32.mrb[0].mxu0
    %1776 = vmatprep.mubr.bf16.mxu0 %v435
    %1777 = vmatmul.mubr.bf16.gmra.mrb[0].mxu0 %v339
    %v1778 = vpop.f32.mrb[0].mxu0
    %v1779 = vadd.f32 %v1286, %v1778
    %v1780 = vpop.f32.mrb[0].mxu0
    %v1781 = vpop.f32.mrb[0].mxu0
    %v1782 = vadd.f32 %v1286, %v1781
    %v1783 = vpop.f32.mrb[0].mxu0
    %1784 = vmatprep.mubr.bf16.mxu0 %v436
    %1785 = vmatmul.mubr.bf16.gmra.mrb[0].mxu0 %v340
    %v1786 = vpop.f32.mrb[0].mxu0
    %v1787 = vadd.f32 %v1286, %v1786
    %v1788 = vpop.f32.mrb[0].mxu0
    %v1789 = vpop.f32.mrb[0].mxu0
    %v1790 = vadd.f32 %v1286, %v1789
    %v1791 = vpop.f32.mrb[0].mxu0
    %1792 = vmatprep.mubr.bf16.mxu0 %v437
    %1793 = vmatmul.mubr.bf16.gmra.mrb[0].mxu0 %v341
    %v1794 = vpop.f32.mrb[0].mxu0
    %v1795 = vadd.f32 %v1286, %v1794
    %v1796 = vpop.f32.mrb[0].mxu0
    %v1797 = vpop.f32.mrb[0].mxu0
    %v1798 = vadd.f32 %v1286, %v1797
    %v1799 = vpop.f32.mrb[0].mxu0
    %1800 = vmatprep.mubr.bf16.mxu0 %v438
    %1801 = vmatmul.mubr.bf16.gmra.mrb[0].mxu0 %v342
    %v1802 = vpop.f32.mrb[0].mxu0
    %v1803 = vadd.f32 %v1286, %v1802
    %v1804 = vpop.f32.mrb[0].mxu0
    %v1805 = vpop.f32.mrb[0].mxu0
    %v1806 = vadd.f32 %v1286, %v1805
    %v1807 = vpop.f32.mrb[0].mxu0
    %1808 = vmatprep.mubr.bf16.mxu0 %v439
    %1809 = vmatmul.mubr.bf16.gmra.mrb[0].mxu0 %v343
    %v1810 = vpop.f32.mrb[0].mxu0
    %v1811 = vadd.f32 %v1286, %v1810
    %v1812 = vpop.f32.mrb[0].mxu0
    %v1813 = vpop.f32.mrb[0].mxu0
    %v1814 = vadd.f32 %v1286, %v1813
    %v1815 = vpop.f32.mrb[0].mxu0
    %1816 = vmatprep.mubr.bf16.mxu0 %v440
    %1817 = vmatmul.mubr.bf16.gmra.mrb[0].mxu0 %v344
    %v1818 = vpop.f32.mrb[0].mxu0
    %v1819 = vadd.f32 %v1286, %v1818
    %v1820 = vpop.f32.mrb[0].mxu0
    %v1821 = vpop.f32.mrb[0].mxu0
    %v1822 = vadd.f32 %v1286, %v1821
    %v1823 = vpop.f32.mrb[0].mxu0
    %1824 = vmatprep.mubr.bf16.mxu0 %v441
    %1825 = vmatmul.mubr.bf16.gmra.mrb[0].mxu0 %v345
    %v1826 = vpop.f32.mrb[0].mxu0
    %v1827 = vadd.f32 %v1286, %v1826
    %v1828 = vpop.f32.mrb[0].mxu0
    %v1829 = vpop.f32.mrb[0].mxu0
    %v1830 = vadd.f32 %v1286, %v1829
    %v1831 = vpop.f32.mrb[0].mxu0
    %1832 = vmatprep.mubr.bf16.mxu0 %v442
    %1833 = vmatmul.mubr.bf16.gmra.mrb[0].mxu0 %v346
    %v1834 = vpop.f32.mrb[0].mxu0
    %v1835 = vadd.f32 %v1286, %v1834
    %v1836 = vpop.f32.mrb[0].mxu0
    %v1837 = vpop.f32.mrb[0].mxu0
    %v1838 = vadd.f32 %v1286, %v1837
    %v1839 = vpop.f32.mrb[0].mxu0
    %1840 = vmatprep.mubr.bf16.mxu0 %v443
    %1841 = vmatmul.mubr.bf16.gmra.mrb[0].mxu0 %v347
    %v1842 = vpop.f32.mrb[0].mxu0
    %v1843 = vadd.f32 %v1286, %v1842
    %v1844 = vpop.f32.mrb[0].mxu0
    %v1845 = vpop.f32.mrb[0].mxu0
    %v1846 = vadd.f32 %v1286, %v1845
    %v1847 = vpop.f32.mrb[0].mxu0
    %1848 = vmatprep.mubr.bf16.mxu0 %v444
    %1849 = vmatmul.mubr.bf16.gmra.mrb[0].mxu0 %v348
    %v1850 = vpop.f32.mrb[0].mxu0
    %v1851 = vadd.f32 %v1286, %v1850
    %v1852 = vpop.f32.mrb[0].mxu0
    %v1853 = vpop.f32.mrb[0].mxu0
    %v1854 = vadd.f32 %v1286, %v1853
    %v1855 = vpop.f32.mrb[0].mxu0
    %1856 = vmatprep.mubr.bf16.mxu0 %v445
    %1857 = vmatmul.mubr.bf16.gmra.mrb[0].mxu0 %v349
    %v1858 = vpop.f32.mrb[0].mxu0
    %v1859 = vadd.f32 %v1286, %v1858
    %v1860 = vpop.f32.mrb[0].mxu0
    %v1861 = vpop.f32.mrb[0].mxu0
    %v1862 = vadd.f32 %v1286, %v1861
    %v1863 = vpop.f32.mrb[0].mxu0
    %1864 = vmatprep.mubr.bf16.mxu0 %v446
    %1865 = vmatmul.mubr.bf16.gmra.mrb[0].mxu0 %v350
    %v1866 = vpop.f32.mrb[0].mxu0
    %v1867 = vadd.f32 %v1286, %v1866
    %v1868 = vpop.f32.mrb[0].mxu0
    %v1869 = vpop.f32.mrb[0].mxu0
    %v1870 = vadd.f32 %v1286, %v1869
    %v1871 = vpop.f32.mrb[0].mxu0
    %1872 = vmatprep.mubr.bf16.mxu0 %v447
    %1873 = vmatmul.mubr.bf16.gmra.mrb[0].mxu0 %v351
    %v1874 = vpop.f32.mrb[0].mxu0
    %v1875 = vadd.f32 %v1286, %v1874
    %v1876 = vpop.f32.mrb[0].mxu0
    %v1877 = vpop.f32.mrb[0].mxu0
    %v1878 = vadd.f32 %v1286, %v1877
    %v1879 = vpop.f32.mrb[0].mxu0
    %1880 = vmatprep.mubr.bf16.mxu0 %v448
    %1881 = vmatmul.mubr.bf16.gmra.mrb[0].mxu0 %v352
    %v1882 = vpop.f32.mrb[0].mxu0
    %v1883 = vadd.f32 %v1286, %v1882
    %v1884 = vpop.f32.mrb[0].mxu0
    %v1885 = vpop.f32.mrb[0].mxu0
    %v1886 = vadd.f32 %v1286, %v1885
    %v1887 = vpop.f32.mrb[0].mxu0
    %1888 = vmatprep.mubr.bf16.mxu0 %v449
    %1889 = vmatmul.mubr.bf16.gmra.mrb[0].mxu0 %v353
    %v1890 = vpop.f32.mrb[0].mxu0
    %v1891 = vadd.f32 %v1286, %v1890
    %v1892 = vpop.f32.mrb[0].mxu0
    %v1893 = vpop.f32.mrb[0].mxu0
    %v1894 = vadd.f32 %v1286, %v1893
    %v1895 = vpop.f32.mrb[0].mxu0
    %1896 = vmatprep.mubr.bf16.mxu0 %v450
    %1897 = vmatmul.mubr.bf16.gmra.mrb[0].mxu0 %v354
    %v1898 = vpop.f32.mrb[0].mxu0
    %v1899 = vadd.f32 %v1286, %v1898
    %v1900 = vpop.f32.mrb[0].mxu0
    %v1901 = vpop.f32.mrb[0].mxu0
    %v1902 = vadd.f32 %v1286, %v1901
    %v1903 = vpop.f32.mrb[0].mxu0
    %1904 = vmatprep.mubr.bf16.mxu0 %v451
    %1905 = vmatmul.mubr.bf16.gmra.mrb[0].mxu0 %v355
    %v1906 = vpop.f32.mrb[0].mxu0
    %v1907 = vadd.f32 %v1286, %v1906
    %v1908 = vpop.f32.mrb[0].mxu0
    %v1909 = vpop.f32.mrb[0].mxu0
    %v1910 = vadd.f32 %v1286, %v1909
    %v1911 = vpop.f32.mrb[0].mxu0
    %1912 = vmatprep.mubr.bf16.mxu0 %v452
    %1913 = vmatmul.mubr.bf16.gmra.mrb[0].mxu0 %v356
    %v1914 = vpop.f32.mrb[0].mxu0
    %v1915 = vadd.f32 %v1286, %v1914
    %v1916 = vpop.f32.mrb[0].mxu0
    %v1917 = vpop.f32.mrb[0].mxu0
    %v1918 = vadd.f32 %v1286, %v1917
    %v1919 = vpop.f32.mrb[0].mxu0
    %1920 = vmatprep.mubr.bf16.mxu0 %v453
    %1921 = vmatmul.mubr.bf16.gmra.mrb[0].mxu0 %v357
    %v1922 = vpop.f32.mrb[0].mxu0
    %v1923 = vadd.f32 %v1286, %v1922
    %v1924 = vpop.f32.mrb[0].mxu0
    %v1925 = vpop.f32.mrb[0].mxu0
    %v1926 = vadd.f32 %v1286, %v1925
    %v1927 = vpop.f32.mrb[0].mxu0
    %1928 = vmatprep.mubr.bf16.mxu0 %v454
    %1929 = vmatmul.mubr.bf16.gmra.mrb[0].mxu0 %v358
    %v1930 = vpop.f32.mrb[0].mxu0
    %v1931 = vadd.f32 %v1286, %v1930
    %v1932 = vpop.f32.mrb[0].mxu0
    %v1933 = vpop.f32.mrb[0].mxu0
    %v1934 = vadd.f32 %v1286, %v1933
    %v1935 = vpop.f32.mrb[0].mxu0
    %1936 = vmatprep.mubr.bf16.mxu0 %v455
    %1937 = vmatmul.mubr.bf16.gmra.mrb[0].mxu0 %v359
    %v1938 = vpop.f32.mrb[0].mxu0
    %v1939 = vadd.f32 %v1286, %v1938
    %v1940 = vpop.f32.mrb[0].mxu0
    %v1941 = vpop.f32.mrb[0].mxu0
    %v1942 = vadd.f32 %v1286, %v1941
    %v1943 = vpop.f32.mrb[0].mxu0
    %1944 = vmatprep.mubr.bf16.mxu0 %v456
    %1945 = vmatmul.mubr.bf16.gmra.mrb[0].mxu0 %v360
    %v1946 = vpop.f32.mrb[0].mxu0
    %v1947 = vadd.f32 %v1286, %v1946
    %v1948 = vpop.f32.mrb[0].mxu0
    %v1949 = vpop.f32.mrb[0].mxu0
    %v1950 = vadd.f32 %v1286, %v1949
    %v1951 = vpop.f32.mrb[0].mxu0
    %1952 = vmatprep.mubr.bf16.mxu0 %v457
    %1953 = vmatmul.mubr.bf16.gmra.mrb[0].mxu0 %v361
    %v1954 = vpop.f32.mrb[0].mxu0
    %v1955 = vadd.f32 %v1286, %v1954
    %v1956 = vpop.f32.mrb[0].mxu0
    %v1957 = vpop.f32.mrb[0].mxu0
    %v1958 = vadd.f32 %v1286, %v1957
    %v1959 = vpop.f32.mrb[0].mxu0
    %1960 = vmatprep.mubr.bf16.mxu0 %v458
    %1961 = vmatmul.mubr.bf16.gmra.mrb[0].mxu0 %v362
    %v1962 = vpop.f32.mrb[0].mxu0
    %v1963 = vadd.f32 %v1286, %v1962
    %v1964 = vpop.f32.mrb[0].mxu0
    %v1965 = vpop.f32.mrb[0].mxu0
    %v1966 = vadd.f32 %v1286, %v1965
    %v1967 = vpop.f32.mrb[0].mxu0
    %1968 = vmatprep.mubr.bf16.mxu0 %v459
    %1969 = vmatmul.mubr.bf16.gmra.mrb[0].mxu0 %v363
    %v1970 = vpop.f32.mrb[0].mxu0
    %v1971 = vadd.f32 %v1286, %v1970
    %v1972 = vpop.f32.mrb[0].mxu0
    %v1973 = vpop.f32.mrb[0].mxu0
    %v1974 = vadd.f32 %v1286, %v1973
    %v1975 = vpop.f32.mrb[0].mxu0
    %1976 = vmatprep.mubr.bf16.mxu0 %v460
    %1977 = vmatmul.mubr.bf16.gmra.mrb[0].mxu0 %v364
    %v1978 = vpop.f32.mrb[0].mxu0
    %v1979 = vadd.f32 %v1286, %v1978
    %v1980 = vpop.f32.mrb[0].mxu0
    %v1981 = vpop.f32.mrb[0].mxu0
    %v1982 = vadd.f32 %v1286, %v1981
    %v1983 = vpop.f32.mrb[0].mxu0
    %1984 = vmatprep.mubr.bf16.mxu0 %v461
    %1985 = vmatmul.mubr.bf16.gmra.mrb[0].mxu0 %v365
    %v1986 = vpop.f32.mrb[0].mxu0
    %v1987 = vadd.f32 %v1286, %v1986
    %v1988 = vpop.f32.mrb[0].mxu0
    %v1989 = vpop.f32.mrb[0].mxu0
    %v1990 = vadd.f32 %v1286, %v1989
    %v1991 = vpop.f32.mrb[0].mxu0
    %1992 = vmatprep.mubr.bf16.mxu0 %v462
    %1993 = vmatmul.mubr.bf16.gmra.mrb[0].mxu0 %v366
    %v1994 = vpop.f32.mrb[0].mxu0
    %v1995 = vadd.f32 %v1286, %v1994
    %v1996 = vpop.f32.mrb[0].mxu0
    %v1997 = vpop.f32.mrb[0].mxu0
    %v1998 = vadd.f32 %v1286, %v1997
    %v1999 = vpop.f32.mrb[0].mxu0
    %2000 = vmatprep.mubr.bf16.mxu0 %v463
    %2001 = vmatmul.mubr.bf16.gmra.mrb[0].mxu0 %v367
    %v2002 = vpop.f32.mrb[0].mxu0
    %v2003 = vadd.f32 %v1286, %v2002
    %v2004 = vpop.f32.mrb[0].mxu0
    %v2005 = vpop.f32.mrb[0].mxu0
    %v2006 = vadd.f32 %v1286, %v2005
    %v2007 = vpop.f32.mrb[0].mxu0
    %2008 = vdwg.mxu0
    %2009 = vmatprep.subr.bf16.mxu0 0
    %2010 = vmatpush1.bf16.msra.mxu0 %v1592
    %2011 = vmatprep.subr.bf16.mxu0 0
    %2012 = vmatpush1.bf16.msra.mxu0 %v1593
    %2013 = vmatprep.subr.bf16.mxu0 0
    %2014 = vmatpush1.bf16.msra.mxu0 %v1594
    %2015 = vmatprep.subr.bf16.mxu0 0
    %2016 = vmatpush1.bf16.msra.mxu0 %v1595
    %2017 = vmatprep.subr.bf16.mxu0 0
    %2018 = vmatpush1.bf16.msra.mxu0 %v1596
    %2019 = vmatprep.subr.bf16.mxu0 0
    %2020 = vmatpush1.bf16.msra.mxu0 %v1597
    %2021 = vmatprep.subr.bf16.mxu0 0
    %2022 = vmatpush1.bf16.msra.mxu0 %v1598
    %2023 = vmatprep.subr.bf16.mxu0 0
    %2024 = vmatpush1.bf16.msra.mxu0 %v1599
    %2025 = vmatprep.subr.bf16.mxu0 0
    %2026 = vmatpush1.bf16.msra.mxu0 %v1600
    %2027 = vmatprep.subr.bf16.mxu0 0
    %2028 = vmatpush1.bf16.msra.mxu0 %v1601
    %2029 = vmatprep.subr.bf16.mxu0 0
    %2030 = vmatpush1.bf16.msra.mxu0 %v1602
    %2031 = vmatprep.subr.bf16.mxu0 0
    %2032 = vmatpush1.bf16.msra.mxu0 %v1603
    %2033 = vmatprep.subr.bf16.mxu0 0
    %2034 = vmatpush1.bf16.msra.mxu0 %v1604
    %2035 = vmatprep.subr.bf16.mxu0 0
    %2036 = vmatpush1.bf16.msra.mxu0 %v1605
    %2037 = vmatprep.subr.bf16.mxu0 0
    %2038 = vmatpush1.bf16.msra.mxu0 %v1606
    %2039 = vmatprep.subr.bf16.mxu0 0
    %2040 = vmatpush1.bf16.msra.mxu0 %v1607
    %2041 = vmatprep.mubr.bf16.mxu0 %v624
    %2042 = vmatmul.mubr.bf16.gmra.mrb[0].mxu0 %v528
    %v2043 = vpop.f32.mrb[0].mxu0
    %v2044 = vadd.f32 %v1755, %v2043
    %v2045 = vpop.f32.mrb[0].mxu0
    %v2046 = vpop.f32.mrb[0].mxu0
    %v2047 = vadd.f32 %v1758, %v2046
    %v2048 = vpop.f32.mrb[0].mxu0
    %2049 = vmatprep.mubr.bf16.mxu0 %v625
    %2050 = vmatmul.mubr.bf16.gmra.mrb[0].mxu0 %v529
    %v2051 = vpop.f32.mrb[0].mxu0
    %v2052 = vadd.f32 %v1763, %v2051
    %v2053 = vpop.f32.mrb[0].mxu0
    %v2054 = vpop.f32.mrb[0].mxu0
    %v2055 = vadd.f32 %v1766, %v2054
    %v2056 = vpop.f32.mrb[0].mxu0
    %2057 = vmatprep.mubr.bf16.mxu0 %v626
    %2058 = vmatmul.mubr.bf16.gmra.mrb[0].mxu0 %v530
    %v2059 = vpop.f32.mrb[0].mxu0
    %v2060 = vadd.f32 %v1771, %v2059
    %v2061 = vpop.f32.mrb[0].mxu0
    %v2062 = vpop.f32.mrb[0].mxu0
    %v2063 = vadd.f32 %v1774, %v2062
    %v2064 = vpop.f32.mrb[0].mxu0
    %2065 = vmatprep.mubr.bf16.mxu0 %v627
    %2066 = vmatmul.mubr.bf16.gmra.mrb[0].mxu0 %v531
    %v2067 = vpop.f32.mrb[0].mxu0
    %v2068 = vadd.f32 %v1779, %v2067
    %v2069 = vpop.f32.mrb[0].mxu0
    %v2070 = vpop.f32.mrb[0].mxu0
    %v2071 = vadd.f32 %v1782, %v2070
    %v2072 = vpop.f32.mrb[0].mxu0
    %2073 = vmatprep.mubr.bf16.mxu0 %v628
    %2074 = vmatmul.mubr.bf16.gmra.mrb[0].mxu0 %v532
    %v2075 = vpop.f32.mrb[0].mxu0
    %v2076 = vadd.f32 %v1787, %v2075
    %v2077 = vpop.f32.mrb[0].mxu0
    %v2078 = vpop.f32.mrb[0].mxu0
    %v2079 = vadd.f32 %v1790, %v2078
    %v2080 = vpop.f32.mrb[0].mxu0
    %2081 = vmatprep.mubr.bf16.mxu0 %v629
    %2082 = vmatmul.mubr.bf16.gmra.mrb[0].mxu0 %v533
    %v2083 = vpop.f32.mrb[0].mxu0
    %v2084 = vadd.f32 %v1795, %v2083
    %v2085 = vpop.f32.mrb[0].mxu0
    %v2086 = vpop.f32.mrb[0].mxu0
    %v2087 = vadd.f32 %v1798, %v2086
    %v2088 = vpop.f32.mrb[0].mxu0
    %2089 = vmatprep.mubr.bf16.mxu0 %v630
    %2090 = vmatmul.mubr.bf16.gmra.mrb[0].mxu0 %v534
    %v2091 = vpop.f32.mrb[0].mxu0
    %v2092 = vadd.f32 %v1803, %v2091
    %v2093 = vpop.f32.mrb[0].mxu0
    %v2094 = vpop.f32.mrb[0].mxu0
    %v2095 = vadd.f32 %v1806, %v2094
    %v2096 = vpop.f32.mrb[0].mxu0
    %2097 = vmatprep.mubr.bf16.mxu0 %v631
    %2098 = vmatmul.mubr.bf16.gmra.mrb[0].mxu0 %v535
    %v2099 = vpop.f32.mrb[0].mxu0
    %v2100 = vadd.f32 %v1811, %v2099
    %v2101 = vpop.f32.mrb[0].mxu0
    %v2102 = vpop.f32.mrb[0].mxu0
    %v2103 = vadd.f32 %v1814, %v2102
    %v2104 = vpop.f32.mrb[0].mxu0
    %2105 = vmatprep.mubr.bf16.mxu0 %v632
    %2106 = vmatmul.mubr.bf16.gmra.mrb[0].mxu0 %v536
    %v2107 = vpop.f32.mrb[0].mxu0
    %v2108 = vadd.f32 %v1819, %v2107
    %v2109 = vpop.f32.mrb[0].mxu0
    %v2110 = vpop.f32.mrb[0].mxu0
    %v2111 = vadd.f32 %v1822, %v2110
    %v2112 = vpop.f32.mrb[0].mxu0
    %2113 = vmatprep.mubr.bf16.mxu0 %v633
    %2114 = vmatmul.mubr.bf16.gmra.mrb[0].mxu0 %v537
    %v2115 = vpop.f32.mrb[0].mxu0
    %v2116 = vadd.f32 %v1827, %v2115
    %v2117 = vpop.f32.mrb[0].mxu0
    %v2118 = vpop.f32.mrb[0].mxu0
    %v2119 = vadd.f32 %v1830, %v2118
    %v2120 = vpop.f32.mrb[0].mxu0
    %2121 = vmatprep.mubr.bf16.mxu0 %v634
    %2122 = vmatmul.mubr.bf16.gmra.mrb[0].mxu0 %v538
    %v2123 = vpop.f32.mrb[0].mxu0
    %v2124 = vadd.f32 %v1835, %v2123
    %v2125 = vpop.f32.mrb[0].mxu0
    %v2126 = vpop.f32.mrb[0].mxu0
    %v2127 = vadd.f32 %v1838, %v2126
    %v2128 = vpop.f32.mrb[0].mxu0
    %2129 = vmatprep.mubr.bf16.mxu0 %v635
    %2130 = vmatmul.mubr.bf16.gmra.mrb[0].mxu0 %v539
    %v2131 = vpop.f32.mrb[0].mxu0
    %v2132 = vadd.f32 %v1843, %v2131
    %v2133 = vpop.f32.mrb[0].mxu0
    %v2134 = vpop.f32.mrb[0].mxu0
    %v2135 = vadd.f32 %v1846, %v2134
    %v2136 = vpop.f32.mrb[0].mxu0
    %2137 = vmatprep.mubr.bf16.mxu0 %v636
    %2138 = vmatmul.mubr.bf16.gmra.mrb[0].mxu0 %v540
    %v2139 = vpop.f32.mrb[0].mxu0
    %v2140 = vadd.f32 %v1851, %v2139
    %v2141 = vpop.f32.mrb[0].mxu0
    %v2142 = vpop.f32.mrb[0].mxu0
    %v2143 = vadd.f32 %v1854, %v2142
    %v2144 = vpop.f32.mrb[0].mxu0
    %2145 = vmatprep.mubr.bf16.mxu0 %v637
    %2146 = vmatmul.mubr.bf16.gmra.mrb[0].mxu0 %v541
    %v2147 = vpop.f32.mrb[0].mxu0
    %v2148 = vadd.f32 %v1859, %v2147
    %v2149 = vpop.f32.mrb[0].mxu0
    %v2150 = vpop.f32.mrb[0].mxu0
    %v2151 = vadd.f32 %v1862, %v2150
    %v2152 = vpop.f32.mrb[0].mxu0
    %2153 = vmatprep.mubr.bf16.mxu0 %v638
    %2154 = vmatmul.mubr.bf16.gmra.mrb[0].mxu0 %v542
    %v2155 = vpop.f32.mrb[0].mxu0
    %v2156 = vadd.f32 %v1867, %v2155
    %v2157 = vpop.f32.mrb[0].mxu0
    %v2158 = vpop.f32.mrb[0].mxu0
    %v2159 = vadd.f32 %v1870, %v2158
    %v2160 = vpop.f32.mrb[0].mxu0
    %2161 = vmatprep.mubr.bf16.mxu0 %v639
    %2162 = vmatmul.mubr.bf16.gmra.mrb[0].mxu0 %v543
    %v2163 = vpop.f32.mrb[0].mxu0
    %v2164 = vadd.f32 %v1875, %v2163
    %v2165 = vpop.f32.mrb[0].mxu0
    %v2166 = vpop.f32.mrb[0].mxu0
    %v2167 = vadd.f32 %v1878, %v2166
    %v2168 = vpop.f32.mrb[0].mxu0
    %2169 = vmatprep.mubr.bf16.mxu0 %v640
    %2170 = vmatmul.mubr.bf16.gmra.mrb[0].mxu0 %v544
    %v2171 = vpop.f32.mrb[0].mxu0
    %v2172 = vadd.f32 %v1883, %v2171
    %v2173 = vpop.f32.mrb[0].mxu0
    %v2174 = vpop.f32.mrb[0].mxu0
    %v2175 = vadd.f32 %v1886, %v2174
    %v2176 = vpop.f32.mrb[0].mxu0
    %2177 = vmatprep.mubr.bf16.mxu0 %v641
    %2178 = vmatmul.mubr.bf16.gmra.mrb[0].mxu0 %v545
    %v2179 = vpop.f32.mrb[0].mxu0
    %v2180 = vadd.f32 %v1891, %v2179
    %v2181 = vpop.f32.mrb[0].mxu0
    %v2182 = vpop.f32.mrb[0].mxu0
    %v2183 = vadd.f32 %v1894, %v2182
    %v2184 = vpop.f32.mrb[0].mxu0
    %2185 = vmatprep.mubr.bf16.mxu0 %v642
    %2186 = vmatmul.mubr.bf16.gmra.mrb[0].mxu0 %v546
    %v2187 = vpop.f32.mrb[0].mxu0
    %v2188 = vadd.f32 %v1899, %v2187
    %v2189 = vpop.f32.mrb[0].mxu0
    %v2190 = vpop.f32.mrb[0].mxu0
    %v2191 = vadd.f32 %v1902, %v2190
    %v2192 = vpop.f32.mrb[0].mxu0
    %2193 = vmatprep.mubr.bf16.mxu0 %v643
    %2194 = vmatmul.mubr.bf16.gmra.mrb[0].mxu0 %v547
    %v2195 = vpop.f32.mrb[0].mxu0
    %v2196 = vadd.f32 %v1907, %v2195
    %v2197 = vpop.f32.mrb[0].mxu0
    %v2198 = vpop.f32.mrb[0].mxu0
    %v2199 = vadd.f32 %v1910, %v2198
    %v2200 = vpop.f32.mrb[0].mxu0
    %2201 = vmatprep.mubr.bf16.mxu0 %v644
    %2202 = vmatmul.mubr.bf16.gmra.mrb[0].mxu0 %v548
    %v2203 = vpop.f32.mrb[0].mxu0
    %v2204 = vadd.f32 %v1915, %v2203
    %v2205 = vpop.f32.mrb[0].mxu0
    %v2206 = vpop.f32.mrb[0].mxu0
    %v2207 = vadd.f32 %v1918, %v2206
    %v2208 = vpop.f32.mrb[0].mxu0
    %2209 = vmatprep.mubr.bf16.mxu0 %v645
    %2210 = vmatmul.mubr.bf16.gmra.mrb[0].mxu0 %v549
    %v2211 = vpop.f32.mrb[0].mxu0
    %v2212 = vadd.f32 %v1923, %v2211
    %v2213 = vpop.f32.mrb[0].mxu0
    %v2214 = vpop.f32.mrb[0].mxu0
    %v2215 = vadd.f32 %v1926, %v2214
    %v2216 = vpop.f32.mrb[0].mxu0
    %2217 = vmatprep.mubr.bf16.mxu0 %v646
    %2218 = vmatmul.mubr.bf16.gmra.mrb[0].mxu0 %v550
    %v2219 = vpop.f32.mrb[0].mxu0
    %v2220 = vadd.f32 %v1931, %v2219
    %v2221 = vpop.f32.mrb[0].mxu0
    %v2222 = vpop.f32.mrb[0].mxu0
    %v2223 = vadd.f32 %v1934, %v2222
    %v2224 = vpop.f32.mrb[0].mxu0
    %2225 = vmatprep.mubr.bf16.mxu0 %v647
    %2226 = vmatmul.mubr.bf16.gmra.mrb[0].mxu0 %v551
    %v2227 = vpop.f32.mrb[0].mxu0
    %v2228 = vadd.f32 %v1939, %v2227
    %v2229 = vpop.f32.mrb[0].mxu0
    %v2230 = vpop.f32.mrb[0].mxu0
    %v2231 = vadd.f32 %v1942, %v2230
    %v2232 = vpop.f32.mrb[0].mxu0
    %2233 = vmatprep.mubr.bf16.mxu0 %v648
    %2234 = vmatmul.mubr.bf16.gmra.mrb[0].mxu0 %v552
    %v2235 = vpop.f32.mrb[0].mxu0
    %v2236 = vadd.f32 %v1947, %v2235
    %v2237 = vpop.f32.mrb[0].mxu0
    %v2238 = vpop.f32.mrb[0].mxu0
    %v2239 = vadd.f32 %v1950, %v2238
    %v2240 = vpop.f32.mrb[0].mxu0
    %2241 = vmatprep.mubr.bf16.mxu0 %v649
    %2242 = vmatmul.mubr.bf16.gmra.mrb[0].mxu0 %v553
    %v2243 = vpop.f32.mrb[0].mxu0
    %v2244 = vadd.f32 %v1955, %v2243
    %v2245 = vpop.f32.mrb[0].mxu0
    %v2246 = vpop.f32.mrb[0].mxu0
    %v2247 = vadd.f32 %v1958, %v2246
    %v2248 = vpop.f32.mrb[0].mxu0
    %2249 = vmatprep.mubr.bf16.mxu0 %v650
    %2250 = vmatmul.mubr.bf16.gmra.mrb[0].mxu0 %v554
    %v2251 = vpop.f32.mrb[0].mxu0
    %v2252 = vadd.f32 %v1963, %v2251
    %v2253 = vpop.f32.mrb[0].mxu0
    %v2254 = vpop.f32.mrb[0].mxu0
    %v2255 = vadd.f32 %v1966, %v2254
    %v2256 = vpop.f32.mrb[0].mxu0
    %2257 = vmatprep.mubr.bf16.mxu0 %v651
    %2258 = vmatmul.mubr.bf16.gmra.mrb[0].mxu0 %v555
    %v2259 = vpop.f32.mrb[0].mxu0
    %v2260 = vadd.f32 %v1971, %v2259
    %v2261 = vpop.f32.mrb[0].mxu0
    %v2262 = vpop.f32.mrb[0].mxu0
    %v2263 = vadd.f32 %v1974, %v2262
    %v2264 = vpop.f32.mrb[0].mxu0
    %2265 = vmatprep.mubr.bf16.mxu0 %v652
    %2266 = vmatmul.mubr.bf16.gmra.mrb[0].mxu0 %v556
    %v2267 = vpop.f32.mrb[0].mxu0
    %v2268 = vadd.f32 %v1979, %v2267
    %v2269 = vpop.f32.mrb[0].mxu0
    %v2270 = vpop.f32.mrb[0].mxu0
    %v2271 = vadd.f32 %v1982, %v2270
    %v2272 = vpop.f32.mrb[0].mxu0
    %2273 = vmatprep.mubr.bf16.mxu0 %v653
    %2274 = vmatmul.mubr.bf16.gmra.mrb[0].mxu0 %v557
    %v2275 = vpop.f32.mrb[0].mxu0
    %v2276 = vadd.f32 %v1987, %v2275
    %v2277 = vpop.f32.mrb[0].mxu0
    %v2278 = vpop.f32.mrb[0].mxu0
    %v2279 = vadd.f32 %v1990, %v2278
    %v2280 = vpop.f32.mrb[0].mxu0
    %2281 = vmatprep.mubr.bf16.mxu0 %v654
    %2282 = vmatmul.mubr.bf16.gmra.mrb[0].mxu0 %v558
    %v2283 = vpop.f32.mrb[0].mxu0
    %v2284 = vadd.f32 %v1995, %v2283
    %v2285 = vpop.f32.mrb[0].mxu0
    %v2286 = vpop.f32.mrb[0].mxu0
    %v2287 = vadd.f32 %v1998, %v2286
    %v2288 = vpop.f32.mrb[0].mxu0
    %2289 = vmatprep.mubr.bf16.mxu0 %v655
    %2290 = vmatmul.mubr.bf16.gmra.mrb[0].mxu0 %v559
    %v2291 = vpop.f32.mrb[0].mxu0
    %v2292 = vadd.f32 %v2003, %v2291
    %v2293 = vpop.f32.mrb[0].mxu0
    %v2294 = vpop.f32.mrb[0].mxu0
    %v2295 = vadd.f32 %v2006, %v2294
    %v2296 = vpop.f32.mrb[0].mxu0
    %2297 = vdwg.mxu0
    %2298 = vmatprep.subr.bf16.mxu0 0
    %2299 = vmatpush1.bf16.msra.mxu0 %v1608
    %2300 = vmatprep.subr.bf16.mxu0 0
    %2301 = vmatpush1.bf16.msra.mxu0 %v1609
    %2302 = vmatprep.subr.bf16.mxu0 0
    %2303 = vmatpush1.bf16.msra.mxu0 %v1610
    %2304 = vmatprep.subr.bf16.mxu0 0
    %2305 = vmatpush1.bf16.msra.mxu0 %v1611
    %2306 = vmatprep.subr.bf16.mxu0 0
    %2307 = vmatpush1.bf16.msra.mxu0 %v1612
    %2308 = vmatprep.subr.bf16.mxu0 0
    %2309 = vmatpush1.bf16.msra.mxu0 %v1613
    %2310 = vmatprep.subr.bf16.mxu0 0
    %2311 = vmatpush1.bf16.msra.mxu0 %v1614
    %2312 = vmatprep.subr.bf16.mxu0 0
    %2313 = vmatpush1.bf16.msra.mxu0 %v1615
    %2314 = vmatprep.subr.bf16.mxu0 0
    %2315 = vmatpush1.bf16.msra.mxu0 %v1616
    %2316 = vmatprep.subr.bf16.mxu0 0
    %2317 = vmatpush1.bf16.msra.mxu0 %v1617
    %2318 = vmatprep.subr.bf16.mxu0 0
    %2319 = vmatpush1.bf16.msra.mxu0 %v1618
    %2320 = vmatprep.subr.bf16.mxu0 0
    %2321 = vmatpush1.bf16.msra.mxu0 %v1619
    %2322 = vmatprep.subr.bf16.mxu0 0
    %2323 = vmatpush1.bf16.msra.mxu0 %v1620
    %2324 = vmatprep.subr.bf16.mxu0 0
    %2325 = vmatpush1.bf16.msra.mxu0 %v1621
    %2326 = vmatprep.subr.bf16.mxu0 0
    %2327 = vmatpush1.bf16.msra.mxu0 %v1622
    %2328 = vmatprep.subr.bf16.mxu0 0
    %2329 = vmatpush1.bf16.msra.mxu0 %v1623
    %2330 = vmatprep.mubr.bf16.mxu0 %v816
    %2331 = vmatmul.mubr.bf16.gmra.mrb[0].mxu0 %v720
    %v2332 = vpop.f32.mrb[0].mxu0
    %v2333 = vadd.f32 %v2044, %v2332
    %v2334 = vpop.f32.mrb[0].mxu0
    %v2335 = vpop.f32.mrb[0].mxu0
    %v2336 = vadd.f32 %v2047, %v2335
    %v2337 = vpop.f32.mrb[0].mxu0
    %2338 = vmatprep.mubr.bf16.mxu0 %v817
    %2339 = vmatmul.mubr.bf16.gmra.mrb[0].mxu0 %v721
    %v2340 = vpop.f32.mrb[0].mxu0
    %v2341 = vadd.f32 %v2052, %v2340
    %v2342 = vpop.f32.mrb[0].mxu0
    %v2343 = vpop.f32.mrb[0].mxu0
    %v2344 = vadd.f32 %v2055, %v2343
    %v2345 = vpop.f32.mrb[0].mxu0
    %2346 = vmatprep.mubr.bf16.mxu0 %v818
    %2347 = vmatmul.mubr.bf16.gmra.mrb[0].mxu0 %v722
    %v2348 = vpop.f32.mrb[0].mxu0
    %v2349 = vadd.f32 %v2060, %v2348
    %v2350 = vpop.f32.mrb[0].mxu0
    %v2351 = vpop.f32.mrb[0].mxu0
    %v2352 = vadd.f32 %v2063, %v2351
    %v2353 = vpop.f32.mrb[0].mxu0
    %2354 = vmatprep.mubr.bf16.mxu0 %v819
    %2355 = vmatmul.mubr.bf16.gmra.mrb[0].mxu0 %v723
    %v2356 = vpop.f32.mrb[0].mxu0
    %v2357 = vadd.f32 %v2068, %v2356
    %v2358 = vpop.f32.mrb[0].mxu0
    %v2359 = vpop.f32.mrb[0].mxu0
    %v2360 = vadd.f32 %v2071, %v2359
    %v2361 = vpop.f32.mrb[0].mxu0
    %2362 = vmatprep.mubr.bf16.mxu0 %v820
    %2363 = vmatmul.mubr.bf16.gmra.mrb[0].mxu0 %v724
    %v2364 = vpop.f32.mrb[0].mxu0
    %v2365 = vadd.f32 %v2076, %v2364
    %v2366 = vpop.f32.mrb[0].mxu0
    %v2367 = vpop.f32.mrb[0].mxu0
    %v2368 = vadd.f32 %v2079, %v2367
    %v2369 = vpop.f32.mrb[0].mxu0
    %2370 = vmatprep.mubr.bf16.mxu0 %v821
    %2371 = vmatmul.mubr.bf16.gmra.mrb[0].mxu0 %v725
    %v2372 = vpop.f32.mrb[0].mxu0
    %v2373 = vadd.f32 %v2084, %v2372
    %v2374 = vpop.f32.mrb[0].mxu0
    %v2375 = vpop.f32.mrb[0].mxu0
    %v2376 = vadd.f32 %v2087, %v2375
    %v2377 = vpop.f32.mrb[0].mxu0
    %2378 = vmatprep.mubr.bf16.mxu0 %v822
    %2379 = vmatmul.mubr.bf16.gmra.mrb[0].mxu0 %v726
    %v2380 = vpop.f32.mrb[0].mxu0
    %v2381 = vadd.f32 %v2092, %v2380
    %v2382 = vpop.f32.mrb[0].mxu0
    %v2383 = vpop.f32.mrb[0].mxu0
    %v2384 = vadd.f32 %v2095, %v2383
    %v2385 = vpop.f32.mrb[0].mxu0
    %2386 = vmatprep.mubr.bf16.mxu0 %v823
    %2387 = vmatmul.mubr.bf16.gmra.mrb[0].mxu0 %v727
    %v2388 = vpop.f32.mrb[0].mxu0
    %v2389 = vadd.f32 %v2100, %v2388
    %v2390 = vpop.f32.mrb[0].mxu0
    %v2391 = vpop.f32.mrb[0].mxu0
    %v2392 = vadd.f32 %v2103, %v2391
    %v2393 = vpop.f32.mrb[0].mxu0
    %2394 = vmatprep.mubr.bf16.mxu0 %v824
    %2395 = vmatmul.mubr.bf16.gmra.mrb[0].mxu0 %v728
    %v2396 = vpop.f32.mrb[0].mxu0
    %v2397 = vadd.f32 %v2108, %v2396
    %v2398 = vpop.f32.mrb[0].mxu0
    %v2399 = vpop.f32.mrb[0].mxu0
    %v2400 = vadd.f32 %v2111, %v2399
    %v2401 = vpop.f32.mrb[0].mxu0
    %2402 = vmatprep.mubr.bf16.mxu0 %v825
    %2403 = vmatmul.mubr.bf16.gmra.mrb[0].mxu0 %v729
    %v2404 = vpop.f32.mrb[0].mxu0
    %v2405 = vadd.f32 %v2116, %v2404
    %v2406 = vpop.f32.mrb[0].mxu0
    %v2407 = vpop.f32.mrb[0].mxu0
    %v2408 = vadd.f32 %v2119, %v2407
    %v2409 = vpop.f32.mrb[0].mxu0
    %2410 = vmatprep.mubr.bf16.mxu0 %v826
    %2411 = vmatmul.mubr.bf16.gmra.mrb[0].mxu0 %v730
    %v2412 = vpop.f32.mrb[0].mxu0
    %v2413 = vadd.f32 %v2124, %v2412
    %v2414 = vpop.f32.mrb[0].mxu0
    %v2415 = vpop.f32.mrb[0].mxu0
    %v2416 = vadd.f32 %v2127, %v2415
    %v2417 = vpop.f32.mrb[0].mxu0
    %2418 = vmatprep.mubr.bf16.mxu0 %v827
    %2419 = vmatmul.mubr.bf16.gmra.mrb[0].mxu0 %v731
    %v2420 = vpop.f32.mrb[0].mxu0
    %v2421 = vadd.f32 %v2132, %v2420
    %v2422 = vpop.f32.mrb[0].mxu0
    %v2423 = vpop.f32.mrb[0].mxu0
    %v2424 = vadd.f32 %v2135, %v2423
    %v2425 = vpop.f32.mrb[0].mxu0
    %2426 = vmatprep.mubr.bf16.mxu0 %v828
    %2427 = vmatmul.mubr.bf16.gmra.mrb[0].mxu0 %v732
    %v2428 = vpop.f32.mrb[0].mxu0
    %v2429 = vadd.f32 %v2140, %v2428
    %v2430 = vpop.f32.mrb[0].mxu0
    %v2431 = vpop.f32.mrb[0].mxu0
    %v2432 = vadd.f32 %v2143, %v2431
    %v2433 = vpop.f32.mrb[0].mxu0
    %2434 = vmatprep.mubr.bf16.mxu0 %v829
    %2435 = vmatmul.mubr.bf16.gmra.mrb[0].mxu0 %v733
    %v2436 = vpop.f32.mrb[0].mxu0
    %v2437 = vadd.f32 %v2148, %v2436
    %v2438 = vpop.f32.mrb[0].mxu0
    %v2439 = vpop.f32.mrb[0].mxu0
    %v2440 = vadd.f32 %v2151, %v2439
    %v2441 = vpop.f32.mrb[0].mxu0
    %2442 = vmatprep.mubr.bf16.mxu0 %v830
    %2443 = vmatmul.mubr.bf16.gmra.mrb[0].mxu0 %v734
    %v2444 = vpop.f32.mrb[0].mxu0
    %v2445 = vadd.f32 %v2156, %v2444
    %v2446 = vpop.f32.mrb[0].mxu0
    %v2447 = vpop.f32.mrb[0].mxu0
    %v2448 = vadd.f32 %v2159, %v2447
    %v2449 = vpop.f32.mrb[0].mxu0
    %2450 = vmatprep.mubr.bf16.mxu0 %v831
    %2451 = vmatmul.mubr.bf16.gmra.mrb[0].mxu0 %v735
    %v2452 = vpop.f32.mrb[0].mxu0
    %v2453 = vadd.f32 %v2164, %v2452
    %v2454 = vpop.f32.mrb[0].mxu0
    %v2455 = vpop.f32.mrb[0].mxu0
    %v2456 = vadd.f32 %v2167, %v2455
    %v2457 = vpop.f32.mrb[0].mxu0
    %2458 = vmatprep.mubr.bf16.mxu0 %v832
    %2459 = vmatmul.mubr.bf16.gmra.mrb[0].mxu0 %v736
    %v2460 = vpop.f32.mrb[0].mxu0
    %v2461 = vadd.f32 %v2172, %v2460
    %v2462 = vpop.f32.mrb[0].mxu0
    %v2463 = vpop.f32.mrb[0].mxu0
    %v2464 = vadd.f32 %v2175, %v2463
    %v2465 = vpop.f32.mrb[0].mxu0
    %2466 = vmatprep.mubr.bf16.mxu0 %v833
    %2467 = vmatmul.mubr.bf16.gmra.mrb[0].mxu0 %v737
    %v2468 = vpop.f32.mrb[0].mxu0
    %v2469 = vadd.f32 %v2180, %v2468
    %v2470 = vpop.f32.mrb[0].mxu0
    %v2471 = vpop.f32.mrb[0].mxu0
    %v2472 = vadd.f32 %v2183, %v2471
    %v2473 = vpop.f32.mrb[0].mxu0
    %2474 = vmatprep.mubr.bf16.mxu0 %v834
    %2475 = vmatmul.mubr.bf16.gmra.mrb[0].mxu0 %v738
    %v2476 = vpop.f32.mrb[0].mxu0
    %v2477 = vadd.f32 %v2188, %v2476
    %v2478 = vpop.f32.mrb[0].mxu0
    %v2479 = vpop.f32.mrb[0].mxu0
    %v2480 = vadd.f32 %v2191, %v2479
    %v2481 = vpop.f32.mrb[0].mxu0
    %2482 = vmatprep.mubr.bf16.mxu0 %v835
    %2483 = vmatmul.mubr.bf16.gmra.mrb[0].mxu0 %v739
    %v2484 = vpop.f32.mrb[0].mxu0
    %v2485 = vadd.f32 %v2196, %v2484
    %v2486 = vpop.f32.mrb[0].mxu0
    %v2487 = vpop.f32.mrb[0].mxu0
    %v2488 = vadd.f32 %v2199, %v2487
    %v2489 = vpop.f32.mrb[0].mxu0
    %2490 = vmatprep.mubr.bf16.mxu0 %v836
    %2491 = vmatmul.mubr.bf16.gmra.mrb[0].mxu0 %v740
    %v2492 = vpop.f32.mrb[0].mxu0
    %v2493 = vadd.f32 %v2204, %v2492
    %v2494 = vpop.f32.mrb[0].mxu0
    %v2495 = vpop.f32.mrb[0].mxu0
    %v2496 = vadd.f32 %v2207, %v2495
    %v2497 = vpop.f32.mrb[0].mxu0
    %2498 = vmatprep.mubr.bf16.mxu0 %v837
    %2499 = vmatmul.mubr.bf16.gmra.mrb[0].mxu0 %v741
    %v2500 = vpop.f32.mrb[0].mxu0
    %v2501 = vadd.f32 %v2212, %v2500
    %v2502 = vpop.f32.mrb[0].mxu0
    %v2503 = vpop.f32.mrb[0].mxu0
    %v2504 = vadd.f32 %v2215, %v2503
    %v2505 = vpop.f32.mrb[0].mxu0
    %2506 = vmatprep.mubr.bf16.mxu0 %v838
    %2507 = vmatmul.mubr.bf16.gmra.mrb[0].mxu0 %v742
    %v2508 = vpop.f32.mrb[0].mxu0
    %v2509 = vadd.f32 %v2220, %v2508
    %v2510 = vpop.f32.mrb[0].mxu0
    %v2511 = vpop.f32.mrb[0].mxu0
    %v2512 = vadd.f32 %v2223, %v2511
    %v2513 = vpop.f32.mrb[0].mxu0
    %2514 = vmatprep.mubr.bf16.mxu0 %v839
    %2515 = vmatmul.mubr.bf16.gmra.mrb[0].mxu0 %v743
    %v2516 = vpop.f32.mrb[0].mxu0
    %v2517 = vadd.f32 %v2228, %v2516
    %v2518 = vpop.f32.mrb[0].mxu0
    %v2519 = vpop.f32.mrb[0].mxu0
    %v2520 = vadd.f32 %v2231, %v2519
    %v2521 = vpop.f32.mrb[0].mxu0
    %2522 = vmatprep.mubr.bf16.mxu0 %v840
    %2523 = vmatmul.mubr.bf16.gmra.mrb[0].mxu0 %v744
    %v2524 = vpop.f32.mrb[0].mxu0
    %v2525 = vadd.f32 %v2236, %v2524
    %v2526 = vpop.f32.mrb[0].mxu0
    %v2527 = vpop.f32.mrb[0].mxu0
    %v2528 = vadd.f32 %v2239, %v2527
    %v2529 = vpop.f32.mrb[0].mxu0
    %2530 = vmatprep.mubr.bf16.mxu0 %v841
    %2531 = vmatmul.mubr.bf16.gmra.mrb[0].mxu0 %v745
    %v2532 = vpop.f32.mrb[0].mxu0
    %v2533 = vadd.f32 %v2244, %v2532
    %v2534 = vpop.f32.mrb[0].mxu0
    %v2535 = vpop.f32.mrb[0].mxu0
    %v2536 = vadd.f32 %v2247, %v2535
    %v2537 = vpop.f32.mrb[0].mxu0
    %2538 = vmatprep.mubr.bf16.mxu0 %v842
    %2539 = vmatmul.mubr.bf16.gmra.mrb[0].mxu0 %v746
    %v2540 = vpop.f32.mrb[0].mxu0
    %v2541 = vadd.f32 %v2252, %v2540
    %v2542 = vpop.f32.mrb[0].mxu0
    %v2543 = vpop.f32.mrb[0].mxu0
    %v2544 = vadd.f32 %v2255, %v2543
    %v2545 = vpop.f32.mrb[0].mxu0
    %2546 = vmatprep.mubr.bf16.mxu0 %v843
    %2547 = vmatmul.mubr.bf16.gmra.mrb[0].mxu0 %v747
    %v2548 = vpop.f32.mrb[0].mxu0
    %v2549 = vadd.f32 %v2260, %v2548
    %v2550 = vpop.f32.mrb[0].mxu0
    %v2551 = vpop.f32.mrb[0].mxu0
    %v2552 = vadd.f32 %v2263, %v2551
    %v2553 = vpop.f32.mrb[0].mxu0
    %2554 = vmatprep.mubr.bf16.mxu0 %v844
    %2555 = vmatmul.mubr.bf16.gmra.mrb[0].mxu0 %v748
    %v2556 = vpop.f32.mrb[0].mxu0
    %v2557 = vadd.f32 %v2268, %v2556
    %v2558 = vpop.f32.mrb[0].mxu0
    %v2559 = vpop.f32.mrb[0].mxu0
    %v2560 = vadd.f32 %v2271, %v2559
    %v2561 = vpop.f32.mrb[0].mxu0
    %2562 = vmatprep.mubr.bf16.mxu0 %v845
    %2563 = vmatmul.mubr.bf16.gmra.mrb[0].mxu0 %v749
    %v2564 = vpop.f32.mrb[0].mxu0
    %v2565 = vadd.f32 %v2276, %v2564
    %v2566 = vpop.f32.mrb[0].mxu0
    %v2567 = vpop.f32.mrb[0].mxu0
    %v2568 = vadd.f32 %v2279, %v2567
    %v2569 = vpop.f32.mrb[0].mxu0
    %2570 = vmatprep.mubr.bf16.mxu0 %v846
    %2571 = vmatmul.mubr.bf16.gmra.mrb[0].mxu0 %v750
    %v2572 = vpop.f32.mrb[0].mxu0
    %v2573 = vadd.f32 %v2284, %v2572
    %v2574 = vpop.f32.mrb[0].mxu0
    %v2575 = vpop.f32.mrb[0].mxu0
    %v2576 = vadd.f32 %v2287, %v2575
    %v2577 = vpop.f32.mrb[0].mxu0
    %2578 = vmatprep.mubr.bf16.mxu0 %v847
    %2579 = vmatmul.mubr.bf16.gmra.mrb[0].mxu0 %v751
    %v2580 = vpop.f32.mrb[0].mxu0
    %v2581 = vadd.f32 %v2292, %v2580
    %v2582 = vpop.f32.mrb[0].mxu0
    %v2583 = vpop.f32.mrb[0].mxu0
    %v2584 = vadd.f32 %v2295, %v2583
    %v2585 = vpop.f32.mrb[0].mxu0
    %2586 = vdwg.mxu0
    %2587 = vmatprep.subr.bf16.mxu0 0
    %2588 = vmatpush1.bf16.msra.mxu0 %v1624
    %2589 = vmatprep.subr.bf16.mxu0 0
    %2590 = vmatpush1.bf16.msra.mxu0 %v1625
    %2591 = vmatprep.subr.bf16.mxu0 0
    %2592 = vmatpush1.bf16.msra.mxu0 %v1626
    %2593 = vmatprep.subr.bf16.mxu0 0
    %2594 = vmatpush1.bf16.msra.mxu0 %v1627
    %2595 = vmatprep.subr.bf16.mxu0 0
    %2596 = vmatpush1.bf16.msra.mxu0 %v1628
    %2597 = vmatprep.subr.bf16.mxu0 0
    %2598 = vmatpush1.bf16.msra.mxu0 %v1629
    %2599 = vmatprep.subr.bf16.mxu0 0
    %2600 = vmatpush1.bf16.msra.mxu0 %v1630
    %2601 = vmatprep.subr.bf16.mxu0 0
    %2602 = vmatpush1.bf16.msra.mxu0 %v1631
    %2603 = vmatprep.subr.bf16.mxu0 0
    %2604 = vmatpush1.bf16.msra.mxu0 %v1632
    %2605 = vmatprep.subr.bf16.mxu0 0
    %2606 = vmatpush1.bf16.msra.mxu0 %v1633
    %2607 = vmatprep.subr.bf16.mxu0 0
    %2608 = vmatpush1.bf16.msra.mxu0 %v1634
    %2609 = vmatprep.subr.bf16.mxu0 0
    %2610 = vmatpush1.bf16.msra.mxu0 %v1635
    %2611 = vmatprep.subr.bf16.mxu0 0
    %2612 = vmatpush1.bf16.msra.mxu0 %v1636
    %2613 = vmatprep.subr.bf16.mxu0 0
    %2614 = vmatpush1.bf16.msra.mxu0 %v1637
    %2615 = vmatprep.subr.bf16.mxu0 0
    %2616 = vmatpush1.bf16.msra.mxu0 %v1638
    %2617 = vmatprep.subr.bf16.mxu0 0
    %2618 = vmatpush1.bf16.msra.mxu0 %v1639
    %2619 = vmatprep.mubr.bf16.mxu0 %v1009
    %2620 = vmatmul.mubr.bf16.gmra.mrb[0].mxu0 %v913
    %v2621 = vpop.f32.mrb[0].mxu0
    %v2622 = vadd.f32 %v2333, %v2621
    %v2623 = vpop.f32.mrb[0].mxu0
    %v2624 = vpop.f32.mrb[0].mxu0
    %v2625 = vadd.f32 %v2336, %v2624
    %v2626 = vpop.f32.mrb[0].mxu0
    %2627 = vmatprep.mubr.bf16.mxu0 %v1010
    %2628 = vmatmul.mubr.bf16.gmra.mrb[0].mxu0 %v914
    %v2629 = vpop.f32.mrb[0].mxu0
    %v2630 = vadd.f32 %v2341, %v2629
    %v2631 = vpop.f32.mrb[0].mxu0
    %v2632 = vpop.f32.mrb[0].mxu0
    %v2633 = vadd.f32 %v2344, %v2632
    %v2634 = vpop.f32.mrb[0].mxu0
    %2635 = vmatprep.mubr.bf16.mxu0 %v1011
    %2636 = vmatmul.mubr.bf16.gmra.mrb[0].mxu0 %v915
    %v2637 = vpop.f32.mrb[0].mxu0
    %v2638 = vadd.f32 %v2349, %v2637
    %v2639 = vpop.f32.mrb[0].mxu0
    %v2640 = vpop.f32.mrb[0].mxu0
    %v2641 = vadd.f32 %v2352, %v2640
    %v2642 = vpop.f32.mrb[0].mxu0
    %2643 = vmatprep.mubr.bf16.mxu0 %v1012
    %2644 = vmatmul.mubr.bf16.gmra.mrb[0].mxu0 %v916
    %v2645 = vpop.f32.mrb[0].mxu0
    %v2646 = vadd.f32 %v2357, %v2645
    %v2647 = vpop.f32.mrb[0].mxu0
    %v2648 = vpop.f32.mrb[0].mxu0
    %v2649 = vadd.f32 %v2360, %v2648
    %v2650 = vpop.f32.mrb[0].mxu0
    %2651 = vmatprep.mubr.bf16.mxu0 %v1013
    %2652 = vmatmul.mubr.bf16.gmra.mrb[0].mxu0 %v917
    %v2653 = vpop.f32.mrb[0].mxu0
    %v2654 = vadd.f32 %v2365, %v2653
    %v2655 = vpop.f32.mrb[0].mxu0
    %v2656 = vpop.f32.mrb[0].mxu0
    %v2657 = vadd.f32 %v2368, %v2656
    %v2658 = vpop.f32.mrb[0].mxu0
    %2659 = vmatprep.mubr.bf16.mxu0 %v1014
    %2660 = vmatmul.mubr.bf16.gmra.mrb[0].mxu0 %v918
    %v2661 = vpop.f32.mrb[0].mxu0
    %v2662 = vadd.f32 %v2373, %v2661
    %v2663 = vpop.f32.mrb[0].mxu0
    %v2664 = vpop.f32.mrb[0].mxu0
    %v2665 = vadd.f32 %v2376, %v2664
    %v2666 = vpop.f32.mrb[0].mxu0
    %2667 = vmatprep.mubr.bf16.mxu0 %v1015
    %2668 = vmatmul.mubr.bf16.gmra.mrb[0].mxu0 %v919
    %v2669 = vpop.f32.mrb[0].mxu0
    %v2670 = vadd.f32 %v2381, %v2669
    %v2671 = vpop.f32.mrb[0].mxu0
    %v2672 = vpop.f32.mrb[0].mxu0
    %v2673 = vadd.f32 %v2384, %v2672
    %v2674 = vpop.f32.mrb[0].mxu0
    %2675 = vmatprep.mubr.bf16.mxu0 %v1016
    %2676 = vmatmul.mubr.bf16.gmra.mrb[0].mxu0 %v920
    %v2677 = vpop.f32.mrb[0].mxu0
    %v2678 = vadd.f32 %v2389, %v2677
    %v2679 = vpop.f32.mrb[0].mxu0
    %v2680 = vpop.f32.mrb[0].mxu0
    %v2681 = vadd.f32 %v2392, %v2680
    %v2682 = vpop.f32.mrb[0].mxu0
    %2683 = vmatprep.mubr.bf16.mxu0 %v1017
    %2684 = vmatmul.mubr.bf16.gmra.mrb[0].mxu0 %v921
    %v2685 = vpop.f32.mrb[0].mxu0
    %v2686 = vadd.f32 %v2397, %v2685
    %v2687 = vpop.f32.mrb[0].mxu0
    %v2688 = vpop.f32.mrb[0].mxu0
    %v2689 = vadd.f32 %v2400, %v2688
    %v2690 = vpop.f32.mrb[0].mxu0
    %2691 = vmatprep.mubr.bf16.mxu0 %v1018
    %2692 = vmatmul.mubr.bf16.gmra.mrb[0].mxu0 %v922
    %v2693 = vpop.f32.mrb[0].mxu0
    %v2694 = vadd.f32 %v2405, %v2693
    %v2695 = vpop.f32.mrb[0].mxu0
    %v2696 = vpop.f32.mrb[0].mxu0
    %v2697 = vadd.f32 %v2408, %v2696
    %v2698 = vpop.f32.mrb[0].mxu0
    %2699 = vmatprep.mubr.bf16.mxu0 %v1019
    %2700 = vmatmul.mubr.bf16.gmra.mrb[0].mxu0 %v923
    %v2701 = vpop.f32.mrb[0].mxu0
    %v2702 = vadd.f32 %v2413, %v2701
    %v2703 = vpop.f32.mrb[0].mxu0
    %v2704 = vpop.f32.mrb[0].mxu0
    %v2705 = vadd.f32 %v2416, %v2704
    %v2706 = vpop.f32.mrb[0].mxu0
    %2707 = vmatprep.mubr.bf16.mxu0 %v1020
    %2708 = vmatmul.mubr.bf16.gmra.mrb[0].mxu0 %v924
    %v2709 = vpop.f32.mrb[0].mxu0
    %v2710 = vadd.f32 %v2421, %v2709
    %v2711 = vpop.f32.mrb[0].mxu0
    %v2712 = vpop.f32.mrb[0].mxu0
    %v2713 = vadd.f32 %v2424, %v2712
    %v2714 = vpop.f32.mrb[0].mxu0
    %2715 = vmatprep.mubr.bf16.mxu0 %v1021
    %2716 = vmatmul.mubr.bf16.gmra.mrb[0].mxu0 %v925
    %v2717 = vpop.f32.mrb[0].mxu0
    %v2718 = vadd.f32 %v2429, %v2717
    %v2719 = vpop.f32.mrb[0].mxu0
    %v2720 = vpop.f32.mrb[0].mxu0
    %v2721 = vadd.f32 %v2432, %v2720
    %v2722 = vpop.f32.mrb[0].mxu0
    %2723 = vmatprep.mubr.bf16.mxu0 %v1022
    %2724 = vmatmul.mubr.bf16.gmra.mrb[0].mxu0 %v926
    %v2725 = vpop.f32.mrb[0].mxu0
    %v2726 = vadd.f32 %v2437, %v2725
    %v2727 = vpop.f32.mrb[0].mxu0
    %v2728 = vpop.f32.mrb[0].mxu0
    %v2729 = vadd.f32 %v2440, %v2728
    %v2730 = vpop.f32.mrb[0].mxu0
    %2731 = vmatprep.mubr.bf16.mxu0 %v1023
    %2732 = vmatmul.mubr.bf16.gmra.mrb[0].mxu0 %v927
    %v2733 = vpop.f32.mrb[0].mxu0
    %v2734 = vadd.f32 %v2445, %v2733
    %v2735 = vpop.f32.mrb[0].mxu0
    %v2736 = vpop.f32.mrb[0].mxu0
    %v2737 = vadd.f32 %v2448, %v2736
    %v2738 = vpop.f32.mrb[0].mxu0
    %2739 = vmatprep.mubr.bf16.mxu0 %v1024
    %2740 = vmatmul.mubr.bf16.gmra.mrb[0].mxu0 %v928
    %v2741 = vpop.f32.mrb[0].mxu0
    %v2742 = vadd.f32 %v2453, %v2741
    %v2743 = vpop.f32.mrb[0].mxu0
    %v2744 = vpop.f32.mrb[0].mxu0
    %v2745 = vadd.f32 %v2456, %v2744
    %v2746 = vpop.f32.mrb[0].mxu0
    %2747 = vmatprep.mubr.bf16.mxu0 %v1025
    %2748 = vmatmul.mubr.bf16.gmra.mrb[0].mxu0 %v929
    %v2749 = vpop.f32.mrb[0].mxu0
    %v2750 = vadd.f32 %v2461, %v2749
    %v2751 = vpop.f32.mrb[0].mxu0
    %v2752 = vpop.f32.mrb[0].mxu0
    %v2753 = vadd.f32 %v2464, %v2752
    %v2754 = vpop.f32.mrb[0].mxu0
    %2755 = vmatprep.mubr.bf16.mxu0 %v1026
    %2756 = vmatmul.mubr.bf16.gmra.mrb[0].mxu0 %v930
    %v2757 = vpop.f32.mrb[0].mxu0
    %v2758 = vadd.f32 %v2469, %v2757
    %v2759 = vpop.f32.mrb[0].mxu0
    %v2760 = vpop.f32.mrb[0].mxu0
    %v2761 = vadd.f32 %v2472, %v2760
    %v2762 = vpop.f32.mrb[0].mxu0
    %2763 = vmatprep.mubr.bf16.mxu0 %v1027
    %2764 = vmatmul.mubr.bf16.gmra.mrb[0].mxu0 %v931
    %v2765 = vpop.f32.mrb[0].mxu0
    %v2766 = vadd.f32 %v2477, %v2765
    %v2767 = vpop.f32.mrb[0].mxu0
    %v2768 = vpop.f32.mrb[0].mxu0
    %v2769 = vadd.f32 %v2480, %v2768
    %v2770 = vpop.f32.mrb[0].mxu0
    %2771 = vmatprep.mubr.bf16.mxu0 %v1028
    %2772 = vmatmul.mubr.bf16.gmra.mrb[0].mxu0 %v932
    %v2773 = vpop.f32.mrb[0].mxu0
    %v2774 = vadd.f32 %v2485, %v2773
    %v2775 = vpop.f32.mrb[0].mxu0
    %v2776 = vpop.f32.mrb[0].mxu0
    %v2777 = vadd.f32 %v2488, %v2776
    %v2778 = vpop.f32.mrb[0].mxu0
    %2779 = vmatprep.mubr.bf16.mxu0 %v1029
    %2780 = vmatmul.mubr.bf16.gmra.mrb[0].mxu0 %v933
    %v2781 = vpop.f32.mrb[0].mxu0
    %v2782 = vadd.f32 %v2493, %v2781
    %v2783 = vpop.f32.mrb[0].mxu0
    %v2784 = vpop.f32.mrb[0].mxu0
    %v2785 = vadd.f32 %v2496, %v2784
    %v2786 = vpop.f32.mrb[0].mxu0
    %2787 = vmatprep.mubr.bf16.mxu0 %v1030
    %2788 = vmatmul.mubr.bf16.gmra.mrb[0].mxu0 %v934
    %v2789 = vpop.f32.mrb[0].mxu0
    %v2790 = vadd.f32 %v2501, %v2789
    %v2791 = vpop.f32.mrb[0].mxu0
    %v2792 = vpop.f32.mrb[0].mxu0
    %v2793 = vadd.f32 %v2504, %v2792
    %v2794 = vpop.f32.mrb[0].mxu0
    %2795 = vmatprep.mubr.bf16.mxu0 %v1031
    %2796 = vmatmul.mubr.bf16.gmra.mrb[0].mxu0 %v935
    %v2797 = vpop.f32.mrb[0].mxu0
    %v2798 = vadd.f32 %v2509, %v2797
    %v2799 = vpop.f32.mrb[0].mxu0
    %v2800 = vpop.f32.mrb[0].mxu0
    %v2801 = vadd.f32 %v2512, %v2800
    %v2802 = vpop.f32.mrb[0].mxu0
    %2803 = vmatprep.mubr.bf16.mxu0 %v1032
    %2804 = vmatmul.mubr.bf16.gmra.mrb[0].mxu0 %v936
    %v2805 = vpop.f32.mrb[0].mxu0
    %v2806 = vadd.f32 %v2517, %v2805
    %v2807 = vpop.f32.mrb[0].mxu0
    %v2808 = vpop.f32.mrb[0].mxu0
    %v2809 = vadd.f32 %v2520, %v2808
    %v2810 = vpop.f32.mrb[0].mxu0
    %2811 = vmatprep.mubr.bf16.mxu0 %v1033
    %2812 = vmatmul.mubr.bf16.gmra.mrb[0].mxu0 %v937
    %v2813 = vpop.f32.mrb[0].mxu0
    %v2814 = vadd.f32 %v2525, %v2813
    %v2815 = vpop.f32.mrb[0].mxu0
    %v2816 = vpop.f32.mrb[0].mxu0
    %v2817 = vadd.f32 %v2528, %v2816
    %v2818 = vpop.f32.mrb[0].mxu0
    %2819 = vmatprep.mubr.bf16.mxu0 %v1034
    %2820 = vmatmul.mubr.bf16.gmra.mrb[0].mxu0 %v938
    %v2821 = vpop.f32.mrb[0].mxu0
    %v2822 = vadd.f32 %v2533, %v2821
    %v2823 = vpop.f32.mrb[0].mxu0
    %v2824 = vpop.f32.mrb[0].mxu0
    %v2825 = vadd.f32 %v2536, %v2824
    %v2826 = vpop.f32.mrb[0].mxu0
    %2827 = vmatprep.mubr.bf16.mxu0 %v1035
    %2828 = vmatmul.mubr.bf16.gmra.mrb[0].mxu0 %v939
    %v2829 = vpop.f32.mrb[0].mxu0
    %v2830 = vadd.f32 %v2541, %v2829
    %v2831 = vpop.f32.mrb[0].mxu0
    %v2832 = vpop.f32.mrb[0].mxu0
    %v2833 = vadd.f32 %v2544, %v2832
    %v2834 = vpop.f32.mrb[0].mxu0
    %2835 = vmatprep.mubr.bf16.mxu0 %v1036
    %2836 = vmatmul.mubr.bf16.gmra.mrb[0].mxu0 %v940
    %v2837 = vpop.f32.mrb[0].mxu0
    %v2838 = vadd.f32 %v2549, %v2837
    %v2839 = vpop.f32.mrb[0].mxu0
    %v2840 = vpop.f32.mrb[0].mxu0
    %v2841 = vadd.f32 %v2552, %v2840
    %v2842 = vpop.f32.mrb[0].mxu0
    %2843 = vmatprep.mubr.bf16.mxu0 %v1037
    %2844 = vmatmul.mubr.bf16.gmra.mrb[0].mxu0 %v941
    %v2845 = vpop.f32.mrb[0].mxu0
    %v2846 = vadd.f32 %v2557, %v2845
    %v2847 = vpop.f32.mrb[0].mxu0
    %v2848 = vpop.f32.mrb[0].mxu0
    %v2849 = vadd.f32 %v2560, %v2848
    %v2850 = vpop.f32.mrb[0].mxu0
    %2851 = vmatprep.mubr.bf16.mxu0 %v1038
    %2852 = vmatmul.mubr.bf16.gmra.mrb[0].mxu0 %v942
    %v2853 = vpop.f32.mrb[0].mxu0
    %v2854 = vadd.f32 %v2565, %v2853
    %v2855 = vpop.f32.mrb[0].mxu0
    %v2856 = vpop.f32.mrb[0].mxu0
    %v2857 = vadd.f32 %v2568, %v2856
    %v2858 = vpop.f32.mrb[0].mxu0
    %2859 = vmatprep.mubr.bf16.mxu0 %v1039
    %2860 = vmatmul.mubr.bf16.gmra.mrb[0].mxu0 %v943
    %v2861 = vpop.f32.mrb[0].mxu0
    %v2862 = vadd.f32 %v2573, %v2861
    %v2863 = vpop.f32.mrb[0].mxu0
    %v2864 = vpop.f32.mrb[0].mxu0
    %v2865 = vadd.f32 %v2576, %v2864
    %v2866 = vpop.f32.mrb[0].mxu0
    %2867 = vmatprep.mubr.bf16.mxu0 %v1040
    %2868 = vmatmul.mubr.bf16.gmra.mrb[0].mxu0 %v944
    %v2869 = vpop.f32.mrb[0].mxu0
    %v2870 = vadd.f32 %v2581, %v2869
    %v2871 = vpop.f32.mrb[0].mxu0
    %v2872 = vpop.f32.mrb[0].mxu0
    %v2873 = vadd.f32 %v2584, %v2872
    %v2874 = vpop.f32.mrb[0].mxu0
    %2875 = vdwg.mxu0
    %2876 = vmatprep.subr.bf16.mxu0 0
    %2877 = vmatpush1.bf16.msra.mxu0 %v1640
    %2878 = vmatprep.subr.bf16.mxu0 0
    %2879 = vmatpush1.bf16.msra.mxu0 %v1641
    %2880 = vmatprep.subr.bf16.mxu0 0
    %2881 = vmatpush1.bf16.msra.mxu0 %v1642
    %2882 = vmatprep.subr.bf16.mxu0 0
    %2883 = vmatpush1.bf16.msra.mxu0 %v1643
    %2884 = vmatprep.subr.bf16.mxu0 0
    %2885 = vmatpush1.bf16.msra.mxu0 %v1644
    %2886 = vmatprep.subr.bf16.mxu0 0
    %2887 = vmatpush1.bf16.msra.mxu0 %v1645
    %2888 = vmatprep.subr.bf16.mxu0 0
    %2889 = vmatpush1.bf16.msra.mxu0 %v1646
    %2890 = vmatprep.subr.bf16.mxu0 0
    %2891 = vmatpush1.bf16.msra.mxu0 %v1647
    %2892 = vmatprep.subr.bf16.mxu0 0
    %2893 = vmatpush1.bf16.msra.mxu0 0
    %2894 = vmatprep.subr.bf16.mxu0 0
    %2895 = vmatpush1.bf16.msra.mxu0 0
    %2896 = vmatprep.subr.bf16.mxu0 0
    %2897 = vmatpush1.bf16.msra.mxu0 0
    %2898 = vmatprep.subr.bf16.mxu0 0
    %2899 = vmatpush1.bf16.msra.mxu0 0
    %2900 = vmatprep.subr.bf16.mxu0 0
    %2901 = vmatpush1.bf16.msra.mxu0 0
    %2902 = vmatprep.subr.bf16.mxu0 0
    %2903 = vmatpush1.bf16.msra.mxu0 0
    %2904 = vmatprep.subr.bf16.mxu0 0
    %2905 = vmatpush1.bf16.msra.mxu0 0
    %2906 = vmatprep.subr.bf16.mxu0 0
    %2907 = vmatpush1.bf16.msra.mxu0 0
    %2908 = vmatprep.mubr.bf16.mxu0 0
    %2909 = vmatmul.mubr.bf16.gmra.mrb[0].mxu0 %v1105
    %v2910 = vpop.f32.mrb[0].mxu0
    %v2911 = vadd.f32 %v2622, %v2910
    %v2912 = vpop.f32.mrb[0].mxu0
    %v2913 = vpop.f32.mrb[0].mxu0
    %v2914 = vadd.f32 %v2625, %v2913
    %v2915 = vpop.f32.mrb[0].mxu0
    %2916 = vmatprep.mubr.bf16.mxu0 0
    %2917 = vmatmul.mubr.bf16.gmra.mrb[0].mxu0 %v1106
    %v2918 = vpop.f32.mrb[0].mxu0
    %v2919 = vadd.f32 %v2630, %v2918
    %v2920 = vpop.f32.mrb[0].mxu0
    %v2921 = vpop.f32.mrb[0].mxu0
    %v2922 = vadd.f32 %v2633, %v2921
    %v2923 = vpop.f32.mrb[0].mxu0
    %2924 = vmatprep.mubr.bf16.mxu0 0
    %2925 = vmatmul.mubr.bf16.gmra.mrb[0].mxu0 %v1107
    %v2926 = vpop.f32.mrb[0].mxu0
    %v2927 = vadd.f32 %v2638, %v2926
    %v2928 = vpop.f32.mrb[0].mxu0
    %v2929 = vpop.f32.mrb[0].mxu0
    %v2930 = vadd.f32 %v2641, %v2929
    %v2931 = vpop.f32.mrb[0].mxu0
    %2932 = vmatprep.mubr.bf16.mxu0 0
    %2933 = vmatmul.mubr.bf16.gmra.mrb[0].mxu0 %v1108
    %v2934 = vpop.f32.mrb[0].mxu0
    %v2935 = vadd.f32 %v2646, %v2934
    %v2936 = vpop.f32.mrb[0].mxu0
    %v2937 = vpop.f32.mrb[0].mxu0
    %v2938 = vadd.f32 %v2649, %v2937
    %v2939 = vpop.f32.mrb[0].mxu0
    %2940 = vmatprep.mubr.bf16.mxu0 0
    %2941 = vmatmul.mubr.bf16.gmra.mrb[0].mxu0 %v1109
    %v2942 = vpop.f32.mrb[0].mxu0
    %v2943 = vadd.f32 %v2654, %v2942
    %v2944 = vpop.f32.mrb[0].mxu0
    %v2945 = vpop.f32.mrb[0].mxu0
    %v2946 = vadd.f32 %v2657, %v2945
    %v2947 = vpop.f32.mrb[0].mxu0
    %2948 = vmatprep.mubr.bf16.mxu0 0
    %2949 = vmatmul.mubr.bf16.gmra.mrb[0].mxu0 %v1110
    %v2950 = vpop.f32.mrb[0].mxu0
    %v2951 = vadd.f32 %v2662, %v2950
    %v2952 = vpop.f32.mrb[0].mxu0
    %v2953 = vpop.f32.mrb[0].mxu0
    %v2954 = vadd.f32 %v2665, %v2953
    %v2955 = vpop.f32.mrb[0].mxu0
    %2956 = vmatprep.mubr.bf16.mxu0 0
    %2957 = vmatmul.mubr.bf16.gmra.mrb[0].mxu0 %v1111
    %v2958 = vpop.f32.mrb[0].mxu0
    %v2959 = vadd.f32 %v2670, %v2958
    %v2960 = vpop.f32.mrb[0].mxu0
    %v2961 = vpop.f32.mrb[0].mxu0
    %v2962 = vadd.f32 %v2673, %v2961
    %v2963 = vpop.f32.mrb[0].mxu0
    %2964 = vmatprep.mubr.bf16.mxu0 0
    %2965 = vmatmul.mubr.bf16.gmra.mrb[0].mxu0 %v1112
    %v2966 = vpop.f32.mrb[0].mxu0
    %v2967 = vadd.f32 %v2678, %v2966
    %v2968 = vpop.f32.mrb[0].mxu0
    %v2969 = vpop.f32.mrb[0].mxu0
    %v2970 = vadd.f32 %v2681, %v2969
    %v2971 = vpop.f32.mrb[0].mxu0
    %2972 = vmatprep.mubr.bf16.mxu0 0
    %2973 = vmatmul.mubr.bf16.gmra.mrb[0].mxu0 %v1113
    %v2974 = vpop.f32.mrb[0].mxu0
    %v2975 = vadd.f32 %v2686, %v2974
    %v2976 = vpop.f32.mrb[0].mxu0
    %v2977 = vpop.f32.mrb[0].mxu0
    %v2978 = vadd.f32 %v2689, %v2977
    %v2979 = vpop.f32.mrb[0].mxu0
    %2980 = vmatprep.mubr.bf16.mxu0 0
    %2981 = vmatmul.mubr.bf16.gmra.mrb[0].mxu0 %v1114
    %v2982 = vpop.f32.mrb[0].mxu0
    %v2983 = vadd.f32 %v2694, %v2982
    %v2984 = vpop.f32.mrb[0].mxu0
    %v2985 = vpop.f32.mrb[0].mxu0
    %v2986 = vadd.f32 %v2697, %v2985
    %v2987 = vpop.f32.mrb[0].mxu0
    %2988 = vmatprep.mubr.bf16.mxu0 0
    %2989 = vmatmul.mubr.bf16.gmra.mrb[0].mxu0 %v1115
    %v2990 = vpop.f32.mrb[0].mxu0
    %v2991 = vadd.f32 %v2702, %v2990
    %v2992 = vpop.f32.mrb[0].mxu0
    %v2993 = vpop.f32.mrb[0].mxu0
    %v2994 = vadd.f32 %v2705, %v2993
    %v2995 = vpop.f32.mrb[0].mxu0
    %2996 = vmatprep.mubr.bf16.mxu0 0
    %2997 = vmatmul.mubr.bf16.gmra.mrb[0].mxu0 %v1116
    %v2998 = vpop.f32.mrb[0].mxu0
    %v2999 = vadd.f32 %v2710, %v2998
    %v3000 = vpop.f32.mrb[0].mxu0
    %v3001 = vpop.f32.mrb[0].mxu0
    %v3002 = vadd.f32 %v2713, %v3001
    %v3003 = vpop.f32.mrb[0].mxu0
    %3004 = vmatprep.mubr.bf16.mxu0 0
    %3005 = vmatmul.mubr.bf16.gmra.mrb[0].mxu0 %v1117
    %v3006 = vpop.f32.mrb[0].mxu0
    %v3007 = vadd.f32 %v2718, %v3006
    %v3008 = vpop.f32.mrb[0].mxu0
    %v3009 = vpop.f32.mrb[0].mxu0
    %v3010 = vadd.f32 %v2721, %v3009
    %v3011 = vpop.f32.mrb[0].mxu0
    %3012 = vmatprep.mubr.bf16.mxu0 0
    %3013 = vmatmul.mubr.bf16.gmra.mrb[0].mxu0 %v1118
    %v3014 = vpop.f32.mrb[0].mxu0
    %v3015 = vadd.f32 %v2726, %v3014
    %v3016 = vpop.f32.mrb[0].mxu0
    %v3017 = vpop.f32.mrb[0].mxu0
    %v3018 = vadd.f32 %v2729, %v3017
    %v3019 = vpop.f32.mrb[0].mxu0
    %3020 = vmatprep.mubr.bf16.mxu0 0
    %3021 = vmatmul.mubr.bf16.gmra.mrb[0].mxu0 %v1119
    %v3022 = vpop.f32.mrb[0].mxu0
    %v3023 = vadd.f32 %v2734, %v3022
    %v3024 = vpop.f32.mrb[0].mxu0
    %v3025 = vpop.f32.mrb[0].mxu0
    %v3026 = vadd.f32 %v2737, %v3025
    %v3027 = vpop.f32.mrb[0].mxu0
    %3028 = vmatprep.mubr.bf16.mxu0 0
    %3029 = vmatmul.mubr.bf16.gmra.mrb[0].mxu0 %v1120
    %v3030 = vpop.f32.mrb[0].mxu0
    %v3031 = vadd.f32 %v2742, %v3030
    %v3032 = vpop.f32.mrb[0].mxu0
    %v3033 = vpop.f32.mrb[0].mxu0
    %v3034 = vadd.f32 %v2745, %v3033
    %v3035 = vpop.f32.mrb[0].mxu0
    %3036 = vmatprep.mubr.bf16.mxu0 0
    %3037 = vmatmul.mubr.bf16.gmra.mrb[0].mxu0 %v1121
    %v3038 = vpop.f32.mrb[0].mxu0
    %v3039 = vadd.f32 %v2750, %v3038
    %v3040 = vpop.f32.mrb[0].mxu0
    %v3041 = vpop.f32.mrb[0].mxu0
    %v3042 = vadd.f32 %v2753, %v3041
    %v3043 = vpop.f32.mrb[0].mxu0
    %3044 = vmatprep.mubr.bf16.mxu0 0
    %3045 = vmatmul.mubr.bf16.gmra.mrb[0].mxu0 %v1122
    %v3046 = vpop.f32.mrb[0].mxu0
    %v3047 = vadd.f32 %v2758, %v3046
    %v3048 = vpop.f32.mrb[0].mxu0
    %v3049 = vpop.f32.mrb[0].mxu0
    %v3050 = vadd.f32 %v2761, %v3049
    %v3051 = vpop.f32.mrb[0].mxu0
    %3052 = vmatprep.mubr.bf16.mxu0 0
    %3053 = vmatmul.mubr.bf16.gmra.mrb[0].mxu0 %v1123
    %v3054 = vpop.f32.mrb[0].mxu0
    %v3055 = vadd.f32 %v2766, %v3054
    %v3056 = vpop.f32.mrb[0].mxu0
    %v3057 = vpop.f32.mrb[0].mxu0
    %v3058 = vadd.f32 %v2769, %v3057
    %v3059 = vpop.f32.mrb[0].mxu0
    %3060 = vmatprep.mubr.bf16.mxu0 0
    %3061 = vmatmul.mubr.bf16.gmra.mrb[0].mxu0 %v1124
    %v3062 = vpop.f32.mrb[0].mxu0
    %v3063 = vadd.f32 %v2774, %v3062
    %v3064 = vpop.f32.mrb[0].mxu0
    %v3065 = vpop.f32.mrb[0].mxu0
    %v3066 = vadd.f32 %v2777, %v3065
    %v3067 = vpop.f32.mrb[0].mxu0
    %3068 = vmatprep.mubr.bf16.mxu0 0
    %3069 = vmatmul.mubr.bf16.gmra.mrb[0].mxu0 %v1125
    %v3070 = vpop.f32.mrb[0].mxu0
    %v3071 = vadd.f32 %v2782, %v3070
    %v3072 = vpop.f32.mrb[0].mxu0
    %v3073 = vpop.f32.mrb[0].mxu0
    %v3074 = vadd.f32 %v2785, %v3073
    %v3075 = vpop.f32.mrb[0].mxu0
    %3076 = vmatprep.mubr.bf16.mxu0 0
    %3077 = vmatmul.mubr.bf16.gmra.mrb[0].mxu0 %v1126
    %v3078 = vpop.f32.mrb[0].mxu0
    %v3079 = vadd.f32 %v2790, %v3078
    %v3080 = vpop.f32.mrb[0].mxu0
    %v3081 = vpop.f32.mrb[0].mxu0
    %v3082 = vadd.f32 %v2793, %v3081
    %v3083 = vpop.f32.mrb[0].mxu0
    %3084 = vmatprep.mubr.bf16.mxu0 0
    %3085 = vmatmul.mubr.bf16.gmra.mrb[0].mxu0 %v1127
    %v3086 = vpop.f32.mrb[0].mxu0
    %v3087 = vadd.f32 %v2798, %v3086
    %v3088 = vpop.f32.mrb[0].mxu0
    %v3089 = vpop.f32.mrb[0].mxu0
    %v3090 = vadd.f32 %v2801, %v3089
    %v3091 = vpop.f32.mrb[0].mxu0
    %3092 = vmatprep.mubr.bf16.mxu0 0
    %3093 = vmatmul.mubr.bf16.gmra.mrb[0].mxu0 %v1128
    %v3094 = vpop.f32.mrb[0].mxu0
    %v3095 = vadd.f32 %v2806, %v3094
    %v3096 = vpop.f32.mrb[0].mxu0
    %v3097 = vpop.f32.mrb[0].mxu0
    %v3098 = vadd.f32 %v2809, %v3097
    %v3099 = vpop.f32.mrb[0].mxu0
    %3100 = vmatprep.mubr.bf16.mxu0 0
    %3101 = vmatmul.mubr.bf16.gmra.mrb[0].mxu0 %v1129
    %v3102 = vpop.f32.mrb[0].mxu0
    %v3103 = vadd.f32 %v2814, %v3102
    %v3104 = vpop.f32.mrb[0].mxu0
    %v3105 = vpop.f32.mrb[0].mxu0
    %v3106 = vadd.f32 %v2817, %v3105
    %v3107 = vpop.f32.mrb[0].mxu0
    %3108 = vmatprep.mubr.bf16.mxu0 0
    %3109 = vmatmul.mubr.bf16.gmra.mrb[0].mxu0 %v1130
    %v3110 = vpop.f32.mrb[0].mxu0
    %v3111 = vadd.f32 %v2822, %v3110
    %v3112 = vpop.f32.mrb[0].mxu0
    %v3113 = vpop.f32.mrb[0].mxu0
    %v3114 = vadd.f32 %v2825, %v3113
    %v3115 = vpop.f32.mrb[0].mxu0
    %3116 = vmatprep.mubr.bf16.mxu0 0
    %3117 = vmatmul.mubr.bf16.gmra.mrb[0].mxu0 %v1131
    %v3118 = vpop.f32.mrb[0].mxu0
    %v3119 = vadd.f32 %v2830, %v3118
    %v3120 = vpop.f32.mrb[0].mxu0
    %v3121 = vpop.f32.mrb[0].mxu0
    %v3122 = vadd.f32 %v2833, %v3121
    %v3123 = vpop.f32.mrb[0].mxu0
    %3124 = vmatprep.mubr.bf16.mxu0 0
    %3125 = vmatmul.mubr.bf16.gmra.mrb[0].mxu0 %v1132
    %v3126 = vpop.f32.mrb[0].mxu0
    %v3127 = vadd.f32 %v2838, %v3126
    %v3128 = vpop.f32.mrb[0].mxu0
    %v3129 = vpop.f32.mrb[0].mxu0
    %v3130 = vadd.f32 %v2841, %v3129
    %v3131 = vpop.f32.mrb[0].mxu0
    %3132 = vmatprep.mubr.bf16.mxu0 0
    %3133 = vmatmul.mubr.bf16.gmra.mrb[0].mxu0 %v1133
    %v3134 = vpop.f32.mrb[0].mxu0
    %v3135 = vadd.f32 %v2846, %v3134
    %v3136 = vpop.f32.mrb[0].mxu0
    %v3137 = vpop.f32.mrb[0].mxu0
    %v3138 = vadd.f32 %v2849, %v3137
    %v3139 = vpop.f32.mrb[0].mxu0
    %3140 = vmatprep.mubr.bf16.mxu0 0
    %3141 = vmatmul.mubr.bf16.gmra.mrb[0].mxu0 %v1134
    %v3142 = vpop.f32.mrb[0].mxu0
    %v3143 = vadd.f32 %v2854, %v3142
    %v3144 = vpop.f32.mrb[0].mxu0
    %v3145 = vpop.f32.mrb[0].mxu0
    %v3146 = vadd.f32 %v2857, %v3145
    %v3147 = vpop.f32.mrb[0].mxu0
    %3148 = vmatprep.mubr.bf16.mxu0 0
    %3149 = vmatmul.mubr.bf16.gmra.mrb[0].mxu0 %v1135
    %v3150 = vpop.f32.mrb[0].mxu0
    %v3151 = vadd.f32 %v2862, %v3150
    %v3152 = vpop.f32.mrb[0].mxu0
    %v3153 = vpop.f32.mrb[0].mxu0
    %v3154 = vadd.f32 %v2865, %v3153
    %v3155 = vpop.f32.mrb[0].mxu0
    %3156 = vmatprep.mubr.bf16.mxu0 0
    %3157 = vmatmul.mubr.bf16.gmra.mrb[0].mxu0 %v1136
    %v3158 = vpop.f32.mrb[0].mxu0
    %v3159 = vadd.f32 %v2870, %v3158
    %v3160 = vpop.f32.mrb[0].mxu0
    %v3161 = vpop.f32.mrb[0].mxu0
    %v3162 = vadd.f32 %v2873, %v3161
    %v3163 = vpop.f32.mrb[0].mxu0
    %3164 = vdwg.mxu0
    %v3165 = vmax.f32 %v2911, 0.0
    %v3166 = vmax.f32 %v2914, 0.0
    %v3167 = vmax.f32 %v2919, 0.0
    %v3168 = vmax.f32 %v2922, 0.0
    %v3169 = vmax.f32 %v2927, 0.0
    %v3170 = vmax.f32 %v2930, 0.0
    %v3171 = vmax.f32 %v2935, 0.0
    %v3172 = vmax.f32 %v2938, 0.0
    %v3173 = vmax.f32 %v2943, 0.0
    %v3174 = vmax.f32 %v2946, 0.0
    %v3175 = vmax.f32 %v2951, 0.0
    %v3176 = vmax.f32 %v2954, 0.0
    %v3177 = vmax.f32 %v2959, 0.0
    %v3178 = vmax.f32 %v2962, 0.0
    %v3179 = vmax.f32 %v2967, 0.0
    %v3180 = vmax.f32 %v2970, 0.0
    %v3181 = vmax.f32 %v2975, 0.0
    %v3182 = vmax.f32 %v2978, 0.0
    %v3183 = vmax.f32 %v2983, 0.0
    %v3184 = vmax.f32 %v2986, 0.0
    %v3185 = vmax.f32 %v2991, 0.0
    %v3186 = vmax.f32 %v2994, 0.0
    %v3187 = vmax.f32 %v2999, 0.0
    %v3188 = vmax.f32 %v3002, 0.0
    %v3189 = vmax.f32 %v3007, 0.0
    %v3190 = vmax.f32 %v3010, 0.0
    %v3191 = vmax.f32 %v3015, 0.0
    %v3192 = vmax.f32 %v3018, 0.0
    %v3193 = vmax.f32 %v3023, 0.0
    %v3194 = vmax.f32 %v3026, 0.0
    %v3195 = vmax.f32 %v3031, 0.0
    %v3196 = vmax.f32 %v3034, 0.0
    %v3197 = vmax.f32 %v3039, 0.0
    %v3198 = vmax.f32 %v3042, 0.0
    %v3199 = vmax.f32 %v3047, 0.0
    %v3200 = vmax.f32 %v3050, 0.0
    %v3201 = vmax.f32 %v3055, 0.0
    %v3202 = vmax.f32 %v3058, 0.0
    %v3203 = vmax.f32 %v3063, 0.0
    %v3204 = vmax.f32 %v3066, 0.0
    %v3205 = vmax.f32 %v3071, 0.0
    %v3206 = vmax.f32 %v3074, 0.0
    %v3207 = vmax.f32 %v3079, 0.0
    %v3208 = vmax.f32 %v3082, 0.0
    %v3209 = vmax.f32 %v3087, 0.0
    %v3210 = vmax.f32 %v3090, 0.0
    %v3211 = vmax.f32 %v3095, 0.0
    %v3212 = vmax.f32 %v3098, 0.0
    %v3213 = vmax.f32 %v3103, 0.0
    %v3214 = vmax.f32 %v3106, 0.0
    %v3215 = vmax.f32 %v3111, 0.0
    %v3216 = vmax.f32 %v3114, 0.0
    %v3217 = vmax.f32 %v3119, 0.0
    %v3218 = vmax.f32 %v3122, 0.0
    %v3219 = vmax.f32 %v3127, 0.0
    %v3220 = vmax.f32 %v3130, 0.0
    %v3221 = vmax.f32 %v3135, 0.0
    %v3222 = vmax.f32 %v3138, 0.0
    %v3223 = vmax.f32 %v3143, 0.0
    %v3224 = vmax.f32 %v3146, 0.0
    %v3225 = vmax.f32 %v3151, 0.0
    %v3226 = vmax.f32 %v3154, 0.0
    %v3227 = vmax.f32 %v3159, 0.0
    %v3228 = vmax.f32 %v3162, 0.0
    %3229 = vst [vmem:[#allocation3] sm:$0xff] 0.0
    %3230 = vst [vmem:[#allocation3 + $0x8] sm:$0xff] 0.0
    %3231 = vst [vmem:[#allocation3 + $0x10] sm:$0x3] 0.0
    %3232 = vst [vmem:[#allocation3 + $0x18] sm:$0xff] 0.0
    %3233 = vst [vmem:[#allocation3 + $0x20] sm:$0xff] 0.0
    %3234 = vst [vmem:[#allocation3 + $0x28] sm:$0x3] 0.0
    %3235 = vst [vmem:[#allocation3 + $0x30] sm:$0xff] 0.0
    %3236 = vst [vmem:[#allocation3 + $0x38] sm:$0xff] 0.0
    %3237 = vst [vmem:[#allocation3 + $0x40] sm:$0x3] 0.0
    %3238 = vst [vmem:[#allocation3 + $0x48] sm:$0xff] 0.0
    %3239 = vst [vmem:[#allocation3 + $0x50] sm:$0xff] 0.0
    %3240 = vst [vmem:[#allocation3 + $0x58] sm:$0x3] 0.0
    %3241 = vst [vmem:[#allocation3 + $0x60] sm:$0xff] 0.0
    %3242 = vst [vmem:[#allocation3 + $0x68] sm:$0xff] 0.0
    %3243 = vst [vmem:[#allocation3 + $0x70] sm:$0x3] 0.0
    %3244 = vst [vmem:[#allocation3 + $0x78] sm:$0xff] 0.0
    %3245 = vst [vmem:[#allocation3 + $0x80] sm:$0xff] 0.0
    %3246 = vst [vmem:[#allocation3 + $0x88] sm:$0x3] 0.0
    %3247 = vst [vmem:[#allocation3 + $0x90] sm:$0xff] 0.0
    %3248 = vst [vmem:[#allocation3 + $0x98] sm:$0xff] 0.0
    %3249 = vst [vmem:[#allocation3 + $0xa0] sm:$0x3] 0.0
    %3250 = vst [vmem:[#allocation3 + $0xa8] sm:$0xff] 0.0
    %3251 = vst [vmem:[#allocation3 + $0xb0] sm:$0xff] 0.0
    %3252 = vst [vmem:[#allocation3 + $0xb8] sm:$0x3] 0.0
    %3253 = vst [vmem:[#allocation3 + $0xc0] sm:$0xff] 0.0
    %3254 = vst [vmem:[#allocation3 + $0xc8] sm:$0xff] 0.0
    %3255 = vst [vmem:[#allocation3 + $0xd0] sm:$0x3] 0.0
    %3256 = vst [vmem:[#allocation3 + $0xd8] sm:$0xff] 0.0
    %3257 = vst [vmem:[#allocation3 + $0xe0] sm:$0xff] 0.0
    %3258 = vst [vmem:[#allocation3 + $0xe8] sm:$0x3] 0.0
    %3259 = vst [vmem:[#allocation3 + $0xf0] sm:$0xff] 0.0
    %3260 = vst [vmem:[#allocation3 + $0xf8] sm:$0xff] 0.0
    %3261 = vst [vmem:[#allocation3 + $0x100] sm:$0x3] 0.0
    %3262 = vst [vmem:[#allocation3 + $0x108] sm:$0xff] 0.0
    %3263 = vst [vmem:[#allocation3 + $0x110] sm:$0xff] 0.0
    %3264 = vst [vmem:[#allocation3 + $0x118] sm:$0x3] 0.0
    %3265 = vst [vmem:[#allocation3 + $0x120] sm:$0xff] 0.0
    %3266 = vst [vmem:[#allocation3 + $0x128] sm:$0xff] 0.0
    %3267 = vst [vmem:[#allocation3 + $0x130] sm:$0x3] 0.0
    %3268 = vst [vmem:[#allocation3 + $0x138] sm:$0xff] 0.0
    %3269 = vst [vmem:[#allocation3 + $0x140] sm:$0xff] 0.0
    %3270 = vst [vmem:[#allocation3 + $0x148] sm:$0x3] 0.0
    %3271 = vst [vmem:[#allocation3 + $0x150] sm:$0xff] 0.0
    %3272 = vst [vmem:[#allocation3 + $0x158] sm:$0xff] 0.0
    %3273 = vst [vmem:[#allocation3 + $0x160] sm:$0x3] 0.0
    %3274 = vst [vmem:[#allocation3 + $0x168] sm:$0xff] 0.0
    %3275 = vst [vmem:[#allocation3 + $0x170] sm:$0xff] 0.0
    %3276 = vst [vmem:[#allocation3 + $0x178] sm:$0x3] 0.0
    %3277 = vst [vmem:[#allocation3 + $0x180] sm:$0xff] 0.0
    %3278 = vst [vmem:[#allocation3 + $0x188] sm:$0xff] 0.0
    %3279 = vst [vmem:[#allocation3 + $0x190] sm:$0x3] 0.0
    %3280 = vst [vmem:[#allocation3 + $0x198] sm:$0xff] 0.0
    %3281 = vst [vmem:[#allocation3 + $0x1a0] sm:$0xff] 0.0
    %3282 = vst [vmem:[#allocation3 + $0x1a8] sm:$0x3] 0.0
    %3283 = vst [vmem:[#allocation3 + $0x1b0] sm:$0xff] 0.0
    %3284 = vst [vmem:[#allocation3 + $0x1b8] sm:$0xff] 0.0
    %3285 = vst [vmem:[#allocation3 + $0x1c0] sm:$0x3] 0.0
    %3286 = vst [vmem:[#allocation3 + $0x1c8] sm:$0xff] 0.0
    %3287 = vst [vmem:[#allocation3 + $0x1d0] sm:$0xff] 0.0
    %3288 = vst [vmem:[#allocation3 + $0x1d8] sm:$0x3] 0.0
    %3289 = vst [vmem:[#allocation3 + $0x1e0] sm:$0xff] 0.0
    %3290 = vst [vmem:[#allocation3 + $0x1e8] sm:$0xff] 0.0
    %3291 = vst [vmem:[#allocation3 + $0x1f0] sm:$0x3] 0.0
    %3292 = vst [vmem:[#allocation3 + $0x1f8] sm:$0xff] 0.0
    %3293 = vst [vmem:[#allocation3 + $0x200] sm:$0xff] 0.0
    %3294 = vst [vmem:[#allocation3 + $0x208] sm:$0x3] 0.0
    %3295 = vst [vmem:[#allocation3 + $0x210] sm:$0xff] 0.0
    %3296 = vst [vmem:[#allocation3 + $0x218] sm:$0xff] 0.0
    %3297 = vst [vmem:[#allocation3 + $0x220] sm:$0x3] 0.0
    %3298 = vst [vmem:[#allocation3 + $0x228] sm:$0xff] 0.0
    %3299 = vst [vmem:[#allocation3 + $0x230] sm:$0xff] 0.0
    %3300 = vst [vmem:[#allocation3 + $0x238] sm:$0x3] 0.0
    %3301 = vst [vmem:[#allocation3 + $0x240] sm:$0xff] 0.0
    %3302 = vst [vmem:[#allocation3 + $0x248] sm:$0xff] 0.0
    %3303 = vst [vmem:[#allocation3 + $0x250] sm:$0x3] 0.0
    %3304 = vst [vmem:[#allocation3 + $0x258] sm:$0xff] 0.0
    %3305 = vst [vmem:[#allocation3 + $0x260] sm:$0xff] 0.0
    %3306 = vst [vmem:[#allocation3 + $0x268] sm:$0x3] 0.0
    %3307 = vst [vmem:[#allocation3 + $0x270] sm:$0xff] 0.0
    %3308 = vst [vmem:[#allocation3 + $0x278] sm:$0xff] 0.0
    %3309 = vst [vmem:[#allocation3 + $0x280] sm:$0x3] 0.0
    %3310 = vst [vmem:[#allocation3 + $0x288] sm:$0xff] 0.0
    %3311 = vst [vmem:[#allocation3 + $0x290] sm:$0xff] 0.0
    %3312 = vst [vmem:[#allocation3 + $0x298] sm:$0x3] 0.0
    %3313 = vst [vmem:[#allocation3 + $0x2a0] sm:$0xff] 0.0
    %3314 = vst [vmem:[#allocation3 + $0x2a8] sm:$0xff] 0.0
    %3315 = vst [vmem:[#allocation3 + $0x2b0] sm:$0x3] 0.0
    %3316 = vst [vmem:[#allocation3 + $0x2b8] sm:$0xff] 0.0
    %3317 = vst [vmem:[#allocation3 + $0x2c0] sm:$0xff] 0.0
    %3318 = vst [vmem:[#allocation3 + $0x2c8] sm:$0x3] 0.0
    %3319 = vst [vmem:[#allocation3 + $0x2d0] sm:$0xff] 0.0
    %3320 = vst [vmem:[#allocation3 + $0x2d8] sm:$0xff] 0.0
    %3321 = vst [vmem:[#allocation3 + $0x2e0] sm:$0x3] 0.0
    %3322 = vst [vmem:[#allocation3 + $0x2e8] sm:$0xff] 0.0
    %3323 = vst [vmem:[#allocation3 + $0x2f0] sm:$0xff] 0.0
    %3324 = vst [vmem:[#allocation3 + $0x2f8] sm:$0x3] 0.0
    %3325 = vst [vmem:[#allocation3 + $0x300] sm:$0xff] 0.0
    %3326 = vst [vmem:[#allocation3 + $0x308] sm:$0xff] 0.0
    %3327 = vst [vmem:[#allocation3 + $0x310] sm:$0x3] 0.0
    %3328 = vst [vmem:[#allocation3 + $0x318] sm:$0xff] 0.0
    %3329 = vst [vmem:[#allocation3 + $0x320] sm:$0xff] 0.0
    %3330 = vst [vmem:[#allocation3 + $0x328] sm:$0x3] 0.0
    %3331 = vst [vmem:[#allocation3 + $0x330] sm:$0xff] 0.0
    %3332 = vst [vmem:[#allocation3 + $0x338] sm:$0xff] 0.0
    %3333 = vst [vmem:[#allocation3 + $0x340] sm:$0x3] 0.0
    %3334 = vst [vmem:[#allocation3 + $0x348] sm:$0xff] 0.0
    %3335 = vst [vmem:[#allocation3 + $0x350] sm:$0xff] 0.0
    %3336 = vst [vmem:[#allocation3 + $0x358] sm:$0x3] 0.0
    %s3337 = scalar_lea.vmem [#allocation3], 24
    %vm3338 = vcmask 523264
    %3339 = vst.msk [vmem:[%s3337 + $0x1] sm:$0xff] %vm3338, %v3165
    %3340 = vst.msk [vmem:[%s3337 + $0x9] sm:$0xff] %vm3338, %v3166
    %3341 = vst.msk [vmem:[%s3337 + $0x19] sm:$0xff] %vm3338, %v3167
    %3342 = vst.msk [vmem:[%s3337 + $0x21] sm:$0xff] %vm3338, %v3168
    %3343 = vst.msk [vmem:[%s3337 + $0x31] sm:$0xff] %vm3338, %v3169
    %3344 = vst.msk [vmem:[%s3337 + $0x39] sm:$0xff] %vm3338, %v3170
    %3345 = vst.msk [vmem:[%s3337 + $0x49] sm:$0xff] %vm3338, %v3171
    %3346 = vst.msk [vmem:[%s3337 + $0x51] sm:$0xff] %vm3338, %v3172
    %3347 = vst.msk [vmem:[%s3337 + $0x61] sm:$0xff] %vm3338, %v3173
    %3348 = vst.msk [vmem:[%s3337 + $0x69] sm:$0xff] %vm3338, %v3174
    %3349 = vst.msk [vmem:[%s3337 + $0x79] sm:$0xff] %vm3338, %v3175
    %3350 = vst.msk [vmem:[%s3337 + $0x81] sm:$0xff] %vm3338, %v3176
    %3351 = vst.msk [vmem:[%s3337 + $0x91] sm:$0xff] %vm3338, %v3177
    %3352 = vst.msk [vmem:[%s3337 + $0x99] sm:$0xff] %vm3338, %v3178
    %3353 = vst.msk [vmem:[%s3337 + $0xa9] sm:$0xff] %vm3338, %v3179
    %3354 = vst.msk [vmem:[%s3337 + $0xb1] sm:$0xff] %vm3338, %v3180
    %3355 = vst.msk [vmem:[%s3337 + $0xc1] sm:$0xff] %vm3338, %v3181
    %3356 = vst.msk [vmem:[%s3337 + $0xc9] sm:$0xff] %vm3338, %v3182
    %3357 = vst.msk [vmem:[%s3337 + $0xd9] sm:$0xff] %vm3338, %v3183
    %3358 = vst.msk [vmem:[%s3337 + $0xe1] sm:$0xff] %vm3338, %v3184
    %3359 = vst.msk [vmem:[%s3337 + $0xf1] sm:$0xff] %vm3338, %v3185
    %3360 = vst.msk [vmem:[%s3337 + $0xf9] sm:$0xff] %vm3338, %v3186
    %3361 = vst.msk [vmem:[%s3337 + $0x109] sm:$0xff] %vm3338, %v3187
    %3362 = vst.msk [vmem:[%s3337 + $0x111] sm:$0xff] %vm3338, %v3188
    %3363 = vst.msk [vmem:[%s3337 + $0x121] sm:$0xff] %vm3338, %v3189
    %3364 = vst.msk [vmem:[%s3337 + $0x129] sm:$0xff] %vm3338, %v3190
    %3365 = vst.msk [vmem:[%s3337 + $0x139] sm:$0xff] %vm3338, %v3191
    %3366 = vst.msk [vmem:[%s3337 + $0x141] sm:$0xff] %vm3338, %v3192
    %3367 = vst.msk [vmem:[%s3337 + $0x151] sm:$0xff] %vm3338, %v3193
    %3368 = vst.msk [vmem:[%s3337 + $0x159] sm:$0xff] %vm3338, %v3194
    %3369 = vst.msk [vmem:[%s3337 + $0x169] sm:$0xff] %vm3338, %v3195
    %3370 = vst.msk [vmem:[%s3337 + $0x171] sm:$0xff] %vm3338, %v3196
    %3371 = vst.msk [vmem:[%s3337 + $0x1b1] sm:$0xff] %vm3338, %v3197
    %3372 = vst.msk [vmem:[%s3337 + $0x1b9] sm:$0xff] %vm3338, %v3198
    %3373 = vst.msk [vmem:[%s3337 + $0x1c9] sm:$0xff] %vm3338, %v3199
    %3374 = vst.msk [vmem:[%s3337 + $0x1d1] sm:$0xff] %vm3338, %v3200
    %3375 = vst.msk [vmem:[%s3337 + $0x1e1] sm:$0xff] %vm3338, %v3201
    %3376 = vst.msk [vmem:[%s3337 + $0x1e9] sm:$0xff] %vm3338, %v3202
    %3377 = vst.msk [vmem:[%s3337 + $0x1f9] sm:$0xff] %vm3338, %v3203
    %3378 = vst.msk [vmem:[%s3337 + $0x201] sm:$0xff] %vm3338, %v3204
    %3379 = vst.msk [vmem:[%s3337 + $0x211] sm:$0xff] %vm3338, %v3205
    %3380 = vst.msk [vmem:[%s3337 + $0x219] sm:$0xff] %vm3338, %v3206
    %3381 = vst.msk [vmem:[%s3337 + $0x229] sm:$0xff] %vm3338, %v3207
    %3382 = vst.msk [vmem:[%s3337 + $0x231] sm:$0xff] %vm3338, %v3208
    %3383 = vst.msk [vmem:[%s3337 + $0x241] sm:$0xff] %vm3338, %v3209
    %3384 = vst.msk [vmem:[%s3337 + $0x249] sm:$0xff] %vm3338, %v3210
    %3385 = vst.msk [vmem:[%s3337 + $0x259] sm:$0xff] %vm3338, %v3211
    %3386 = vst.msk [vmem:[%s3337 + $0x261] sm:$0xff] %vm3338, %v3212
    %3387 = vst.msk [vmem:[%s3337 + $0x271] sm:$0xff] %vm3338, %v3213
    %3388 = vst.msk [vmem:[%s3337 + $0x279] sm:$0xff] %vm3338, %v3214
    %3389 = vst.msk [vmem:[%s3337 + $0x289] sm:$0xff] %vm3338, %v3215
    %3390 = vst.msk [vmem:[%s3337 + $0x291] sm:$0xff] %vm3338, %v3216
    %3391 = vst.msk [vmem:[%s3337 + $0x2a1] sm:$0xff] %vm3338, %v3217
    %3392 = vst.msk [vmem:[%s3337 + $0x2a9] sm:$0xff] %vm3338, %v3218
    %3393 = vst.msk [vmem:[%s3337 + $0x2b9] sm:$0xff] %vm3338, %v3219
    %3394 = vst.msk [vmem:[%s3337 + $0x2c1] sm:$0xff] %vm3338, %v3220
    %3395 = vst.msk [vmem:[%s3337 + $0x2d1] sm:$0xff] %vm3338, %v3221
    %3396 = vst.msk [vmem:[%s3337 + $0x2d9] sm:$0xff] %vm3338, %v3222
    %3397 = vst.msk [vmem:[%s3337 + $0x2e9] sm:$0xff] %vm3338, %v3223
    %3398 = vst.msk [vmem:[%s3337 + $0x2f1] sm:$0xff] %vm3338, %v3224
    %3399 = vst.msk [vmem:[%s3337 + $0x301] sm:$0xff] %vm3338, %v3225
    %3400 = vst.msk [vmem:[%s3337 + $0x309] sm:$0xff] %vm3338, %v3226
    %3401 = vst.msk [vmem:[%s3337 + $0x319] sm:$0xff] %vm3338, %v3227
    %3402 = vst.msk [vmem:[%s3337 + $0x321] sm:$0xff] %vm3338, %v3228
    %v3403 = vld [vmem:[#allocation3] sm:$0xff]
    %v3404 = vld [vmem:[#allocation3 + $0x8] sm:$0xff]
    %v3405 = vld [vmem:[#allocation3 + $0x18] sm:$0xff]
    %v3406 = vld [vmem:[#allocation3 + $0x20] sm:$0xff]
    %v3407 = vld [vmem:[#allocation3 + $0x30] sm:$0xff]
    %v3408 = vld [vmem:[#allocation3 + $0x38] sm:$0xff]
    %v3409 = vld [vmem:[#allocation3 + $0x48] sm:$0xff]
    %v3410 = vld [vmem:[#allocation3 + $0x50] sm:$0xff]
    %v3411 = vld [vmem:[#allocation3 + $0x60] sm:$0xff]
    %v3412 = vld [vmem:[#allocation3 + $0x68] sm:$0xff]
    %v3413 = vld [vmem:[#allocation3 + $0x78] sm:$0xff]
    %v3414 = vld [vmem:[#allocation3 + $0x80] sm:$0xff]
    %v3415 = vld [vmem:[#allocation3 + $0x90] sm:$0xff]
    %v3416 = vld [vmem:[#allocation3 + $0x98] sm:$0xff]
    %v3417 = vld [vmem:[#allocation3 + $0xa8] sm:$0xff]
    %v3418 = vld [vmem:[#allocation3 + $0xb0] sm:$0xff]
    %v3419 = vld [vmem:[#allocation3 + $0xc0] sm:$0xff]
    %v3420 = vld [vmem:[#allocation3 + $0xc8] sm:$0xff]
    %v3421 = vld [vmem:[#allocation3 + $0xd8] sm:$0xff]
    %v3422 = vld [vmem:[#allocation3 + $0xe0] sm:$0xff]
    %v3423 = vld [vmem:[#allocation3 + $0xf0] sm:$0xff]
    %v3424 = vld [vmem:[#allocation3 + $0xf8] sm:$0xff]
    %v3425 = vld [vmem:[#allocation3 + $0x108] sm:$0xff]
    %v3426 = vld [vmem:[#allocation3 + $0x110] sm:$0xff]
    %v3427 = vld [vmem:[#allocation3 + $0x120] sm:$0xff]
    %v3428 = vld [vmem:[#allocation3 + $0x128] sm:$0xff]
    %v3429 = vld [vmem:[#allocation3 + $0x138] sm:$0xff]
    %v3430 = vld [vmem:[#allocation3 + $0x140] sm:$0xff]
    %v3431 = vld [vmem:[#allocation3 + $0x150] sm:$0xff]
    %v3432 = vld [vmem:[#allocation3 + $0x158] sm:$0xff]
    %v3433 = vld [vmem:[#allocation3 + $0x168] sm:$0xff]
    %v3434 = vld [vmem:[#allocation3 + $0x170] sm:$0xff]
    %v3435 = vld [vmem:[#allocation3 + $0x1b0] sm:$0xff]
    %v3436 = vld [vmem:[#allocation3 + $0x1b8] sm:$0xff]
    %v3437 = vld [vmem:[#allocation3 + $0x1c8] sm:$0xff]
    %v3438 = vld [vmem:[#allocation3 + $0x1d0] sm:$0xff]
    %v3439 = vld [vmem:[#allocation3 + $0x1e0] sm:$0xff]
    %v3440 = vld [vmem:[#allocation3 + $0x1e8] sm:$0xff]
    %v3441 = vld [vmem:[#allocation3 + $0x1f8] sm:$0xff]
    %v3442 = vld [vmem:[#allocation3 + $0x200] sm:$0xff]
    %v3443 = vld [vmem:[#allocation3 + $0x210] sm:$0xff]
    %v3444 = vld [vmem:[#allocation3 + $0x218] sm:$0xff]
    %v3445 = vld [vmem:[#allocation3 + $0x228] sm:$0xff]
    %v3446 = vld [vmem:[#allocation3 + $0x230] sm:$0xff]
    %v3447 = vld [vmem:[#allocation3 + $0x240] sm:$0xff]
    %v3448 = vld [vmem:[#allocation3 + $0x248] sm:$0xff]
    %v3449 = vld [vmem:[#allocation3 + $0x258] sm:$0xff]
    %v3450 = vld [vmem:[#allocation3 + $0x260] sm:$0xff]
    %v3451 = vld [vmem:[#allocation3 + $0x270] sm:$0xff]
    %v3452 = vld [vmem:[#allocation3 + $0x278] sm:$0xff]
    %v3453 = vld [vmem:[#allocation3 + $0x288] sm:$0xff]
    %v3454 = vld [vmem:[#allocation3 + $0x290] sm:$0xff]
    %v3455 = vld [vmem:[#allocation3 + $0x2a0] sm:$0xff]
    %v3456 = vld [vmem:[#allocation3 + $0x2a8] sm:$0xff]
    %v3457 = vld [vmem:[#allocation3 + $0x2b8] sm:$0xff]
    %v3458 = vld [vmem:[#allocation3 + $0x2c0] sm:$0xff]
    %v3459 = vld [vmem:[#allocation3 + $0x2d0] sm:$0xff]
    %v3460 = vld [vmem:[#allocation3 + $0x2d8] sm:$0xff]
    %v3461 = vld [vmem:[#allocation3 + $0x2e8] sm:$0xff]
    %v3462 = vld [vmem:[#allocation3 + $0x2f0] sm:$0xff]
    %v3463 = vld [vmem:[#allocation3 + $0x300] sm:$0xff]
    %v3464 = vld [vmem:[#allocation3 + $0x308] sm:$0xff]
    %v3465 = vld [vmem:[#allocation3 + $0x318] sm:$0xff]
    %v3466 = vld [vmem:[#allocation3 + $0x320] sm:$0xff]
    %v3467 = vpack.c.bf16 %v3404, %v3403
    %v3468 = vpack.c.bf16 %v3406, %v3405
    %v3469 = vpack.c.bf16 %v3408, %v3407
    %v3470 = vpack.c.bf16 %v3410, %v3409
    %v3471 = vpack.c.bf16 %v3412, %v3411
    %v3472 = vpack.c.bf16 %v3414, %v3413
    %v3473 = vpack.c.bf16 %v3416, %v3415
    %v3474 = vpack.c.bf16 %v3418, %v3417
    %v3475 = vpack.c.bf16 %v3420, %v3419
    %v3476 = vpack.c.bf16 %v3422, %v3421
    %v3477 = vpack.c.bf16 %v3424, %v3423
    %v3478 = vpack.c.bf16 %v3426, %v3425
    %v3479 = vpack.c.bf16 %v3428, %v3427
    %v3480 = vpack.c.bf16 %v3430, %v3429
    %v3481 = vpack.c.bf16 %v3432, %v3431
    %v3482 = vpack.c.bf16 %v3434, %v3433
    %v3483 = vpack.c.bf16 %v3436, %v3435
    %v3484 = vpack.c.bf16 %v3438, %v3437
    %v3485 = vpack.c.bf16 %v3440, %v3439
    %v3486 = vpack.c.bf16 %v3442, %v3441
    %v3487 = vpack.c.bf16 %v3444, %v3443
    %v3488 = vpack.c.bf16 %v3446, %v3445
    %v3489 = vpack.c.bf16 %v3448, %v3447
    %v3490 = vpack.c.bf16 %v3450, %v3449
    %v3491 = vpack.c.bf16 %v3452, %v3451
    %v3492 = vpack.c.bf16 %v3454, %v3453
    %v3493 = vpack.c.bf16 %v3456, %v3455
    %v3494 = vpack.c.bf16 %v3458, %v3457
    %v3495 = vpack.c.bf16 %v3460, %v3459
    %v3496 = vpack.c.bf16 %v3462, %v3461
    %v3497 = vpack.c.bf16 %v3464, %v3463
    %v3498 = vpack.c.bf16 %v3466, %v3465
    %v3499 = vld [vmem:[#allocation3 + $0x1] sm:$0xff]
    %v3500 = vld [vmem:[#allocation3 + $0x9] sm:$0xff]
    %v3501 = vld [vmem:[#allocation3 + $0x19] sm:$0xff]
    %v3502 = vld [vmem:[#allocation3 + $0x21] sm:$0xff]
    %v3503 = vld [vmem:[#allocation3 + $0x31] sm:$0xff]
    %v3504 = vld [vmem:[#allocation3 + $0x39] sm:$0xff]
    %v3505 = vld [vmem:[#allocation3 + $0x49] sm:$0xff]
    %v3506 = vld [vmem:[#allocation3 + $0x51] sm:$0xff]
    %v3507 = vld [vmem:[#allocation3 + $0x61] sm:$0xff]
    %v3508 = vld [vmem:[#allocation3 + $0x69] sm:$0xff]
    %v3509 = vld [vmem:[#allocation3 + $0x79] sm:$0xff]
    %v3510 = vld [vmem:[#allocation3 + $0x81] sm:$0xff]
    %v3511 = vld [vmem:[#allocation3 + $0x91] sm:$0xff]
    %v3512 = vld [vmem:[#allocation3 + $0x99] sm:$0xff]
    %v3513 = vld [vmem:[#allocation3 + $0xa9] sm:$0xff]
    %v3514 = vld [vmem:[#allocation3 + $0xb1] sm:$0xff]
    %v3515 = vld [vmem:[#allocation3 + $0xc1] sm:$0xff]
    %v3516 = vld [vmem:[#allocation3 + $0xc9] sm:$0xff]
    %v3517 = vld [vmem:[#allocation3 + $0xd9] sm:$0xff]
    %v3518 = vld [vmem:[#allocation3 + $0xe1] sm:$0xff]
    %v3519 = vld [vmem:[#allocation3 + $0xf1] sm:$0xff]
    %v3520 = vld [vmem:[#allocation3 + $0xf9] sm:$0xff]
    %v3521 = vld [vmem:[#allocation3 + $0x109] sm:$0xff]
    %v3522 = vld [vmem:[#allocation3 + $0x111] sm:$0xff]
    %v3523 = vld [vmem:[#allocation3 + $0x121] sm:$0xff]
    %v3524 = vld [vmem:[#allocation3 + $0x129] sm:$0xff]
    %v3525 = vld [vmem:[#allocation3 + $0x139] sm:$0xff]
    %v3526 = vld [vmem:[#allocation3 + $0x141] sm:$0xff]
    %v3527 = vld [vmem:[#allocation3 + $0x151] sm:$0xff]
    %v3528 = vld [vmem:[#allocation3 + $0x159] sm:$0xff]
    %v3529 = vld [vmem:[#allocation3 + $0x169] sm:$0xff]
    %v3530 = vld [vmem:[#allocation3 + $0x171] sm:$0xff]
    %v3531 = vld [vmem:[#allocation3 + $0x1b1] sm:$0xff]
    %v3532 = vld [vmem:[#allocation3 + $0x1b9] sm:$0xff]
    %v3533 = vld [vmem:[#allocation3 + $0x1c9] sm:$0xff]
    %v3534 = vld [vmem:[#allocation3 + $0x1d1] sm:$0xff]
    %v3535 = vld [vmem:[#allocation3 + $0x1e1] sm:$0xff]
    %v3536 = vld [vmem:[#allocation3 + $0x1e9] sm:$0xff]
    %v3537 = vld [vmem:[#allocation3 + $0x1f9] sm:$0xff]
    %v3538 = vld [vmem:[#allocation3 + $0x201] sm:$0xff]
    %v3539 = vld [vmem:[#allocation3 + $0x211] sm:$0xff]
    %v3540 = vld [vmem:[#allocation3 + $0x219] sm:$0xff]
    %v3541 = vld [vmem:[#allocation3 + $0x229] sm:$0xff]
    %v3542 = vld [vmem:[#allocation3 + $0x231] sm:$0xff]
    %v3543 = vld [vmem:[#allocation3 + $0x241] sm:$0xff]
    %v3544 = vld [vmem:[#allocation3 + $0x249] sm:$0xff]
    %v3545 = vld [vmem:[#allocation3 + $0x259] sm:$0xff]
    %v3546 = vld [vmem:[#allocation3 + $0x261] sm:$0xff]
    %v3547 = vld [vmem:[#allocation3 + $0x271] sm:$0xff]
    %v3548 = vld [vmem:[#allocation3 + $0x279] sm:$0xff]
    %v3549 = vld [vmem:[#allocation3 + $0x289] sm:$0xff]
    %v3550 = vld [vmem:[#allocation3 + $0x291] sm:$0xff]
    %v3551 = vld [vmem:[#allocation3 + $0x2a1] sm:$0xff]
    %v3552 = vld [vmem:[#allocation3 + $0x2a9] sm:$0xff]
    %v3553 = vld [vmem:[#allocation3 + $0x2b9] sm:$0xff]
    %v3554 = vld [vmem:[#allocation3 + $0x2c1] sm:$0xff]
    %v3555 = vld [vmem:[#allocation3 + $0x2d1] sm:$0xff]
    %v3556 = vld [vmem:[#allocation3 + $0x2d9] sm:$0xff]
    %v3557 = vld [vmem:[#allocation3 + $0x2e9] sm:$0xff]
    %v3558 = vld [vmem:[#allocation3 + $0x2f1] sm:$0xff]
    %v3559 = vld [vmem:[#allocation3 + $0x301] sm:$0xff]
    %v3560 = vld [vmem:[#allocation3 + $0x309] sm:$0xff]
    %v3561 = vld [vmem:[#allocation3 + $0x319] sm:$0xff]
    %v3562 = vld [vmem:[#allocation3 + $0x321] sm:$0xff]
    %v3563 = vpack.c.bf16 %v3500, %v3499
    %v3564 = vpack.c.bf16 %v3502, %v3501
    %v3565 = vpack.c.bf16 %v3504, %v3503
    %v3566 = vpack.c.bf16 %v3506, %v3505
    %v3567 = vpack.c.bf16 %v3508, %v3507
    %v3568 = vpack.c.bf16 %v3510, %v3509
    %v3569 = vpack.c.bf16 %v3512, %v3511
    %v3570 = vpack.c.bf16 %v3514, %v3513
    %v3571 = vpack.c.bf16 %v3516, %v3515
    %v3572 = vpack.c.bf16 %v3518, %v3517
    %v3573 = vpack.c.bf16 %v3520, %v3519
    %v3574 = vpack.c.bf16 %v3522, %v3521
    %v3575 = vpack.c.bf16 %v3524, %v3523
    %v3576 = vpack.c.bf16 %v3526, %v3525
    %v3577 = vpack.c.bf16 %v3528, %v3527
    %v3578 = vpack.c.bf16 %v3530, %v3529
    %v3579 = vpack.c.bf16 %v3532, %v3531
    %v3580 = vpack.c.bf16 %v3534, %v3533
    %v3581 = vpack.c.bf16 %v3536, %v3535
    %v3582 = vpack.c.bf16 %v3538, %v3537
    %v3583 = vpack.c.bf16 %v3540, %v3539
    %v3584 = vpack.c.bf16 %v3542, %v3541
    %v3585 = vpack.c.bf16 %v3544, %v3543
    %v3586 = vpack.c.bf16 %v3546, %v3545
    %v3587 = vpack.c.bf16 %v3548, %v3547
    %v3588 = vpack.c.bf16 %v3550, %v3549
    %v3589 = vpack.c.bf16 %v3552, %v3551
    %v3590 = vpack.c.bf16 %v3554, %v3553
    %v3591 = vpack.c.bf16 %v3556, %v3555
    %v3592 = vpack.c.bf16 %v3558, %v3557
    %v3593 = vpack.c.bf16 %v3560, %v3559
    %v3594 = vpack.c.bf16 %v3562, %v3561
    %v3595 = vld [vmem:[#allocation3 + $0x2] sm:$0xff]
    %v3596 = vld [vmem:[#allocation3 + $0xa] sm:$0xff]
    %v3597 = vld [vmem:[#allocation3 + $0x1a] sm:$0xff]
    %v3598 = vld [vmem:[#allocation3 + $0x22] sm:$0xff]
    %v3599 = vld [vmem:[#allocation3 + $0x32] sm:$0xff]
    %v3600 = vld [vmem:[#allocation3 + $0x3a] sm:$0xff]
    %v3601 = vld [vmem:[#allocation3 + $0x4a] sm:$0xff]
    %v3602 = vld [vmem:[#allocation3 + $0x52] sm:$0xff]
    %v3603 = vld [vmem:[#allocation3 + $0x62] sm:$0xff]
    %v3604 = vld [vmem:[#allocation3 + $0x6a] sm:$0xff]
    %v3605 = vld [vmem:[#allocation3 + $0x7a] sm:$0xff]
    %v3606 = vld [vmem:[#allocation3 + $0x82] sm:$0xff]
    %v3607 = vld [vmem:[#allocation3 + $0x92] sm:$0xff]
    %v3608 = vld [vmem:[#allocation3 + $0x9a] sm:$0xff]
    %v3609 = vld [vmem:[#allocation3 + $0xaa] sm:$0xff]
    %v3610 = vld [vmem:[#allocation3 + $0xb2] sm:$0xff]
    %v3611 = vld [vmem:[#allocation3 + $0xc2] sm:$0xff]
    %v3612 = vld [vmem:[#allocation3 + $0xca] sm:$0xff]
    %v3613 = vld [vmem:[#allocation3 + $0xda] sm:$0xff]
    %v3614 = vld [vmem:[#allocation3 + $0xe2] sm:$0xff]
    %v3615 = vld [vmem:[#allocation3 + $0xf2] sm:$0xff]
    %v3616 = vld [vmem:[#allocation3 + $0xfa] sm:$0xff]
    %v3617 = vld [vmem:[#allocation3 + $0x10a] sm:$0xff]
    %v3618 = vld [vmem:[#allocation3 + $0x112] sm:$0xff]
    %v3619 = vld [vmem:[#allocation3 + $0x122] sm:$0xff]
    %v3620 = vld [vmem:[#allocation3 + $0x12a] sm:$0xff]
    %v3621 = vld [vmem:[#allocation3 + $0x13a] sm:$0xff]
    %v3622 = vld [vmem:[#allocation3 + $0x142] sm:$0xff]
    %v3623 = vld [vmem:[#allocation3 + $0x152] sm:$0xff]
    %v3624 = vld [vmem:[#allocation3 + $0x15a] sm:$0xff]
    %v3625 = vld [vmem:[#allocation3 + $0x16a] sm:$0xff]
    %v3626 = vld [vmem:[#allocation3 + $0x172] sm:$0xff]
    %v3627 = vld [vmem:[#allocation3 + $0x1b2] sm:$0xff]
    %v3628 = vld [vmem:[#allocation3 + $0x1ba] sm:$0xff]
    %v3629 = vld [vmem:[#allocation3 + $0x1ca] sm:$0xff]
    %v3630 = vld [vmem:[#allocation3 + $0x1d2] sm:$0xff]
    %v3631 = vld [vmem:[#allocation3 + $0x1e2] sm:$0xff]
    %v3632 = vld [vmem:[#allocation3 + $0x1ea] sm:$0xff]
    %v3633 = vld [vmem:[#allocation3 + $0x1fa] sm:$0xff]
    %v3634 = vld [vmem:[#allocation3 + $0x202] sm:$0xff]
    %v3635 = vld [vmem:[#allocation3 + $0x212] sm:$0xff]
    %v3636 = vld [vmem:[#allocation3 + $0x21a] sm:$0xff]
    %v3637 = vld [vmem:[#allocation3 + $0x22a] sm:$0xff]
    %v3638 = vld [vmem:[#allocation3 + $0x232] sm:$0xff]
    %v3639 = vld [vmem:[#allocation3 + $0x242] sm:$0xff]
    %v3640 = vld [vmem:[#allocation3 + $0x24a] sm:$0xff]
    %v3641 = vld [vmem:[#allocation3 + $0x25a] sm:$0xff]
    %v3642 = vld [vmem:[#allocation3 + $0x262] sm:$0xff]
    %v3643 = vld [vmem:[#allocation3 + $0x272] sm:$0xff]
    %v3644 = vld [vmem:[#allocation3 + $0x27a] sm:$0xff]
    %v3645 = vld [vmem:[#allocation3 + $0x28a] sm:$0xff]
    %v3646 = vld [vmem:[#allocation3 + $0x292] sm:$0xff]
    %v3647 = vld [vmem:[#allocation3 + $0x2a2] sm:$0xff]
    %v3648 = vld [vmem:[#allocation3 + $0x2aa] sm:$0xff]
    %v3649 = vld [vmem:[#allocation3 + $0x2ba] sm:$0xff]
    %v3650 = vld [vmem:[#allocation3 + $0x2c2] sm:$0xff]
    %v3651 = vld [vmem:[#allocation3 + $0x2d2] sm:$0xff]
    %v3652 = vld [vmem:[#allocation3 + $0x2da] sm:$0xff]
    %v3653 = vld [vmem:[#allocation3 + $0x2ea] sm:$0xff]
    %v3654 = vld [vmem:[#allocation3 + $0x2f2] sm:$0xff]
    %v3655 = vld [vmem:[#allocation3 + $0x302] sm:$0xff]
    %v3656 = vld [vmem:[#allocation3 + $0x30a] sm:$0xff]
    %v3657 = vld [vmem:[#allocation3 + $0x31a] sm:$0xff]
    %v3658 = vld [vmem:[#allocation3 + $0x322] sm:$0xff]
    %v3659 = vpack.c.bf16 %v3596, %v3595
    %v3660 = vpack.c.bf16 %v3598, %v3597
    %v3661 = vpack.c.bf16 %v3600, %v3599
    %v3662 = vpack.c.bf16 %v3602, %v3601
    %v3663 = vpack.c.bf16 %v3604, %v3603
    %v3664 = vpack.c.bf16 %v3606, %v3605
    %v3665 = vpack.c.bf16 %v3608, %v3607
    %v3666 = vpack.c.bf16 %v3610, %v3609
    %v3667 = vpack.c.bf16 %v3612, %v3611
    %v3668 = vpack.c.bf16 %v3614, %v3613
    %v3669 = vpack.c.bf16 %v3616, %v3615
    %v3670 = vpack.c.bf16 %v3618, %v3617
    %v3671 = vpack.c.bf16 %v3620, %v3619
    %v3672 = vpack.c.bf16 %v3622, %v3621
    %v3673 = vpack.c.bf16 %v3624, %v3623
    %v3674 = vpack.c.bf16 %v3626, %v3625
    %v3675 = vpack.c.bf16 %v3628, %v3627
    %v3676 = vpack.c.bf16 %v3630, %v3629
    %v3677 = vpack.c.bf16 %v3632, %v3631
    %v3678 = vpack.c.bf16 %v3634, %v3633
    %v3679 = vpack.c.bf16 %v3636, %v3635
    %v3680 = vpack.c.bf16 %v3638, %v3637
    %v3681 = vpack.c.bf16 %v3640, %v3639
    %v3682 = vpack.c.bf16 %v3642, %v3641
    %v3683 = vpack.c.bf16 %v3644, %v3643
    %v3684 = vpack.c.bf16 %v3646, %v3645
    %v3685 = vpack.c.bf16 %v3648, %v3647
    %v3686 = vpack.c.bf16 %v3650, %v3649
    %v3687 = vpack.c.bf16 %v3652, %v3651
    %v3688 = vpack.c.bf16 %v3654, %v3653
    %v3689 = vpack.c.bf16 %v3656, %v3655
    %v3690 = vpack.c.bf16 %v3658, %v3657
    %v3691 = vld [vmem:[%s3337] sm:$0xff]
    %v3692 = vld [vmem:[%s3337 + $0x8] sm:$0xff]
    %v3693 = vld [vmem:[%s3337 + $0x18] sm:$0xff]
    %v3694 = vld [vmem:[%s3337 + $0x20] sm:$0xff]
    %v3695 = vld [vmem:[%s3337 + $0x30] sm:$0xff]
    %v3696 = vld [vmem:[%s3337 + $0x38] sm:$0xff]
    %v3697 = vld [vmem:[%s3337 + $0x48] sm:$0xff]
    %v3698 = vld [vmem:[%s3337 + $0x50] sm:$0xff]
    %v3699 = vld [vmem:[%s3337 + $0x60] sm:$0xff]
    %v3700 = vld [vmem:[%s3337 + $0x68] sm:$0xff]
    %v3701 = vld [vmem:[%s3337 + $0x78] sm:$0xff]
    %v3702 = vld [vmem:[%s3337 + $0x80] sm:$0xff]
    %v3703 = vld [vmem:[%s3337 + $0x90] sm:$0xff]
    %v3704 = vld [vmem:[%s3337 + $0x98] sm:$0xff]
    %v3705 = vld [vmem:[%s3337 + $0xa8] sm:$0xff]
    %v3706 = vld [vmem:[%s3337 + $0xb0] sm:$0xff]
    %v3707 = vld [vmem:[%s3337 + $0xc0] sm:$0xff]
    %v3708 = vld [vmem:[%s3337 + $0xc8] sm:$0xff]
    %v3709 = vld [vmem:[%s3337 + $0xd8] sm:$0xff]
    %v3710 = vld [vmem:[%s3337 + $0xe0] sm:$0xff]
    %v3711 = vld [vmem:[%s3337 + $0xf0] sm:$0xff]
    %v3712 = vld [vmem:[%s3337 + $0xf8] sm:$0xff]
    %v3713 = vld [vmem:[%s3337 + $0x108] sm:$0xff]
    %v3714 = vld [vmem:[%s3337 + $0x110] sm:$0xff]
    %v3715 = vld [vmem:[%s3337 + $0x120] sm:$0xff]
    %v3716 = vld [vmem:[%s3337 + $0x128] sm:$0xff]
    %v3717 = vld [vmem:[%s3337 + $0x138] sm:$0xff]
    %v3718 = vld [vmem:[%s3337 + $0x140] sm:$0xff]
    %v3719 = vld [vmem:[%s3337 + $0x150] sm:$0xff]
    %v3720 = vld [vmem:[%s3337 + $0x158] sm:$0xff]
    %v3721 = vld [vmem:[%s3337 + $0x168] sm:$0xff]
    %v3722 = vld [vmem:[%s3337 + $0x170] sm:$0xff]
    %v3723 = vld [vmem:[%s3337 + $0x1b0] sm:$0xff]
    %v3724 = vld [vmem:[%s3337 + $0x1b8] sm:$0xff]
    %v3725 = vld [vmem:[%s3337 + $0x1c8] sm:$0xff]
    %v3726 = vld [vmem:[%s3337 + $0x1d0] sm:$0xff]
    %v3727 = vld [vmem:[%s3337 + $0x1e0] sm:$0xff]
    %v3728 = vld [vmem:[%s3337 + $0x1e8] sm:$0xff]
    %v3729 = vld [vmem:[%s3337 + $0x1f8] sm:$0xff]
    %v3730 = vld [vmem:[%s3337 + $0x200] sm:$0xff]
    %v3731 = vld [vmem:[%s3337 + $0x210] sm:$0xff]
    %v3732 = vld [vmem:[%s3337 + $0x218] sm:$0xff]
    %v3733 = vld [vmem:[%s3337 + $0x228] sm:$0xff]
    %v3734 = vld [vmem:[%s3337 + $0x230] sm:$0xff]
    %v3735 = vld [vmem:[%s3337 + $0x240] sm:$0xff]
    %v3736 = vld [vmem:[%s3337 + $0x248] sm:$0xff]
    %v3737 = vld [vmem:[%s3337 + $0x258] sm:$0xff]
    %v3738 = vld [vmem:[%s3337 + $0x260] sm:$0xff]
    %v3739 = vld [vmem:[%s3337 + $0x270] sm:$0xff]
    %v3740 = vld [vmem:[%s3337 + $0x278] sm:$0xff]
    %v3741 = vld [vmem:[%s3337 + $0x288] sm:$0xff]
    %v3742 = vld [vmem:[%s3337 + $0x290] sm:$0xff]
    %v3743 = vld [vmem:[%s3337 + $0x2a0] sm:$0xff]
    %v3744 = vld [vmem:[%s3337 + $0x2a8] sm:$0xff]
    %v3745 = vld [vmem:[%s3337 + $0x2b8] sm:$0xff]
    %v3746 = vld [vmem:[%s3337 + $0x2c0] sm:$0xff]
    %v3747 = vld [vmem:[%s3337 + $0x2d0] sm:$0xff]
    %v3748 = vld [vmem:[%s3337 + $0x2d8] sm:$0xff]
    %v3749 = vld [vmem:[%s3337 + $0x2e8] sm:$0xff]
    %v3750 = vld [vmem:[%s3337 + $0x2f0] sm:$0xff]
    %v3751 = vld [vmem:[%s3337 + $0x300] sm:$0xff]
    %v3752 = vld [vmem:[%s3337 + $0x308] sm:$0xff]
    %v3753 = vld [vmem:[%s3337 + $0x318] sm:$0xff]
    %v3754 = vld [vmem:[%s3337 + $0x320] sm:$0xff]
    %v3755 = vpack.c.bf16 %v3692, %v3691
    %v3756 = vpack.c.bf16 %v3694, %v3693
    %v3757 = vpack.c.bf16 %v3696, %v3695
    %v3758 = vpack.c.bf16 %v3698, %v3697
    %v3759 = vpack.c.bf16 %v3700, %v3699
    %v3760 = vpack.c.bf16 %v3702, %v3701
    %v3761 = vpack.c.bf16 %v3704, %v3703
    %v3762 = vpack.c.bf16 %v3706, %v3705
    %v3763 = vpack.c.bf16 %v3708, %v3707
    %v3764 = vpack.c.bf16 %v3710, %v3709
    %v3765 = vpack.c.bf16 %v3712, %v3711
    %v3766 = vpack.c.bf16 %v3714, %v3713
    %v3767 = vpack.c.bf16 %v3716, %v3715
    %v3768 = vpack.c.bf16 %v3718, %v3717
    %v3769 = vpack.c.bf16 %v3720, %v3719
    %v3770 = vpack.c.bf16 %v3722, %v3721
    %v3771 = vpack.c.bf16 %v3724, %v3723
    %v3772 = vpack.c.bf16 %v3726, %v3725
    %v3773 = vpack.c.bf16 %v3728, %v3727
    %v3774 = vpack.c.bf16 %v3730, %v3729
    %v3775 = vpack.c.bf16 %v3732, %v3731
    %v3776 = vpack.c.bf16 %v3734, %v3733
    %v3777 = vpack.c.bf16 %v3736, %v3735
    %v3778 = vpack.c.bf16 %v3738, %v3737
    %v3779 = vpack.c.bf16 %v3740, %v3739
    %v3780 = vpack.c.bf16 %v3742, %v3741
    %v3781 = vpack.c.bf16 %v3744, %v3743
    %v3782 = vpack.c.bf16 %v3746, %v3745
    %v3783 = vpack.c.bf16 %v3748, %v3747
    %v3784 = vpack.c.bf16 %v3750, %v3749
    %v3785 = vpack.c.bf16 %v3752, %v3751
    %v3786 = vpack.c.bf16 %v3754, %v3753
    %v3787 = vld [vmem:[%s3337 + $0x1] sm:$0xff]
    %v3788 = vld [vmem:[%s3337 + $0x9] sm:$0xff]
    %v3789 = vld [vmem:[%s3337 + $0x19] sm:$0xff]
    %v3790 = vld [vmem:[%s3337 + $0x21] sm:$0xff]
    %v3791 = vld [vmem:[%s3337 + $0x31] sm:$0xff]
    %v3792 = vld [vmem:[%s3337 + $0x39] sm:$0xff]
    %v3793 = vld [vmem:[%s3337 + $0x49] sm:$0xff]
    %v3794 = vld [vmem:[%s3337 + $0x51] sm:$0xff]
    %v3795 = vld [vmem:[%s3337 + $0x61] sm:$0xff]
    %v3796 = vld [vmem:[%s3337 + $0x69] sm:$0xff]
    %v3797 = vld [vmem:[%s3337 + $0x79] sm:$0xff]
    %v3798 = vld [vmem:[%s3337 + $0x81] sm:$0xff]
    %v3799 = vld [vmem:[%s3337 + $0x91] sm:$0xff]
    %v3800 = vld [vmem:[%s3337 + $0x99] sm:$0xff]
    %v3801 = vld [vmem:[%s3337 + $0xa9] sm:$0xff]
    %v3802 = vld [vmem:[%s3337 + $0xb1] sm:$0xff]
    %v3803 = vld [vmem:[%s3337 + $0xc1] sm:$0xff]
    %v3804 = vld [vmem:[%s3337 + $0xc9] sm:$0xff]
    %v3805 = vld [vmem:[%s3337 + $0xd9] sm:$0xff]
    %v3806 = vld [vmem:[%s3337 + $0xe1] sm:$0xff]
    %v3807 = vld [vmem:[%s3337 + $0xf1] sm:$0xff]
    %v3808 = vld [vmem:[%s3337 + $0xf9] sm:$0xff]
    %v3809 = vld [vmem:[%s3337 + $0x109] sm:$0xff]
    %v3810 = vld [vmem:[%s3337 + $0x111] sm:$0xff]
    %v3811 = vld [vmem:[%s3337 + $0x121] sm:$0xff]
    %v3812 = vld [vmem:[%s3337 + $0x129] sm:$0xff]
    %v3813 = vld [vmem:[%s3337 + $0x139] sm:$0xff]
    %v3814 = vld [vmem:[%s3337 + $0x141] sm:$0xff]
    %v3815 = vld [vmem:[%s3337 + $0x151] sm:$0xff]
    %v3816 = vld [vmem:[%s3337 + $0x159] sm:$0xff]
    %v3817 = vld [vmem:[%s3337 + $0x169] sm:$0xff]
    %v3818 = vld [vmem:[%s3337 + $0x171] sm:$0xff]
    %v3819 = vld [vmem:[%s3337 + $0x1b1] sm:$0xff]
    %v3820 = vld [vmem:[%s3337 + $0x1b9] sm:$0xff]
    %v3821 = vld [vmem:[%s3337 + $0x1c9] sm:$0xff]
    %v3822 = vld [vmem:[%s3337 + $0x1d1] sm:$0xff]
    %v3823 = vld [vmem:[%s3337 + $0x1e1] sm:$0xff]
    %v3824 = vld [vmem:[%s3337 + $0x1e9] sm:$0xff]
    %v3825 = vld [vmem:[%s3337 + $0x1f9] sm:$0xff]
    %v3826 = vld [vmem:[%s3337 + $0x201] sm:$0xff]
    %v3827 = vld [vmem:[%s3337 + $0x211] sm:$0xff]
    %v3828 = vld [vmem:[%s3337 + $0x219] sm:$0xff]
    %v3829 = vld [vmem:[%s3337 + $0x229] sm:$0xff]
    %v3830 = vld [vmem:[%s3337 + $0x231] sm:$0xff]
    %v3831 = vld [vmem:[%s3337 + $0x241] sm:$0xff]
    %v3832 = vld [vmem:[%s3337 + $0x249] sm:$0xff]
    %v3833 = vld [vmem:[%s3337 + $0x259] sm:$0xff]
    %v3834 = vld [vmem:[%s3337 + $0x261] sm:$0xff]
    %v3835 = vld [vmem:[%s3337 + $0x271] sm:$0xff]
    %v3836 = vld [vmem:[%s3337 + $0x279] sm:$0xff]
    %v3837 = vld [vmem:[%s3337 + $0x289] sm:$0xff]
    %v3838 = vld [vmem:[%s3337 + $0x291] sm:$0xff]
    %v3839 = vld [vmem:[%s3337 + $0x2a1] sm:$0xff]
    %v3840 = vld [vmem:[%s3337 + $0x2a9] sm:$0xff]
    %v3841 = vld [vmem:[%s3337 + $0x2b9] sm:$0xff]
    %v3842 = vld [vmem:[%s3337 + $0x2c1] sm:$0xff]
    %v3843 = vld [vmem:[%s3337 + $0x2d1] sm:$0xff]
    %v3844 = vld [vmem:[%s3337 + $0x2d9] sm:$0xff]
    %v3845 = vld [vmem:[%s3337 + $0x2e9] sm:$0xff]
    %v3846 = vld [vmem:[%s3337 + $0x2f1] sm:$0xff]
    %v3847 = vld [vmem:[%s3337 + $0x301] sm:$0xff]
    %v3848 = vld [vmem:[%s3337 + $0x309] sm:$0xff]
    %v3849 = vld [vmem:[%s3337 + $0x319] sm:$0xff]
    %v3850 = vld [vmem:[%s3337 + $0x321] sm:$0xff]
    %v3851 = vpack.c.bf16 %v3788, %v3787
    %v3852 = vpack.c.bf16 %v3790, %v3789
    %v3853 = vpack.c.bf16 %v3792, %v3791
    %v3854 = vpack.c.bf16 %v3794, %v3793
    %v3855 = vpack.c.bf16 %v3796, %v3795
    %v3856 = vpack.c.bf16 %v3798, %v3797
    %v3857 = vpack.c.bf16 %v3800, %v3799
    %v3858 = vpack.c.bf16 %v3802, %v3801
    %v3859 = vpack.c.bf16 %v3804, %v3803
    %v3860 = vpack.c.bf16 %v3806, %v3805
    %v3861 = vpack.c.bf16 %v3808, %v3807
    %v3862 = vpack.c.bf16 %v3810, %v3809
    %v3863 = vpack.c.bf16 %v3812, %v3811
    %v3864 = vpack.c.bf16 %v3814, %v3813
    %v3865 = vpack.c.bf16 %v3816, %v3815
    %v3866 = vpack.c.bf16 %v3818, %v3817
    %v3867 = vpack.c.bf16 %v3820, %v3819
    %v3868 = vpack.c.bf16 %v3822, %v3821
    %v3869 = vpack.c.bf16 %v3824, %v3823
    %v3870 = vpack.c.bf16 %v3826, %v3825
    %v3871 = vpack.c.bf16 %v3828, %v3827
    %v3872 = vpack.c.bf16 %v3830, %v3829
    %v3873 = vpack.c.bf16 %v3832, %v3831
    %v3874 = vpack.c.bf16 %v3834, %v3833
    %v3875 = vpack.c.bf16 %v3836, %v3835
    %v3876 = vpack.c.bf16 %v3838, %v3837
    %v3877 = vpack.c.bf16 %v3840, %v3839
    %v3878 = vpack.c.bf16 %v3842, %v3841
    %v3879 = vpack.c.bf16 %v3844, %v3843
    %v3880 = vpack.c.bf16 %v3846, %v3845
    %v3881 = vpack.c.bf16 %v3848, %v3847
    %v3882 = vpack.c.bf16 %v3850, %v3849
    %v3883 = vld [vmem:[%s3337 + $0x2] sm:$0xff]
    %v3884 = vld [vmem:[%s3337 + $0xa] sm:$0xff]
    %v3885 = vld [vmem:[%s3337 + $0x1a] sm:$0xff]
    %v3886 = vld [vmem:[%s3337 + $0x22] sm:$0xff]
    %v3887 = vld [vmem:[%s3337 + $0x32] sm:$0xff]
    %v3888 = vld [vmem:[%s3337 + $0x3a] sm:$0xff]
    %v3889 = vld [vmem:[%s3337 + $0x4a] sm:$0xff]
    %v3890 = vld [vmem:[%s3337 + $0x52] sm:$0xff]
    %v3891 = vld [vmem:[%s3337 + $0x62] sm:$0xff]
    %v3892 = vld [vmem:[%s3337 + $0x6a] sm:$0xff]
    %v3893 = vld [vmem:[%s3337 + $0x7a] sm:$0xff]
    %v3894 = vld [vmem:[%s3337 + $0x82] sm:$0xff]
    %v3895 = vld [vmem:[%s3337 + $0x92] sm:$0xff]
    %v3896 = vld [vmem:[%s3337 + $0x9a] sm:$0xff]
    %v3897 = vld [vmem:[%s3337 + $0xaa] sm:$0xff]
    %v3898 = vld [vmem:[%s3337 + $0xb2] sm:$0xff]
    %v3899 = vld [vmem:[%s3337 + $0xc2] sm:$0xff]
    %v3900 = vld [vmem:[%s3337 + $0xca] sm:$0xff]
    %v3901 = vld [vmem:[%s3337 + $0xda] sm:$0xff]
    %v3902 = vld [vmem:[%s3337 + $0xe2] sm:$0xff]
    %v3903 = vld [vmem:[%s3337 + $0xf2] sm:$0xff]
    %v3904 = vld [vmem:[%s3337 + $0xfa] sm:$0xff]
    %v3905 = vld [vmem:[%s3337 + $0x10a] sm:$0xff]
    %v3906 = vld [vmem:[%s3337 + $0x112] sm:$0xff]
    %v3907 = vld [vmem:[%s3337 + $0x122] sm:$0xff]
    %v3908 = vld [vmem:[%s3337 + $0x12a] sm:$0xff]
    %v3909 = vld [vmem:[%s3337 + $0x13a] sm:$0xff]
    %v3910 = vld [vmem:[%s3337 + $0x142] sm:$0xff]
    %v3911 = vld [vmem:[%s3337 + $0x152] sm:$0xff]
    %v3912 = vld [vmem:[%s3337 + $0x15a] sm:$0xff]
    %v3913 = vld [vmem:[%s3337 + $0x16a] sm:$0xff]
    %v3914 = vld [vmem:[%s3337 + $0x172] sm:$0xff]
    %v3915 = vld [vmem:[%s3337 + $0x1b2] sm:$0xff]
    %v3916 = vld [vmem:[%s3337 + $0x1ba] sm:$0xff]
    %v3917 = vld [vmem:[%s3337 + $0x1ca] sm:$0xff]
    %v3918 = vld [vmem:[%s3337 + $0x1d2] sm:$0xff]
    %v3919 = vld [vmem:[%s3337 + $0x1e2] sm:$0xff]
    %v3920 = vld [vmem:[%s3337 + $0x1ea] sm:$0xff]
    %v3921 = vld [vmem:[%s3337 + $0x1fa] sm:$0xff]
    %v3922 = vld [vmem:[%s3337 + $0x202] sm:$0xff]
    %v3923 = vld [vmem:[%s3337 + $0x212] sm:$0xff]
    %v3924 = vld [vmem:[%s3337 + $0x21a] sm:$0xff]
    %v3925 = vld [vmem:[%s3337 + $0x22a] sm:$0xff]
    %v3926 = vld [vmem:[%s3337 + $0x232] sm:$0xff]
    %v3927 = vld [vmem:[%s3337 + $0x242] sm:$0xff]
    %v3928 = vld [vmem:[%s3337 + $0x24a] sm:$0xff]
    %v3929 = vld [vmem:[%s3337 + $0x25a] sm:$0xff]
    %v3930 = vld [vmem:[%s3337 + $0x262] sm:$0xff]
    %v3931 = vld [vmem:[%s3337 + $0x272] sm:$0xff]
    %v3932 = vld [vmem:[%s3337 + $0x27a] sm:$0xff]
    %v3933 = vld [vmem:[%s3337 + $0x28a] sm:$0xff]
    %v3934 = vld [vmem:[%s3337 + $0x292] sm:$0xff]
    %v3935 = vld [vmem:[%s3337 + $0x2a2] sm:$0xff]
    %v3936 = vld [vmem:[%s3337 + $0x2aa] sm:$0xff]
    %v3937 = vld [vmem:[%s3337 + $0x2ba] sm:$0xff]
    %v3938 = vld [vmem:[%s3337 + $0x2c2] sm:$0xff]
    %v3939 = vld [vmem:[%s3337 + $0x2d2] sm:$0xff]
    %v3940 = vld [vmem:[%s3337 + $0x2da] sm:$0xff]
    %v3941 = vld [vmem:[%s3337 + $0x2ea] sm:$0xff]
    %v3942 = vld [vmem:[%s3337 + $0x2f2] sm:$0xff]
    %v3943 = vld [vmem:[%s3337 + $0x302] sm:$0xff]
    %v3944 = vld [vmem:[%s3337 + $0x30a] sm:$0xff]
    %v3945 = vld [vmem:[%s3337 + $0x31a] sm:$0xff]
    %v3946 = vld [vmem:[%s3337 + $0x322] sm:$0xff]
    %v3947 = vpack.c.bf16 %v3884, %v3883
    %v3948 = vpack.c.bf16 %v3886, %v3885
    %v3949 = vpack.c.bf16 %v3888, %v3887
    %v3950 = vpack.c.bf16 %v3890, %v3889
    %v3951 = vpack.c.bf16 %v3892, %v3891
    %v3952 = vpack.c.bf16 %v3894, %v3893
    %v3953 = vpack.c.bf16 %v3896, %v3895
    %v3954 = vpack.c.bf16 %v3898, %v3897
    %v3955 = vpack.c.bf16 %v3900, %v3899
    %v3956 = vpack.c.bf16 %v3902, %v3901
    %v3957 = vpack.c.bf16 %v3904, %v3903
    %v3958 = vpack.c.bf16 %v3906, %v3905
    %v3959 = vpack.c.bf16 %v3908, %v3907
    %v3960 = vpack.c.bf16 %v3910, %v3909
    %v3961 = vpack.c.bf16 %v3912, %v3911
    %v3962 = vpack.c.bf16 %v3914, %v3913
    %v3963 = vpack.c.bf16 %v3916, %v3915
    %v3964 = vpack.c.bf16 %v3918, %v3917
    %v3965 = vpack.c.bf16 %v3920, %v3919
    %v3966 = vpack.c.bf16 %v3922, %v3921
    %v3967 = vpack.c.bf16 %v3924, %v3923
    %v3968 = vpack.c.bf16 %v3926, %v3925
    %v3969 = vpack.c.bf16 %v3928, %v3927
    %v3970 = vpack.c.bf16 %v3930, %v3929
    %v3971 = vpack.c.bf16 %v3932, %v3931
    %v3972 = vpack.c.bf16 %v3934, %v3933
    %v3973 = vpack.c.bf16 %v3936, %v3935
    %v3974 = vpack.c.bf16 %v3938, %v3937
    %v3975 = vpack.c.bf16 %v3940, %v3939
    %v3976 = vpack.c.bf16 %v3942, %v3941
    %v3977 = vpack.c.bf16 %v3944, %v3943
    %v3978 = vpack.c.bf16 %v3946, %v3945
    %s3979 = scalar_lea.vmem [#allocation3], 48
    %v3980 = vld [vmem:[%s3979] sm:$0xff]
    %v3981 = vld [vmem:[%s3979 + $0x8] sm:$0xff]
    %v3982 = vld [vmem:[%s3979 + $0x18] sm:$0xff]
    %v3983 = vld [vmem:[%s3979 + $0x20] sm:$0xff]
    %v3984 = vld [vmem:[%s3979 + $0x30] sm:$0xff]
    %v3985 = vld [vmem:[%s3979 + $0x38] sm:$0xff]
    %v3986 = vld [vmem:[%s3979 + $0x48] sm:$0xff]
    %v3987 = vld [vmem:[%s3979 + $0x50] sm:$0xff]
    %v3988 = vld [vmem:[%s3979 + $0x60] sm:$0xff]
    %v3989 = vld [vmem:[%s3979 + $0x68] sm:$0xff]
    %v3990 = vld [vmem:[%s3979 + $0x78] sm:$0xff]
    %v3991 = vld [vmem:[%s3979 + $0x80] sm:$0xff]
    %v3992 = vld [vmem:[%s3979 + $0x90] sm:$0xff]
    %v3993 = vld [vmem:[%s3979 + $0x98] sm:$0xff]
    %v3994 = vld [vmem:[%s3979 + $0xa8] sm:$0xff]
    %v3995 = vld [vmem:[%s3979 + $0xb0] sm:$0xff]
    %v3996 = vld [vmem:[%s3979 + $0xc0] sm:$0xff]
    %v3997 = vld [vmem:[%s3979 + $0xc8] sm:$0xff]
    %v3998 = vld [vmem:[%s3979 + $0xd8] sm:$0xff]
    %v3999 = vld [vmem:[%s3979 + $0xe0] sm:$0xff]
    %v4000 = vld [vmem:[%s3979 + $0xf0] sm:$0xff]
    %v4001 = vld [vmem:[%s3979 + $0xf8] sm:$0xff]
    %v4002 = vld [vmem:[%s3979 + $0x108] sm:$0xff]
    %v4003 = vld [vmem:[%s3979 + $0x110] sm:$0xff]
    %v4004 = vld [vmem:[%s3979 + $0x120] sm:$0xff]
    %v4005 = vld [vmem:[%s3979 + $0x128] sm:$0xff]
    %v4006 = vld [vmem:[%s3979 + $0x138] sm:$0xff]
    %v4007 = vld [vmem:[%s3979 + $0x140] sm:$0xff]
    %v4008 = vld [vmem:[%s3979 + $0x150] sm:$0xff]
    %v4009 = vld [vmem:[%s3979 + $0x158] sm:$0xff]
    %v4010 = vld [vmem:[%s3979 + $0x168] sm:$0xff]
    %v4011 = vld [vmem:[%s3979 + $0x170] sm:$0xff]
    %v4012 = vld [vmem:[%s3979 + $0x1b0] sm:$0xff]
    %v4013 = vld [vmem:[%s3979 + $0x1b8] sm:$0xff]
    %v4014 = vld [vmem:[%s3979 + $0x1c8] sm:$0xff]
    %v4015 = vld [vmem:[%s3979 + $0x1d0] sm:$0xff]
    %v4016 = vld [vmem:[%s3979 + $0x1e0] sm:$0xff]
    %v4017 = vld [vmem:[%s3979 + $0x1e8] sm:$0xff]
    %v4018 = vld [vmem:[%s3979 + $0x1f8] sm:$0xff]
    %v4019 = vld [vmem:[%s3979 + $0x200] sm:$0xff]
    %v4020 = vld [vmem:[%s3979 + $0x210] sm:$0xff]
    %v4021 = vld [vmem:[%s3979 + $0x218] sm:$0xff]
    %v4022 = vld [vmem:[%s3979 + $0x228] sm:$0xff]
    %v4023 = vld [vmem:[%s3979 + $0x230] sm:$0xff]
    %v4024 = vld [vmem:[%s3979 + $0x240] sm:$0xff]
    %v4025 = vld [vmem:[%s3979 + $0x248] sm:$0xff]
    %v4026 = vld [vmem:[%s3979 + $0x258] sm:$0xff]
    %v4027 = vld [vmem:[%s3979 + $0x260] sm:$0xff]
    %v4028 = vld [vmem:[%s3979 + $0x270] sm:$0xff]
    %v4029 = vld [vmem:[%s3979 + $0x278] sm:$0xff]
    %v4030 = vld [vmem:[%s3979 + $0x288] sm:$0xff]
    %v4031 = vld [vmem:[%s3979 + $0x290] sm:$0xff]
    %v4032 = vld [vmem:[%s3979 + $0x2a0] sm:$0xff]
    %v4033 = vld [vmem:[%s3979 + $0x2a8] sm:$0xff]
    %v4034 = vld [vmem:[%s3979 + $0x2b8] sm:$0xff]
    %v4035 = vld [vmem:[%s3979 + $0x2c0] sm:$0xff]
    %v4036 = vld [vmem:[%s3979 + $0x2d0] sm:$0xff]
    %v4037 = vld [vmem:[%s3979 + $0x2d8] sm:$0xff]
    %v4038 = vld [vmem:[%s3979 + $0x2e8] sm:$0xff]
    %v4039 = vld [vmem:[%s3979 + $0x2f0] sm:$0xff]
    %v4040 = vld [vmem:[%s3979 + $0x300] sm:$0xff]
    %v4041 = vld [vmem:[%s3979 + $0x308] sm:$0xff]
    %v4042 = vld [vmem:[%s3979 + $0x318] sm:$0xff]
    %v4043 = vld [vmem:[%s3979 + $0x320] sm:$0xff]
    %v4044 = vpack.c.bf16 %v3981, %v3980
    %v4045 = vpack.c.bf16 %v3983, %v3982
    %v4046 = vpack.c.bf16 %v3985, %v3984
    %v4047 = vpack.c.bf16 %v3987, %v3986
    %v4048 = vpack.c.bf16 %v3989, %v3988
    %v4049 = vpack.c.bf16 %v3991, %v3990
    %v4050 = vpack.c.bf16 %v3993, %v3992
    %v4051 = vpack.c.bf16 %v3995, %v3994
    %v4052 = vpack.c.bf16 %v3997, %v3996
    %v4053 = vpack.c.bf16 %v3999, %v3998
    %v4054 = vpack.c.bf16 %v4001, %v4000
    %v4055 = vpack.c.bf16 %v4003, %v4002
    %v4056 = vpack.c.bf16 %v4005, %v4004
    %v4057 = vpack.c.bf16 %v4007, %v4006
    %v4058 = vpack.c.bf16 %v4009, %v4008
    %v4059 = vpack.c.bf16 %v4011, %v4010
    %v4060 = vpack.c.bf16 %v4013, %v4012
    %v4061 = vpack.c.bf16 %v4015, %v4014
    %v4062 = vpack.c.bf16 %v4017, %v4016
    %v4063 = vpack.c.bf16 %v4019, %v4018
    %v4064 = vpack.c.bf16 %v4021, %v4020
    %v4065 = vpack.c.bf16 %v4023, %v4022
    %v4066 = vpack.c.bf16 %v4025, %v4024
    %v4067 = vpack.c.bf16 %v4027, %v4026
    %v4068 = vpack.c.bf16 %v4029, %v4028
    %v4069 = vpack.c.bf16 %v4031, %v4030
    %v4070 = vpack.c.bf16 %v4033, %v4032
    %v4071 = vpack.c.bf16 %v4035, %v4034
    %v4072 = vpack.c.bf16 %v4037, %v4036
    %v4073 = vpack.c.bf16 %v4039, %v4038
    %v4074 = vpack.c.bf16 %v4041, %v4040
    %v4075 = vpack.c.bf16 %v4043, %v4042
    %v4076 = vld [vmem:[%s3979 + $0x1] sm:$0xff]
    %v4077 = vld [vmem:[%s3979 + $0x9] sm:$0xff]
    %v4078 = vld [vmem:[%s3979 + $0x19] sm:$0xff]
    %v4079 = vld [vmem:[%s3979 + $0x21] sm:$0xff]
    %v4080 = vld [vmem:[%s3979 + $0x31] sm:$0xff]
    %v4081 = vld [vmem:[%s3979 + $0x39] sm:$0xff]
    %v4082 = vld [vmem:[%s3979 + $0x49] sm:$0xff]
    %v4083 = vld [vmem:[%s3979 + $0x51] sm:$0xff]
    %v4084 = vld [vmem:[%s3979 + $0x61] sm:$0xff]
    %v4085 = vld [vmem:[%s3979 + $0x69] sm:$0xff]
    %v4086 = vld [vmem:[%s3979 + $0x79] sm:$0xff]
    %v4087 = vld [vmem:[%s3979 + $0x81] sm:$0xff]
    %v4088 = vld [vmem:[%s3979 + $0x91] sm:$0xff]
    %v4089 = vld [vmem:[%s3979 + $0x99] sm:$0xff]
    %v4090 = vld [vmem:[%s3979 + $0xa9] sm:$0xff]
    %v4091 = vld [vmem:[%s3979 + $0xb1] sm:$0xff]
    %v4092 = vld [vmem:[%s3979 + $0xc1] sm:$0xff]
    %v4093 = vld [vmem:[%s3979 + $0xc9] sm:$0xff]
    %v4094 = vld [vmem:[%s3979 + $0xd9] sm:$0xff]
    %v4095 = vld [vmem:[%s3979 + $0xe1] sm:$0xff]
    %v4096 = vld [vmem:[%s3979 + $0xf1] sm:$0xff]
    %v4097 = vld [vmem:[%s3979 + $0xf9] sm:$0xff]
    %v4098 = vld [vmem:[%s3979 + $0x109] sm:$0xff]
    %v4099 = vld [vmem:[%s3979 + $0x111] sm:$0xff]
    %v4100 = vld [vmem:[%s3979 + $0x121] sm:$0xff]
    %v4101 = vld [vmem:[%s3979 + $0x129] sm:$0xff]
    %v4102 = vld [vmem:[%s3979 + $0x139] sm:$0xff]
    %v4103 = vld [vmem:[%s3979 + $0x141] sm:$0xff]
    %v4104 = vld [vmem:[%s3979 + $0x151] sm:$0xff]
    %v4105 = vld [vmem:[%s3979 + $0x159] sm:$0xff]
    %v4106 = vld [vmem:[%s3979 + $0x169] sm:$0xff]
    %v4107 = vld [vmem:[%s3979 + $0x171] sm:$0xff]
    %v4108 = vld [vmem:[%s3979 + $0x1b1] sm:$0xff]
    %v4109 = vld [vmem:[%s3979 + $0x1b9] sm:$0xff]
    %v4110 = vld [vmem:[%s3979 + $0x1c9] sm:$0xff]
    %v4111 = vld [vmem:[%s3979 + $0x1d1] sm:$0xff]
    %v4112 = vld [vmem:[%s3979 + $0x1e1] sm:$0xff]
    %v4113 = vld [vmem:[%s3979 + $0x1e9] sm:$0xff]
    %v4114 = vld [vmem:[%s3979 + $0x1f9] sm:$0xff]
    %v4115 = vld [vmem:[%s3979 + $0x201] sm:$0xff]
    %v4116 = vld [vmem:[%s3979 + $0x211] sm:$0xff]
    %v4117 = vld [vmem:[%s3979 + $0x219] sm:$0xff]
    %v4118 = vld [vmem:[%s3979 + $0x229] sm:$0xff]
    %v4119 = vld [vmem:[%s3979 + $0x231] sm:$0xff]
    %v4120 = vld [vmem:[%s3979 + $0x241] sm:$0xff]
    %v4121 = vld [vmem:[%s3979 + $0x249] sm:$0xff]
    %v4122 = vld [vmem:[%s3979 + $0x259] sm:$0xff]
    %v4123 = vld [vmem:[%s3979 + $0x261] sm:$0xff]
    %v4124 = vld [vmem:[%s3979 + $0x271] sm:$0xff]
    %v4125 = vld [vmem:[%s3979 + $0x279] sm:$0xff]
    %v4126 = vld [vmem:[%s3979 + $0x289] sm:$0xff]
    %v4127 = vld [vmem:[%s3979 + $0x291] sm:$0xff]
    %v4128 = vld [vmem:[%s3979 + $0x2a1] sm:$0xff]
    %v4129 = vld [vmem:[%s3979 + $0x2a9] sm:$0xff]
    %v4130 = vld [vmem:[%s3979 + $0x2b9] sm:$0xff]
    %v4131 = vld [vmem:[%s3979 + $0x2c1] sm:$0xff]
    %v4132 = vld [vmem:[%s3979 + $0x2d1] sm:$0xff]
    %v4133 = vld [vmem:[%s3979 + $0x2d9] sm:$0xff]
    %v4134 = vld [vmem:[%s3979 + $0x2e9] sm:$0xff]
    %v4135 = vld [vmem:[%s3979 + $0x2f1] sm:$0xff]
    %v4136 = vld [vmem:[%s3979 + $0x301] sm:$0xff]
    %v4137 = vld [vmem:[%s3979 + $0x309] sm:$0xff]
    %v4138 = vld [vmem:[%s3979 + $0x319] sm:$0xff]
    %v4139 = vld [vmem:[%s3979 + $0x321] sm:$0xff]
    %v4140 = vpack.c.bf16 %v4077, %v4076
    %v4141 = vpack.c.bf16 %v4079, %v4078
    %v4142 = vpack.c.bf16 %v4081, %v4080
    %v4143 = vpack.c.bf16 %v4083, %v4082
    %v4144 = vpack.c.bf16 %v4085, %v4084
    %v4145 = vpack.c.bf16 %v4087, %v4086
    %v4146 = vpack.c.bf16 %v4089, %v4088
    %v4147 = vpack.c.bf16 %v4091, %v4090
    %v4148 = vpack.c.bf16 %v4093, %v4092
    %v4149 = vpack.c.bf16 %v4095, %v4094
    %v4150 = vpack.c.bf16 %v4097, %v4096
    %v4151 = vpack.c.bf16 %v4099, %v4098
    %v4152 = vpack.c.bf16 %v4101, %v4100
    %v4153 = vpack.c.bf16 %v4103, %v4102
    %v4154 = vpack.c.bf16 %v4105, %v4104
    %v4155 = vpack.c.bf16 %v4107, %v4106
    %v4156 = vpack.c.bf16 %v4109, %v4108
    %v4157 = vpack.c.bf16 %v4111, %v4110
    %v4158 = vpack.c.bf16 %v4113, %v4112
    %v4159 = vpack.c.bf16 %v4115, %v4114
    %v4160 = vpack.c.bf16 %v4117, %v4116
    %v4161 = vpack.c.bf16 %v4119, %v4118
    %v4162 = vpack.c.bf16 %v4121, %v4120
    %v4163 = vpack.c.bf16 %v4123, %v4122
    %v4164 = vpack.c.bf16 %v4125, %v4124
    %v4165 = vpack.c.bf16 %v4127, %v4126
    %v4166 = vpack.c.bf16 %v4129, %v4128
    %v4167 = vpack.c.bf16 %v4131, %v4130
    %v4168 = vpack.c.bf16 %v4133, %v4132
    %v4169 = vpack.c.bf16 %v4135, %v4134
    %v4170 = vpack.c.bf16 %v4137, %v4136
    %v4171 = vpack.c.bf16 %v4139, %v4138
    %v4172 = vld [vmem:[%s3979 + $0x2] sm:$0xff]
    %v4173 = vld [vmem:[%s3979 + $0xa] sm:$0xff]
    %v4174 = vld [vmem:[%s3979 + $0x1a] sm:$0xff]
    %v4175 = vld [vmem:[%s3979 + $0x22] sm:$0xff]
    %v4176 = vld [vmem:[%s3979 + $0x32] sm:$0xff]
    %v4177 = vld [vmem:[%s3979 + $0x3a] sm:$0xff]
    %v4178 = vld [vmem:[%s3979 + $0x4a] sm:$0xff]
    %v4179 = vld [vmem:[%s3979 + $0x52] sm:$0xff]
    %v4180 = vld [vmem:[%s3979 + $0x62] sm:$0xff]
    %v4181 = vld [vmem:[%s3979 + $0x6a] sm:$0xff]
    %v4182 = vld [vmem:[%s3979 + $0x7a] sm:$0xff]
    %v4183 = vld [vmem:[%s3979 + $0x82] sm:$0xff]
    %v4184 = vld [vmem:[%s3979 + $0x92] sm:$0xff]
    %v4185 = vld [vmem:[%s3979 + $0x9a] sm:$0xff]
    %v4186 = vld [vmem:[%s3979 + $0xaa] sm:$0xff]
    %v4187 = vld [vmem:[%s3979 + $0xb2] sm:$0xff]
    %v4188 = vld [vmem:[%s3979 + $0xc2] sm:$0xff]
    %v4189 = vld [vmem:[%s3979 + $0xca] sm:$0xff]
    %v4190 = vld [vmem:[%s3979 + $0xda] sm:$0xff]
    %v4191 = vld [vmem:[%s3979 + $0xe2] sm:$0xff]
    %v4192 = vld [vmem:[%s3979 + $0xf2] sm:$0xff]
    %v4193 = vld [vmem:[%s3979 + $0xfa] sm:$0xff]
    %v4194 = vld [vmem:[%s3979 + $0x10a] sm:$0xff]
    %v4195 = vld [vmem:[%s3979 + $0x112] sm:$0xff]
    %v4196 = vld [vmem:[%s3979 + $0x122] sm:$0xff]
    %v4197 = vld [vmem:[%s3979 + $0x12a] sm:$0xff]
    %v4198 = vld [vmem:[%s3979 + $0x13a] sm:$0xff]
    %v4199 = vld [vmem:[%s3979 + $0x142] sm:$0xff]
    %v4200 = vld [vmem:[%s3979 + $0x152] sm:$0xff]
    %v4201 = vld [vmem:[%s3979 + $0x15a] sm:$0xff]
    %v4202 = vld [vmem:[%s3979 + $0x16a] sm:$0xff]
    %v4203 = vld [vmem:[%s3979 + $0x172] sm:$0xff]
    %v4204 = vld [vmem:[%s3979 + $0x1b2] sm:$0xff]
    %v4205 = vld [vmem:[%s3979 + $0x1ba] sm:$0xff]
    %v4206 = vld [vmem:[%s3979 + $0x1ca] sm:$0xff]
    %v4207 = vld [vmem:[%s3979 + $0x1d2] sm:$0xff]
    %v4208 = vld [vmem:[%s3979 + $0x1e2] sm:$0xff]
    %v4209 = vld [vmem:[%s3979 + $0x1ea] sm:$0xff]
    %v4210 = vld [vmem:[%s3979 + $0x1fa] sm:$0xff]
    %v4211 = vld [vmem:[%s3979 + $0x202] sm:$0xff]
    %v4212 = vld [vmem:[%s3979 + $0x212] sm:$0xff]
    %v4213 = vld [vmem:[%s3979 + $0x21a] sm:$0xff]
    %v4214 = vld [vmem:[%s3979 + $0x22a] sm:$0xff]
    %v4215 = vld [vmem:[%s3979 + $0x232] sm:$0xff]
    %v4216 = vld [vmem:[%s3979 + $0x242] sm:$0xff]
    %v4217 = vld [vmem:[%s3979 + $0x24a] sm:$0xff]
    %v4218 = vld [vmem:[%s3979 + $0x25a] sm:$0xff]
    %v4219 = vld [vmem:[%s3979 + $0x262] sm:$0xff]
    %v4220 = vld [vmem:[%s3979 + $0x272] sm:$0xff]
    %v4221 = vld [vmem:[%s3979 + $0x27a] sm:$0xff]
    %v4222 = vld [vmem:[%s3979 + $0x28a] sm:$0xff]
    %v4223 = vld [vmem:[%s3979 + $0x292] sm:$0xff]
    %v4224 = vld [vmem:[%s3979 + $0x2a2] sm:$0xff]
    %v4225 = vld [vmem:[%s3979 + $0x2aa] sm:$0xff]
    %v4226 = vld [vmem:[%s3979 + $0x2ba] sm:$0xff]
    %v4227 = vld [vmem:[%s3979 + $0x2c2] sm:$0xff]
    %v4228 = vld [vmem:[%s3979 + $0x2d2] sm:$0xff]
    %v4229 = vld [vmem:[%s3979 + $0x2da] sm:$0xff]
    %v4230 = vld [vmem:[%s3979 + $0x2ea] sm:$0xff]
    %v4231 = vld [vmem:[%s3979 + $0x2f2] sm:$0xff]
    %v4232 = vld [vmem:[%s3979 + $0x302] sm:$0xff]
    %v4233 = vld [vmem:[%s3979 + $0x30a] sm:$0xff]
    %v4234 = vld [vmem:[%s3979 + $0x31a] sm:$0xff]
    %v4235 = vld [vmem:[%s3979 + $0x322] sm:$0xff]
    %v4236 = vpack.c.bf16 %v4173, %v4172
    %v4237 = vpack.c.bf16 %v4175, %v4174
    %v4238 = vpack.c.bf16 %v4177, %v4176
    %v4239 = vpack.c.bf16 %v4179, %v4178
    %v4240 = vpack.c.bf16 %v4181, %v4180
    %v4241 = vpack.c.bf16 %v4183, %v4182
    %v4242 = vpack.c.bf16 %v4185, %v4184
    %v4243 = vpack.c.bf16 %v4187, %v4186
    %v4244 = vpack.c.bf16 %v4189, %v4188
    %v4245 = vpack.c.bf16 %v4191, %v4190
    %v4246 = vpack.c.bf16 %v4193, %v4192
    %v4247 = vpack.c.bf16 %v4195, %v4194
    %v4248 = vpack.c.bf16 %v4197, %v4196
    %v4249 = vpack.c.bf16 %v4199, %v4198
    %v4250 = vpack.c.bf16 %v4201, %v4200
    %v4251 = vpack.c.bf16 %v4203, %v4202
    %v4252 = vpack.c.bf16 %v4205, %v4204
    %v4253 = vpack.c.bf16 %v4207, %v4206
    %v4254 = vpack.c.bf16 %v4209, %v4208
    %v4255 = vpack.c.bf16 %v4211, %v4210
    %v4256 = vpack.c.bf16 %v4213, %v4212
    %v4257 = vpack.c.bf16 %v4215, %v4214
    %v4258 = vpack.c.bf16 %v4217, %v4216
    %v4259 = vpack.c.bf16 %v4219, %v4218
    %v4260 = vpack.c.bf16 %v4221, %v4220
    %v4261 = vpack.c.bf16 %v4223, %v4222
    %v4262 = vpack.c.bf16 %v4225, %v4224
    %v4263 = vpack.c.bf16 %v4227, %v4226
    %v4264 = vpack.c.bf16 %v4229, %v4228
    %v4265 = vpack.c.bf16 %v4231, %v4230
    %v4266 = vpack.c.bf16 %v4233, %v4232
    %v4267 = vpack.c.bf16 %v4235, %v4234
    %v4268 = vld [vmem:[%s3] sm:$0xf]
    %v4269 = vld [vmem:[%s3 + $0x4] sm:$0xf]
    %v4270 = vld [vmem:[%s3 + $0x8] sm:$0xf]
    %v4271 = vld [vmem:[%s3 + $0xc] sm:$0xf]
    %v4272 = vld [vmem:[%s3 + $0x10] sm:$0xf]
    %v4273 = vld [vmem:[%s3 + $0x14] sm:$0xf]
    %v4274 = vld [vmem:[%s3 + $0x18] sm:$0xf]
    %v4275 = vld [vmem:[%s3 + $0x1c] sm:$0xf]
    %v4276 = vld [vmem:[%s3 + $0x20] sm:$0xf]
    %v4277 = vld [vmem:[%s3 + $0x24] sm:$0xf]
    %v4278 = vld [vmem:[%s3 + $0x28] sm:$0xf]
    %v4279 = vld [vmem:[%s3 + $0x2c] sm:$0xf]
    %v4280 = vld [vmem:[%s3 + $0x30] sm:$0xf]
    %v4281 = vld [vmem:[%s3 + $0x34] sm:$0xf]
    %v4282 = vld [vmem:[%s3 + $0x38] sm:$0xf]
    %v4283 = vld [vmem:[%s3 + $0x3c] sm:$0xf]
    %v4284 = vld [vmem:[%s3 + $0x40] sm:$0xf]
    %v4285 = vld [vmem:[%s3 + $0x44] sm:$0xf]
    %v4286 = vld [vmem:[%s3 + $0x48] sm:$0xf]
    %v4287 = vld [vmem:[%s3 + $0x4c] sm:$0xf]
    %v4288 = vld [vmem:[%s3 + $0x50] sm:$0xf]
    %v4289 = vld [vmem:[%s3 + $0x54] sm:$0xf]
    %v4290 = vld [vmem:[%s3 + $0x58] sm:$0xf]
    %v4291 = vld [vmem:[%s3 + $0x5c] sm:$0xf]
    %v4292 = vld [vmem:[%s3 + $0x60] sm:$0xf]
    %v4293 = vld [vmem:[%s3 + $0x64] sm:$0xf]
    %v4294 = vld [vmem:[%s3 + $0x68] sm:$0xf]
    %v4295 = vld [vmem:[%s3 + $0x6c] sm:$0xf]
    %v4296 = vld [vmem:[%s3 + $0x70] sm:$0xf]
    %v4297 = vld [vmem:[%s3 + $0x74] sm:$0xf]
    %v4298 = vld [vmem:[%s3 + $0x78] sm:$0xf]
    %v4299 = vld [vmem:[%s3 + $0x7c] sm:$0xf]
    %v4300 = vld [vmem:[%s3 + $0x80] sm:$0xf]
    %v4301 = vld [vmem:[%s3 + $0x84] sm:$0xf]
    %v4302 = vld [vmem:[%s3 + $0x88] sm:$0xf]
    %v4303 = vld [vmem:[%s3 + $0x8c] sm:$0xf]
    %v4304 = vld [vmem:[%s3 + $0x90] sm:$0xf]
    %v4305 = vld [vmem:[%s3 + $0x94] sm:$0xf]
    %v4306 = vld [vmem:[%s3 + $0x98] sm:$0xf]
    %v4307 = vld [vmem:[%s3 + $0x9c] sm:$0xf]
    %v4308 = vld [vmem:[%s3 + $0xa0] sm:$0xf]
    %v4309 = vld [vmem:[%s3 + $0xa4] sm:$0xf]
    %v4310 = vld [vmem:[%s3 + $0xa8] sm:$0xf]
    %v4311 = vld [vmem:[%s3 + $0xac] sm:$0xf]
    %v4312 = vld [vmem:[%s3 + $0xb0] sm:$0xf]
    %v4313 = vld [vmem:[%s3 + $0xb4] sm:$0xf]
    %v4314 = vld [vmem:[%s3 + $0xb8] sm:$0xf]
    %v4315 = vld [vmem:[%s3 + $0xbc] sm:$0xf]
    %v4316 = vld [vmem:[%s3 + $0xc0] sm:$0xf]
    %v4317 = vld [vmem:[%s3 + $0xc4] sm:$0xf]
    %v4318 = vld [vmem:[%s3 + $0xc8] sm:$0xf]
    %v4319 = vld [vmem:[%s3 + $0xcc] sm:$0xf]
    %v4320 = vld [vmem:[%s3 + $0xd0] sm:$0xf]
    %v4321 = vld [vmem:[%s3 + $0xd4] sm:$0xf]
    %v4322 = vld [vmem:[%s3 + $0xd8] sm:$0xf]
    %v4323 = vld [vmem:[%s3 + $0xdc] sm:$0xf]
    %v4324 = vld [vmem:[%s3 + $0xe0] sm:$0xf]
    %v4325 = vld [vmem:[%s3 + $0xe4] sm:$0xf]
    %v4326 = vld [vmem:[%s3 + $0xe8] sm:$0xf]
    %v4327 = vld [vmem:[%s3 + $0xec] sm:$0xf]
    %v4328 = vld [vmem:[%s3 + $0xf0] sm:$0xf]
    %v4329 = vld [vmem:[%s3 + $0xf4] sm:$0xf]
    %v4330 = vld [vmem:[%s3 + $0xf8] sm:$0xf]
    %v4331 = vld [vmem:[%s3 + $0xfc] sm:$0xf]
    %v4332 = vld [vmem:[%s3 + $0x100] sm:$0xf]
    %v4333 = vld [vmem:[%s3 + $0x104] sm:$0xf]
    %v4334 = vld [vmem:[%s3 + $0x108] sm:$0xf]
    %v4335 = vld [vmem:[%s3 + $0x10c] sm:$0xf]
    %v4336 = vld [vmem:[%s3 + $0x110] sm:$0xf]
    %v4337 = vld [vmem:[%s3 + $0x114] sm:$0xf]
    %v4338 = vld [vmem:[%s3 + $0x118] sm:$0xf]
    %v4339 = vld [vmem:[%s3 + $0x11c] sm:$0xf]
    %v4340 = vld [vmem:[%s3 + $0x120] sm:$0xf]
    %v4341 = vld [vmem:[%s3 + $0x124] sm:$0xf]
    %v4342 = vld [vmem:[%s3 + $0x128] sm:$0xf]
    %v4343 = vld [vmem:[%s3 + $0x12c] sm:$0xf]
    %v4344 = vld [vmem:[%s3 + $0x130] sm:$0xf]
    %v4345 = vld [vmem:[%s3 + $0x134] sm:$0xf]
    %v4346 = vld [vmem:[%s3 + $0x138] sm:$0xf]
    %v4347 = vld [vmem:[%s3 + $0x13c] sm:$0xf]
    %v4348 = vld [vmem:[%s3 + $0x140] sm:$0xf]
    %v4349 = vld [vmem:[%s3 + $0x144] sm:$0xf]
    %v4350 = vld [vmem:[%s3 + $0x148] sm:$0xf]
    %v4351 = vld [vmem:[%s3 + $0x14c] sm:$0xf]
    %v4352 = vld [vmem:[%s3 + $0x150] sm:$0xf]
    %v4353 = vld [vmem:[%s3 + $0x154] sm:$0xf]
    %v4354 = vld [vmem:[%s3 + $0x158] sm:$0xf]
    %v4355 = vld [vmem:[%s3 + $0x15c] sm:$0xf]
    %v4356 = vld [vmem:[%s3 + $0x160] sm:$0xf]
    %v4357 = vld [vmem:[%s3 + $0x164] sm:$0xf]
    %v4358 = vld [vmem:[%s3 + $0x168] sm:$0xf]
    %v4359 = vld [vmem:[%s3 + $0x16c] sm:$0xf]
    %v4360 = vld [vmem:[%s3 + $0x170] sm:$0xf]
    %v4361 = vld [vmem:[%s3 + $0x174] sm:$0xf]
    %v4362 = vld [vmem:[%s3 + $0x178] sm:$0xf]
    %v4363 = vld [vmem:[%s3 + $0x17c] sm:$0xf]
    %v4364 = vld [vmem:[%s3 + $0x180] sm:$0xf]
    %v4365 = vld [vmem:[%s3 + $0x184] sm:$0xf]
    %v4366 = vld [vmem:[%s3 + $0x188] sm:$0xf]
    %v4367 = vld [vmem:[%s3 + $0x18c] sm:$0xf]
    %v4368 = vld [vmem:[%s3 + $0x190] sm:$0xf]
    %v4369 = vld [vmem:[%s3 + $0x194] sm:$0xf]
    %v4370 = vld [vmem:[%s3 + $0x198] sm:$0xf]
    %v4371 = vld [vmem:[%s3 + $0x19c] sm:$0xf]
    %v4372 = vld [vmem:[%s3 + $0x1a0] sm:$0xf]
    %v4373 = vld [vmem:[%s3 + $0x1a4] sm:$0xf]
    %v4374 = vld [vmem:[%s3 + $0x1a8] sm:$0xf]
    %v4375 = vld [vmem:[%s3 + $0x1ac] sm:$0xf]
    %v4376 = vld [vmem:[%s3 + $0x1b0] sm:$0xf]
    %v4377 = vld [vmem:[%s3 + $0x1b4] sm:$0xf]
    %v4378 = vld [vmem:[%s3 + $0x1b8] sm:$0xf]
    %v4379 = vld [vmem:[%s3 + $0x1bc] sm:$0xf]
    %v4380 = vld [vmem:[%s3 + $0x1c0] sm:$0xf]
    %v4381 = vld [vmem:[%s3 + $0x1c4] sm:$0xf]
    %v4382 = vld [vmem:[%s3 + $0x1c8] sm:$0xf]
    %v4383 = vld [vmem:[%s3 + $0x1cc] sm:$0xf]
    %v4384 = vld [vmem:[%s3 + $0x1d0] sm:$0xf]
    %v4385 = vld [vmem:[%s3 + $0x1d4] sm:$0xf]
    %v4386 = vld [vmem:[%s3 + $0x1d8] sm:$0xf]
    %v4387 = vld [vmem:[%s3 + $0x1dc] sm:$0xf]
    %v4388 = vld [vmem:[%s3 + $0x1e0] sm:$0xf]
    %v4389 = vld [vmem:[%s3 + $0x1e4] sm:$0xf]
    %v4390 = vld [vmem:[%s3 + $0x1e8] sm:$0xf]
    %v4391 = vld [vmem:[%s3 + $0x1ec] sm:$0xf]
    %v4392 = vld [vmem:[%s3 + $0x1f0] sm:$0xf]
    %v4393 = vld [vmem:[%s3 + $0x1f4] sm:$0xf]
    %v4394 = vld [vmem:[%s3 + $0x1f8] sm:$0xf]
    %v4395 = vld [vmem:[%s3 + $0x1fc] sm:$0xf]
    %v4396 = vld [vmem:[%s3 + $0x200] sm:$0xf]
    %v4397 = vld [vmem:[%s3 + $0x204] sm:$0xf]
    %v4398 = vld [vmem:[%s3 + $0x208] sm:$0xf]
    %v4399 = vld [vmem:[%s3 + $0x20c] sm:$0xf]
    %v4400 = vld [vmem:[%s3 + $0x210] sm:$0xf]
    %v4401 = vld [vmem:[%s3 + $0x214] sm:$0xf]
    %v4402 = vld [vmem:[%s3 + $0x218] sm:$0xf]
    %v4403 = vld [vmem:[%s3 + $0x21c] sm:$0xf]
    %v4404 = vld [vmem:[%s3 + $0x220] sm:$0xf]
    %v4405 = vld [vmem:[%s3 + $0x224] sm:$0xf]
    %v4406 = vld [vmem:[%s3 + $0x228] sm:$0xf]
    %v4407 = vld [vmem:[%s3 + $0x22c] sm:$0xf]
    %v4408 = vld [vmem:[%s3 + $0x230] sm:$0xf]
    %v4409 = vld [vmem:[%s3 + $0x234] sm:$0xf]
    %v4410 = vld [vmem:[%s3 + $0x238] sm:$0xf]
    %v4411 = vld [vmem:[%s3 + $0x23c] sm:$0xf]
    %v4412 = vld [vmem:[%s4] sm:$0x1]
    %v4414 = vlaneseq
    %v4415 = vshrl.u32 %v4414, 7
    %v4416 = vsub.s32 0, %v4415
    %v4417 = vrot.slane %v4412, %v4416
    %v4563 = vunpack.c.l.b16 %v4268
    %v4564 = vunpack.c.l.b16 %v4269
    %v4565 = vunpack.c.l.b16 %v4270
    %v4566 = vunpack.c.l.b16 %v4271
    %v4567 = vunpack.c.l.b16 %v4272
    %v4568 = vunpack.c.l.b16 %v4273
    %v4569 = vunpack.c.l.b16 %v4274
    %v4570 = vunpack.c.l.b16 %v4275
    %v4571 = vunpack.c.l.b16 %v4276
    %v4572 = vunpack.c.l.b16 %v4277
    %v4573 = vunpack.c.l.b16 %v4278
    %v4574 = vunpack.c.l.b16 %v4279
    %v4575 = vunpack.c.l.b16 %v4280
    %v4576 = vunpack.c.l.b16 %v4281
    %v4577 = vunpack.c.l.b16 %v4282
    %v4578 = vunpack.c.l.b16 %v4283
    %v4579 = vunpack.c.l.b16 %v4284
    %v4580 = vunpack.c.l.b16 %v4285
    %v4581 = vunpack.c.l.b16 %v4286
    %v4582 = vunpack.c.l.b16 %v4287
    %v4583 = vunpack.c.l.b16 %v4288
    %v4584 = vunpack.c.l.b16 %v4289
    %v4585 = vunpack.c.l.b16 %v4290
    %v4586 = vunpack.c.l.b16 %v4291
    %v4587 = vunpack.c.l.b16 %v4292
    %v4588 = vunpack.c.l.b16 %v4293
    %v4589 = vunpack.c.l.b16 %v4294
    %v4590 = vunpack.c.l.b16 %v4295
    %v4591 = vunpack.c.l.b16 %v4296
    %v4592 = vunpack.c.l.b16 %v4297
    %v4593 = vunpack.c.l.b16 %v4298
    %v4594 = vunpack.c.l.b16 %v4299
    %v4595 = vunpack.c.l.b16 %v4300
    %v4596 = vunpack.c.l.b16 %v4301
    %v4597 = vunpack.c.l.b16 %v4302
    %v4598 = vunpack.c.l.b16 %v4303
    %v4599 = vunpack.c.l.b16 %v4304
    %v4600 = vunpack.c.l.b16 %v4305
    %v4601 = vunpack.c.l.b16 %v4306
    %v4602 = vunpack.c.l.b16 %v4307
    %v4603 = vunpack.c.l.b16 %v4308
    %v4604 = vunpack.c.l.b16 %v4309
    %v4605 = vunpack.c.l.b16 %v4310
    %v4606 = vunpack.c.l.b16 %v4311
    %v4607 = vunpack.c.l.b16 %v4312
    %v4608 = vunpack.c.l.b16 %v4313
    %v4609 = vunpack.c.l.b16 %v4314
    %v4610 = vunpack.c.l.b16 %v4315
    %v4611 = vunpack.c.l.b16 %v4316
    %v4612 = vunpack.c.l.b16 %v4317
    %v4613 = vunpack.c.l.b16 %v4318
    %v4614 = vunpack.c.l.b16 %v4319
    %v4615 = vunpack.c.l.b16 %v4320
    %v4616 = vunpack.c.l.b16 %v4321
    %v4617 = vunpack.c.l.b16 %v4322
    %v4618 = vunpack.c.l.b16 %v4323
    %v4619 = vunpack.c.l.b16 %v4324
    %v4620 = vunpack.c.l.b16 %v4325
    %v4621 = vunpack.c.l.b16 %v4326
    %v4622 = vunpack.c.l.b16 %v4327
    %v4623 = vunpack.c.l.b16 %v4328
    %v4624 = vunpack.c.l.b16 %v4329
    %v4625 = vunpack.c.l.b16 %v4330
    %v4626 = vunpack.c.l.b16 %v4331
    %v4627 = vunpack.c.l.b16 %v4332
    %v4628 = vunpack.c.l.b16 %v4333
    %v4629 = vunpack.c.l.b16 %v4334
    %v4630 = vunpack.c.l.b16 %v4335
    %v4631 = vunpack.c.l.b16 %v4336
    %v4632 = vunpack.c.l.b16 %v4337
    %v4633 = vunpack.c.l.b16 %v4338
    %v4634 = vunpack.c.l.b16 %v4339
    %v4635 = vunpack.c.l.b16 %v4340
    %v4636 = vunpack.c.l.b16 %v4341
    %v4637 = vunpack.c.l.b16 %v4342
    %v4638 = vunpack.c.l.b16 %v4343
    %v4639 = vunpack.c.l.b16 %v4344
    %v4640 = vunpack.c.l.b16 %v4345
    %v4641 = vunpack.c.l.b16 %v4346
    %v4642 = vunpack.c.l.b16 %v4347
    %v4643 = vunpack.c.l.b16 %v4348
    %v4644 = vunpack.c.l.b16 %v4349
    %v4645 = vunpack.c.l.b16 %v4350
    %v4646 = vunpack.c.l.b16 %v4351
    %v4647 = vunpack.c.l.b16 %v4352
    %v4648 = vunpack.c.l.b16 %v4353
    %v4649 = vunpack.c.l.b16 %v4354
    %v4650 = vunpack.c.l.b16 %v4355
    %v4651 = vunpack.c.l.b16 %v4356
    %v4652 = vunpack.c.l.b16 %v4357
    %v4653 = vunpack.c.l.b16 %v4358
    %v4654 = vunpack.c.l.b16 %v4359
    %v4655 = vunpack.c.l.b16 %v4360
    %v4656 = vunpack.c.l.b16 %v4361
    %v4657 = vunpack.c.l.b16 %v4362
    %v4658 = vunpack.c.l.b16 %v4363
    %v4659 = vunpack.c.l.b16 %v4364
    %v4660 = vunpack.c.l.b16 %v4365
    %v4661 = vunpack.c.l.b16 %v4366
    %v4662 = vunpack.c.l.b16 %v4367
    %v4663 = vunpack.c.l.b16 %v4368
    %v4664 = vunpack.c.l.b16 %v4369
    %v4665 = vunpack.c.l.b16 %v4370
    %v4666 = vunpack.c.l.b16 %v4371
    %v4667 = vunpack.c.l.b16 %v4372
    %v4668 = vunpack.c.l.b16 %v4373
    %v4669 = vunpack.c.l.b16 %v4374
    %v4670 = vunpack.c.l.b16 %v4375
    %v4671 = vunpack.c.l.b16 %v4376
    %v4672 = vunpack.c.l.b16 %v4377
    %v4673 = vunpack.c.l.b16 %v4378
    %v4674 = vunpack.c.l.b16 %v4379
    %v4675 = vunpack.c.l.b16 %v4380
    %v4676 = vunpack.c.l.b16 %v4381
    %v4677 = vunpack.c.l.b16 %v4382
    %v4678 = vunpack.c.l.b16 %v4383
    %v4679 = vunpack.c.l.b16 %v4384
    %v4680 = vunpack.c.l.b16 %v4385
    %v4681 = vunpack.c.l.b16 %v4386
    %v4682 = vunpack.c.l.b16 %v4387
    %v4683 = vunpack.c.l.b16 %v4388
    %v4684 = vunpack.c.l.b16 %v4389
    %v4685 = vunpack.c.l.b16 %v4390
    %v4686 = vunpack.c.l.b16 %v4391
    %v4687 = vunpack.c.l.b16 %v4392
    %v4688 = vunpack.c.l.b16 %v4393
    %v4689 = vunpack.c.l.b16 %v4394
    %v4690 = vunpack.c.l.b16 %v4395
    %v4691 = vunpack.c.l.b16 %v4396
    %v4692 = vunpack.c.l.b16 %v4397
    %v4693 = vunpack.c.l.b16 %v4398
    %v4694 = vunpack.c.l.b16 %v4399
    %v4695 = vunpack.c.l.b16 %v4400
    %v4696 = vunpack.c.l.b16 %v4401
    %v4697 = vunpack.c.l.b16 %v4402
    %v4698 = vunpack.c.l.b16 %v4403
    %v4699 = vunpack.c.l.b16 %v4404
    %v4700 = vunpack.c.l.b16 %v4405
    %v4701 = vunpack.c.l.b16 %v4406
    %v4702 = vunpack.c.l.b16 %v4407
    %v4703 = vunpack.c.l.b16 %v4408
    %v4704 = vunpack.c.l.b16 %v4409
    %v4705 = vunpack.c.l.b16 %v4410
    %v4706 = vunpack.c.l.b16 %v4411
    %v4707 = vpack.c.b16 %v4564, %v4563
    %v4708 = vpack.c.b16 %v4566, %v4565
    %v4709 = vpack.c.b16 %v4568, %v4567
    %v4710 = vpack.c.b16 %v4570, %v4569
    %v4711 = vpack.c.b16 %v4572, %v4571
    %v4712 = vpack.c.b16 %v4574, %v4573
    %v4713 = vpack.c.b16 %v4576, %v4575
    %v4714 = vpack.c.b16 %v4578, %v4577
    %v4715 = vpack.c.b16 %v4580, %v4579
    %v4716 = vpack.c.b16 %v4582, %v4581
    %v4717 = vpack.c.b16 %v4584, %v4583
    %v4718 = vpack.c.b16 %v4586, %v4585
    %v4719 = vpack.c.b16 %v4588, %v4587
    %v4720 = vpack.c.b16 %v4590, %v4589
    %v4721 = vpack.c.b16 %v4592, %v4591
    %v4722 = vpack.c.b16 %v4594, %v4593
    %v4723 = vpack.c.b16 %v4596, %v4595
    %v4724 = vpack.c.b16 %v4598, %v4597
    %v4725 = vpack.c.b16 %v4600, %v4599
    %v4726 = vpack.c.b16 %v4602, %v4601
    %v4727 = vpack.c.b16 %v4604, %v4603
    %v4728 = vpack.c.b16 %v4606, %v4605
    %v4729 = vpack.c.b16 %v4608, %v4607
    %v4730 = vpack.c.b16 %v4610, %v4609
    %v4731 = vpack.c.b16 %v4612, %v4611
    %v4732 = vpack.c.b16 %v4614, %v4613
    %v4733 = vpack.c.b16 %v4616, %v4615
    %v4734 = vpack.c.b16 %v4618, %v4617
    %v4735 = vpack.c.b16 %v4620, %v4619
    %v4736 = vpack.c.b16 %v4622, %v4621
    %v4737 = vpack.c.b16 %v4624, %v4623
    %v4738 = vpack.c.b16 %v4626, %v4625
    %v4739 = vpack.c.b16 %v4628, %v4627
    %v4740 = vpack.c.b16 %v4630, %v4629
    %v4741 = vpack.c.b16 %v4632, %v4631
    %v4742 = vpack.c.b16 %v4634, %v4633
    %v4743 = vpack.c.b16 %v4636, %v4635
    %v4744 = vpack.c.b16 %v4638, %v4637
    %v4745 = vpack.c.b16 %v4640, %v4639
    %v4746 = vpack.c.b16 %v4642, %v4641
    %v4747 = vpack.c.b16 %v4644, %v4643
    %v4748 = vpack.c.b16 %v4646, %v4645
    %v4749 = vpack.c.b16 %v4648, %v4647
    %v4750 = vpack.c.b16 %v4650, %v4649
    %v4751 = vpack.c.b16 %v4652, %v4651
    %v4752 = vpack.c.b16 %v4654, %v4653
    %v4753 = vpack.c.b16 %v4656, %v4655
    %v4754 = vpack.c.b16 %v4658, %v4657
    %v4755 = vpack.c.b16 %v4660, %v4659
    %v4756 = vpack.c.b16 %v4662, %v4661
    %v4757 = vpack.c.b16 %v4664, %v4663
    %v4758 = vpack.c.b16 %v4666, %v4665
    %v4759 = vpack.c.b16 %v4668, %v4667
    %v4760 = vpack.c.b16 %v4670, %v4669
    %v4761 = vpack.c.b16 %v4672, %v4671
    %v4762 = vpack.c.b16 %v4674, %v4673
    %v4763 = vpack.c.b16 %v4676, %v4675
    %v4764 = vpack.c.b16 %v4678, %v4677
    %v4765 = vpack.c.b16 %v4680, %v4679
    %v4766 = vpack.c.b16 %v4682, %v4681
    %v4767 = vpack.c.b16 %v4684, %v4683
    %v4768 = vpack.c.b16 %v4686, %v4685
    %v4769 = vpack.c.b16 %v4688, %v4687
    %v4770 = vpack.c.b16 %v4690, %v4689
    %v4771 = vpack.c.b16 %v4692, %v4691
    %v4772 = vpack.c.b16 %v4694, %v4693
    %v4773 = vpack.c.b16 %v4696, %v4695
    %v4774 = vpack.c.b16 %v4698, %v4697
    %v4775 = vpack.c.b16 %v4700, %v4699
    %v4776 = vpack.c.b16 %v4702, %v4701
    %v4777 = vpack.c.b16 %v4704, %v4703
    %v4778 = vpack.c.b16 %v4706, %v4705
    %4851 = vmatprep.subr.bf16.mxu0 0
    %4852 = vmatpush1.bf16.msra.mxu0 %v4707
    %4853 = vmatprep.subr.bf16.mxu0 0
    %4854 = vmatpush1.bf16.msra.mxu0 %v4708
    %4855 = vmatprep.subr.bf16.mxu0 0
    %4856 = vmatpush1.bf16.msra.mxu0 %v4709
    %4857 = vmatprep.subr.bf16.mxu0 0
    %4858 = vmatpush1.bf16.msra.mxu0 %v4710
    %4859 = vmatprep.subr.bf16.mxu0 0
    %4860 = vmatpush1.bf16.msra.mxu0 %v4711
    %4861 = vmatprep.subr.bf16.mxu0 0
    %4862 = vmatpush1.bf16.msra.mxu0 %v4712
    %4863 = vmatprep.subr.bf16.mxu0 0
    %4864 = vmatpush1.bf16.msra.mxu0 %v4713
    %4865 = vmatprep.subr.bf16.mxu0 0
    %4866 = vmatpush1.bf16.msra.mxu0 %v4714
    %4867 = vmatprep.subr.bf16.mxu0 0
    %4868 = vmatpush1.bf16.msra.mxu0 %v4715
    %4869 = vmatprep.subr.bf16.mxu0 0
    %4870 = vmatpush1.bf16.msra.mxu0 %v4716
    %4871 = vmatprep.subr.bf16.mxu0 0
    %4872 = vmatpush1.bf16.msra.mxu0 %v4717
    %4873 = vmatprep.subr.bf16.mxu0 0
    %4874 = vmatpush1.bf16.msra.mxu0 %v4718
    %4875 = vmatprep.subr.bf16.mxu0 0
    %4876 = vmatpush1.bf16.msra.mxu0 %v4719
    %4877 = vmatprep.subr.bf16.mxu0 0
    %4878 = vmatpush1.bf16.msra.mxu0 %v4720
    %4879 = vmatprep.subr.bf16.mxu0 0
    %4880 = vmatpush1.bf16.msra.mxu0 %v4721
    %4881 = vmatprep.subr.bf16.mxu0 0
    %4882 = vmatpush1.bf16.msra.mxu0 %v4722
    %4883 = vmatprep.mubr.bf16.mxu0 %v3563
    %4884 = vmatmul.mubr.bf16.gmra.mrb[0].mxu0 %v3467
    %v4885 = vpop.f32.mrb[0].mxu0
    %v4886 = vadd.f32 %v4417, %v4885
    %v4887 = vpop.f32.mrb[0].mxu0
    %v4888 = vpop.f32.mrb[0].mxu0
    %v4889 = vadd.f32 %v4417, %v4888
    %v4890 = vpop.f32.mrb[0].mxu0
    %4891 = vmatprep.mubr.bf16.mxu0 %v3564
    %4892 = vmatmul.mubr.bf16.gmra.mrb[0].mxu0 %v3468
    %v4893 = vpop.f32.mrb[0].mxu0
    %v4894 = vadd.f32 %v4417, %v4893
    %v4895 = vpop.f32.mrb[0].mxu0
    %v4896 = vpop.f32.mrb[0].mxu0
    %v4897 = vadd.f32 %v4417, %v4896
    %v4898 = vpop.f32.mrb[0].mxu0
    %4899 = vmatprep.mubr.bf16.mxu0 %v3565
    %4900 = vmatmul.mubr.bf16.gmra.mrb[0].mxu0 %v3469
    %v4901 = vpop.f32.mrb[0].mxu0
    %v4902 = vadd.f32 %v4417, %v4901
    %v4903 = vpop.f32.mrb[0].mxu0
    %v4904 = vpop.f32.mrb[0].mxu0
    %v4905 = vadd.f32 %v4417, %v4904
    %v4906 = vpop.f32.mrb[0].mxu0
    %4907 = vmatprep.mubr.bf16.mxu0 %v3566
    %4908 = vmatmul.mubr.bf16.gmra.mrb[0].mxu0 %v3470
    %v4909 = vpop.f32.mrb[0].mxu0
    %v4910 = vadd.f32 %v4417, %v4909
    %v4911 = vpop.f32.mrb[0].mxu0
    %v4912 = vpop.f32.mrb[0].mxu0
    %v4913 = vadd.f32 %v4417, %v4912
    %v4914 = vpop.f32.mrb[0].mxu0
    %4915 = vmatprep.mubr.bf16.mxu0 %v3567
    %4916 = vmatmul.mubr.bf16.gmra.mrb[0].mxu0 %v3471
    %v4917 = vpop.f32.mrb[0].mxu0
    %v4918 = vadd.f32 %v4417, %v4917
    %v4919 = vpop.f32.mrb[0].mxu0
    %v4920 = vpop.f32.mrb[0].mxu0
    %v4921 = vadd.f32 %v4417, %v4920
    %v4922 = vpop.f32.mrb[0].mxu0
    %4923 = vmatprep.mubr.bf16.mxu0 %v3568
    %4924 = vmatmul.mubr.bf16.gmra.mrb[0].mxu0 %v3472
    %v4925 = vpop.f32.mrb[0].mxu0
    %v4926 = vadd.f32 %v4417, %v4925
    %v4927 = vpop.f32.mrb[0].mxu0
    %v4928 = vpop.f32.mrb[0].mxu0
    %v4929 = vadd.f32 %v4417, %v4928
    %v4930 = vpop.f32.mrb[0].mxu0
    %4931 = vmatprep.mubr.bf16.mxu0 %v3569
    %4932 = vmatmul.mubr.bf16.gmra.mrb[0].mxu0 %v3473
    %v4933 = vpop.f32.mrb[0].mxu0
    %v4934 = vadd.f32 %v4417, %v4933
    %v4935 = vpop.f32.mrb[0].mxu0
    %v4936 = vpop.f32.mrb[0].mxu0
    %v4937 = vadd.f32 %v4417, %v4936
    %v4938 = vpop.f32.mrb[0].mxu0
    %4939 = vmatprep.mubr.bf16.mxu0 %v3570
    %4940 = vmatmul.mubr.bf16.gmra.mrb[0].mxu0 %v3474
    %v4941 = vpop.f32.mrb[0].mxu0
    %v4942 = vadd.f32 %v4417, %v4941
    %v4943 = vpop.f32.mrb[0].mxu0
    %v4944 = vpop.f32.mrb[0].mxu0
    %v4945 = vadd.f32 %v4417, %v4944
    %v4946 = vpop.f32.mrb[0].mxu0
    %4947 = vmatprep.mubr.bf16.mxu0 %v3571
    %4948 = vmatmul.mubr.bf16.gmra.mrb[0].mxu0 %v3475
    %v4949 = vpop.f32.mrb[0].mxu0
    %v4950 = vadd.f32 %v4417, %v4949
    %v4951 = vpop.f32.mrb[0].mxu0
    %v4952 = vpop.f32.mrb[0].mxu0
    %v4953 = vadd.f32 %v4417, %v4952
    %v4954 = vpop.f32.mrb[0].mxu0
    %4955 = vmatprep.mubr.bf16.mxu0 %v3572
    %4956 = vmatmul.mubr.bf16.gmra.mrb[0].mxu0 %v3476
    %v4957 = vpop.f32.mrb[0].mxu0
    %v4958 = vadd.f32 %v4417, %v4957
    %v4959 = vpop.f32.mrb[0].mxu0
    %v4960 = vpop.f32.mrb[0].mxu0
    %v4961 = vadd.f32 %v4417, %v4960
    %v4962 = vpop.f32.mrb[0].mxu0
    %4963 = vmatprep.mubr.bf16.mxu0 %v3573
    %4964 = vmatmul.mubr.bf16.gmra.mrb[0].mxu0 %v3477
    %v4965 = vpop.f32.mrb[0].mxu0
    %v4966 = vadd.f32 %v4417, %v4965
    %v4967 = vpop.f32.mrb[0].mxu0
    %v4968 = vpop.f32.mrb[0].mxu0
    %v4969 = vadd.f32 %v4417, %v4968
    %v4970 = vpop.f32.mrb[0].mxu0
    %4971 = vmatprep.mubr.bf16.mxu0 %v3574
    %4972 = vmatmul.mubr.bf16.gmra.mrb[0].mxu0 %v3478
    %v4973 = vpop.f32.mrb[0].mxu0
    %v4974 = vadd.f32 %v4417, %v4973
    %v4975 = vpop.f32.mrb[0].mxu0
    %v4976 = vpop.f32.mrb[0].mxu0
    %v4977 = vadd.f32 %v4417, %v4976
    %v4978 = vpop.f32.mrb[0].mxu0
    %4979 = vmatprep.mubr.bf16.mxu0 %v3575
    %4980 = vmatmul.mubr.bf16.gmra.mrb[0].mxu0 %v3479
    %v4981 = vpop.f32.mrb[0].mxu0
    %v4982 = vadd.f32 %v4417, %v4981
    %v4983 = vpop.f32.mrb[0].mxu0
    %v4984 = vpop.f32.mrb[0].mxu0
    %v4985 = vadd.f32 %v4417, %v4984
    %v4986 = vpop.f32.mrb[0].mxu0
    %4987 = vmatprep.mubr.bf16.mxu0 %v3576
    %4988 = vmatmul.mubr.bf16.gmra.mrb[0].mxu0 %v3480
    %v4989 = vpop.f32.mrb[0].mxu0
    %v4990 = vadd.f32 %v4417, %v4989
    %v4991 = vpop.f32.mrb[0].mxu0
    %v4992 = vpop.f32.mrb[0].mxu0
    %v4993 = vadd.f32 %v4417, %v4992
    %v4994 = vpop.f32.mrb[0].mxu0
    %4995 = vmatprep.mubr.bf16.mxu0 %v3577
    %4996 = vmatmul.mubr.bf16.gmra.mrb[0].mxu0 %v3481
    %v4997 = vpop.f32.mrb[0].mxu0
    %v4998 = vadd.f32 %v4417, %v4997
    %v4999 = vpop.f32.mrb[0].mxu0
    %v5000 = vpop.f32.mrb[0].mxu0
    %v5001 = vadd.f32 %v4417, %v5000
    %v5002 = vpop.f32.mrb[0].mxu0
    %5003 = vmatprep.mubr.bf16.mxu0 %v3578
    %5004 = vmatmul.mubr.bf16.gmra.mrb[0].mxu0 %v3482
    %v5005 = vpop.f32.mrb[0].mxu0
    %v5006 = vadd.f32 %v4417, %v5005
    %v5007 = vpop.f32.mrb[0].mxu0
    %v5008 = vpop.f32.mrb[0].mxu0
    %v5009 = vadd.f32 %v4417, %v5008
    %v5010 = vpop.f32.mrb[0].mxu0
    %5011 = vmatprep.mubr.bf16.mxu0 %v3579
    %5012 = vmatmul.mubr.bf16.gmra.mrb[0].mxu0 %v3483
    %v5013 = vpop.f32.mrb[0].mxu0
    %v5014 = vadd.f32 %v4417, %v5013
    %v5015 = vpop.f32.mrb[0].mxu0
    %v5016 = vpop.f32.mrb[0].mxu0
    %v5017 = vadd.f32 %v4417, %v5016
    %v5018 = vpop.f32.mrb[0].mxu0
    %5019 = vmatprep.mubr.bf16.mxu0 %v3580
    %5020 = vmatmul.mubr.bf16.gmra.mrb[0].mxu0 %v3484
    %v5021 = vpop.f32.mrb[0].mxu0
    %v5022 = vadd.f32 %v4417, %v5021
    %v5023 = vpop.f32.mrb[0].mxu0
    %v5024 = vpop.f32.mrb[0].mxu0
    %v5025 = vadd.f32 %v4417, %v5024
    %v5026 = vpop.f32.mrb[0].mxu0
    %5027 = vmatprep.mubr.bf16.mxu0 %v3581
    %5028 = vmatmul.mubr.bf16.gmra.mrb[0].mxu0 %v3485
    %v5029 = vpop.f32.mrb[0].mxu0
    %v5030 = vadd.f32 %v4417, %v5029
    %v5031 = vpop.f32.mrb[0].mxu0
    %v5032 = vpop.f32.mrb[0].mxu0
    %v5033 = vadd.f32 %v4417, %v5032
    %v5034 = vpop.f32.mrb[0].mxu0
    %5035 = vmatprep.mubr.bf16.mxu0 %v3582
    %5036 = vmatmul.mubr.bf16.gmra.mrb[0].mxu0 %v3486
    %v5037 = vpop.f32.mrb[0].mxu0
    %v5038 = vadd.f32 %v4417, %v5037
    %v5039 = vpop.f32.mrb[0].mxu0
    %v5040 = vpop.f32.mrb[0].mxu0
    %v5041 = vadd.f32 %v4417, %v5040
    %v5042 = vpop.f32.mrb[0].mxu0
    %5043 = vmatprep.mubr.bf16.mxu0 %v3583
    %5044 = vmatmul.mubr.bf16.gmra.mrb[0].mxu0 %v3487
    %v5045 = vpop.f32.mrb[0].mxu0
    %v5046 = vadd.f32 %v4417, %v5045
    %v5047 = vpop.f32.mrb[0].mxu0
    %v5048 = vpop.f32.mrb[0].mxu0
    %v5049 = vadd.f32 %v4417, %v5048
    %v5050 = vpop.f32.mrb[0].mxu0
    %5051 = vmatprep.mubr.bf16.mxu0 %v3584
    %5052 = vmatmul.mubr.bf16.gmra.mrb[0].mxu0 %v3488
    %v5053 = vpop.f32.mrb[0].mxu0
    %v5054 = vadd.f32 %v4417, %v5053
    %v5055 = vpop.f32.mrb[0].mxu0
    %v5056 = vpop.f32.mrb[0].mxu0
    %v5057 = vadd.f32 %v4417, %v5056
    %v5058 = vpop.f32.mrb[0].mxu0
    %5059 = vmatprep.mubr.bf16.mxu0 %v3585
    %5060 = vmatmul.mubr.bf16.gmra.mrb[0].mxu0 %v3489
    %v5061 = vpop.f32.mrb[0].mxu0
    %v5062 = vadd.f32 %v4417, %v5061
    %v5063 = vpop.f32.mrb[0].mxu0
    %v5064 = vpop.f32.mrb[0].mxu0
    %v5065 = vadd.f32 %v4417, %v5064
    %v5066 = vpop.f32.mrb[0].mxu0
    %5067 = vmatprep.mubr.bf16.mxu0 %v3586
    %5068 = vmatmul.mubr.bf16.gmra.mrb[0].mxu0 %v3490
    %v5069 = vpop.f32.mrb[0].mxu0
    %v5070 = vadd.f32 %v4417, %v5069
    %v5071 = vpop.f32.mrb[0].mxu0
    %v5072 = vpop.f32.mrb[0].mxu0
    %v5073 = vadd.f32 %v4417, %v5072
    %v5074 = vpop.f32.mrb[0].mxu0
    %5075 = vmatprep.mubr.bf16.mxu0 %v3587
    %5076 = vmatmul.mubr.bf16.gmra.mrb[0].mxu0 %v3491
    %v5077 = vpop.f32.mrb[0].mxu0
    %v5078 = vadd.f32 %v4417, %v5077
    %v5079 = vpop.f32.mrb[0].mxu0
    %v5080 = vpop.f32.mrb[0].mxu0
    %v5081 = vadd.f32 %v4417, %v5080
    %v5082 = vpop.f32.mrb[0].mxu0
    %5083 = vmatprep.mubr.bf16.mxu0 %v3588
    %5084 = vmatmul.mubr.bf16.gmra.mrb[0].mxu0 %v3492
    %v5085 = vpop.f32.mrb[0].mxu0
    %v5086 = vadd.f32 %v4417, %v5085
    %v5087 = vpop.f32.mrb[0].mxu0
    %v5088 = vpop.f32.mrb[0].mxu0
    %v5089 = vadd.f32 %v4417, %v5088
    %v5090 = vpop.f32.mrb[0].mxu0
    %5091 = vmatprep.mubr.bf16.mxu0 %v3589
    %5092 = vmatmul.mubr.bf16.gmra.mrb[0].mxu0 %v3493
    %v5093 = vpop.f32.mrb[0].mxu0
    %v5094 = vadd.f32 %v4417, %v5093
    %v5095 = vpop.f32.mrb[0].mxu0
    %v5096 = vpop.f32.mrb[0].mxu0
    %v5097 = vadd.f32 %v4417, %v5096
    %v5098 = vpop.f32.mrb[0].mxu0
    %5099 = vmatprep.mubr.bf16.mxu0 %v3590
    %5100 = vmatmul.mubr.bf16.gmra.mrb[0].mxu0 %v3494
    %v5101 = vpop.f32.mrb[0].mxu0
    %v5102 = vadd.f32 %v4417, %v5101
    %v5103 = vpop.f32.mrb[0].mxu0
    %v5104 = vpop.f32.mrb[0].mxu0
    %v5105 = vadd.f32 %v4417, %v5104
    %v5106 = vpop.f32.mrb[0].mxu0
    %5107 = vmatprep.mubr.bf16.mxu0 %v3591
    %5108 = vmatmul.mubr.bf16.gmra.mrb[0].mxu0 %v3495
    %v5109 = vpop.f32.mrb[0].mxu0
    %v5110 = vadd.f32 %v4417, %v5109
    %v5111 = vpop.f32.mrb[0].mxu0
    %v5112 = vpop.f32.mrb[0].mxu0
    %v5113 = vadd.f32 %v4417, %v5112
    %v5114 = vpop.f32.mrb[0].mxu0
    %5115 = vmatprep.mubr.bf16.mxu0 %v3592
    %5116 = vmatmul.mubr.bf16.gmra.mrb[0].mxu0 %v3496
    %v5117 = vpop.f32.mrb[0].mxu0
    %v5118 = vadd.f32 %v4417, %v5117
    %v5119 = vpop.f32.mrb[0].mxu0
    %v5120 = vpop.f32.mrb[0].mxu0
    %v5121 = vadd.f32 %v4417, %v5120
    %v5122 = vpop.f32.mrb[0].mxu0
    %5123 = vmatprep.mubr.bf16.mxu0 %v3593
    %5124 = vmatmul.mubr.bf16.gmra.mrb[0].mxu0 %v3497
    %v5125 = vpop.f32.mrb[0].mxu0
    %v5126 = vadd.f32 %v4417, %v5125
    %v5127 = vpop.f32.mrb[0].mxu0
    %v5128 = vpop.f32.mrb[0].mxu0
    %v5129 = vadd.f32 %v4417, %v5128
    %v5130 = vpop.f32.mrb[0].mxu0
    %5131 = vmatprep.mubr.bf16.mxu0 %v3594
    %5132 = vmatmul.mubr.bf16.gmra.mrb[0].mxu0 %v3498
    %v5133 = vpop.f32.mrb[0].mxu0
    %v5134 = vadd.f32 %v4417, %v5133
    %v5135 = vpop.f32.mrb[0].mxu0
    %v5136 = vpop.f32.mrb[0].mxu0
    %v5137 = vadd.f32 %v4417, %v5136
    %v5138 = vpop.f32.mrb[0].mxu0
    %5139 = vdwg.mxu0
    %5140 = vmatprep.subr.bf16.mxu0 0
    %5141 = vmatpush1.bf16.msra.mxu0 %v4723
    %5142 = vmatprep.subr.bf16.mxu0 0
    %5143 = vmatpush1.bf16.msra.mxu0 %v4724
    %5144 = vmatprep.subr.bf16.mxu0 0
    %5145 = vmatpush1.bf16.msra.mxu0 %v4725
    %5146 = vmatprep.subr.bf16.mxu0 0
    %5147 = vmatpush1.bf16.msra.mxu0 %v4726
    %5148 = vmatprep.subr.bf16.mxu0 0
    %5149 = vmatpush1.bf16.msra.mxu0 %v4727
    %5150 = vmatprep.subr.bf16.mxu0 0
    %5151 = vmatpush1.bf16.msra.mxu0 %v4728
    %5152 = vmatprep.subr.bf16.mxu0 0
    %5153 = vmatpush1.bf16.msra.mxu0 %v4729
    %5154 = vmatprep.subr.bf16.mxu0 0
    %5155 = vmatpush1.bf16.msra.mxu0 %v4730
    %5156 = vmatprep.subr.bf16.mxu0 0
    %5157 = vmatpush1.bf16.msra.mxu0 %v4731
    %5158 = vmatprep.subr.bf16.mxu0 0
    %5159 = vmatpush1.bf16.msra.mxu0 %v4732
    %5160 = vmatprep.subr.bf16.mxu0 0
    %5161 = vmatpush1.bf16.msra.mxu0 %v4733
    %5162 = vmatprep.subr.bf16.mxu0 0
    %5163 = vmatpush1.bf16.msra.mxu0 %v4734
    %5164 = vmatprep.subr.bf16.mxu0 0
    %5165 = vmatpush1.bf16.msra.mxu0 %v4735
    %5166 = vmatprep.subr.bf16.mxu0 0
    %5167 = vmatpush1.bf16.msra.mxu0 %v4736
    %5168 = vmatprep.subr.bf16.mxu0 0
    %5169 = vmatpush1.bf16.msra.mxu0 %v4737
    %5170 = vmatprep.subr.bf16.mxu0 0
    %5171 = vmatpush1.bf16.msra.mxu0 %v4738
    %5172 = vmatprep.mubr.bf16.mxu0 %v3755
    %5173 = vmatmul.mubr.bf16.gmra.mrb[0].mxu0 %v3659
    %v5174 = vpop.f32.mrb[0].mxu0
    %v5175 = vadd.f32 %v4886, %v5174
    %v5176 = vpop.f32.mrb[0].mxu0
    %v5177 = vpop.f32.mrb[0].mxu0
    %v5178 = vadd.f32 %v4889, %v5177
    %v5179 = vpop.f32.mrb[0].mxu0
    %5180 = vmatprep.mubr.bf16.mxu0 %v3756
    %5181 = vmatmul.mubr.bf16.gmra.mrb[0].mxu0 %v3660
    %v5182 = vpop.f32.mrb[0].mxu0
    %v5183 = vadd.f32 %v4894, %v5182
    %v5184 = vpop.f32.mrb[0].mxu0
    %v5185 = vpop.f32.mrb[0].mxu0
    %v5186 = vadd.f32 %v4897, %v5185
    %v5187 = vpop.f32.mrb[0].mxu0
    %5188 = vmatprep.mubr.bf16.mxu0 %v3757
    %5189 = vmatmul.mubr.bf16.gmra.mrb[0].mxu0 %v3661
    %v5190 = vpop.f32.mrb[0].mxu0
    %v5191 = vadd.f32 %v4902, %v5190
    %v5192 = vpop.f32.mrb[0].mxu0
    %v5193 = vpop.f32.mrb[0].mxu0
    %v5194 = vadd.f32 %v4905, %v5193
    %v5195 = vpop.f32.mrb[0].mxu0
    %5196 = vmatprep.mubr.bf16.mxu0 %v3758
    %5197 = vmatmul.mubr.bf16.gmra.mrb[0].mxu0 %v3662
    %v5198 = vpop.f32.mrb[0].mxu0
    %v5199 = vadd.f32 %v4910, %v5198
    %v5200 = vpop.f32.mrb[0].mxu0
    %v5201 = vpop.f32.mrb[0].mxu0
    %v5202 = vadd.f32 %v4913, %v5201
    %v5203 = vpop.f32.mrb[0].mxu0
    %5204 = vmatprep.mubr.bf16.mxu0 %v3759
    %5205 = vmatmul.mubr.bf16.gmra.mrb[0].mxu0 %v3663
    %v5206 = vpop.f32.mrb[0].mxu0
    %v5207 = vadd.f32 %v4918, %v5206
    %v5208 = vpop.f32.mrb[0].mxu0
    %v5209 = vpop.f32.mrb[0].mxu0
    %v5210 = vadd.f32 %v4921, %v5209
    %v5211 = vpop.f32.mrb[0].mxu0
    %5212 = vmatprep.mubr.bf16.mxu0 %v3760
    %5213 = vmatmul.mubr.bf16.gmra.mrb[0].mxu0 %v3664
    %v5214 = vpop.f32.mrb[0].mxu0
    %v5215 = vadd.f32 %v4926, %v5214
    %v5216 = vpop.f32.mrb[0].mxu0
    %v5217 = vpop.f32.mrb[0].mxu0
    %v5218 = vadd.f32 %v4929, %v5217
    %v5219 = vpop.f32.mrb[0].mxu0
    %5220 = vmatprep.mubr.bf16.mxu0 %v3761
    %5221 = vmatmul.mubr.bf16.gmra.mrb[0].mxu0 %v3665
    %v5222 = vpop.f32.mrb[0].mxu0
    %v5223 = vadd.f32 %v4934, %v5222
    %v5224 = vpop.f32.mrb[0].mxu0
    %v5225 = vpop.f32.mrb[0].mxu0
    %v5226 = vadd.f32 %v4937, %v5225
    %v5227 = vpop.f32.mrb[0].mxu0
    %5228 = vmatprep.mubr.bf16.mxu0 %v3762
    %5229 = vmatmul.mubr.bf16.gmra.mrb[0].mxu0 %v3666
    %v5230 = vpop.f32.mrb[0].mxu0
    %v5231 = vadd.f32 %v4942, %v5230
    %v5232 = vpop.f32.mrb[0].mxu0
    %v5233 = vpop.f32.mrb[0].mxu0
    %v5234 = vadd.f32 %v4945, %v5233
    %v5235 = vpop.f32.mrb[0].mxu0
    %5236 = vmatprep.mubr.bf16.mxu0 %v3763
    %5237 = vmatmul.mubr.bf16.gmra.mrb[0].mxu0 %v3667
    %v5238 = vpop.f32.mrb[0].mxu0
    %v5239 = vadd.f32 %v4950, %v5238
    %v5240 = vpop.f32.mrb[0].mxu0
    %v5241 = vpop.f32.mrb[0].mxu0
    %v5242 = vadd.f32 %v4953, %v5241
    %v5243 = vpop.f32.mrb[0].mxu0
    %5244 = vmatprep.mubr.bf16.mxu0 %v3764
    %5245 = vmatmul.mubr.bf16.gmra.mrb[0].mxu0 %v3668
    %v5246 = vpop.f32.mrb[0].mxu0
    %v5247 = vadd.f32 %v4958, %v5246
    %v5248 = vpop.f32.mrb[0].mxu0
    %v5249 = vpop.f32.mrb[0].mxu0
    %v5250 = vadd.f32 %v4961, %v5249
    %v5251 = vpop.f32.mrb[0].mxu0
    %5252 = vmatprep.mubr.bf16.mxu0 %v3765
    %5253 = vmatmul.mubr.bf16.gmra.mrb[0].mxu0 %v3669
    %v5254 = vpop.f32.mrb[0].mxu0
    %v5255 = vadd.f32 %v4966, %v5254
    %v5256 = vpop.f32.mrb[0].mxu0
    %v5257 = vpop.f32.mrb[0].mxu0
    %v5258 = vadd.f32 %v4969, %v5257
    %v5259 = vpop.f32.mrb[0].mxu0
    %5260 = vmatprep.mubr.bf16.mxu0 %v3766
    %5261 = vmatmul.mubr.bf16.gmra.mrb[0].mxu0 %v3670
    %v5262 = vpop.f32.mrb[0].mxu0
    %v5263 = vadd.f32 %v4974, %v5262
    %v5264 = vpop.f32.mrb[0].mxu0
    %v5265 = vpop.f32.mrb[0].mxu0
    %v5266 = vadd.f32 %v4977, %v5265
    %v5267 = vpop.f32.mrb[0].mxu0
    %5268 = vmatprep.mubr.bf16.mxu0 %v3767
    %5269 = vmatmul.mubr.bf16.gmra.mrb[0].mxu0 %v3671
    %v5270 = vpop.f32.mrb[0].mxu0
    %v5271 = vadd.f32 %v4982, %v5270
    %v5272 = vpop.f32.mrb[0].mxu0
    %v5273 = vpop.f32.mrb[0].mxu0
    %v5274 = vadd.f32 %v4985, %v5273
    %v5275 = vpop.f32.mrb[0].mxu0
    %5276 = vmatprep.mubr.bf16.mxu0 %v3768
    %5277 = vmatmul.mubr.bf16.gmra.mrb[0].mxu0 %v3672
    %v5278 = vpop.f32.mrb[0].mxu0
    %v5279 = vadd.f32 %v4990, %v5278
    %v5280 = vpop.f32.mrb[0].mxu0
    %v5281 = vpop.f32.mrb[0].mxu0
    %v5282 = vadd.f32 %v4993, %v5281
    %v5283 = vpop.f32.mrb[0].mxu0
    %5284 = vmatprep.mubr.bf16.mxu0 %v3769
    %5285 = vmatmul.mubr.bf16.gmra.mrb[0].mxu0 %v3673
    %v5286 = vpop.f32.mrb[0].mxu0
    %v5287 = vadd.f32 %v4998, %v5286
    %v5288 = vpop.f32.mrb[0].mxu0
    %v5289 = vpop.f32.mrb[0].mxu0
    %v5290 = vadd.f32 %v5001, %v5289
    %v5291 = vpop.f32.mrb[0].mxu0
    %5292 = vmatprep.mubr.bf16.mxu0 %v3770
    %5293 = vmatmul.mubr.bf16.gmra.mrb[0].mxu0 %v3674
    %v5294 = vpop.f32.mrb[0].mxu0
    %v5295 = vadd.f32 %v5006, %v5294
    %v5296 = vpop.f32.mrb[0].mxu0
    %v5297 = vpop.f32.mrb[0].mxu0
    %v5298 = vadd.f32 %v5009, %v5297
    %v5299 = vpop.f32.mrb[0].mxu0
    %5300 = vmatprep.mubr.bf16.mxu0 %v3771
    %5301 = vmatmul.mubr.bf16.gmra.mrb[0].mxu0 %v3675
    %v5302 = vpop.f32.mrb[0].mxu0
    %v5303 = vadd.f32 %v5014, %v5302
    %v5304 = vpop.f32.mrb[0].mxu0
    %v5305 = vpop.f32.mrb[0].mxu0
    %v5306 = vadd.f32 %v5017, %v5305
    %v5307 = vpop.f32.mrb[0].mxu0
    %5308 = vmatprep.mubr.bf16.mxu0 %v3772
    %5309 = vmatmul.mubr.bf16.gmra.mrb[0].mxu0 %v3676
    %v5310 = vpop.f32.mrb[0].mxu0
    %v5311 = vadd.f32 %v5022, %v5310
    %v5312 = vpop.f32.mrb[0].mxu0
    %v5313 = vpop.f32.mrb[0].mxu0
    %v5314 = vadd.f32 %v5025, %v5313
    %v5315 = vpop.f32.mrb[0].mxu0
    %5316 = vmatprep.mubr.bf16.mxu0 %v3773
    %5317 = vmatmul.mubr.bf16.gmra.mrb[0].mxu0 %v3677
    %v5318 = vpop.f32.mrb[0].mxu0
    %v5319 = vadd.f32 %v5030, %v5318
    %v5320 = vpop.f32.mrb[0].mxu0
    %v5321 = vpop.f32.mrb[0].mxu0
    %v5322 = vadd.f32 %v5033, %v5321
    %v5323 = vpop.f32.mrb[0].mxu0
    %5324 = vmatprep.mubr.bf16.mxu0 %v3774
    %5325 = vmatmul.mubr.bf16.gmra.mrb[0].mxu0 %v3678
    %v5326 = vpop.f32.mrb[0].mxu0
    %v5327 = vadd.f32 %v5038, %v5326
    %v5328 = vpop.f32.mrb[0].mxu0
    %v5329 = vpop.f32.mrb[0].mxu0
    %v5330 = vadd.f32 %v5041, %v5329
    %v5331 = vpop.f32.mrb[0].mxu0
    %5332 = vmatprep.mubr.bf16.mxu0 %v3775
    %5333 = vmatmul.mubr.bf16.gmra.mrb[0].mxu0 %v3679
    %v5334 = vpop.f32.mrb[0].mxu0
    %v5335 = vadd.f32 %v5046, %v5334
    %v5336 = vpop.f32.mrb[0].mxu0
    %v5337 = vpop.f32.mrb[0].mxu0
    %v5338 = vadd.f32 %v5049, %v5337
    %v5339 = vpop.f32.mrb[0].mxu0
    %5340 = vmatprep.mubr.bf16.mxu0 %v3776
    %5341 = vmatmul.mubr.bf16.gmra.mrb[0].mxu0 %v3680
    %v5342 = vpop.f32.mrb[0].mxu0
    %v5343 = vadd.f32 %v5054, %v5342
    %v5344 = vpop.f32.mrb[0].mxu0
    %v5345 = vpop.f32.mrb[0].mxu0
    %v5346 = vadd.f32 %v5057, %v5345
    %v5347 = vpop.f32.mrb[0].mxu0
    %5348 = vmatprep.mubr.bf16.mxu0 %v3777
    %5349 = vmatmul.mubr.bf16.gmra.mrb[0].mxu0 %v3681
    %v5350 = vpop.f32.mrb[0].mxu0
    %v5351 = vadd.f32 %v5062, %v5350
    %v5352 = vpop.f32.mrb[0].mxu0
    %v5353 = vpop.f32.mrb[0].mxu0
    %v5354 = vadd.f32 %v5065, %v5353
    %v5355 = vpop.f32.mrb[0].mxu0
    %5356 = vmatprep.mubr.bf16.mxu0 %v3778
    %5357 = vmatmul.mubr.bf16.gmra.mrb[0].mxu0 %v3682
    %v5358 = vpop.f32.mrb[0].mxu0
    %v5359 = vadd.f32 %v5070, %v5358
    %v5360 = vpop.f32.mrb[0].mxu0
    %v5361 = vpop.f32.mrb[0].mxu0
    %v5362 = vadd.f32 %v5073, %v5361
    %v5363 = vpop.f32.mrb[0].mxu0
    %5364 = vmatprep.mubr.bf16.mxu0 %v3779
    %5365 = vmatmul.mubr.bf16.gmra.mrb[0].mxu0 %v3683
    %v5366 = vpop.f32.mrb[0].mxu0
    %v5367 = vadd.f32 %v5078, %v5366
    %v5368 = vpop.f32.mrb[0].mxu0
    %v5369 = vpop.f32.mrb[0].mxu0
    %v5370 = vadd.f32 %v5081, %v5369
    %v5371 = vpop.f32.mrb[0].mxu0
    %5372 = vmatprep.mubr.bf16.mxu0 %v3780
    %5373 = vmatmul.mubr.bf16.gmra.mrb[0].mxu0 %v3684
    %v5374 = vpop.f32.mrb[0].mxu0
    %v5375 = vadd.f32 %v5086, %v5374
    %v5376 = vpop.f32.mrb[0].mxu0
    %v5377 = vpop.f32.mrb[0].mxu0
    %v5378 = vadd.f32 %v5089, %v5377
    %v5379 = vpop.f32.mrb[0].mxu0
    %5380 = vmatprep.mubr.bf16.mxu0 %v3781
    %5381 = vmatmul.mubr.bf16.gmra.mrb[0].mxu0 %v3685
    %v5382 = vpop.f32.mrb[0].mxu0
    %v5383 = vadd.f32 %v5094, %v5382
    %v5384 = vpop.f32.mrb[0].mxu0
    %v5385 = vpop.f32.mrb[0].mxu0
    %v5386 = vadd.f32 %v5097, %v5385
    %v5387 = vpop.f32.mrb[0].mxu0
    %5388 = vmatprep.mubr.bf16.mxu0 %v3782
    %5389 = vmatmul.mubr.bf16.gmra.mrb[0].mxu0 %v3686
    %v5390 = vpop.f32.mrb[0].mxu0
    %v5391 = vadd.f32 %v5102, %v5390
    %v5392 = vpop.f32.mrb[0].mxu0
    %v5393 = vpop.f32.mrb[0].mxu0
    %v5394 = vadd.f32 %v5105, %v5393
    %v5395 = vpop.f32.mrb[0].mxu0
    %5396 = vmatprep.mubr.bf16.mxu0 %v3783
    %5397 = vmatmul.mubr.bf16.gmra.mrb[0].mxu0 %v3687
    %v5398 = vpop.f32.mrb[0].mxu0
    %v5399 = vadd.f32 %v5110, %v5398
    %v5400 = vpop.f32.mrb[0].mxu0
    %v5401 = vpop.f32.mrb[0].mxu0
    %v5402 = vadd.f32 %v5113, %v5401
    %v5403 = vpop.f32.mrb[0].mxu0
    %5404 = vmatprep.mubr.bf16.mxu0 %v3784
    %5405 = vmatmul.mubr.bf16.gmra.mrb[0].mxu0 %v3688
    %v5406 = vpop.f32.mrb[0].mxu0
    %v5407 = vadd.f32 %v5118, %v5406
    %v5408 = vpop.f32.mrb[0].mxu0
    %v5409 = vpop.f32.mrb[0].mxu0
    %v5410 = vadd.f32 %v5121, %v5409
    %v5411 = vpop.f32.mrb[0].mxu0
    %5412 = vmatprep.mubr.bf16.mxu0 %v3785
    %5413 = vmatmul.mubr.bf16.gmra.mrb[0].mxu0 %v3689
    %v5414 = vpop.f32.mrb[0].mxu0
    %v5415 = vadd.f32 %v5126, %v5414
    %v5416 = vpop.f32.mrb[0].mxu0
    %v5417 = vpop.f32.mrb[0].mxu0
    %v5418 = vadd.f32 %v5129, %v5417
    %v5419 = vpop.f32.mrb[0].mxu0
    %5420 = vmatprep.mubr.bf16.mxu0 %v3786
    %5421 = vmatmul.mubr.bf16.gmra.mrb[0].mxu0 %v3690
    %v5422 = vpop.f32.mrb[0].mxu0
    %v5423 = vadd.f32 %v5134, %v5422
    %v5424 = vpop.f32.mrb[0].mxu0
    %v5425 = vpop.f32.mrb[0].mxu0
    %v5426 = vadd.f32 %v5137, %v5425
    %v5427 = vpop.f32.mrb[0].mxu0
    %5428 = vdwg.mxu0
    %5429 = vmatprep.subr.bf16.mxu0 0
    %5430 = vmatpush1.bf16.msra.mxu0 %v4739
    %5431 = vmatprep.subr.bf16.mxu0 0
    %5432 = vmatpush1.bf16.msra.mxu0 %v4740
    %5433 = vmatprep.subr.bf16.mxu0 0
    %5434 = vmatpush1.bf16.msra.mxu0 %v4741
    %5435 = vmatprep.subr.bf16.mxu0 0
    %5436 = vmatpush1.bf16.msra.mxu0 %v4742
    %5437 = vmatprep.subr.bf16.mxu0 0
    %5438 = vmatpush1.bf16.msra.mxu0 %v4743
    %5439 = vmatprep.subr.bf16.mxu0 0
    %5440 = vmatpush1.bf16.msra.mxu0 %v4744
    %5441 = vmatprep.subr.bf16.mxu0 0
    %5442 = vmatpush1.bf16.msra.mxu0 %v4745
    %5443 = vmatprep.subr.bf16.mxu0 0
    %5444 = vmatpush1.bf16.msra.mxu0 %v4746
    %5445 = vmatprep.subr.bf16.mxu0 0
    %5446 = vmatpush1.bf16.msra.mxu0 %v4747
    %5447 = vmatprep.subr.bf16.mxu0 0
    %5448 = vmatpush1.bf16.msra.mxu0 %v4748
    %5449 = vmatprep.subr.bf16.mxu0 0
    %5450 = vmatpush1.bf16.msra.mxu0 %v4749
    %5451 = vmatprep.subr.bf16.mxu0 0
    %5452 = vmatpush1.bf16.msra.mxu0 %v4750
    %5453 = vmatprep.subr.bf16.mxu0 0
    %5454 = vmatpush1.bf16.msra.mxu0 %v4751
    %5455 = vmatprep.subr.bf16.mxu0 0
    %5456 = vmatpush1.bf16.msra.mxu0 %v4752
    %5457 = vmatprep.subr.bf16.mxu0 0
    %5458 = vmatpush1.bf16.msra.mxu0 %v4753
    %5459 = vmatprep.subr.bf16.mxu0 0
    %5460 = vmatpush1.bf16.msra.mxu0 %v4754
    %5461 = vmatprep.mubr.bf16.mxu0 %v3947
    %5462 = vmatmul.mubr.bf16.gmra.mrb[0].mxu0 %v3851
    %v5463 = vpop.f32.mrb[0].mxu0
    %v5464 = vadd.f32 %v5175, %v5463
    %v5465 = vpop.f32.mrb[0].mxu0
    %v5466 = vpop.f32.mrb[0].mxu0
    %v5467 = vadd.f32 %v5178, %v5466
    %v5468 = vpop.f32.mrb[0].mxu0
    %5469 = vmatprep.mubr.bf16.mxu0 %v3948
    %5470 = vmatmul.mubr.bf16.gmra.mrb[0].mxu0 %v3852
    %v5471 = vpop.f32.mrb[0].mxu0
    %v5472 = vadd.f32 %v5183, %v5471
    %v5473 = vpop.f32.mrb[0].mxu0
    %v5474 = vpop.f32.mrb[0].mxu0
    %v5475 = vadd.f32 %v5186, %v5474
    %v5476 = vpop.f32.mrb[0].mxu0
    %5477 = vmatprep.mubr.bf16.mxu0 %v3949
    %5478 = vmatmul.mubr.bf16.gmra.mrb[0].mxu0 %v3853
    %v5479 = vpop.f32.mrb[0].mxu0
    %v5480 = vadd.f32 %v5191, %v5479
    %v5481 = vpop.f32.mrb[0].mxu0
    %v5482 = vpop.f32.mrb[0].mxu0
    %v5483 = vadd.f32 %v5194, %v5482
    %v5484 = vpop.f32.mrb[0].mxu0
    %5485 = vmatprep.mubr.bf16.mxu0 %v3950
    %5486 = vmatmul.mubr.bf16.gmra.mrb[0].mxu0 %v3854
    %v5487 = vpop.f32.mrb[0].mxu0
    %v5488 = vadd.f32 %v5199, %v5487
    %v5489 = vpop.f32.mrb[0].mxu0
    %v5490 = vpop.f32.mrb[0].mxu0
    %v5491 = vadd.f32 %v5202, %v5490
    %v5492 = vpop.f32.mrb[0].mxu0
    %5493 = vmatprep.mubr.bf16.mxu0 %v3951
    %5494 = vmatmul.mubr.bf16.gmra.mrb[0].mxu0 %v3855
    %v5495 = vpop.f32.mrb[0].mxu0
    %v5496 = vadd.f32 %v5207, %v5495
    %v5497 = vpop.f32.mrb[0].mxu0
    %v5498 = vpop.f32.mrb[0].mxu0
    %v5499 = vadd.f32 %v5210, %v5498
    %v5500 = vpop.f32.mrb[0].mxu0
    %5501 = vmatprep.mubr.bf16.mxu0 %v3952
    %5502 = vmatmul.mubr.bf16.gmra.mrb[0].mxu0 %v3856
    %v5503 = vpop.f32.mrb[0].mxu0
    %v5504 = vadd.f32 %v5215, %v5503
    %v5505 = vpop.f32.mrb[0].mxu0
    %v5506 = vpop.f32.mrb[0].mxu0
    %v5507 = vadd.f32 %v5218, %v5506
    %v5508 = vpop.f32.mrb[0].mxu0
    %5509 = vmatprep.mubr.bf16.mxu0 %v3953
    %5510 = vmatmul.mubr.bf16.gmra.mrb[0].mxu0 %v3857
    %v5511 = vpop.f32.mrb[0].mxu0
    %v5512 = vadd.f32 %v5223, %v5511
    %v5513 = vpop.f32.mrb[0].mxu0
    %v5514 = vpop.f32.mrb[0].mxu0
    %v5515 = vadd.f32 %v5226, %v5514
    %v5516 = vpop.f32.mrb[0].mxu0
    %5517 = vmatprep.mubr.bf16.mxu0 %v3954
    %5518 = vmatmul.mubr.bf16.gmra.mrb[0].mxu0 %v3858
    %v5519 = vpop.f32.mrb[0].mxu0
    %v5520 = vadd.f32 %v5231, %v5519
    %v5521 = vpop.f32.mrb[0].mxu0
    %v5522 = vpop.f32.mrb[0].mxu0
    %v5523 = vadd.f32 %v5234, %v5522
    %v5524 = vpop.f32.mrb[0].mxu0
    %5525 = vmatprep.mubr.bf16.mxu0 %v3955
    %5526 = vmatmul.mubr.bf16.gmra.mrb[0].mxu0 %v3859
    %v5527 = vpop.f32.mrb[0].mxu0
    %v5528 = vadd.f32 %v5239, %v5527
    %v5529 = vpop.f32.mrb[0].mxu0
    %v5530 = vpop.f32.mrb[0].mxu0
    %v5531 = vadd.f32 %v5242, %v5530
    %v5532 = vpop.f32.mrb[0].mxu0
    %5533 = vmatprep.mubr.bf16.mxu0 %v3956
    %5534 = vmatmul.mubr.bf16.gmra.mrb[0].mxu0 %v3860
    %v5535 = vpop.f32.mrb[0].mxu0
    %v5536 = vadd.f32 %v5247, %v5535
    %v5537 = vpop.f32.mrb[0].mxu0
    %v5538 = vpop.f32.mrb[0].mxu0
    %v5539 = vadd.f32 %v5250, %v5538
    %v5540 = vpop.f32.mrb[0].mxu0
    %5541 = vmatprep.mubr.bf16.mxu0 %v3957
    %5542 = vmatmul.mubr.bf16.gmra.mrb[0].mxu0 %v3861
    %v5543 = vpop.f32.mrb[0].mxu0
    %v5544 = vadd.f32 %v5255, %v5543
    %v5545 = vpop.f32.mrb[0].mxu0
    %v5546 = vpop.f32.mrb[0].mxu0
    %v5547 = vadd.f32 %v5258, %v5546
    %v5548 = vpop.f32.mrb[0].mxu0
    %5549 = vmatprep.mubr.bf16.mxu0 %v3958
    %5550 = vmatmul.mubr.bf16.gmra.mrb[0].mxu0 %v3862
    %v5551 = vpop.f32.mrb[0].mxu0
    %v5552 = vadd.f32 %v5263, %v5551
    %v5553 = vpop.f32.mrb[0].mxu0
    %v5554 = vpop.f32.mrb[0].mxu0
    %v5555 = vadd.f32 %v5266, %v5554
    %v5556 = vpop.f32.mrb[0].mxu0
    %5557 = vmatprep.mubr.bf16.mxu0 %v3959
    %5558 = vmatmul.mubr.bf16.gmra.mrb[0].mxu0 %v3863
    %v5559 = vpop.f32.mrb[0].mxu0
    %v5560 = vadd.f32 %v5271, %v5559
    %v5561 = vpop.f32.mrb[0].mxu0
    %v5562 = vpop.f32.mrb[0].mxu0
    %v5563 = vadd.f32 %v5274, %v5562
    %v5564 = vpop.f32.mrb[0].mxu0
    %5565 = vmatprep.mubr.bf16.mxu0 %v3960
    %5566 = vmatmul.mubr.bf16.gmra.mrb[0].mxu0 %v3864
    %v5567 = vpop.f32.mrb[0].mxu0
    %v5568 = vadd.f32 %v5279, %v5567
    %v5569 = vpop.f32.mrb[0].mxu0
    %v5570 = vpop.f32.mrb[0].mxu0
    %v5571 = vadd.f32 %v5282, %v5570
    %v5572 = vpop.f32.mrb[0].mxu0
    %5573 = vmatprep.mubr.bf16.mxu0 %v3961
    %5574 = vmatmul.mubr.bf16.gmra.mrb[0].mxu0 %v3865
    %v5575 = vpop.f32.mrb[0].mxu0
    %v5576 = vadd.f32 %v5287, %v5575
    %v5577 = vpop.f32.mrb[0].mxu0
    %v5578 = vpop.f32.mrb[0].mxu0
    %v5579 = vadd.f32 %v5290, %v5578
    %v5580 = vpop.f32.mrb[0].mxu0
    %5581 = vmatprep.mubr.bf16.mxu0 %v3962
    %5582 = vmatmul.mubr.bf16.gmra.mrb[0].mxu0 %v3866
    %v5583 = vpop.f32.mrb[0].mxu0
    %v5584 = vadd.f32 %v5295, %v5583
    %v5585 = vpop.f32.mrb[0].mxu0
    %v5586 = vpop.f32.mrb[0].mxu0
    %v5587 = vadd.f32 %v5298, %v5586
    %v5588 = vpop.f32.mrb[0].mxu0
    %5589 = vmatprep.mubr.bf16.mxu0 %v3963
    %5590 = vmatmul.mubr.bf16.gmra.mrb[0].mxu0 %v3867
    %v5591 = vpop.f32.mrb[0].mxu0
    %v5592 = vadd.f32 %v5303, %v5591
    %v5593 = vpop.f32.mrb[0].mxu0
    %v5594 = vpop.f32.mrb[0].mxu0
    %v5595 = vadd.f32 %v5306, %v5594
    %v5596 = vpop.f32.mrb[0].mxu0
    %5597 = vmatprep.mubr.bf16.mxu0 %v3964
    %5598 = vmatmul.mubr.bf16.gmra.mrb[0].mxu0 %v3868
    %v5599 = vpop.f32.mrb[0].mxu0
    %v5600 = vadd.f32 %v5311, %v5599
    %v5601 = vpop.f32.mrb[0].mxu0
    %v5602 = vpop.f32.mrb[0].mxu0
    %v5603 = vadd.f32 %v5314, %v5602
    %v5604 = vpop.f32.mrb[0].mxu0
    %5605 = vmatprep.mubr.bf16.mxu0 %v3965
    %5606 = vmatmul.mubr.bf16.gmra.mrb[0].mxu0 %v3869
    %v5607 = vpop.f32.mrb[0].mxu0
    %v5608 = vadd.f32 %v5319, %v5607
    %v5609 = vpop.f32.mrb[0].mxu0
    %v5610 = vpop.f32.mrb[0].mxu0
    %v5611 = vadd.f32 %v5322, %v5610
    %v5612 = vpop.f32.mrb[0].mxu0
    %5613 = vmatprep.mubr.bf16.mxu0 %v3966
    %5614 = vmatmul.mubr.bf16.gmra.mrb[0].mxu0 %v3870
    %v5615 = vpop.f32.mrb[0].mxu0
    %v5616 = vadd.f32 %v5327, %v5615
    %v5617 = vpop.f32.mrb[0].mxu0
    %v5618 = vpop.f32.mrb[0].mxu0
    %v5619 = vadd.f32 %v5330, %v5618
    %v5620 = vpop.f32.mrb[0].mxu0
    %5621 = vmatprep.mubr.bf16.mxu0 %v3967
    %5622 = vmatmul.mubr.bf16.gmra.mrb[0].mxu0 %v3871
    %v5623 = vpop.f32.mrb[0].mxu0
    %v5624 = vadd.f32 %v5335, %v5623
    %v5625 = vpop.f32.mrb[0].mxu0
    %v5626 = vpop.f32.mrb[0].mxu0
    %v5627 = vadd.f32 %v5338, %v5626
    %v5628 = vpop.f32.mrb[0].mxu0
    %5629 = vmatprep.mubr.bf16.mxu0 %v3968
    %5630 = vmatmul.mubr.bf16.gmra.mrb[0].mxu0 %v3872
    %v5631 = vpop.f32.mrb[0].mxu0
    %v5632 = vadd.f32 %v5343, %v5631
    %v5633 = vpop.f32.mrb[0].mxu0
    %v5634 = vpop.f32.mrb[0].mxu0
    %v5635 = vadd.f32 %v5346, %v5634
    %v5636 = vpop.f32.mrb[0].mxu0
    %5637 = vmatprep.mubr.bf16.mxu0 %v3969
    %5638 = vmatmul.mubr.bf16.gmra.mrb[0].mxu0 %v3873
    %v5639 = vpop.f32.mrb[0].mxu0
    %v5640 = vadd.f32 %v5351, %v5639
    %v5641 = vpop.f32.mrb[0].mxu0
    %v5642 = vpop.f32.mrb[0].mxu0
    %v5643 = vadd.f32 %v5354, %v5642
    %v5644 = vpop.f32.mrb[0].mxu0
    %5645 = vmatprep.mubr.bf16.mxu0 %v3970
    %5646 = vmatmul.mubr.bf16.gmra.mrb[0].mxu0 %v3874
    %v5647 = vpop.f32.mrb[0].mxu0
    %v5648 = vadd.f32 %v5359, %v5647
    %v5649 = vpop.f32.mrb[0].mxu0
    %v5650 = vpop.f32.mrb[0].mxu0
    %v5651 = vadd.f32 %v5362, %v5650
    %v5652 = vpop.f32.mrb[0].mxu0
    %5653 = vmatprep.mubr.bf16.mxu0 %v3971
    %5654 = vmatmul.mubr.bf16.gmra.mrb[0].mxu0 %v3875
    %v5655 = vpop.f32.mrb[0].mxu0
    %v5656 = vadd.f32 %v5367, %v5655
    %v5657 = vpop.f32.mrb[0].mxu0
    %v5658 = vpop.f32.mrb[0].mxu0
    %v5659 = vadd.f32 %v5370, %v5658
    %v5660 = vpop.f32.mrb[0].mxu0
    %5661 = vmatprep.mubr.bf16.mxu0 %v3972
    %5662 = vmatmul.mubr.bf16.gmra.mrb[0].mxu0 %v3876
    %v5663 = vpop.f32.mrb[0].mxu0
    %v5664 = vadd.f32 %v5375, %v5663
    %v5665 = vpop.f32.mrb[0].mxu0
    %v5666 = vpop.f32.mrb[0].mxu0
    %v5667 = vadd.f32 %v5378, %v5666
    %v5668 = vpop.f32.mrb[0].mxu0
    %5669 = vmatprep.mubr.bf16.mxu0 %v3973
    %5670 = vmatmul.mubr.bf16.gmra.mrb[0].mxu0 %v3877
    %v5671 = vpop.f32.mrb[0].mxu0
    %v5672 = vadd.f32 %v5383, %v5671
    %v5673 = vpop.f32.mrb[0].mxu0
    %v5674 = vpop.f32.mrb[0].mxu0
    %v5675 = vadd.f32 %v5386, %v5674
    %v5676 = vpop.f32.mrb[0].mxu0
    %5677 = vmatprep.mubr.bf16.mxu0 %v3974
    %5678 = vmatmul.mubr.bf16.gmra.mrb[0].mxu0 %v3878
    %v5679 = vpop.f32.mrb[0].mxu0
    %v5680 = vadd.f32 %v5391, %v5679
    %v5681 = vpop.f32.mrb[0].mxu0
    %v5682 = vpop.f32.mrb[0].mxu0
    %v5683 = vadd.f32 %v5394, %v5682
    %v5684 = vpop.f32.mrb[0].mxu0
    %5685 = vmatprep.mubr.bf16.mxu0 %v3975
    %5686 = vmatmul.mubr.bf16.gmra.mrb[0].mxu0 %v3879
    %v5687 = vpop.f32.mrb[0].mxu0
    %v5688 = vadd.f32 %v5399, %v5687
    %v5689 = vpop.f32.mrb[0].mxu0
    %v5690 = vpop.f32.mrb[0].mxu0
    %v5691 = vadd.f32 %v5402, %v5690
    %v5692 = vpop.f32.mrb[0].mxu0
    %5693 = vmatprep.mubr.bf16.mxu0 %v3976
    %5694 = vmatmul.mubr.bf16.gmra.mrb[0].mxu0 %v3880
    %v5695 = vpop.f32.mrb[0].mxu0
    %v5696 = vadd.f32 %v5407, %v5695
    %v5697 = vpop.f32.mrb[0].mxu0
    %v5698 = vpop.f32.mrb[0].mxu0
    %v5699 = vadd.f32 %v5410, %v5698
    %v5700 = vpop.f32.mrb[0].mxu0
    %5701 = vmatprep.mubr.bf16.mxu0 %v3977
    %5702 = vmatmul.mubr.bf16.gmra.mrb[0].mxu0 %v3881
    %v5703 = vpop.f32.mrb[0].mxu0
    %v5704 = vadd.f32 %v5415, %v5703
    %v5705 = vpop.f32.mrb[0].mxu0
    %v5706 = vpop.f32.mrb[0].mxu0
    %v5707 = vadd.f32 %v5418, %v5706
    %v5708 = vpop.f32.mrb[0].mxu0
    %5709 = vmatprep.mubr.bf16.mxu0 %v3978
    %5710 = vmatmul.mubr.bf16.gmra.mrb[0].mxu0 %v3882
    %v5711 = vpop.f32.mrb[0].mxu0
    %v5712 = vadd.f32 %v5423, %v5711
    %v5713 = vpop.f32.mrb[0].mxu0
    %v5714 = vpop.f32.mrb[0].mxu0
    %v5715 = vadd.f32 %v5426, %v5714
    %v5716 = vpop.f32.mrb[0].mxu0
    %5717 = vdwg.mxu0
    %5718 = vmatprep.subr.bf16.mxu0 0
    %5719 = vmatpush1.bf16.msra.mxu0 %v4755
    %5720 = vmatprep.subr.bf16.mxu0 0
    %5721 = vmatpush1.bf16.msra.mxu0 %v4756
    %5722 = vmatprep.subr.bf16.mxu0 0
    %5723 = vmatpush1.bf16.msra.mxu0 %v4757
    %5724 = vmatprep.subr.bf16.mxu0 0
    %5725 = vmatpush1.bf16.msra.mxu0 %v4758
    %5726 = vmatprep.subr.bf16.mxu0 0
    %5727 = vmatpush1.bf16.msra.mxu0 %v4759
    %5728 = vmatprep.subr.bf16.mxu0 0
    %5729 = vmatpush1.bf16.msra.mxu0 %v4760
    %5730 = vmatprep.subr.bf16.mxu0 0
    %5731 = vmatpush1.bf16.msra.mxu0 %v4761
    %5732 = vmatprep.subr.bf16.mxu0 0
    %5733 = vmatpush1.bf16.msra.mxu0 %v4762
    %5734 = vmatprep.subr.bf16.mxu0 0
    %5735 = vmatpush1.bf16.msra.mxu0 %v4763
    %5736 = vmatprep.subr.bf16.mxu0 0
    %5737 = vmatpush1.bf16.msra.mxu0 %v4764
    %5738 = vmatprep.subr.bf16.mxu0 0
    %5739 = vmatpush1.bf16.msra.mxu0 %v4765
    %5740 = vmatprep.subr.bf16.mxu0 0
    %5741 = vmatpush1.bf16.msra.mxu0 %v4766
    %5742 = vmatprep.subr.bf16.mxu0 0
    %5743 = vmatpush1.bf16.msra.mxu0 %v4767
    %5744 = vmatprep.subr.bf16.mxu0 0
    %5745 = vmatpush1.bf16.msra.mxu0 %v4768
    %5746 = vmatprep.subr.bf16.mxu0 0
    %5747 = vmatpush1.bf16.msra.mxu0 %v4769
    %5748 = vmatprep.subr.bf16.mxu0 0
    %5749 = vmatpush1.bf16.msra.mxu0 %v4770
    %5750 = vmatprep.mubr.bf16.mxu0 %v4140
    %5751 = vmatmul.mubr.bf16.gmra.mrb[0].mxu0 %v4044
    %v5752 = vpop.f32.mrb[0].mxu0
    %v5753 = vadd.f32 %v5464, %v5752
    %v5754 = vpop.f32.mrb[0].mxu0
    %v5755 = vpop.f32.mrb[0].mxu0
    %v5756 = vadd.f32 %v5467, %v5755
    %v5757 = vpop.f32.mrb[0].mxu0
    %5758 = vmatprep.mubr.bf16.mxu0 %v4141
    %5759 = vmatmul.mubr.bf16.gmra.mrb[0].mxu0 %v4045
    %v5760 = vpop.f32.mrb[0].mxu0
    %v5761 = vadd.f32 %v5472, %v5760
    %v5762 = vpop.f32.mrb[0].mxu0
    %v5763 = vpop.f32.mrb[0].mxu0
    %v5764 = vadd.f32 %v5475, %v5763
    %v5765 = vpop.f32.mrb[0].mxu0
    %5766 = vmatprep.mubr.bf16.mxu0 %v4142
    %5767 = vmatmul.mubr.bf16.gmra.mrb[0].mxu0 %v4046
    %v5768 = vpop.f32.mrb[0].mxu0
    %v5769 = vadd.f32 %v5480, %v5768
    %v5770 = vpop.f32.mrb[0].mxu0
    %v5771 = vpop.f32.mrb[0].mxu0
    %v5772 = vadd.f32 %v5483, %v5771
    %v5773 = vpop.f32.mrb[0].mxu0
    %5774 = vmatprep.mubr.bf16.mxu0 %v4143
    %5775 = vmatmul.mubr.bf16.gmra.mrb[0].mxu0 %v4047
    %v5776 = vpop.f32.mrb[0].mxu0
    %v5777 = vadd.f32 %v5488, %v5776
    %v5778 = vpop.f32.mrb[0].mxu0
    %v5779 = vpop.f32.mrb[0].mxu0
    %v5780 = vadd.f32 %v5491, %v5779
    %v5781 = vpop.f32.mrb[0].mxu0
    %5782 = vmatprep.mubr.bf16.mxu0 %v4144
    %5783 = vmatmul.mubr.bf16.gmra.mrb[0].mxu0 %v4048
    %v5784 = vpop.f32.mrb[0].mxu0
    %v5785 = vadd.f32 %v5496, %v5784
    %v5786 = vpop.f32.mrb[0].mxu0
    %v5787 = vpop.f32.mrb[0].mxu0
    %v5788 = vadd.f32 %v5499, %v5787
    %v5789 = vpop.f32.mrb[0].mxu0
    %5790 = vmatprep.mubr.bf16.mxu0 %v4145
    %5791 = vmatmul.mubr.bf16.gmra.mrb[0].mxu0 %v4049
    %v5792 = vpop.f32.mrb[0].mxu0
    %v5793 = vadd.f32 %v5504, %v5792
    %v5794 = vpop.f32.mrb[0].mxu0
    %v5795 = vpop.f32.mrb[0].mxu0
    %v5796 = vadd.f32 %v5507, %v5795
    %v5797 = vpop.f32.mrb[0].mxu0
    %5798 = vmatprep.mubr.bf16.mxu0 %v4146
    %5799 = vmatmul.mubr.bf16.gmra.mrb[0].mxu0 %v4050
    %v5800 = vpop.f32.mrb[0].mxu0
    %v5801 = vadd.f32 %v5512, %v5800
    %v5802 = vpop.f32.mrb[0].mxu0
    %v5803 = vpop.f32.mrb[0].mxu0
    %v5804 = vadd.f32 %v5515, %v5803
    %v5805 = vpop.f32.mrb[0].mxu0
    %5806 = vmatprep.mubr.bf16.mxu0 %v4147
    %5807 = vmatmul.mubr.bf16.gmra.mrb[0].mxu0 %v4051
    %v5808 = vpop.f32.mrb[0].mxu0
    %v5809 = vadd.f32 %v5520, %v5808
    %v5810 = vpop.f32.mrb[0].mxu0
    %v5811 = vpop.f32.mrb[0].mxu0
    %v5812 = vadd.f32 %v5523, %v5811
    %v5813 = vpop.f32.mrb[0].mxu0
    %5814 = vmatprep.mubr.bf16.mxu0 %v4148
    %5815 = vmatmul.mubr.bf16.gmra.mrb[0].mxu0 %v4052
    %v5816 = vpop.f32.mrb[0].mxu0
    %v5817 = vadd.f32 %v5528, %v5816
    %v5818 = vpop.f32.mrb[0].mxu0
    %v5819 = vpop.f32.mrb[0].mxu0
    %v5820 = vadd.f32 %v5531, %v5819
    %v5821 = vpop.f32.mrb[0].mxu0
    %5822 = vmatprep.mubr.bf16.mxu0 %v4149
    %5823 = vmatmul.mubr.bf16.gmra.mrb[0].mxu0 %v4053
    %v5824 = vpop.f32.mrb[0].mxu0
    %v5825 = vadd.f32 %v5536, %v5824
    %v5826 = vpop.f32.mrb[0].mxu0
    %v5827 = vpop.f32.mrb[0].mxu0
    %v5828 = vadd.f32 %v5539, %v5827
    %v5829 = vpop.f32.mrb[0].mxu0
    %5830 = vmatprep.mubr.bf16.mxu0 %v4150
    %5831 = vmatmul.mubr.bf16.gmra.mrb[0].mxu0 %v4054
    %v5832 = vpop.f32.mrb[0].mxu0
    %v5833 = vadd.f32 %v5544, %v5832
    %v5834 = vpop.f32.mrb[0].mxu0
    %v5835 = vpop.f32.mrb[0].mxu0
    %v5836 = vadd.f32 %v5547, %v5835
    %v5837 = vpop.f32.mrb[0].mxu0
    %5838 = vmatprep.mubr.bf16.mxu0 %v4151
    %5839 = vmatmul.mubr.bf16.gmra.mrb[0].mxu0 %v4055
    %v5840 = vpop.f32.mrb[0].mxu0
    %v5841 = vadd.f32 %v5552, %v5840
    %v5842 = vpop.f32.mrb[0].mxu0
    %v5843 = vpop.f32.mrb[0].mxu0
    %v5844 = vadd.f32 %v5555, %v5843
    %v5845 = vpop.f32.mrb[0].mxu0
    %5846 = vmatprep.mubr.bf16.mxu0 %v4152
    %5847 = vmatmul.mubr.bf16.gmra.mrb[0].mxu0 %v4056
    %v5848 = vpop.f32.mrb[0].mxu0
    %v5849 = vadd.f32 %v5560, %v5848
    %v5850 = vpop.f32.mrb[0].mxu0
    %v5851 = vpop.f32.mrb[0].mxu0
    %v5852 = vadd.f32 %v5563, %v5851
    %v5853 = vpop.f32.mrb[0].mxu0
    %5854 = vmatprep.mubr.bf16.mxu0 %v4153
    %5855 = vmatmul.mubr.bf16.gmra.mrb[0].mxu0 %v4057
    %v5856 = vpop.f32.mrb[0].mxu0
    %v5857 = vadd.f32 %v5568, %v5856
    %v5858 = vpop.f32.mrb[0].mxu0
    %v5859 = vpop.f32.mrb[0].mxu0
    %v5860 = vadd.f32 %v5571, %v5859
    %v5861 = vpop.f32.mrb[0].mxu0
    %5862 = vmatprep.mubr.bf16.mxu0 %v4154
    %5863 = vmatmul.mubr.bf16.gmra.mrb[0].mxu0 %v4058
    %v5864 = vpop.f32.mrb[0].mxu0
    %v5865 = vadd.f32 %v5576, %v5864
    %v5866 = vpop.f32.mrb[0].mxu0
    %v5867 = vpop.f32.mrb[0].mxu0
    %v5868 = vadd.f32 %v5579, %v5867
    %v5869 = vpop.f32.mrb[0].mxu0
    %5870 = vmatprep.mubr.bf16.mxu0 %v4155
    %5871 = vmatmul.mubr.bf16.gmra.mrb[0].mxu0 %v4059
    %v5872 = vpop.f32.mrb[0].mxu0
    %v5873 = vadd.f32 %v5584, %v5872
    %v5874 = vpop.f32.mrb[0].mxu0
    %v5875 = vpop.f32.mrb[0].mxu0
    %v5876 = vadd.f32 %v5587, %v5875
    %v5877 = vpop.f32.mrb[0].mxu0
    %5878 = vmatprep.mubr.bf16.mxu0 %v4156
    %5879 = vmatmul.mubr.bf16.gmra.mrb[0].mxu0 %v4060
    %v5880 = vpop.f32.mrb[0].mxu0
    %v5881 = vadd.f32 %v5592, %v5880
    %v5882 = vpop.f32.mrb[0].mxu0
    %v5883 = vpop.f32.mrb[0].mxu0
    %v5884 = vadd.f32 %v5595, %v5883
    %v5885 = vpop.f32.mrb[0].mxu0
    %5886 = vmatprep.mubr.bf16.mxu0 %v4157
    %5887 = vmatmul.mubr.bf16.gmra.mrb[0].mxu0 %v4061
    %v5888 = vpop.f32.mrb[0].mxu0
    %v5889 = vadd.f32 %v5600, %v5888
    %v5890 = vpop.f32.mrb[0].mxu0
    %v5891 = vpop.f32.mrb[0].mxu0
    %v5892 = vadd.f32 %v5603, %v5891
    %v5893 = vpop.f32.mrb[0].mxu0
    %5894 = vmatprep.mubr.bf16.mxu0 %v4158
    %5895 = vmatmul.mubr.bf16.gmra.mrb[0].mxu0 %v4062
    %v5896 = vpop.f32.mrb[0].mxu0
    %v5897 = vadd.f32 %v5608, %v5896
    %v5898 = vpop.f32.mrb[0].mxu0
    %v5899 = vpop.f32.mrb[0].mxu0
    %v5900 = vadd.f32 %v5611, %v5899
    %v5901 = vpop.f32.mrb[0].mxu0
    %5902 = vmatprep.mubr.bf16.mxu0 %v4159
    %5903 = vmatmul.mubr.bf16.gmra.mrb[0].mxu0 %v4063
    %v5904 = vpop.f32.mrb[0].mxu0
    %v5905 = vadd.f32 %v5616, %v5904
    %v5906 = vpop.f32.mrb[0].mxu0
    %v5907 = vpop.f32.mrb[0].mxu0
    %v5908 = vadd.f32 %v5619, %v5907
    %v5909 = vpop.f32.mrb[0].mxu0
    %5910 = vmatprep.mubr.bf16.mxu0 %v4160
    %5911 = vmatmul.mubr.bf16.gmra.mrb[0].mxu0 %v4064
    %v5912 = vpop.f32.mrb[0].mxu0
    %v5913 = vadd.f32 %v5624, %v5912
    %v5914 = vpop.f32.mrb[0].mxu0
    %v5915 = vpop.f32.mrb[0].mxu0
    %v5916 = vadd.f32 %v5627, %v5915
    %v5917 = vpop.f32.mrb[0].mxu0
    %5918 = vmatprep.mubr.bf16.mxu0 %v4161
    %5919 = vmatmul.mubr.bf16.gmra.mrb[0].mxu0 %v4065
    %v5920 = vpop.f32.mrb[0].mxu0
    %v5921 = vadd.f32 %v5632, %v5920
    %v5922 = vpop.f32.mrb[0].mxu0
    %v5923 = vpop.f32.mrb[0].mxu0
    %v5924 = vadd.f32 %v5635, %v5923
    %v5925 = vpop.f32.mrb[0].mxu0
    %5926 = vmatprep.mubr.bf16.mxu0 %v4162
    %5927 = vmatmul.mubr.bf16.gmra.mrb[0].mxu0 %v4066
    %v5928 = vpop.f32.mrb[0].mxu0
    %v5929 = vadd.f32 %v5640, %v5928
    %v5930 = vpop.f32.mrb[0].mxu0
    %v5931 = vpop.f32.mrb[0].mxu0
    %v5932 = vadd.f32 %v5643, %v5931
    %v5933 = vpop.f32.mrb[0].mxu0
    %5934 = vmatprep.mubr.bf16.mxu0 %v4163
    %5935 = vmatmul.mubr.bf16.gmra.mrb[0].mxu0 %v4067
    %v5936 = vpop.f32.mrb[0].mxu0
    %v5937 = vadd.f32 %v5648, %v5936
    %v5938 = vpop.f32.mrb[0].mxu0
    %v5939 = vpop.f32.mrb[0].mxu0
    %v5940 = vadd.f32 %v5651, %v5939
    %v5941 = vpop.f32.mrb[0].mxu0
    %5942 = vmatprep.mubr.bf16.mxu0 %v4164
    %5943 = vmatmul.mubr.bf16.gmra.mrb[0].mxu0 %v4068
    %v5944 = vpop.f32.mrb[0].mxu0
    %v5945 = vadd.f32 %v5656, %v5944
    %v5946 = vpop.f32.mrb[0].mxu0
    %v5947 = vpop.f32.mrb[0].mxu0
    %v5948 = vadd.f32 %v5659, %v5947
    %v5949 = vpop.f32.mrb[0].mxu0
    %5950 = vmatprep.mubr.bf16.mxu0 %v4165
    %5951 = vmatmul.mubr.bf16.gmra.mrb[0].mxu0 %v4069
    %v5952 = vpop.f32.mrb[0].mxu0
    %v5953 = vadd.f32 %v5664, %v5952
    %v5954 = vpop.f32.mrb[0].mxu0
    %v5955 = vpop.f32.mrb[0].mxu0
    %v5956 = vadd.f32 %v5667, %v5955
    %v5957 = vpop.f32.mrb[0].mxu0
    %5958 = vmatprep.mubr.bf16.mxu0 %v4166
    %5959 = vmatmul.mubr.bf16.gmra.mrb[0].mxu0 %v4070
    %v5960 = vpop.f32.mrb[0].mxu0
    %v5961 = vadd.f32 %v5672, %v5960
    %v5962 = vpop.f32.mrb[0].mxu0
    %v5963 = vpop.f32.mrb[0].mxu0
    %v5964 = vadd.f32 %v5675, %v5963
    %v5965 = vpop.f32.mrb[0].mxu0
    %5966 = vmatprep.mubr.bf16.mxu0 %v4167
    %5967 = vmatmul.mubr.bf16.gmra.mrb[0].mxu0 %v4071
    %v5968 = vpop.f32.mrb[0].mxu0
    %v5969 = vadd.f32 %v5680, %v5968
    %v5970 = vpop.f32.mrb[0].mxu0
    %v5971 = vpop.f32.mrb[0].mxu0
    %v5972 = vadd.f32 %v5683, %v5971
    %v5973 = vpop.f32.mrb[0].mxu0
    %5974 = vmatprep.mubr.bf16.mxu0 %v4168
    %5975 = vmatmul.mubr.bf16.gmra.mrb[0].mxu0 %v4072
    %v5976 = vpop.f32.mrb[0].mxu0
    %v5977 = vadd.f32 %v5688, %v5976
    %v5978 = vpop.f32.mrb[0].mxu0
    %v5979 = vpop.f32.mrb[0].mxu0
    %v5980 = vadd.f32 %v5691, %v5979
    %v5981 = vpop.f32.mrb[0].mxu0
    %5982 = vmatprep.mubr.bf16.mxu0 %v4169
    %5983 = vmatmul.mubr.bf16.gmra.mrb[0].mxu0 %v4073
    %v5984 = vpop.f32.mrb[0].mxu0
    %v5985 = vadd.f32 %v5696, %v5984
    %v5986 = vpop.f32.mrb[0].mxu0
    %v5987 = vpop.f32.mrb[0].mxu0
    %v5988 = vadd.f32 %v5699, %v5987
    %v5989 = vpop.f32.mrb[0].mxu0
    %5990 = vmatprep.mubr.bf16.mxu0 %v4170
    %5991 = vmatmul.mubr.bf16.gmra.mrb[0].mxu0 %v4074
    %v5992 = vpop.f32.mrb[0].mxu0
    %v5993 = vadd.f32 %v5704, %v5992
    %v5994 = vpop.f32.mrb[0].mxu0
    %v5995 = vpop.f32.mrb[0].mxu0
    %v5996 = vadd.f32 %v5707, %v5995
    %v5997 = vpop.f32.mrb[0].mxu0
    %5998 = vmatprep.mubr.bf16.mxu0 %v4171
    %5999 = vmatmul.mubr.bf16.gmra.mrb[0].mxu0 %v4075
    %v6000 = vpop.f32.mrb[0].mxu0
    %v6001 = vadd.f32 %v5712, %v6000
    %v6002 = vpop.f32.mrb[0].mxu0
    %v6003 = vpop.f32.mrb[0].mxu0
    %v6004 = vadd.f32 %v5715, %v6003
    %v6005 = vpop.f32.mrb[0].mxu0
    %6006 = vdwg.mxu0
    %6007 = vmatprep.subr.bf16.mxu0 0
    %6008 = vmatpush1.bf16.msra.mxu0 %v4771
    %6009 = vmatprep.subr.bf16.mxu0 0
    %6010 = vmatpush1.bf16.msra.mxu0 %v4772
    %6011 = vmatprep.subr.bf16.mxu0 0
    %6012 = vmatpush1.bf16.msra.mxu0 %v4773
    %6013 = vmatprep.subr.bf16.mxu0 0
    %6014 = vmatpush1.bf16.msra.mxu0 %v4774
    %6015 = vmatprep.subr.bf16.mxu0 0
    %6016 = vmatpush1.bf16.msra.mxu0 %v4775
    %6017 = vmatprep.subr.bf16.mxu0 0
    %6018 = vmatpush1.bf16.msra.mxu0 %v4776
    %6019 = vmatprep.subr.bf16.mxu0 0
    %6020 = vmatpush1.bf16.msra.mxu0 %v4777
    %6021 = vmatprep.subr.bf16.mxu0 0
    %6022 = vmatpush1.bf16.msra.mxu0 %v4778
    %6023 = vmatprep.subr.bf16.mxu0 0
    %6024 = vmatpush1.bf16.msra.mxu0 0
    %6025 = vmatprep.subr.bf16.mxu0 0
    %6026 = vmatpush1.bf16.msra.mxu0 0
    %6027 = vmatprep.subr.bf16.mxu0 0
    %6028 = vmatpush1.bf16.msra.mxu0 0
    %6029 = vmatprep.subr.bf16.mxu0 0
    %6030 = vmatpush1.bf16.msra.mxu0 0
    %6031 = vmatprep.subr.bf16.mxu0 0
    %6032 = vmatpush1.bf16.msra.mxu0 0
    %6033 = vmatprep.subr.bf16.mxu0 0
    %6034 = vmatpush1.bf16.msra.mxu0 0
    %6035 = vmatprep.subr.bf16.mxu0 0
    %6036 = vmatpush1.bf16.msra.mxu0 0
    %6037 = vmatprep.subr.bf16.mxu0 0
    %6038 = vmatpush1.bf16.msra.mxu0 0
    %6039 = vmatprep.mubr.bf16.mxu0 0
    %6040 = vmatmul.mubr.bf16.gmra.mrb[0].mxu0 %v4236
    %v6041 = vpop.f32.mrb[0].mxu0
    %v6042 = vadd.f32 %v5753, %v6041
    %v6043 = vpop.f32.mrb[0].mxu0
    %v6044 = vpop.f32.mrb[0].mxu0
    %v6045 = vadd.f32 %v5756, %v6044
    %v6046 = vpop.f32.mrb[0].mxu0
    %6047 = vmatprep.mubr.bf16.mxu0 0
    %6048 = vmatmul.mubr.bf16.gmra.mrb[0].mxu0 %v4237
    %v6049 = vpop.f32.mrb[0].mxu0
    %v6050 = vadd.f32 %v5761, %v6049
    %v6051 = vpop.f32.mrb[0].mxu0
    %v6052 = vpop.f32.mrb[0].mxu0
    %v6053 = vadd.f32 %v5764, %v6052
    %v6054 = vpop.f32.mrb[0].mxu0
    %6055 = vmatprep.mubr.bf16.mxu0 0
    %6056 = vmatmul.mubr.bf16.gmra.mrb[0].mxu0 %v4238
    %v6057 = vpop.f32.mrb[0].mxu0
    %v6058 = vadd.f32 %v5769, %v6057
    %v6059 = vpop.f32.mrb[0].mxu0
    %v6060 = vpop.f32.mrb[0].mxu0
    %v6061 = vadd.f32 %v5772, %v6060
    %v6062 = vpop.f32.mrb[0].mxu0
    %6063 = vmatprep.mubr.bf16.mxu0 0
    %6064 = vmatmul.mubr.bf16.gmra.mrb[0].mxu0 %v4239
    %v6065 = vpop.f32.mrb[0].mxu0
    %v6066 = vadd.f32 %v5777, %v6065
    %v6067 = vpop.f32.mrb[0].mxu0
    %v6068 = vpop.f32.mrb[0].mxu0
    %v6069 = vadd.f32 %v5780, %v6068
    %v6070 = vpop.f32.mrb[0].mxu0
    %6071 = vmatprep.mubr.bf16.mxu0 0
    %6072 = vmatmul.mubr.bf16.gmra.mrb[0].mxu0 %v4240
    %v6073 = vpop.f32.mrb[0].mxu0
    %v6074 = vadd.f32 %v5785, %v6073
    %v6075 = vpop.f32.mrb[0].mxu0
    %v6076 = vpop.f32.mrb[0].mxu0
    %v6077 = vadd.f32 %v5788, %v6076
    %v6078 = vpop.f32.mrb[0].mxu0
    %6079 = vmatprep.mubr.bf16.mxu0 0
    %6080 = vmatmul.mubr.bf16.gmra.mrb[0].mxu0 %v4241
    %v6081 = vpop.f32.mrb[0].mxu0
    %v6082 = vadd.f32 %v5793, %v6081
    %v6083 = vpop.f32.mrb[0].mxu0
    %v6084 = vpop.f32.mrb[0].mxu0
    %v6085 = vadd.f32 %v5796, %v6084
    %v6086 = vpop.f32.mrb[0].mxu0
    %6087 = vmatprep.mubr.bf16.mxu0 0
    %6088 = vmatmul.mubr.bf16.gmra.mrb[0].mxu0 %v4242
    %v6089 = vpop.f32.mrb[0].mxu0
    %v6090 = vadd.f32 %v5801, %v6089
    %v6091 = vpop.f32.mrb[0].mxu0
    %v6092 = vpop.f32.mrb[0].mxu0
    %v6093 = vadd.f32 %v5804, %v6092
    %v6094 = vpop.f32.mrb[0].mxu0
    %6095 = vmatprep.mubr.bf16.mxu0 0
    %6096 = vmatmul.mubr.bf16.gmra.mrb[0].mxu0 %v4243
    %v6097 = vpop.f32.mrb[0].mxu0
    %v6098 = vadd.f32 %v5809, %v6097
    %v6099 = vpop.f32.mrb[0].mxu0
    %v6100 = vpop.f32.mrb[0].mxu0
    %v6101 = vadd.f32 %v5812, %v6100
    %v6102 = vpop.f32.mrb[0].mxu0
    %6103 = vmatprep.mubr.bf16.mxu0 0
    %6104 = vmatmul.mubr.bf16.gmra.mrb[0].mxu0 %v4244
    %v6105 = vpop.f32.mrb[0].mxu0
    %v6106 = vadd.f32 %v5817, %v6105
    %v6107 = vpop.f32.mrb[0].mxu0
    %v6108 = vpop.f32.mrb[0].mxu0
    %v6109 = vadd.f32 %v5820, %v6108
    %v6110 = vpop.f32.mrb[0].mxu0
    %6111 = vmatprep.mubr.bf16.mxu0 0
    %6112 = vmatmul.mubr.bf16.gmra.mrb[0].mxu0 %v4245
    %v6113 = vpop.f32.mrb[0].mxu0
    %v6114 = vadd.f32 %v5825, %v6113
    %v6115 = vpop.f32.mrb[0].mxu0
    %v6116 = vpop.f32.mrb[0].mxu0
    %v6117 = vadd.f32 %v5828, %v6116
    %v6118 = vpop.f32.mrb[0].mxu0
    %6119 = vmatprep.mubr.bf16.mxu0 0
    %6120 = vmatmul.mubr.bf16.gmra.mrb[0].mxu0 %v4246
    %v6121 = vpop.f32.mrb[0].mxu0
    %v6122 = vadd.f32 %v5833, %v6121
    %v6123 = vpop.f32.mrb[0].mxu0
    %v6124 = vpop.f32.mrb[0].mxu0
    %v6125 = vadd.f32 %v5836, %v6124
    %v6126 = vpop.f32.mrb[0].mxu0
    %6127 = vmatprep.mubr.bf16.mxu0 0
    %6128 = vmatmul.mubr.bf16.gmra.mrb[0].mxu0 %v4247
    %v6129 = vpop.f32.mrb[0].mxu0
    %v6130 = vadd.f32 %v5841, %v6129
    %v6131 = vpop.f32.mrb[0].mxu0
    %v6132 = vpop.f32.mrb[0].mxu0
    %v6133 = vadd.f32 %v5844, %v6132
    %v6134 = vpop.f32.mrb[0].mxu0
    %6135 = vmatprep.mubr.bf16.mxu0 0
    %6136 = vmatmul.mubr.bf16.gmra.mrb[0].mxu0 %v4248
    %v6137 = vpop.f32.mrb[0].mxu0
    %v6138 = vadd.f32 %v5849, %v6137
    %v6139 = vpop.f32.mrb[0].mxu0
    %v6140 = vpop.f32.mrb[0].mxu0
    %v6141 = vadd.f32 %v5852, %v6140
    %v6142 = vpop.f32.mrb[0].mxu0
    %6143 = vmatprep.mubr.bf16.mxu0 0
    %6144 = vmatmul.mubr.bf16.gmra.mrb[0].mxu0 %v4249
    %v6145 = vpop.f32.mrb[0].mxu0
    %v6146 = vadd.f32 %v5857, %v6145
    %v6147 = vpop.f32.mrb[0].mxu0
    %v6148 = vpop.f32.mrb[0].mxu0
    %v6149 = vadd.f32 %v5860, %v6148
    %v6150 = vpop.f32.mrb[0].mxu0
    %6151 = vmatprep.mubr.bf16.mxu0 0
    %6152 = vmatmul.mubr.bf16.gmra.mrb[0].mxu0 %v4250
    %v6153 = vpop.f32.mrb[0].mxu0
    %v6154 = vadd.f32 %v5865, %v6153
    %v6155 = vpop.f32.mrb[0].mxu0
    %v6156 = vpop.f32.mrb[0].mxu0
    %v6157 = vadd.f32 %v5868, %v6156
    %v6158 = vpop.f32.mrb[0].mxu0
    %6159 = vmatprep.mubr.bf16.mxu0 0
    %6160 = vmatmul.mubr.bf16.gmra.mrb[0].mxu0 %v4251
    %v6161 = vpop.f32.mrb[0].mxu0
    %v6162 = vadd.f32 %v5873, %v6161
    %v6163 = vpop.f32.mrb[0].mxu0
    %v6164 = vpop.f32.mrb[0].mxu0
    %v6165 = vadd.f32 %v5876, %v6164
    %v6166 = vpop.f32.mrb[0].mxu0
    %6167 = vmatprep.mubr.bf16.mxu0 0
    %6168 = vmatmul.mubr.bf16.gmra.mrb[0].mxu0 %v4252
    %v6169 = vpop.f32.mrb[0].mxu0
    %v6170 = vadd.f32 %v5881, %v6169
    %v6171 = vpop.f32.mrb[0].mxu0
    %v6172 = vpop.f32.mrb[0].mxu0
    %v6173 = vadd.f32 %v5884, %v6172
    %v6174 = vpop.f32.mrb[0].mxu0
    %6175 = vmatprep.mubr.bf16.mxu0 0
    %6176 = vmatmul.mubr.bf16.gmra.mrb[0].mxu0 %v4253
    %v6177 = vpop.f32.mrb[0].mxu0
    %v6178 = vadd.f32 %v5889, %v6177
    %v6179 = vpop.f32.mrb[0].mxu0
    %v6180 = vpop.f32.mrb[0].mxu0
    %v6181 = vadd.f32 %v5892, %v6180
    %v6182 = vpop.f32.mrb[0].mxu0
    %6183 = vmatprep.mubr.bf16.mxu0 0
    %6184 = vmatmul.mubr.bf16.gmra.mrb[0].mxu0 %v4254
    %v6185 = vpop.f32.mrb[0].mxu0
    %v6186 = vadd.f32 %v5897, %v6185
    %v6187 = vpop.f32.mrb[0].mxu0
    %v6188 = vpop.f32.mrb[0].mxu0
    %v6189 = vadd.f32 %v5900, %v6188
    %v6190 = vpop.f32.mrb[0].mxu0
    %6191 = vmatprep.mubr.bf16.mxu0 0
    %6192 = vmatmul.mubr.bf16.gmra.mrb[0].mxu0 %v4255
    %v6193 = vpop.f32.mrb[0].mxu0
    %v6194 = vadd.f32 %v5905, %v6193
    %v6195 = vpop.f32.mrb[0].mxu0
    %v6196 = vpop.f32.mrb[0].mxu0
    %v6197 = vadd.f32 %v5908, %v6196
    %v6198 = vpop.f32.mrb[0].mxu0
    %6199 = vmatprep.mubr.bf16.mxu0 0
    %6200 = vmatmul.mubr.bf16.gmra.mrb[0].mxu0 %v4256
    %v6201 = vpop.f32.mrb[0].mxu0
    %v6202 = vadd.f32 %v5913, %v6201
    %v6203 = vpop.f32.mrb[0].mxu0
    %v6204 = vpop.f32.mrb[0].mxu0
    %v6205 = vadd.f32 %v5916, %v6204
    %v6206 = vpop.f32.mrb[0].mxu0
    %6207 = vmatprep.mubr.bf16.mxu0 0
    %6208 = vmatmul.mubr.bf16.gmra.mrb[0].mxu0 %v4257
    %v6209 = vpop.f32.mrb[0].mxu0
    %v6210 = vadd.f32 %v5921, %v6209
    %v6211 = vpop.f32.mrb[0].mxu0
    %v6212 = vpop.f32.mrb[0].mxu0
    %v6213 = vadd.f32 %v5924, %v6212
    %v6214 = vpop.f32.mrb[0].mxu0
    %6215 = vmatprep.mubr.bf16.mxu0 0
    %6216 = vmatmul.mubr.bf16.gmra.mrb[0].mxu0 %v4258
    %v6217 = vpop.f32.mrb[0].mxu0
    %v6218 = vadd.f32 %v5929, %v6217
    %v6219 = vpop.f32.mrb[0].mxu0
    %v6220 = vpop.f32.mrb[0].mxu0
    %v6221 = vadd.f32 %v5932, %v6220
    %v6222 = vpop.f32.mrb[0].mxu0
    %6223 = vmatprep.mubr.bf16.mxu0 0
    %6224 = vmatmul.mubr.bf16.gmra.mrb[0].mxu0 %v4259
    %v6225 = vpop.f32.mrb[0].mxu0
    %v6226 = vadd.f32 %v5937, %v6225
    %v6227 = vpop.f32.mrb[0].mxu0
    %v6228 = vpop.f32.mrb[0].mxu0
    %v6229 = vadd.f32 %v5940, %v6228
    %v6230 = vpop.f32.mrb[0].mxu0
    %6231 = vmatprep.mubr.bf16.mxu0 0
    %6232 = vmatmul.mubr.bf16.gmra.mrb[0].mxu0 %v4260
    %v6233 = vpop.f32.mrb[0].mxu0
    %v6234 = vadd.f32 %v5945, %v6233
    %v6235 = vpop.f32.mrb[0].mxu0
    %v6236 = vpop.f32.mrb[0].mxu0
    %v6237 = vadd.f32 %v5948, %v6236
    %v6238 = vpop.f32.mrb[0].mxu0
    %6239 = vmatprep.mubr.bf16.mxu0 0
    %6240 = vmatmul.mubr.bf16.gmra.mrb[0].mxu0 %v4261
    %v6241 = vpop.f32.mrb[0].mxu0
    %v6242 = vadd.f32 %v5953, %v6241
    %v6243 = vpop.f32.mrb[0].mxu0
    %v6244 = vpop.f32.mrb[0].mxu0
    %v6245 = vadd.f32 %v5956, %v6244
    %v6246 = vpop.f32.mrb[0].mxu0
    %6247 = vmatprep.mubr.bf16.mxu0 0
    %6248 = vmatmul.mubr.bf16.gmra.mrb[0].mxu0 %v4262
    %v6249 = vpop.f32.mrb[0].mxu0
    %v6250 = vadd.f32 %v5961, %v6249
    %v6251 = vpop.f32.mrb[0].mxu0
    %v6252 = vpop.f32.mrb[0].mxu0
    %v6253 = vadd.f32 %v5964, %v6252
    %v6254 = vpop.f32.mrb[0].mxu0
    %6255 = vmatprep.mubr.bf16.mxu0 0
    %6256 = vmatmul.mubr.bf16.gmra.mrb[0].mxu0 %v4263
    %v6257 = vpop.f32.mrb[0].mxu0
    %v6258 = vadd.f32 %v5969, %v6257
    %v6259 = vpop.f32.mrb[0].mxu0
    %v6260 = vpop.f32.mrb[0].mxu0
    %v6261 = vadd.f32 %v5972, %v6260
    %v6262 = vpop.f32.mrb[0].mxu0
    %6263 = vmatprep.mubr.bf16.mxu0 0
    %6264 = vmatmul.mubr.bf16.gmra.mrb[0].mxu0 %v4264
    %v6265 = vpop.f32.mrb[0].mxu0
    %v6266 = vadd.f32 %v5977, %v6265
    %v6267 = vpop.f32.mrb[0].mxu0
    %v6268 = vpop.f32.mrb[0].mxu0
    %v6269 = vadd.f32 %v5980, %v6268
    %v6270 = vpop.f32.mrb[0].mxu0
    %6271 = vmatprep.mubr.bf16.mxu0 0
    %6272 = vmatmul.mubr.bf16.gmra.mrb[0].mxu0 %v4265
    %v6273 = vpop.f32.mrb[0].mxu0
    %v6274 = vadd.f32 %v5985, %v6273
    %v6275 = vpop.f32.mrb[0].mxu0
    %v6276 = vpop.f32.mrb[0].mxu0
    %v6277 = vadd.f32 %v5988, %v6276
    %v6278 = vpop.f32.mrb[0].mxu0
    %6279 = vmatprep.mubr.bf16.mxu0 0
    %6280 = vmatmul.mubr.bf16.gmra.mrb[0].mxu0 %v4266
    %v6281 = vpop.f32.mrb[0].mxu0
    %v6282 = vadd.f32 %v5993, %v6281
    %v6283 = vpop.f32.mrb[0].mxu0
    %v6284 = vpop.f32.mrb[0].mxu0
    %v6285 = vadd.f32 %v5996, %v6284
    %v6286 = vpop.f32.mrb[0].mxu0
    %6287 = vmatprep.mubr.bf16.mxu0 0
    %6288 = vmatmul.mubr.bf16.gmra.mrb[0].mxu0 %v4267
    %v6289 = vpop.f32.mrb[0].mxu0
    %v6290 = vadd.f32 %v6001, %v6289
    %v6291 = vpop.f32.mrb[0].mxu0
    %v6292 = vpop.f32.mrb[0].mxu0
    %v6293 = vadd.f32 %v6004, %v6292
    %v6294 = vpop.f32.mrb[0].mxu0
    %6295 = vdwg.mxu0
    %v6296 = vmax.f32 %v6042, 0.0
    %v6297 = vmax.f32 %v6045, 0.0
    %v6298 = vmax.f32 %v6050, 0.0
    %v6299 = vmax.f32 %v6053, 0.0
    %v6300 = vmax.f32 %v6058, 0.0
    %v6301 = vmax.f32 %v6061, 0.0
    %v6302 = vmax.f32 %v6066, 0.0
    %v6303 = vmax.f32 %v6069, 0.0
    %v6304 = vmax.f32 %v6074, 0.0
    %v6305 = vmax.f32 %v6077, 0.0
    %v6306 = vmax.f32 %v6082, 0.0
    %v6307 = vmax.f32 %v6085, 0.0
    %v6308 = vmax.f32 %v6090, 0.0
    %v6309 = vmax.f32 %v6093, 0.0
    %v6310 = vmax.f32 %v6098, 0.0
    %v6311 = vmax.f32 %v6101, 0.0
    %v6312 = vmax.f32 %v6106, 0.0
    %v6313 = vmax.f32 %v6109, 0.0
    %v6314 = vmax.f32 %v6114, 0.0
    %v6315 = vmax.f32 %v6117, 0.0
    %v6316 = vmax.f32 %v6122, 0.0
    %v6317 = vmax.f32 %v6125, 0.0
    %v6318 = vmax.f32 %v6130, 0.0
    %v6319 = vmax.f32 %v6133, 0.0
    %v6320 = vmax.f32 %v6138, 0.0
    %v6321 = vmax.f32 %v6141, 0.0
    %v6322 = vmax.f32 %v6146, 0.0
    %v6323 = vmax.f32 %v6149, 0.0
    %v6324 = vmax.f32 %v6154, 0.0
    %v6325 = vmax.f32 %v6157, 0.0
    %v6326 = vmax.f32 %v6162, 0.0
    %v6327 = vmax.f32 %v6165, 0.0
    %v6328 = vmax.f32 %v6170, 0.0
    %v6329 = vmax.f32 %v6173, 0.0
    %v6330 = vmax.f32 %v6178, 0.0
    %v6331 = vmax.f32 %v6181, 0.0
    %v6332 = vmax.f32 %v6186, 0.0
    %v6333 = vmax.f32 %v6189, 0.0
    %v6334 = vmax.f32 %v6194, 0.0
    %v6335 = vmax.f32 %v6197, 0.0
    %v6336 = vmax.f32 %v6202, 0.0
    %v6337 = vmax.f32 %v6205, 0.0
    %v6338 = vmax.f32 %v6210, 0.0
    %v6339 = vmax.f32 %v6213, 0.0
    %v6340 = vmax.f32 %v6218, 0.0
    %v6341 = vmax.f32 %v6221, 0.0
    %v6342 = vmax.f32 %v6226, 0.0
    %v6343 = vmax.f32 %v6229, 0.0
    %v6344 = vmax.f32 %v6234, 0.0
    %v6345 = vmax.f32 %v6237, 0.0
    %v6346 = vmax.f32 %v6242, 0.0
    %v6347 = vmax.f32 %v6245, 0.0
    %v6348 = vmax.f32 %v6250, 0.0
    %v6349 = vmax.f32 %v6253, 0.0
    %v6350 = vmax.f32 %v6258, 0.0
    %v6351 = vmax.f32 %v6261, 0.0
    %v6352 = vmax.f32 %v6266, 0.0
    %v6353 = vmax.f32 %v6269, 0.0
    %v6354 = vmax.f32 %v6274, 0.0
    %v6355 = vmax.f32 %v6277, 0.0
    %v6356 = vmax.f32 %v6282, 0.0
    %v6357 = vmax.f32 %v6285, 0.0
    %v6358 = vmax.f32 %v6290, 0.0
    %v6359 = vmax.f32 %v6293, 0.0
    %6360 = vst.msk [vmem:[#allocation4] sm:$0xff] %vm3338, %v6296
    %6361 = vst.msk [vmem:[#allocation4 + $0x8] sm:$0xff] %vm3338, %v6297
    %6362 = vst.msk [vmem:[#allocation4 + $0x10] sm:$0xff] %vm3338, %v6298
    %6363 = vst.msk [vmem:[#allocation4 + $0x18] sm:$0xff] %vm3338, %v6299
    %6364 = vst.msk [vmem:[#allocation4 + $0x20] sm:$0xff] %vm3338, %v6300
    %6365 = vst.msk [vmem:[#allocation4 + $0x28] sm:$0xff] %vm3338, %v6301
    %6366 = vst.msk [vmem:[#allocation4 + $0x30] sm:$0xff] %vm3338, %v6302
    %6367 = vst.msk [vmem:[#allocation4 + $0x38] sm:$0xff] %vm3338, %v6303
    %6368 = vst.msk [vmem:[#allocation4 + $0x40] sm:$0xff] %vm3338, %v6304
    %6369 = vst.msk [vmem:[#allocation4 + $0x48] sm:$0xff] %vm3338, %v6305
    %6370 = vst.msk [vmem:[#allocation4 + $0x50] sm:$0xff] %vm3338, %v6306
    %6371 = vst.msk [vmem:[#allocation4 + $0x58] sm:$0xff] %vm3338, %v6307
    %6372 = vst.msk [vmem:[#allocation4 + $0x60] sm:$0xff] %vm3338, %v6308
    %6373 = vst.msk [vmem:[#allocation4 + $0x68] sm:$0xff] %vm3338, %v6309
    %6374 = vst.msk [vmem:[#allocation4 + $0x70] sm:$0xff] %vm3338, %v6310
    %6375 = vst.msk [vmem:[#allocation4 + $0x78] sm:$0xff] %vm3338, %v6311
    %6376 = vst.msk [vmem:[#allocation4 + $0x80] sm:$0xff] %vm3338, %v6312
    %6377 = vst.msk [vmem:[#allocation4 + $0x88] sm:$0xff] %vm3338, %v6313
    %6378 = vst.msk [vmem:[#allocation4 + $0x90] sm:$0xff] %vm3338, %v6314
    %6379 = vst.msk [vmem:[#allocation4 + $0x98] sm:$0xff] %vm3338, %v6315
    %6380 = vst.msk [vmem:[#allocation4 + $0xa0] sm:$0xff] %vm3338, %v6316
    %6381 = vst.msk [vmem:[#allocation4 + $0xa8] sm:$0xff] %vm3338, %v6317
    %6382 = vst.msk [vmem:[#allocation4 + $0xb0] sm:$0xff] %vm3338, %v6318
    %6383 = vst.msk [vmem:[#allocation4 + $0xb8] sm:$0xff] %vm3338, %v6319
    %6384 = vst.msk [vmem:[#allocation4 + $0xc0] sm:$0xff] %vm3338, %v6320
    %6385 = vst.msk [vmem:[#allocation4 + $0xc8] sm:$0xff] %vm3338, %v6321
    %6386 = vst.msk [vmem:[#allocation4 + $0xd0] sm:$0xff] %vm3338, %v6322
    %6387 = vst.msk [vmem:[#allocation4 + $0xd8] sm:$0xff] %vm3338, %v6323
    %6388 = vst.msk [vmem:[#allocation4 + $0xe0] sm:$0xff] %vm3338, %v6324
    %6389 = vst.msk [vmem:[#allocation4 + $0xe8] sm:$0xff] %vm3338, %v6325
    %6390 = vst.msk [vmem:[#allocation4 + $0xf0] sm:$0xff] %vm3338, %v6326
    %6391 = vst.msk [vmem:[#allocation4 + $0xf8] sm:$0xff] %vm3338, %v6327
    %6392 = vst.msk [vmem:[#allocation4 + $0x100] sm:$0xff] %vm3338, %v6328
    %6393 = vst.msk [vmem:[#allocation4 + $0x108] sm:$0xff] %vm3338, %v6329
    %6394 = vst.msk [vmem:[#allocation4 + $0x110] sm:$0xff] %vm3338, %v6330
    %6395 = vst.msk [vmem:[#allocation4 + $0x118] sm:$0xff] %vm3338, %v6331
    %6396 = vst.msk [vmem:[#allocation4 + $0x120] sm:$0xff] %vm3338, %v6332
    %6397 = vst.msk [vmem:[#allocation4 + $0x128] sm:$0xff] %vm3338, %v6333
    %6398 = vst.msk [vmem:[#allocation4 + $0x130] sm:$0xff] %vm3338, %v6334
    %6399 = vst.msk [vmem:[#allocation4 + $0x138] sm:$0xff] %vm3338, %v6335
    %6400 = vst.msk [vmem:[#allocation4 + $0x140] sm:$0xff] %vm3338, %v6336
    %6401 = vst.msk [vmem:[#allocation4 + $0x148] sm:$0xff] %vm3338, %v6337
    %6402 = vst.msk [vmem:[#allocation4 + $0x150] sm:$0xff] %vm3338, %v6338
    %6403 = vst.msk [vmem:[#allocation4 + $0x158] sm:$0xff] %vm3338, %v6339
    %6404 = vst.msk [vmem:[#allocation4 + $0x160] sm:$0xff] %vm3338, %v6340
    %6405 = vst.msk [vmem:[#allocation4 + $0x168] sm:$0xff] %vm3338, %v6341
    %6406 = vst.msk [vmem:[#allocation4 + $0x170] sm:$0xff] %vm3338, %v6342
    %6407 = vst.msk [vmem:[#allocation4 + $0x178] sm:$0xff] %vm3338, %v6343
    %6408 = vst.msk [vmem:[#allocation4 + $0x180] sm:$0xff] %vm3338, %v6344
    %6409 = vst.msk [vmem:[#allocation4 + $0x188] sm:$0xff] %vm3338, %v6345
    %6410 = vst.msk [vmem:[#allocation4 + $0x190] sm:$0xff] %vm3338, %v6346
    %6411 = vst.msk [vmem:[#allocation4 + $0x198] sm:$0xff] %vm3338, %v6347
    %6412 = vst.msk [vmem:[#allocation4 + $0x1a0] sm:$0xff] %vm3338, %v6348
    %6413 = vst.msk [vmem:[#allocation4 + $0x1a8] sm:$0xff] %vm3338, %v6349
    %6414 = vst.msk [vmem:[#allocation4 + $0x1b0] sm:$0xff] %vm3338, %v6350
    %6415 = vst.msk [vmem:[#allocation4 + $0x1b8] sm:$0xff] %vm3338, %v6351
    %6416 = vst.msk [vmem:[#allocation4 + $0x1c0] sm:$0xff] %vm3338, %v6352
    %6417 = vst.msk [vmem:[#allocation4 + $0x1c8] sm:$0xff] %vm3338, %v6353
    %6418 = vst.msk [vmem:[#allocation4 + $0x1d0] sm:$0xff] %vm3338, %v6354
    %6419 = vst.msk [vmem:[#allocation4 + $0x1d8] sm:$0xff] %vm3338, %v6355
    %6420 = vst.msk [vmem:[#allocation4 + $0x1e0] sm:$0xff] %vm3338, %v6356
    %6421 = vst.msk [vmem:[#allocation4 + $0x1e8] sm:$0xff] %vm3338, %v6357
    %6422 = vst.msk [vmem:[#allocation4 + $0x1f0] sm:$0xff] %vm3338, %v6358
    %6423 = vst.msk [vmem:[#allocation4 + $0x1f8] sm:$0xff] %vm3338, %v6359
    %v6424 = vld [vmem:[#allocation4] ss:$2 sm:$0xff]
    %s6425 = scalar_lea.vmem [#allocation4], 32
    %v6426 = vld [vmem:[%s6425] ss:$2 sm:$0xff]
    %s6427 = scalar_lea.vmem [#allocation4], 64
    %v6428 = vld [vmem:[%s6427] ss:$2 sm:$0xff]
    %s6429 = scalar_lea.vmem [#allocation4], 96
    %v6430 = vld [vmem:[%s6429] ss:$2 sm:$0xff]
    %s6431 = scalar_lea.vmem [#allocation4], 128
    %v6432 = vld [vmem:[%s6431] ss:$2 sm:$0xff]
    %s6433 = scalar_lea.vmem [#allocation4], 160
    %v6434 = vld [vmem:[%s6433] ss:$2 sm:$0xff]
    %s6435 = scalar_lea.vmem [#allocation4], 192
    %v6436 = vld [vmem:[%s6435] ss:$2 sm:$0xff]
    %s6437 = scalar_lea.vmem [#allocation4], 224
    %v6438 = vld [vmem:[%s6437] ss:$2 sm:$0xff]
    %s6439 = scalar_lea.vmem [#allocation4], 256
    %v6440 = vld [vmem:[%s6439] ss:$2 sm:$0xff]
    %s6441 = scalar_lea.vmem [#allocation4], 288
    %v6442 = vld [vmem:[%s6441] ss:$2 sm:$0xff]
    %s6443 = scalar_lea.vmem [#allocation4], 320
    %v6444 = vld [vmem:[%s6443] ss:$2 sm:$0xff]
    %s6445 = scalar_lea.vmem [#allocation4], 352
    %v6446 = vld [vmem:[%s6445] ss:$2 sm:$0xff]
    %s6447 = scalar_lea.vmem [#allocation4], 384
    %v6448 = vld [vmem:[%s6447] ss:$2 sm:$0xff]
    %s6449 = scalar_lea.vmem [#allocation4], 416
    %v6450 = vld [vmem:[%s6449] ss:$2 sm:$0xff]
    %s6451 = scalar_lea.vmem [#allocation4], 448
    %v6452 = vld [vmem:[%s6451] ss:$2 sm:$0xff]
    %s6453 = scalar_lea.vmem [#allocation4], 480
    %v6454 = vld [vmem:[%s6453] ss:$2 sm:$0xff]
    %s6455 = scalar_lea.vmem [#allocation4], 1
    %v6456 = vld [vmem:[%s6455] ss:$2 sm:$0xff]
    %s6457 = scalar_lea.vmem [#allocation4], 33
    %v6458 = vld [vmem:[%s6457] ss:$2 sm:$0xff]
    %s6459 = scalar_lea.vmem [#allocation4], 65
    %v6460 = vld [vmem:[%s6459] ss:$2 sm:$0xff]
    %s6461 = scalar_lea.vmem [#allocation4], 97
    %v6462 = vld [vmem:[%s6461] ss:$2 sm:$0xff]
    %s6463 = scalar_lea.vmem [#allocation4], 129
    %v6464 = vld [vmem:[%s6463] ss:$2 sm:$0xff]
    %s6465 = scalar_lea.vmem [#allocation4], 161
    %v6466 = vld [vmem:[%s6465] ss:$2 sm:$0xff]
    %s6467 = scalar_lea.vmem [#allocation4], 193
    %v6468 = vld [vmem:[%s6467] ss:$2 sm:$0xff]
    %s6469 = scalar_lea.vmem [#allocation4], 225
    %v6470 = vld [vmem:[%s6469] ss:$2 sm:$0xff]
    %s6471 = scalar_lea.vmem [#allocation4], 257
    %v6472 = vld [vmem:[%s6471] ss:$2 sm:$0xff]
    %s6473 = scalar_lea.vmem [#allocation4], 289
    %v6474 = vld [vmem:[%s6473] ss:$2 sm:$0xff]
    %s6475 = scalar_lea.vmem [#allocation4], 321
    %v6476 = vld [vmem:[%s6475] ss:$2 sm:$0xff]
    %s6477 = scalar_lea.vmem [#allocation4], 353
    %v6478 = vld [vmem:[%s6477] ss:$2 sm:$0xff]
    %s6479 = scalar_lea.vmem [#allocation4], 385
    %v6480 = vld [vmem:[%s6479] ss:$2 sm:$0xff]
    %s6481 = scalar_lea.vmem [#allocation4], 417
    %v6482 = vld [vmem:[%s6481] ss:$2 sm:$0xff]
    %s6483 = scalar_lea.vmem [#allocation4], 449
    %v6484 = vld [vmem:[%s6483] ss:$2 sm:$0xff]
    %s6485 = scalar_lea.vmem [#allocation4], 481
    %v6486 = vld [vmem:[%s6485] ss:$2 sm:$0xff]
    %s6487 = scalar_lea.vmem [#allocation4], 16
    %v6488 = vld [vmem:[%s6487] ss:$2 sm:$0xff]
    %s6489 = scalar_lea.vmem %s6487, 32 [#allocation4]
    %v6490 = vld [vmem:[%s6489] ss:$2 sm:$0xff]
    %s6491 = scalar_lea.vmem %s6487, 64 [#allocation4]
    %v6492 = vld [vmem:[%s6491] ss:$2 sm:$0xff]
    %s6493 = scalar_lea.vmem %s6487, 96 [#allocation4]
    %v6494 = vld [vmem:[%s6493] ss:$2 sm:$0xff]
    %s6495 = scalar_lea.vmem %s6487, 128 [#allocation4]
    %v6496 = vld [vmem:[%s6495] ss:$2 sm:$0xff]
    %s6497 = scalar_lea.vmem %s6487, 160 [#allocation4]
    %v6498 = vld [vmem:[%s6497] ss:$2 sm:$0xff]
    %s6499 = scalar_lea.vmem %s6487, 192 [#allocation4]
    %v6500 = vld [vmem:[%s6499] ss:$2 sm:$0xff]
    %s6501 = scalar_lea.vmem %s6487, 224 [#allocation4]
    %v6502 = vld [vmem:[%s6501] ss:$2 sm:$0xff]
    %s6503 = scalar_lea.vmem %s6487, 256 [#allocation4]
    %v6504 = vld [vmem:[%s6503] ss:$2 sm:$0xff]
    %s6505 = scalar_lea.vmem %s6487, 288 [#allocation4]
    %v6506 = vld [vmem:[%s6505] ss:$2 sm:$0xff]
    %s6507 = scalar_lea.vmem %s6487, 320 [#allocation4]
    %v6508 = vld [vmem:[%s6507] ss:$2 sm:$0xff]
    %s6509 = scalar_lea.vmem %s6487, 352 [#allocation4]
    %v6510 = vld [vmem:[%s6509] ss:$2 sm:$0xff]
    %s6511 = scalar_lea.vmem %s6487, 384 [#allocation4]
    %v6512 = vld [vmem:[%s6511] ss:$2 sm:$0xff]
    %s6513 = scalar_lea.vmem %s6487, 416 [#allocation4]
    %v6514 = vld [vmem:[%s6513] ss:$2 sm:$0xff]
    %s6515 = scalar_lea.vmem %s6487, 448 [#allocation4]
    %v6516 = vld [vmem:[%s6515] ss:$2 sm:$0xff]
    %s6517 = scalar_lea.vmem %s6487, 480 [#allocation4]
    %v6518 = vld [vmem:[%s6517] ss:$2 sm:$0xff]
    %s6519 = scalar_lea.vmem %s6487, 1 [#allocation4]
    %v6520 = vld [vmem:[%s6519] ss:$2 sm:$0xff]
    %s6521 = scalar_lea.vmem %s6487, 33 [#allocation4]
    %v6522 = vld [vmem:[%s6521] ss:$2 sm:$0xff]
    %s6523 = scalar_lea.vmem %s6487, 65 [#allocation4]
    %v6524 = vld [vmem:[%s6523] ss:$2 sm:$0xff]
    %s6525 = scalar_lea.vmem %s6487, 97 [#allocation4]
    %v6526 = vld [vmem:[%s6525] ss:$2 sm:$0xff]
    %s6527 = scalar_lea.vmem %s6487, 129 [#allocation4]
    %v6528 = vld [vmem:[%s6527] ss:$2 sm:$0xff]
    %s6529 = scalar_lea.vmem %s6487, 161 [#allocation4]
    %v6530 = vld [vmem:[%s6529] ss:$2 sm:$0xff]
    %s6531 = scalar_lea.vmem %s6487, 193 [#allocation4]
    %v6532 = vld [vmem:[%s6531] ss:$2 sm:$0xff]
    %s6533 = scalar_lea.vmem %s6487, 225 [#allocation4]
    %v6534 = vld [vmem:[%s6533] ss:$2 sm:$0xff]
    %s6535 = scalar_lea.vmem %s6487, 257 [#allocation4]
    %v6536 = vld [vmem:[%s6535] ss:$2 sm:$0xff]
    %s6537 = scalar_lea.vmem %s6487, 289 [#allocation4]
    %v6538 = vld [vmem:[%s6537] ss:$2 sm:$0xff]
    %s6539 = scalar_lea.vmem %s6487, 321 [#allocation4]
    %v6540 = vld [vmem:[%s6539] ss:$2 sm:$0xff]
    %s6541 = scalar_lea.vmem %s6487, 353 [#allocation4]
    %v6542 = vld [vmem:[%s6541] ss:$2 sm:$0xff]
    %s6543 = scalar_lea.vmem %s6487, 385 [#allocation4]
    %v6544 = vld [vmem:[%s6543] ss:$2 sm:$0xff]
    %s6545 = scalar_lea.vmem %s6487, 417 [#allocation4]
    %v6546 = vld [vmem:[%s6545] ss:$2 sm:$0xff]
    %s6547 = scalar_lea.vmem %s6487, 449 [#allocation4]
    %v6548 = vld [vmem:[%s6547] ss:$2 sm:$0xff]
    %s6549 = scalar_lea.vmem %s6487, 481 [#allocation4]
    %v6550 = vld [vmem:[%s6549] ss:$2 sm:$0xff]
    %v6551 = vmax.f32 %v6424, %v6456
    %v6552 = vmax.f32 %v6426, %v6458
    %v6553 = vmax.f32 %v6428, %v6460
    %v6554 = vmax.f32 %v6430, %v6462
    %v6555 = vmax.f32 %v6432, %v6464
    %v6556 = vmax.f32 %v6434, %v6466
    %v6557 = vmax.f32 %v6436, %v6468
    %v6558 = vmax.f32 %v6438, %v6470
    %v6559 = vmax.f32 %v6440, %v6472
    %v6560 = vmax.f32 %v6442, %v6474
    %v6561 = vmax.f32 %v6444, %v6476
    %v6562 = vmax.f32 %v6446, %v6478
    %v6563 = vmax.f32 %v6448, %v6480
    %v6564 = vmax.f32 %v6450, %v6482
    %v6565 = vmax.f32 %v6452, %v6484
    %v6566 = vmax.f32 %v6454, %v6486
    %v6567 = vmax.f32 %v6488, %v6520
    %v6568 = vmax.f32 %v6490, %v6522
    %v6569 = vmax.f32 %v6492, %v6524
    %v6570 = vmax.f32 %v6494, %v6526
    %v6571 = vmax.f32 %v6496, %v6528
    %v6572 = vmax.f32 %v6498, %v6530
    %v6573 = vmax.f32 %v6500, %v6532
    %v6574 = vmax.f32 %v6502, %v6534
    %v6575 = vmax.f32 %v6504, %v6536
    %v6576 = vmax.f32 %v6506, %v6538
    %v6577 = vmax.f32 %v6508, %v6540
    %v6578 = vmax.f32 %v6510, %v6542
    %v6579 = vmax.f32 %v6512, %v6544
    %v6580 = vmax.f32 %v6514, %v6546
    %v6581 = vmax.f32 %v6516, %v6548
    %v6582 = vmax.f32 %v6518, %v6550
    %v6583 = vmax.f32 %v6551, %v6567
    %v6584 = vmax.f32 %v6552, %v6568
    %v6585 = vmax.f32 %v6553, %v6569
    %v6586 = vmax.f32 %v6554, %v6570
    %v6587 = vmax.f32 %v6555, %v6571
    %v6588 = vmax.f32 %v6556, %v6572
    %v6589 = vmax.f32 %v6557, %v6573
    %v6590 = vmax.f32 %v6558, %v6574
    %v6591 = vmax.f32 %v6559, %v6575
    %v6592 = vmax.f32 %v6560, %v6576
    %v6593 = vmax.f32 %v6561, %v6577
    %v6594 = vmax.f32 %v6562, %v6578
    %v6595 = vmax.f32 %v6563, %v6579
    %v6596 = vmax.f32 %v6564, %v6580
    %v6597 = vmax.f32 %v6565, %v6581
    %v6598 = vmax.f32 %v6566, %v6582
    %6599 = vst [vmem:[#allocation5] sm:$0xff] 0.0
    %6600 = vst [vmem:[#allocation5 + $0x8] sm:$0x3] 0.0
    %6601 = vst [vmem:[#allocation5 + $0x10] sm:$0xff] 0.0
    %6602 = vst [vmem:[#allocation5 + $0x18] sm:$0x3] 0.0
    %6603 = vst [vmem:[#allocation5 + $0x20] sm:$0xff] 0.0
    %6604 = vst [vmem:[#allocation5 + $0x28] sm:$0x3] 0.0
    %6605 = vst [vmem:[#allocation5 + $0x30] sm:$0xff] 0.0
    %6606 = vst [vmem:[#allocation5 + $0x38] sm:$0x3] 0.0
    %6607 = vst [vmem:[#allocation5 + $0x40] sm:$0xff] 0.0
    %6608 = vst [vmem:[#allocation5 + $0x48] sm:$0x3] 0.0
    %6609 = vst [vmem:[#allocation5 + $0x50] sm:$0xff] 0.0
    %6610 = vst [vmem:[#allocation5 + $0x58] sm:$0x3] 0.0
    %6611 = vst [vmem:[#allocation5 + $0x60] sm:$0xff] 0.0
    %6612 = vst [vmem:[#allocation5 + $0x68] sm:$0x3] 0.0
    %6613 = vst [vmem:[#allocation5 + $0x70] sm:$0xff] 0.0
    %6614 = vst [vmem:[#allocation5 + $0x78] sm:$0x3] 0.0
    %6615 = vst [vmem:[#allocation5 + $0x80] sm:$0xff] 0.0
    %6616 = vst [vmem:[#allocation5 + $0x88] sm:$0x3] 0.0
    %6617 = vst [vmem:[#allocation5 + $0x90] sm:$0xff] 0.0
    %6618 = vst [vmem:[#allocation5 + $0x98] sm:$0x3] 0.0
    %6619 = vst [vmem:[#allocation5 + $0xa0] sm:$0xff] 0.0
    %6620 = vst [vmem:[#allocation5 + $0xa8] sm:$0x3] 0.0
    %6621 = vst [vmem:[#allocation5 + $0xb0] sm:$0xff] 0.0
    %6622 = vst [vmem:[#allocation5 + $0xb8] sm:$0x3] 0.0
    %6623 = vst [vmem:[#allocation5 + $0xc0] sm:$0xff] 0.0
    %6624 = vst [vmem:[#allocation5 + $0xc8] sm:$0x3] 0.0
    %6625 = vst [vmem:[#allocation5 + $0xd0] sm:$0xff] 0.0
    %6626 = vst [vmem:[#allocation5 + $0xd8] sm:$0x3] 0.0
    %6627 = vst [vmem:[#allocation5 + $0xe0] sm:$0xff] 0.0
    %6628 = vst [vmem:[#allocation5 + $0xe8] sm:$0x3] 0.0
    %6629 = vst [vmem:[#allocation5 + $0xf0] sm:$0xff] 0.0
    %6630 = vst [vmem:[#allocation5 + $0xf8] sm:$0x3] 0.0
    %6631 = vst [vmem:[#allocation5 + $0x100] sm:$0xff] 0.0
    %6632 = vst [vmem:[#allocation5 + $0x108] sm:$0x3] 0.0
    %6633 = vst [vmem:[#allocation5 + $0x110] sm:$0xff] 0.0
    %6634 = vst [vmem:[#allocation5 + $0x118] sm:$0x3] 0.0
    %6635 = vst [vmem:[#allocation5 + $0x120] sm:$0xff] 0.0
    %6636 = vst [vmem:[#allocation5 + $0x128] sm:$0x3] 0.0
    %6637 = vst [vmem:[#allocation5 + $0x130] sm:$0xff] 0.0
    %6638 = vst [vmem:[#allocation5 + $0x138] sm:$0x3] 0.0
    %s6639 = scalar_lea.vmem [#allocation5], 16
    %6640 = vst.msk [vmem:[%s6639 + $0x1] sm:$0xff] %vm3338, %v6583
    %6641 = vst.msk [vmem:[%s6639 + $0x11] sm:$0xff] %vm3338, %v6584
    %6642 = vst.msk [vmem:[%s6639 + $0x21] sm:$0xff] %vm3338, %v6585
    %6643 = vst.msk [vmem:[%s6639 + $0x31] sm:$0xff] %vm3338, %v6586
    %6644 = vst.msk [vmem:[%s6639 + $0x41] sm:$0xff] %vm3338, %v6587
    %6645 = vst.msk [vmem:[%s6639 + $0x51] sm:$0xff] %vm3338, %v6588
    %6646 = vst.msk [vmem:[%s6639 + $0x61] sm:$0xff] %vm3338, %v6589
    %6647 = vst.msk [vmem:[%s6639 + $0x71] sm:$0xff] %vm3338, %v6590
    %6648 = vst.msk [vmem:[%s6639 + $0xa1] sm:$0xff] %vm3338, %v6591
    %6649 = vst.msk [vmem:[%s6639 + $0xb1] sm:$0xff] %vm3338, %v6592
    %6650 = vst.msk [vmem:[%s6639 + $0xc1] sm:$0xff] %vm3338, %v6593
    %6651 = vst.msk [vmem:[%s6639 + $0xd1] sm:$0xff] %vm3338, %v6594
    %6652 = vst.msk [vmem:[%s6639 + $0xe1] sm:$0xff] %vm3338, %v6595
    %6653 = vst.msk [vmem:[%s6639 + $0xf1] sm:$0xff] %vm3338, %v6596
    %6654 = vst.msk [vmem:[%s6639 + $0x101] sm:$0xff] %vm3338, %v6597
    %6655 = vst.msk [vmem:[%s6639 + $0x111] sm:$0xff] %vm3338, %v6598
    %v6656 = vld [vmem:[#allocation5] sm:$0xff]
    %v6657 = vld [vmem:[#allocation5 + $0x10] sm:$0xff]
    %v6658 = vld [vmem:[#allocation5 + $0x20] sm:$0xff]
    %v6659 = vld [vmem:[#allocation5 + $0x30] sm:$0xff]
    %v6660 = vld [vmem:[#allocation5 + $0x40] sm:$0xff]
    %v6661 = vld [vmem:[#allocation5 + $0x50] sm:$0xff]
    %v6662 = vld [vmem:[#allocation5 + $0x60] sm:$0xff]
    %v6663 = vld [vmem:[#allocation5 + $0x70] sm:$0xff]
    %v6664 = vld [vmem:[#allocation5 + $0xa0] sm:$0xff]
    %v6665 = vld [vmem:[#allocation5 + $0xb0] sm:$0xff]
    %v6666 = vld [vmem:[#allocation5 + $0xc0] sm:$0xff]
    %v6667 = vld [vmem:[#allocation5 + $0xd0] sm:$0xff]
    %v6668 = vld [vmem:[#allocation5 + $0xe0] sm:$0xff]
    %v6669 = vld [vmem:[#allocation5 + $0xf0] sm:$0xff]
    %v6670 = vld [vmem:[#allocation5 + $0x100] sm:$0xff]
    %v6671 = vld [vmem:[#allocation5 + $0x110] sm:$0xff]
    %v6672 = vpack.c.bf16 %v6657, %v6656
    %v6673 = vpack.c.bf16 %v6659, %v6658
    %v6674 = vpack.c.bf16 %v6661, %v6660
    %v6675 = vpack.c.bf16 %v6663, %v6662
    %v6676 = vpack.c.bf16 %v6665, %v6664
    %v6677 = vpack.c.bf16 %v6667, %v6666
    %v6678 = vpack.c.bf16 %v6669, %v6668
    %v6679 = vpack.c.bf16 %v6671, %v6670
    %v6680 = vld [vmem:[#allocation5 + $0x1] sm:$0xff]
    %v6681 = vld [vmem:[#allocation5 + $0x11] sm:$0xff]
    %v6682 = vld [vmem:[#allocation5 + $0x21] sm:$0xff]
    %v6683 = vld [vmem:[#allocation5 + $0x31] sm:$0xff]
    %v6684 = vld [vmem:[#allocation5 + $0x41] sm:$0xff]
    %v6685 = vld [vmem:[#allocation5 + $0x51] sm:$0xff]
    %v6686 = vld [vmem:[#allocation5 + $0x61] sm:$0xff]
    %v6687 = vld [vmem:[#allocation5 + $0x71] sm:$0xff]
    %v6688 = vld [vmem:[#allocation5 + $0xa1] sm:$0xff]
    %v6689 = vld [vmem:[#allocation5 + $0xb1] sm:$0xff]
    %v6690 = vld [vmem:[#allocation5 + $0xc1] sm:$0xff]
    %v6691 = vld [vmem:[#allocation5 + $0xd1] sm:$0xff]
    %v6692 = vld [vmem:[#allocation5 + $0xe1] sm:$0xff]
    %v6693 = vld [vmem:[#allocation5 + $0xf1] sm:$0xff]
    %v6694 = vld [vmem:[#allocation5 + $0x101] sm:$0xff]
    %v6695 = vld [vmem:[#allocation5 + $0x111] sm:$0xff]
    %v6696 = vpack.c.bf16 %v6681, %v6680
    %v6697 = vpack.c.bf16 %v6683, %v6682
    %v6698 = vpack.c.bf16 %v6685, %v6684
    %v6699 = vpack.c.bf16 %v6687, %v6686
    %v6700 = vpack.c.bf16 %v6689, %v6688
    %v6701 = vpack.c.bf16 %v6691, %v6690
    %v6702 = vpack.c.bf16 %v6693, %v6692
    %v6703 = vpack.c.bf16 %v6695, %v6694
    %v6704 = vld [vmem:[#allocation5 + $0x2] sm:$0xff]
    %v6705 = vld [vmem:[#allocation5 + $0x12] sm:$0xff]
    %v6706 = vld [vmem:[#allocation5 + $0x22] sm:$0xff]
    %v6707 = vld [vmem:[#allocation5 + $0x32] sm:$0xff]
    %v6708 = vld [vmem:[#allocation5 + $0x42] sm:$0xff]
    %v6709 = vld [vmem:[#allocation5 + $0x52] sm:$0xff]
    %v6710 = vld [vmem:[#allocation5 + $0x62] sm:$0xff]
    %v6711 = vld [vmem:[#allocation5 + $0x72] sm:$0xff]
    %v6712 = vld [vmem:[#allocation5 + $0xa2] sm:$0xff]
    %v6713 = vld [vmem:[#allocation5 + $0xb2] sm:$0xff]
    %v6714 = vld [vmem:[#allocation5 + $0xc2] sm:$0xff]
    %v6715 = vld [vmem:[#allocation5 + $0xd2] sm:$0xff]
    %v6716 = vld [vmem:[#allocation5 + $0xe2] sm:$0xff]
    %v6717 = vld [vmem:[#allocation5 + $0xf2] sm:$0xff]
    %v6718 = vld [vmem:[#allocation5 + $0x102] sm:$0xff]
    %v6719 = vld [vmem:[#allocation5 + $0x112] sm:$0xff]
    %v6720 = vpack.c.bf16 %v6705, %v6704
    %v6721 = vpack.c.bf16 %v6707, %v6706
    %v6722 = vpack.c.bf16 %v6709, %v6708
    %v6723 = vpack.c.bf16 %v6711, %v6710
    %v6724 = vpack.c.bf16 %v6713, %v6712
    %v6725 = vpack.c.bf16 %v6715, %v6714
    %v6726 = vpack.c.bf16 %v6717, %v6716
    %v6727 = vpack.c.bf16 %v6719, %v6718
    %v6728 = vld [vmem:[%s6639] sm:$0xff]
    %v6729 = vld [vmem:[%s6639 + $0x10] sm:$0xff]
    %v6730 = vld [vmem:[%s6639 + $0x20] sm:$0xff]
    %v6731 = vld [vmem:[%s6639 + $0x30] sm:$0xff]
    %v6732 = vld [vmem:[%s6639 + $0x40] sm:$0xff]
    %v6733 = vld [vmem:[%s6639 + $0x50] sm:$0xff]
    %v6734 = vld [vmem:[%s6639 + $0x60] sm:$0xff]
    %v6735 = vld [vmem:[%s6639 + $0x70] sm:$0xff]
    %v6736 = vld [vmem:[%s6639 + $0xa0] sm:$0xff]
    %v6737 = vld [vmem:[%s6639 + $0xb0] sm:$0xff]
    %v6738 = vld [vmem:[%s6639 + $0xc0] sm:$0xff]
    %v6739 = vld [vmem:[%s6639 + $0xd0] sm:$0xff]
    %v6740 = vld [vmem:[%s6639 + $0xe0] sm:$0xff]
    %v6741 = vld [vmem:[%s6639 + $0xf0] sm:$0xff]
    %v6742 = vld [vmem:[%s6639 + $0x100] sm:$0xff]
    %v6743 = vld [vmem:[%s6639 + $0x110] sm:$0xff]
    %v6744 = vpack.c.bf16 %v6729, %v6728
    %v6745 = vpack.c.bf16 %v6731, %v6730
    %v6746 = vpack.c.bf16 %v6733, %v6732
    %v6747 = vpack.c.bf16 %v6735, %v6734
    %v6748 = vpack.c.bf16 %v6737, %v6736
    %v6749 = vpack.c.bf16 %v6739, %v6738
    %v6750 = vpack.c.bf16 %v6741, %v6740
    %v6751 = vpack.c.bf16 %v6743, %v6742
    %v6752 = vld [vmem:[%s6639 + $0x1] sm:$0xff]
    %v6753 = vld [vmem:[%s6639 + $0x11] sm:$0xff]
    %v6754 = vld [vmem:[%s6639 + $0x21] sm:$0xff]
    %v6755 = vld [vmem:[%s6639 + $0x31] sm:$0xff]
    %v6756 = vld [vmem:[%s6639 + $0x41] sm:$0xff]
    %v6757 = vld [vmem:[%s6639 + $0x51] sm:$0xff]
    %v6758 = vld [vmem:[%s6639 + $0x61] sm:$0xff]
    %v6759 = vld [vmem:[%s6639 + $0x71] sm:$0xff]
    %v6760 = vld [vmem:[%s6639 + $0xa1] sm:$0xff]
    %v6761 = vld [vmem:[%s6639 + $0xb1] sm:$0xff]
    %v6762 = vld [vmem:[%s6639 + $0xc1] sm:$0xff]
    %v6763 = vld [vmem:[%s6639 + $0xd1] sm:$0xff]
    %v6764 = vld [vmem:[%s6639 + $0xe1] sm:$0xff]
    %v6765 = vld [vmem:[%s6639 + $0xf1] sm:$0xff]
    %v6766 = vld [vmem:[%s6639 + $0x101] sm:$0xff]
    %v6767 = vld [vmem:[%s6639 + $0x111] sm:$0xff]
    %v6768 = vpack.c.bf16 %v6753, %v6752
    %v6769 = vpack.c.bf16 %v6755, %v6754
    %v6770 = vpack.c.bf16 %v6757, %v6756
    %v6771 = vpack.c.bf16 %v6759, %v6758
    %v6772 = vpack.c.bf16 %v6761, %v6760
    %v6773 = vpack.c.bf16 %v6763, %v6762
    %v6774 = vpack.c.bf16 %v6765, %v6764
    %v6775 = vpack.c.bf16 %v6767, %v6766
    %v6776 = vld [vmem:[%s6639 + $0x2] sm:$0xff]
    %v6777 = vld [vmem:[%s6639 + $0x12] sm:$0xff]
    %v6778 = vld [vmem:[%s6639 + $0x22] sm:$0xff]
    %v6779 = vld [vmem:[%s6639 + $0x32] sm:$0xff]
    %v6780 = vld [vmem:[%s6639 + $0x42] sm:$0xff]
    %v6781 = vld [vmem:[%s6639 + $0x52] sm:$0xff]
    %v6782 = vld [vmem:[%s6639 + $0x62] sm:$0xff]
    %v6783 = vld [vmem:[%s6639 + $0x72] sm:$0xff]
    %v6784 = vld [vmem:[%s6639 + $0xa2] sm:$0xff]
    %v6785 = vld [vmem:[%s6639 + $0xb2] sm:$0xff]
    %v6786 = vld [vmem:[%s6639 + $0xc2] sm:$0xff]
    %v6787 = vld [vmem:[%s6639 + $0xd2] sm:$0xff]
    %v6788 = vld [vmem:[%s6639 + $0xe2] sm:$0xff]
    %v6789 = vld [vmem:[%s6639 + $0xf2] sm:$0xff]
    %v6790 = vld [vmem:[%s6639 + $0x102] sm:$0xff]
    %v6791 = vld [vmem:[%s6639 + $0x112] sm:$0xff]
    %v6792 = vpack.c.bf16 %v6777, %v6776
    %v6793 = vpack.c.bf16 %v6779, %v6778
    %v6794 = vpack.c.bf16 %v6781, %v6780
    %v6795 = vpack.c.bf16 %v6783, %v6782
    %v6796 = vpack.c.bf16 %v6785, %v6784
    %v6797 = vpack.c.bf16 %v6787, %v6786
    %v6798 = vpack.c.bf16 %v6789, %v6788
    %v6799 = vpack.c.bf16 %v6791, %v6790
    %s6800 = scalar_lea.vmem [#allocation5], 32
    %v6801 = vld [vmem:[%s6800] sm:$0xff]
    %v6802 = vld [vmem:[%s6800 + $0x10] sm:$0xff]
    %v6803 = vld [vmem:[%s6800 + $0x20] sm:$0xff]
    %v6804 = vld [vmem:[%s6800 + $0x30] sm:$0xff]
    %v6805 = vld [vmem:[%s6800 + $0x40] sm:$0xff]
    %v6806 = vld [vmem:[%s6800 + $0x50] sm:$0xff]
    %v6807 = vld [vmem:[%s6800 + $0x60] sm:$0xff]
    %v6808 = vld [vmem:[%s6800 + $0x70] sm:$0xff]
    %v6809 = vld [vmem:[%s6800 + $0xa0] sm:$0xff]
    %v6810 = vld [vmem:[%s6800 + $0xb0] sm:$0xff]
    %v6811 = vld [vmem:[%s6800 + $0xc0] sm:$0xff]
    %v6812 = vld [vmem:[%s6800 + $0xd0] sm:$0xff]
    %v6813 = vld [vmem:[%s6800 + $0xe0] sm:$0xff]
    %v6814 = vld [vmem:[%s6800 + $0xf0] sm:$0xff]
    %v6815 = vld [vmem:[%s6800 + $0x100] sm:$0xff]
    %v6816 = vld [vmem:[%s6800 + $0x110] sm:$0xff]
    %v6817 = vpack.c.bf16 %v6802, %v6801
    %v6818 = vpack.c.bf16 %v6804, %v6803
    %v6819 = vpack.c.bf16 %v6806, %v6805
    %v6820 = vpack.c.bf16 %v6808, %v6807
    %v6821 = vpack.c.bf16 %v6810, %v6809
    %v6822 = vpack.c.bf16 %v6812, %v6811
    %v6823 = vpack.c.bf16 %v6814, %v6813
    %v6824 = vpack.c.bf16 %v6816, %v6815
    %v6825 = vld [vmem:[%s6800 + $0x1] sm:$0xff]
    %v6826 = vld [vmem:[%s6800 + $0x11] sm:$0xff]
    %v6827 = vld [vmem:[%s6800 + $0x21] sm:$0xff]
    %v6828 = vld [vmem:[%s6800 + $0x31] sm:$0xff]
    %v6829 = vld [vmem:[%s6800 + $0x41] sm:$0xff]
    %v6830 = vld [vmem:[%s6800 + $0x51] sm:$0xff]
    %v6831 = vld [vmem:[%s6800 + $0x61] sm:$0xff]
    %v6832 = vld [vmem:[%s6800 + $0x71] sm:$0xff]
    %v6833 = vld [vmem:[%s6800 + $0xa1] sm:$0xff]
    %v6834 = vld [vmem:[%s6800 + $0xb1] sm:$0xff]
    %v6835 = vld [vmem:[%s6800 + $0xc1] sm:$0xff]
    %v6836 = vld [vmem:[%s6800 + $0xd1] sm:$0xff]
    %v6837 = vld [vmem:[%s6800 + $0xe1] sm:$0xff]
    %v6838 = vld [vmem:[%s6800 + $0xf1] sm:$0xff]
    %v6839 = vld [vmem:[%s6800 + $0x101] sm:$0xff]
    %v6840 = vld [vmem:[%s6800 + $0x111] sm:$0xff]
    %v6841 = vpack.c.bf16 %v6826, %v6825
    %v6842 = vpack.c.bf16 %v6828, %v6827
    %v6843 = vpack.c.bf16 %v6830, %v6829
    %v6844 = vpack.c.bf16 %v6832, %v6831
    %v6845 = vpack.c.bf16 %v6834, %v6833
    %v6846 = vpack.c.bf16 %v6836, %v6835
    %v6847 = vpack.c.bf16 %v6838, %v6837
    %v6848 = vpack.c.bf16 %v6840, %v6839
    %v6849 = vld [vmem:[%s6800 + $0x2] sm:$0xff]
    %v6850 = vld [vmem:[%s6800 + $0x12] sm:$0xff]
    %v6851 = vld [vmem:[%s6800 + $0x22] sm:$0xff]
    %v6852 = vld [vmem:[%s6800 + $0x32] sm:$0xff]
    %v6853 = vld [vmem:[%s6800 + $0x42] sm:$0xff]
    %v6854 = vld [vmem:[%s6800 + $0x52] sm:$0xff]
    %v6855 = vld [vmem:[%s6800 + $0x62] sm:$0xff]
    %v6856 = vld [vmem:[%s6800 + $0x72] sm:$0xff]
    %v6857 = vld [vmem:[%s6800 + $0xa2] sm:$0xff]
    %v6858 = vld [vmem:[%s6800 + $0xb2] sm:$0xff]
    %v6859 = vld [vmem:[%s6800 + $0xc2] sm:$0xff]
    %v6860 = vld [vmem:[%s6800 + $0xd2] sm:$0xff]
    %v6861 = vld [vmem:[%s6800 + $0xe2] sm:$0xff]
    %v6862 = vld [vmem:[%s6800 + $0xf2] sm:$0xff]
    %v6863 = vld [vmem:[%s6800 + $0x102] sm:$0xff]
    %v6864 = vld [vmem:[%s6800 + $0x112] sm:$0xff]
    %v6865 = vpack.c.bf16 %v6850, %v6849
    %v6866 = vpack.c.bf16 %v6852, %v6851
    %v6867 = vpack.c.bf16 %v6854, %v6853
    %v6868 = vpack.c.bf16 %v6856, %v6855
    %v6869 = vpack.c.bf16 %v6858, %v6857
    %v6870 = vpack.c.bf16 %v6860, %v6859
    %v6871 = vpack.c.bf16 %v6862, %v6861
    %v6872 = vpack.c.bf16 %v6864, %v6863
    %v6873 = vld [vmem:[%s5] sm:$0xf]
    %v6874 = vld [vmem:[%s5 + $0x4] sm:$0xf]
    %v6875 = vld [vmem:[%s5 + $0x8] sm:$0xf]
    %v6876 = vld [vmem:[%s5 + $0xc] sm:$0xf]
    %v6877 = vld [vmem:[%s5 + $0x10] sm:$0xf]
    %v6878 = vld [vmem:[%s5 + $0x14] sm:$0xf]
    %v6879 = vld [vmem:[%s5 + $0x18] sm:$0xf]
    %v6880 = vld [vmem:[%s5 + $0x1c] sm:$0xf]
    %v6881 = vld [vmem:[%s5 + $0x20] sm:$0xf]
    %v6882 = vld [vmem:[%s5 + $0x24] sm:$0xf]
    %v6883 = vld [vmem:[%s5 + $0x28] sm:$0xf]
    %v6884 = vld [vmem:[%s5 + $0x2c] sm:$0xf]
    %v6885 = vld [vmem:[%s5 + $0x30] sm:$0xf]
    %v6886 = vld [vmem:[%s5 + $0x34] sm:$0xf]
    %v6887 = vld [vmem:[%s5 + $0x38] sm:$0xf]
    %v6888 = vld [vmem:[%s5 + $0x3c] sm:$0xf]
    %v6889 = vld [vmem:[%s5 + $0x40] sm:$0xf]
    %v6890 = vld [vmem:[%s5 + $0x44] sm:$0xf]
    %v6891 = vld [vmem:[%s5 + $0x48] sm:$0xf]
    %v6892 = vld [vmem:[%s5 + $0x4c] sm:$0xf]
    %v6893 = vld [vmem:[%s5 + $0x50] sm:$0xf]
    %v6894 = vld [vmem:[%s5 + $0x54] sm:$0xf]
    %v6895 = vld [vmem:[%s5 + $0x58] sm:$0xf]
    %v6896 = vld [vmem:[%s5 + $0x5c] sm:$0xf]
    %v6897 = vld [vmem:[%s5 + $0x60] sm:$0xf]
    %v6898 = vld [vmem:[%s5 + $0x64] sm:$0xf]
    %v6899 = vld [vmem:[%s5 + $0x68] sm:$0xf]
    %v6900 = vld [vmem:[%s5 + $0x6c] sm:$0xf]
    %v6901 = vld [vmem:[%s5 + $0x70] sm:$0xf]
    %v6902 = vld [vmem:[%s5 + $0x74] sm:$0xf]
    %v6903 = vld [vmem:[%s5 + $0x78] sm:$0xf]
    %v6904 = vld [vmem:[%s5 + $0x7c] sm:$0xf]
    %v6905 = vld [vmem:[%s5 + $0x80] sm:$0xf]
    %v6906 = vld [vmem:[%s5 + $0x84] sm:$0xf]
    %v6907 = vld [vmem:[%s5 + $0x88] sm:$0xf]
    %v6908 = vld [vmem:[%s5 + $0x8c] sm:$0xf]
    %v6909 = vld [vmem:[%s5 + $0x90] sm:$0xf]
    %v6910 = vld [vmem:[%s5 + $0x94] sm:$0xf]
    %v6911 = vld [vmem:[%s5 + $0x98] sm:$0xf]
    %v6912 = vld [vmem:[%s5 + $0x9c] sm:$0xf]
    %v6913 = vld [vmem:[%s5 + $0xa0] sm:$0xf]
    %v6914 = vld [vmem:[%s5 + $0xa4] sm:$0xf]
    %v6915 = vld [vmem:[%s5 + $0xa8] sm:$0xf]
    %v6916 = vld [vmem:[%s5 + $0xac] sm:$0xf]
    %v6917 = vld [vmem:[%s5 + $0xb0] sm:$0xf]
    %v6918 = vld [vmem:[%s5 + $0xb4] sm:$0xf]
    %v6919 = vld [vmem:[%s5 + $0xb8] sm:$0xf]
    %v6920 = vld [vmem:[%s5 + $0xbc] sm:$0xf]
    %v6921 = vld [vmem:[%s5 + $0xc0] sm:$0xf]
    %v6922 = vld [vmem:[%s5 + $0xc4] sm:$0xf]
    %v6923 = vld [vmem:[%s5 + $0xc8] sm:$0xf]
    %v6924 = vld [vmem:[%s5 + $0xcc] sm:$0xf]
    %v6925 = vld [vmem:[%s5 + $0xd0] sm:$0xf]
    %v6926 = vld [vmem:[%s5 + $0xd4] sm:$0xf]
    %v6927 = vld [vmem:[%s5 + $0xd8] sm:$0xf]
    %v6928 = vld [vmem:[%s5 + $0xdc] sm:$0xf]
    %v6929 = vld [vmem:[%s5 + $0xe0] sm:$0xf]
    %v6930 = vld [vmem:[%s5 + $0xe4] sm:$0xf]
    %v6931 = vld [vmem:[%s5 + $0xe8] sm:$0xf]
    %v6932 = vld [vmem:[%s5 + $0xec] sm:$0xf]
    %v6933 = vld [vmem:[%s5 + $0xf0] sm:$0xf]
    %v6934 = vld [vmem:[%s5 + $0xf4] sm:$0xf]
    %v6935 = vld [vmem:[%s5 + $0xf8] sm:$0xf]
    %v6936 = vld [vmem:[%s5 + $0xfc] sm:$0xf]
    %v6937 = vld [vmem:[%s5 + $0x100] sm:$0xf]
    %v6938 = vld [vmem:[%s5 + $0x104] sm:$0xf]
    %v6939 = vld [vmem:[%s5 + $0x108] sm:$0xf]
    %v6940 = vld [vmem:[%s5 + $0x10c] sm:$0xf]
    %v6941 = vld [vmem:[%s5 + $0x110] sm:$0xf]
    %v6942 = vld [vmem:[%s5 + $0x114] sm:$0xf]
    %v6943 = vld [vmem:[%s5 + $0x118] sm:$0xf]
    %v6944 = vld [vmem:[%s5 + $0x11c] sm:$0xf]
    %v6945 = vld [vmem:[%s5 + $0x120] sm:$0xf]
    %v6946 = vld [vmem:[%s5 + $0x124] sm:$0xf]
    %v6947 = vld [vmem:[%s5 + $0x128] sm:$0xf]
    %v6948 = vld [vmem:[%s5 + $0x12c] sm:$0xf]
    %v6949 = vld [vmem:[%s5 + $0x130] sm:$0xf]
    %v6950 = vld [vmem:[%s5 + $0x134] sm:$0xf]
    %v6951 = vld [vmem:[%s5 + $0x138] sm:$0xf]
    %v6952 = vld [vmem:[%s5 + $0x13c] sm:$0xf]
    %v6953 = vld [vmem:[%s5 + $0x140] sm:$0xf]
    %v6954 = vld [vmem:[%s5 + $0x144] sm:$0xf]
    %v6955 = vld [vmem:[%s5 + $0x148] sm:$0xf]
    %v6956 = vld [vmem:[%s5 + $0x14c] sm:$0xf]
    %v6957 = vld [vmem:[%s5 + $0x150] sm:$0xf]
    %v6958 = vld [vmem:[%s5 + $0x154] sm:$0xf]
    %v6959 = vld [vmem:[%s5 + $0x158] sm:$0xf]
    %v6960 = vld [vmem:[%s5 + $0x15c] sm:$0xf]
    %v6961 = vld [vmem:[%s5 + $0x160] sm:$0xf]
    %v6962 = vld [vmem:[%s5 + $0x164] sm:$0xf]
    %v6963 = vld [vmem:[%s5 + $0x168] sm:$0xf]
    %v6964 = vld [vmem:[%s5 + $0x16c] sm:$0xf]
    %v6965 = vld [vmem:[%s5 + $0x170] sm:$0xf]
    %v6966 = vld [vmem:[%s5 + $0x174] sm:$0xf]
    %v6967 = vld [vmem:[%s5 + $0x178] sm:$0xf]
    %v6968 = vld [vmem:[%s5 + $0x17c] sm:$0xf]
    %v6969 = vld [vmem:[%s5 + $0x180] sm:$0xf]
    %v6970 = vld [vmem:[%s5 + $0x184] sm:$0xf]
    %v6971 = vld [vmem:[%s5 + $0x188] sm:$0xf]
    %v6972 = vld [vmem:[%s5 + $0x18c] sm:$0xf]
    %v6973 = vld [vmem:[%s5 + $0x190] sm:$0xf]
    %v6974 = vld [vmem:[%s5 + $0x194] sm:$0xf]
    %v6975 = vld [vmem:[%s5 + $0x198] sm:$0xf]
    %v6976 = vld [vmem:[%s5 + $0x19c] sm:$0xf]
    %v6977 = vld [vmem:[%s5 + $0x1a0] sm:$0xf]
    %v6978 = vld [vmem:[%s5 + $0x1a4] sm:$0xf]
    %v6979 = vld [vmem:[%s5 + $0x1a8] sm:$0xf]
    %v6980 = vld [vmem:[%s5 + $0x1ac] sm:$0xf]
    %v6981 = vld [vmem:[%s5 + $0x1b0] sm:$0xf]
    %v6982 = vld [vmem:[%s5 + $0x1b4] sm:$0xf]
    %v6983 = vld [vmem:[%s5 + $0x1b8] sm:$0xf]
    %v6984 = vld [vmem:[%s5 + $0x1bc] sm:$0xf]
    %v6985 = vld [vmem:[%s5 + $0x1c0] sm:$0xf]
    %v6986 = vld [vmem:[%s5 + $0x1c4] sm:$0xf]
    %v6987 = vld [vmem:[%s5 + $0x1c8] sm:$0xf]
    %v6988 = vld [vmem:[%s5 + $0x1cc] sm:$0xf]
    %v6989 = vld [vmem:[%s5 + $0x1d0] sm:$0xf]
    %v6990 = vld [vmem:[%s5 + $0x1d4] sm:$0xf]
    %v6991 = vld [vmem:[%s5 + $0x1d8] sm:$0xf]
    %v6992 = vld [vmem:[%s5 + $0x1dc] sm:$0xf]
    %v6993 = vld [vmem:[%s5 + $0x1e0] sm:$0xf]
    %v6994 = vld [vmem:[%s5 + $0x1e4] sm:$0xf]
    %v6995 = vld [vmem:[%s5 + $0x1e8] sm:$0xf]
    %v6996 = vld [vmem:[%s5 + $0x1ec] sm:$0xf]
    %v6997 = vld [vmem:[%s5 + $0x1f0] sm:$0xf]
    %v6998 = vld [vmem:[%s5 + $0x1f4] sm:$0xf]
    %v6999 = vld [vmem:[%s5 + $0x1f8] sm:$0xf]
    %v7000 = vld [vmem:[%s5 + $0x1fc] sm:$0xf]
    %v7001 = vld [vmem:[%s5 + $0x200] sm:$0xf]
    %v7002 = vld [vmem:[%s5 + $0x204] sm:$0xf]
    %v7003 = vld [vmem:[%s5 + $0x208] sm:$0xf]
    %v7004 = vld [vmem:[%s5 + $0x20c] sm:$0xf]
    %v7005 = vld [vmem:[%s5 + $0x210] sm:$0xf]
    %v7006 = vld [vmem:[%s5 + $0x214] sm:$0xf]
    %v7007 = vld [vmem:[%s5 + $0x218] sm:$0xf]
    %v7008 = vld [vmem:[%s5 + $0x21c] sm:$0xf]
    %v7009 = vld [vmem:[%s5 + $0x220] sm:$0xf]
    %v7010 = vld [vmem:[%s5 + $0x224] sm:$0xf]
    %v7011 = vld [vmem:[%s5 + $0x228] sm:$0xf]
    %v7012 = vld [vmem:[%s5 + $0x22c] sm:$0xf]
    %v7013 = vld [vmem:[%s5 + $0x230] sm:$0xf]
    %v7014 = vld [vmem:[%s5 + $0x234] sm:$0xf]
    %v7015 = vld [vmem:[%s5 + $0x238] sm:$0xf]
    %v7016 = vld [vmem:[%s5 + $0x23c] sm:$0xf]
    %v7017 = vld [vmem:[%s6] sm:$0x1]
    %v7019 = vlaneseq
    %v7020 = vshrl.u32 %v7019, 7
    %v7021 = vsub.s32 0, %v7020
    %v7022 = vrot.slane %v7017, %v7021
    %v7168 = vunpack.c.l.b16 %v6873
    %v7169 = vunpack.c.l.b16 %v6874
    %v7170 = vunpack.c.l.b16 %v6875
    %v7171 = vunpack.c.l.b16 %v6876
    %v7172 = vunpack.c.l.b16 %v6877
    %v7173 = vunpack.c.l.b16 %v6878
    %v7174 = vunpack.c.l.b16 %v6879
    %v7175 = vunpack.c.l.b16 %v6880
    %v7176 = vunpack.c.l.b16 %v6881
    %v7177 = vunpack.c.l.b16 %v6882
    %v7178 = vunpack.c.l.b16 %v6883
    %v7179 = vunpack.c.l.b16 %v6884
    %v7180 = vunpack.c.l.b16 %v6885
    %v7181 = vunpack.c.l.b16 %v6886
    %v7182 = vunpack.c.l.b16 %v6887
    %v7183 = vunpack.c.l.b16 %v6888
    %v7184 = vunpack.c.l.b16 %v6889
    %v7185 = vunpack.c.l.b16 %v6890
    %v7186 = vunpack.c.l.b16 %v6891
    %v7187 = vunpack.c.l.b16 %v6892
    %v7188 = vunpack.c.l.b16 %v6893
    %v7189 = vunpack.c.l.b16 %v6894
    %v7190 = vunpack.c.l.b16 %v6895
    %v7191 = vunpack.c.l.b16 %v6896
    %v7192 = vunpack.c.l.b16 %v6897
    %v7193 = vunpack.c.l.b16 %v6898
    %v7194 = vunpack.c.l.b16 %v6899
    %v7195 = vunpack.c.l.b16 %v6900
    %v7196 = vunpack.c.l.b16 %v6901
    %v7197 = vunpack.c.l.b16 %v6902
    %v7198 = vunpack.c.l.b16 %v6903
    %v7199 = vunpack.c.l.b16 %v6904
    %v7200 = vunpack.c.l.b16 %v6905
    %v7201 = vunpack.c.l.b16 %v6906
    %v7202 = vunpack.c.l.b16 %v6907
    %v7203 = vunpack.c.l.b16 %v6908
    %v7204 = vunpack.c.l.b16 %v6909
    %v7205 = vunpack.c.l.b16 %v6910
    %v7206 = vunpack.c.l.b16 %v6911
    %v7207 = vunpack.c.l.b16 %v6912
    %v7208 = vunpack.c.l.b16 %v6913
    %v7209 = vunpack.c.l.b16 %v6914
    %v7210 = vunpack.c.l.b16 %v6915
    %v7211 = vunpack.c.l.b16 %v6916
    %v7212 = vunpack.c.l.b16 %v6917
    %v7213 = vunpack.c.l.b16 %v6918
    %v7214 = vunpack.c.l.b16 %v6919
    %v7215 = vunpack.c.l.b16 %v6920
    %v7216 = vunpack.c.l.b16 %v6921
    %v7217 = vunpack.c.l.b16 %v6922
    %v7218 = vunpack.c.l.b16 %v6923
    %v7219 = vunpack.c.l.b16 %v6924
    %v7220 = vunpack.c.l.b16 %v6925
    %v7221 = vunpack.c.l.b16 %v6926
    %v7222 = vunpack.c.l.b16 %v6927
    %v7223 = vunpack.c.l.b16 %v6928
    %v7224 = vunpack.c.l.b16 %v6929
    %v7225 = vunpack.c.l.b16 %v6930
    %v7226 = vunpack.c.l.b16 %v6931
    %v7227 = vunpack.c.l.b16 %v6932
    %v7228 = vunpack.c.l.b16 %v6933
    %v7229 = vunpack.c.l.b16 %v6934
    %v7230 = vunpack.c.l.b16 %v6935
    %v7231 = vunpack.c.l.b16 %v6936
    %v7232 = vunpack.c.l.b16 %v6937
    %v7233 = vunpack.c.l.b16 %v6938
    %v7234 = vunpack.c.l.b16 %v6939
    %v7235 = vunpack.c.l.b16 %v6940
    %v7236 = vunpack.c.l.b16 %v6941
    %v7237 = vunpack.c.l.b16 %v6942
    %v7238 = vunpack.c.l.b16 %v6943
    %v7239 = vunpack.c.l.b16 %v6944
    %v7240 = vunpack.c.l.b16 %v6945
    %v7241 = vunpack.c.l.b16 %v6946
    %v7242 = vunpack.c.l.b16 %v6947
    %v7243 = vunpack.c.l.b16 %v6948
    %v7244 = vunpack.c.l.b16 %v6949
    %v7245 = vunpack.c.l.b16 %v6950
    %v7246 = vunpack.c.l.b16 %v6951
    %v7247 = vunpack.c.l.b16 %v6952
    %v7248 = vunpack.c.l.b16 %v6953
    %v7249 = vunpack.c.l.b16 %v6954
    %v7250 = vunpack.c.l.b16 %v6955
    %v7251 = vunpack.c.l.b16 %v6956
    %v7252 = vunpack.c.l.b16 %v6957
    %v7253 = vunpack.c.l.b16 %v6958
    %v7254 = vunpack.c.l.b16 %v6959
    %v7255 = vunpack.c.l.b16 %v6960
    %v7256 = vunpack.c.l.b16 %v6961
    %v7257 = vunpack.c.l.b16 %v6962
    %v7258 = vunpack.c.l.b16 %v6963
    %v7259 = vunpack.c.l.b16 %v6964
    %v7260 = vunpack.c.l.b16 %v6965
    %v7261 = vunpack.c.l.b16 %v6966
    %v7262 = vunpack.c.l.b16 %v6967
    %v7263 = vunpack.c.l.b16 %v6968
    %v7264 = vunpack.c.l.b16 %v6969
    %v7265 = vunpack.c.l.b16 %v6970
    %v7266 = vunpack.c.l.b16 %v6971
    %v7267 = vunpack.c.l.b16 %v6972
    %v7268 = vunpack.c.l.b16 %v6973
    %v7269 = vunpack.c.l.b16 %v6974
    %v7270 = vunpack.c.l.b16 %v6975
    %v7271 = vunpack.c.l.b16 %v6976
    %v7272 = vunpack.c.l.b16 %v6977
    %v7273 = vunpack.c.l.b16 %v6978
    %v7274 = vunpack.c.l.b16 %v6979
    %v7275 = vunpack.c.l.b16 %v6980
    %v7276 = vunpack.c.l.b16 %v6981
    %v7277 = vunpack.c.l.b16 %v6982
    %v7278 = vunpack.c.l.b16 %v6983
    %v7279 = vunpack.c.l.b16 %v6984
    %v7280 = vunpack.c.l.b16 %v6985
    %v7281 = vunpack.c.l.b16 %v6986
    %v7282 = vunpack.c.l.b16 %v6987
    %v7283 = vunpack.c.l.b16 %v6988
    %v7284 = vunpack.c.l.b16 %v6989
    %v7285 = vunpack.c.l.b16 %v6990
    %v7286 = vunpack.c.l.b16 %v6991
    %v7287 = vunpack.c.l.b16 %v6992
    %v7288 = vunpack.c.l.b16 %v6993
    %v7289 = vunpack.c.l.b16 %v6994
    %v7290 = vunpack.c.l.b16 %v6995
    %v7291 = vunpack.c.l.b16 %v6996
    %v7292 = vunpack.c.l.b16 %v6997
    %v7293 = vunpack.c.l.b16 %v6998
    %v7294 = vunpack.c.l.b16 %v6999
    %v7295 = vunpack.c.l.b16 %v7000
    %v7296 = vunpack.c.l.b16 %v7001
    %v7297 = vunpack.c.l.b16 %v7002
    %v7298 = vunpack.c.l.b16 %v7003
    %v7299 = vunpack.c.l.b16 %v7004
    %v7300 = vunpack.c.l.b16 %v7005
    %v7301 = vunpack.c.l.b16 %v7006
    %v7302 = vunpack.c.l.b16 %v7007
    %v7303 = vunpack.c.l.b16 %v7008
    %v7304 = vunpack.c.l.b16 %v7009
    %v7305 = vunpack.c.l.b16 %v7010
    %v7306 = vunpack.c.l.b16 %v7011
    %v7307 = vunpack.c.l.b16 %v7012
    %v7308 = vunpack.c.l.b16 %v7013
    %v7309 = vunpack.c.l.b16 %v7014
    %v7310 = vunpack.c.l.b16 %v7015
    %v7311 = vunpack.c.l.b16 %v7016
    %v7312 = vpack.c.b16 %v7169, %v7168
    %v7313 = vpack.c.b16 %v7171, %v7170
    %v7314 = vpack.c.b16 %v7173, %v7172
    %v7315 = vpack.c.b16 %v7175, %v7174
    %v7316 = vpack.c.b16 %v7177, %v7176
    %v7317 = vpack.c.b16 %v7179, %v7178
    %v7318 = vpack.c.b16 %v7181, %v7180
    %v7319 = vpack.c.b16 %v7183, %v7182
    %v7320 = vpack.c.b16 %v7185, %v7184
    %v7321 = vpack.c.b16 %v7187, %v7186
    %v7322 = vpack.c.b16 %v7189, %v7188
    %v7323 = vpack.c.b16 %v7191, %v7190
    %v7324 = vpack.c.b16 %v7193, %v7192
    %v7325 = vpack.c.b16 %v7195, %v7194
    %v7326 = vpack.c.b16 %v7197, %v7196
    %v7327 = vpack.c.b16 %v7199, %v7198
    %v7328 = vpack.c.b16 %v7201, %v7200
    %v7329 = vpack.c.b16 %v7203, %v7202
    %v7330 = vpack.c.b16 %v7205, %v7204
    %v7331 = vpack.c.b16 %v7207, %v7206
    %v7332 = vpack.c.b16 %v7209, %v7208
    %v7333 = vpack.c.b16 %v7211, %v7210
    %v7334 = vpack.c.b16 %v7213, %v7212
    %v7335 = vpack.c.b16 %v7215, %v7214
    %v7336 = vpack.c.b16 %v7217, %v7216
    %v7337 = vpack.c.b16 %v7219, %v7218
    %v7338 = vpack.c.b16 %v7221, %v7220
    %v7339 = vpack.c.b16 %v7223, %v7222
    %v7340 = vpack.c.b16 %v7225, %v7224
    %v7341 = vpack.c.b16 %v7227, %v7226
    %v7342 = vpack.c.b16 %v7229, %v7228
    %v7343 = vpack.c.b16 %v7231, %v7230
    %v7344 = vpack.c.b16 %v7233, %v7232
    %v7345 = vpack.c.b16 %v7235, %v7234
    %v7346 = vpack.c.b16 %v7237, %v7236
    %v7347 = vpack.c.b16 %v7239, %v7238
    %v7348 = vpack.c.b16 %v7241, %v7240
    %v7349 = vpack.c.b16 %v7243, %v7242
    %v7350 = vpack.c.b16 %v7245, %v7244
    %v7351 = vpack.c.b16 %v7247, %v7246
    %v7352 = vpack.c.b16 %v7249, %v7248
    %v7353 = vpack.c.b16 %v7251, %v7250
    %v7354 = vpack.c.b16 %v7253, %v7252
    %v7355 = vpack.c.b16 %v7255, %v7254
    %v7356 = vpack.c.b16 %v7257, %v7256
    %v7357 = vpack.c.b16 %v7259, %v7258
    %v7358 = vpack.c.b16 %v7261, %v7260
    %v7359 = vpack.c.b16 %v7263, %v7262
    %v7360 = vpack.c.b16 %v7265, %v7264
    %v7361 = vpack.c.b16 %v7267, %v7266
    %v7362 = vpack.c.b16 %v7269, %v7268
    %v7363 = vpack.c.b16 %v7271, %v7270
    %v7364 = vpack.c.b16 %v7273, %v7272
    %v7365 = vpack.c.b16 %v7275, %v7274
    %v7366 = vpack.c.b16 %v7277, %v7276
    %v7367 = vpack.c.b16 %v7279, %v7278
    %v7368 = vpack.c.b16 %v7281, %v7280
    %v7369 = vpack.c.b16 %v7283, %v7282
    %v7370 = vpack.c.b16 %v7285, %v7284
    %v7371 = vpack.c.b16 %v7287, %v7286
    %v7372 = vpack.c.b16 %v7289, %v7288
    %v7373 = vpack.c.b16 %v7291, %v7290
    %v7374 = vpack.c.b16 %v7293, %v7292
    %v7375 = vpack.c.b16 %v7295, %v7294
    %v7376 = vpack.c.b16 %v7297, %v7296
    %v7377 = vpack.c.b16 %v7299, %v7298
    %v7378 = vpack.c.b16 %v7301, %v7300
    %v7379 = vpack.c.b16 %v7303, %v7302
    %v7380 = vpack.c.b16 %v7305, %v7304
    %v7381 = vpack.c.b16 %v7307, %v7306
    %v7382 = vpack.c.b16 %v7309, %v7308
    %v7383 = vpack.c.b16 %v7311, %v7310
    %7456 = vmatprep.subr.bf16.mxu0 0
    %7457 = vmatpush1.bf16.msra.mxu0 %v7312
    %7458 = vmatprep.subr.bf16.mxu0 0
    %7459 = vmatpush1.bf16.msra.mxu0 %v7313
    %7460 = vmatprep.subr.bf16.mxu0 0
    %7461 = vmatpush1.bf16.msra.mxu0 %v7314
    %7462 = vmatprep.subr.bf16.mxu0 0
    %7463 = vmatpush1.bf16.msra.mxu0 %v7315
    %7464 = vmatprep.subr.bf16.mxu0 0
    %7465 = vmatpush1.bf16.msra.mxu0 %v7316
    %7466 = vmatprep.subr.bf16.mxu0 0
    %7467 = vmatpush1.bf16.msra.mxu0 %v7317
    %7468 = vmatprep.subr.bf16.mxu0 0
    %7469 = vmatpush1.bf16.msra.mxu0 %v7318
    %7470 = vmatprep.subr.bf16.mxu0 0
    %7471 = vmatpush1.bf16.msra.mxu0 %v7319
    %7472 = vmatprep.subr.bf16.mxu0 0
    %7473 = vmatpush1.bf16.msra.mxu0 %v7320
    %7474 = vmatprep.subr.bf16.mxu0 0
    %7475 = vmatpush1.bf16.msra.mxu0 %v7321
    %7476 = vmatprep.subr.bf16.mxu0 0
    %7477 = vmatpush1.bf16.msra.mxu0 %v7322
    %7478 = vmatprep.subr.bf16.mxu0 0
    %7479 = vmatpush1.bf16.msra.mxu0 %v7323
    %7480 = vmatprep.subr.bf16.mxu0 0
    %7481 = vmatpush1.bf16.msra.mxu0 %v7324
    %7482 = vmatprep.subr.bf16.mxu0 0
    %7483 = vmatpush1.bf16.msra.mxu0 %v7325
    %7484 = vmatprep.subr.bf16.mxu0 0
    %7485 = vmatpush1.bf16.msra.mxu0 %v7326
    %7486 = vmatprep.subr.bf16.mxu0 0
    %7487 = vmatpush1.bf16.msra.mxu0 %v7327
    %7488 = vmatprep.mubr.bf16.mxu0 %v6696
    %7489 = vmatmul.mubr.bf16.gmra.mrb[0].mxu0 %v6672
    %v7490 = vpop.f32.mrb[0].mxu0
    %v7491 = vadd.f32 %v7022, %v7490
    %v7492 = vpop.f32.mrb[0].mxu0
    %v7493 = vpop.f32.mrb[0].mxu0
    %v7494 = vadd.f32 %v7022, %v7493
    %v7495 = vpop.f32.mrb[0].mxu0
    %7496 = vmatprep.mubr.bf16.mxu0 %v6697
    %7497 = vmatmul.mubr.bf16.gmra.mrb[0].mxu0 %v6673
    %v7498 = vpop.f32.mrb[0].mxu0
    %v7499 = vadd.f32 %v7022, %v7498
    %v7500 = vpop.f32.mrb[0].mxu0
    %v7501 = vpop.f32.mrb[0].mxu0
    %v7502 = vadd.f32 %v7022, %v7501
    %v7503 = vpop.f32.mrb[0].mxu0
    %7504 = vmatprep.mubr.bf16.mxu0 %v6698
    %7505 = vmatmul.mubr.bf16.gmra.mrb[0].mxu0 %v6674
    %v7506 = vpop.f32.mrb[0].mxu0
    %v7507 = vadd.f32 %v7022, %v7506
    %v7508 = vpop.f32.mrb[0].mxu0
    %v7509 = vpop.f32.mrb[0].mxu0
    %v7510 = vadd.f32 %v7022, %v7509
    %v7511 = vpop.f32.mrb[0].mxu0
    %7512 = vmatprep.mubr.bf16.mxu0 %v6699
    %7513 = vmatmul.mubr.bf16.gmra.mrb[0].mxu0 %v6675
    %v7514 = vpop.f32.mrb[0].mxu0
    %v7515 = vadd.f32 %v7022, %v7514
    %v7516 = vpop.f32.mrb[0].mxu0
    %v7517 = vpop.f32.mrb[0].mxu0
    %v7518 = vadd.f32 %v7022, %v7517
    %v7519 = vpop.f32.mrb[0].mxu0
    %7520 = vmatprep.mubr.bf16.mxu0 %v6700
    %7521 = vmatmul.mubr.bf16.gmra.mrb[0].mxu0 %v6676
    %v7522 = vpop.f32.mrb[0].mxu0
    %v7523 = vadd.f32 %v7022, %v7522
    %v7524 = vpop.f32.mrb[0].mxu0
    %v7525 = vpop.f32.mrb[0].mxu0
    %v7526 = vadd.f32 %v7022, %v7525
    %v7527 = vpop.f32.mrb[0].mxu0
    %7528 = vmatprep.mubr.bf16.mxu0 %v6701
    %7529 = vmatmul.mubr.bf16.gmra.mrb[0].mxu0 %v6677
    %v7530 = vpop.f32.mrb[0].mxu0
    %v7531 = vadd.f32 %v7022, %v7530
    %v7532 = vpop.f32.mrb[0].mxu0
    %v7533 = vpop.f32.mrb[0].mxu0
    %v7534 = vadd.f32 %v7022, %v7533
    %v7535 = vpop.f32.mrb[0].mxu0
    %7536 = vmatprep.mubr.bf16.mxu0 %v6702
    %7537 = vmatmul.mubr.bf16.gmra.mrb[0].mxu0 %v6678
    %v7538 = vpop.f32.mrb[0].mxu0
    %v7539 = vadd.f32 %v7022, %v7538
    %v7540 = vpop.f32.mrb[0].mxu0
    %v7541 = vpop.f32.mrb[0].mxu0
    %v7542 = vadd.f32 %v7022, %v7541
    %v7543 = vpop.f32.mrb[0].mxu0
    %7544 = vmatprep.mubr.bf16.mxu0 %v6703
    %7545 = vmatmul.mubr.bf16.gmra.mrb[0].mxu0 %v6679
    %v7546 = vpop.f32.mrb[0].mxu0
    %v7547 = vadd.f32 %v7022, %v7546
    %v7548 = vpop.f32.mrb[0].mxu0
    %v7549 = vpop.f32.mrb[0].mxu0
    %v7550 = vadd.f32 %v7022, %v7549
    %v7551 = vpop.f32.mrb[0].mxu0
    %7552 = vdwg.mxu0
    %7553 = vmatprep.subr.bf16.mxu0 0
    %7554 = vmatpush1.bf16.msra.mxu0 %v7328
    %7555 = vmatprep.subr.bf16.mxu0 0
    %7556 = vmatpush1.bf16.msra.mxu0 %v7329
    %7557 = vmatprep.subr.bf16.mxu0 0
    %7558 = vmatpush1.bf16.msra.mxu0 %v7330
    %7559 = vmatprep.subr.bf16.mxu0 0
    %7560 = vmatpush1.bf16.msra.mxu0 %v7331
    %7561 = vmatprep.subr.bf16.mxu0 0
    %7562 = vmatpush1.bf16.msra.mxu0 %v7332
    %7563 = vmatprep.subr.bf16.mxu0 0
    %7564 = vmatpush1.bf16.msra.mxu0 %v7333
    %7565 = vmatprep.subr.bf16.mxu0 0
    %7566 = vmatpush1.bf16.msra.mxu0 %v7334
    %7567 = vmatprep.subr.bf16.mxu0 0
    %7568 = vmatpush1.bf16.msra.mxu0 %v7335
    %7569 = vmatprep.subr.bf16.mxu0 0
    %7570 = vmatpush1.bf16.msra.mxu0 %v7336
    %7571 = vmatprep.subr.bf16.mxu0 0
    %7572 = vmatpush1.bf16.msra.mxu0 %v7337
    %7573 = vmatprep.subr.bf16.mxu0 0
    %7574 = vmatpush1.bf16.msra.mxu0 %v7338
    %7575 = vmatprep.subr.bf16.mxu0 0
    %7576 = vmatpush1.bf16.msra.mxu0 %v7339
    %7577 = vmatprep.subr.bf16.mxu0 0
    %7578 = vmatpush1.bf16.msra.mxu0 %v7340
    %7579 = vmatprep.subr.bf16.mxu0 0
    %7580 = vmatpush1.bf16.msra.mxu0 %v7341
    %7581 = vmatprep.subr.bf16.mxu0 0
    %7582 = vmatpush1.bf16.msra.mxu0 %v7342
    %7583 = vmatprep.subr.bf16.mxu0 0
    %7584 = vmatpush1.bf16.msra.mxu0 %v7343
    %7585 = vmatprep.mubr.bf16.mxu0 %v6744
    %7586 = vmatmul.mubr.bf16.gmra.mrb[0].mxu0 %v6720
    %v7587 = vpop.f32.mrb[0].mxu0
    %v7588 = vadd.f32 %v7491, %v7587
    %v7589 = vpop.f32.mrb[0].mxu0
    %v7590 = vpop.f32.mrb[0].mxu0
    %v7591 = vadd.f32 %v7494, %v7590
    %v7592 = vpop.f32.mrb[0].mxu0
    %7593 = vmatprep.mubr.bf16.mxu0 %v6745
    %7594 = vmatmul.mubr.bf16.gmra.mrb[0].mxu0 %v6721
    %v7595 = vpop.f32.mrb[0].mxu0
    %v7596 = vadd.f32 %v7499, %v7595
    %v7597 = vpop.f32.mrb[0].mxu0
    %v7598 = vpop.f32.mrb[0].mxu0
    %v7599 = vadd.f32 %v7502, %v7598
    %v7600 = vpop.f32.mrb[0].mxu0
    %7601 = vmatprep.mubr.bf16.mxu0 %v6746
    %7602 = vmatmul.mubr.bf16.gmra.mrb[0].mxu0 %v6722
    %v7603 = vpop.f32.mrb[0].mxu0
    %v7604 = vadd.f32 %v7507, %v7603
    %v7605 = vpop.f32.mrb[0].mxu0
    %v7606 = vpop.f32.mrb[0].mxu0
    %v7607 = vadd.f32 %v7510, %v7606
    %v7608 = vpop.f32.mrb[0].mxu0
    %7609 = vmatprep.mubr.bf16.mxu0 %v6747
    %7610 = vmatmul.mubr.bf16.gmra.mrb[0].mxu0 %v6723
    %v7611 = vpop.f32.mrb[0].mxu0
    %v7612 = vadd.f32 %v7515, %v7611
    %v7613 = vpop.f32.mrb[0].mxu0
    %v7614 = vpop.f32.mrb[0].mxu0
    %v7615 = vadd.f32 %v7518, %v7614
    %v7616 = vpop.f32.mrb[0].mxu0
    %7617 = vmatprep.mubr.bf16.mxu0 %v6748
    %7618 = vmatmul.mubr.bf16.gmra.mrb[0].mxu0 %v6724
    %v7619 = vpop.f32.mrb[0].mxu0
    %v7620 = vadd.f32 %v7523, %v7619
    %v7621 = vpop.f32.mrb[0].mxu0
    %v7622 = vpop.f32.mrb[0].mxu0
    %v7623 = vadd.f32 %v7526, %v7622
    %v7624 = vpop.f32.mrb[0].mxu0
    %7625 = vmatprep.mubr.bf16.mxu0 %v6749
    %7626 = vmatmul.mubr.bf16.gmra.mrb[0].mxu0 %v6725
    %v7627 = vpop.f32.mrb[0].mxu0
    %v7628 = vadd.f32 %v7531, %v7627
    %v7629 = vpop.f32.mrb[0].mxu0
    %v7630 = vpop.f32.mrb[0].mxu0
    %v7631 = vadd.f32 %v7534, %v7630
    %v7632 = vpop.f32.mrb[0].mxu0
    %7633 = vmatprep.mubr.bf16.mxu0 %v6750
    %7634 = vmatmul.mubr.bf16.gmra.mrb[0].mxu0 %v6726
    %v7635 = vpop.f32.mrb[0].mxu0
    %v7636 = vadd.f32 %v7539, %v7635
    %v7637 = vpop.f32.mrb[0].mxu0
    %v7638 = vpop.f32.mrb[0].mxu0
    %v7639 = vadd.f32 %v7542, %v7638
    %v7640 = vpop.f32.mrb[0].mxu0
    %7641 = vmatprep.mubr.bf16.mxu0 %v6751
    %7642 = vmatmul.mubr.bf16.gmra.mrb[0].mxu0 %v6727
    %v7643 = vpop.f32.mrb[0].mxu0
    %v7644 = vadd.f32 %v7547, %v7643
    %v7645 = vpop.f32.mrb[0].mxu0
    %v7646 = vpop.f32.mrb[0].mxu0
    %v7647 = vadd.f32 %v7550, %v7646
    %v7648 = vpop.f32.mrb[0].mxu0
    %7649 = vdwg.mxu0
    %7650 = vmatprep.subr.bf16.mxu0 0
    %7651 = vmatpush1.bf16.msra.mxu0 %v7344
    %7652 = vmatprep.subr.bf16.mxu0 0
    %7653 = vmatpush1.bf16.msra.mxu0 %v7345
    %7654 = vmatprep.subr.bf16.mxu0 0
    %7655 = vmatpush1.bf16.msra.mxu0 %v7346
    %7656 = vmatprep.subr.bf16.mxu0 0
    %7657 = vmatpush1.bf16.msra.mxu0 %v7347
    %7658 = vmatprep.subr.bf16.mxu0 0
    %7659 = vmatpush1.bf16.msra.mxu0 %v7348
    %7660 = vmatprep.subr.bf16.mxu0 0
    %7661 = vmatpush1.bf16.msra.mxu0 %v7349
    %7662 = vmatprep.subr.bf16.mxu0 0
    %7663 = vmatpush1.bf16.msra.mxu0 %v7350
    %7664 = vmatprep.subr.bf16.mxu0 0
    %7665 = vmatpush1.bf16.msra.mxu0 %v7351
    %7666 = vmatprep.subr.bf16.mxu0 0
    %7667 = vmatpush1.bf16.msra.mxu0 %v7352
    %7668 = vmatprep.subr.bf16.mxu0 0
    %7669 = vmatpush1.bf16.msra.mxu0 %v7353
    %7670 = vmatprep.subr.bf16.mxu0 0
    %7671 = vmatpush1.bf16.msra.mxu0 %v7354
    %7672 = vmatprep.subr.bf16.mxu0 0
    %7673 = vmatpush1.bf16.msra.mxu0 %v7355
    %7674 = vmatprep.subr.bf16.mxu0 0
    %7675 = vmatpush1.bf16.msra.mxu0 %v7356
    %7676 = vmatprep.subr.bf16.mxu0 0
    %7677 = vmatpush1.bf16.msra.mxu0 %v7357
    %7678 = vmatprep.subr.bf16.mxu0 0
    %7679 = vmatpush1.bf16.msra.mxu0 %v7358
    %7680 = vmatprep.subr.bf16.mxu0 0
    %7681 = vmatpush1.bf16.msra.mxu0 %v7359
    %7682 = vmatprep.mubr.bf16.mxu0 %v6792
    %7683 = vmatmul.mubr.bf16.gmra.mrb[0].mxu0 %v6768
    %v7684 = vpop.f32.mrb[0].mxu0
    %v7685 = vadd.f32 %v7588, %v7684
    %v7686 = vpop.f32.mrb[0].mxu0
    %v7687 = vpop.f32.mrb[0].mxu0
    %v7688 = vadd.f32 %v7591, %v7687
    %v7689 = vpop.f32.mrb[0].mxu0
    %7690 = vmatprep.mubr.bf16.mxu0 %v6793
    %7691 = vmatmul.mubr.bf16.gmra.mrb[0].mxu0 %v6769
    %v7692 = vpop.f32.mrb[0].mxu0
    %v7693 = vadd.f32 %v7596, %v7692
    %v7694 = vpop.f32.mrb[0].mxu0
    %v7695 = vpop.f32.mrb[0].mxu0
    %v7696 = vadd.f32 %v7599, %v7695
    %v7697 = vpop.f32.mrb[0].mxu0
    %7698 = vmatprep.mubr.bf16.mxu0 %v6794
    %7699 = vmatmul.mubr.bf16.gmra.mrb[0].mxu0 %v6770
    %v7700 = vpop.f32.mrb[0].mxu0
    %v7701 = vadd.f32 %v7604, %v7700
    %v7702 = vpop.f32.mrb[0].mxu0
    %v7703 = vpop.f32.mrb[0].mxu0
    %v7704 = vadd.f32 %v7607, %v7703
    %v7705 = vpop.f32.mrb[0].mxu0
    %7706 = vmatprep.mubr.bf16.mxu0 %v6795
    %7707 = vmatmul.mubr.bf16.gmra.mrb[0].mxu0 %v6771
    %v7708 = vpop.f32.mrb[0].mxu0
    %v7709 = vadd.f32 %v7612, %v7708
    %v7710 = vpop.f32.mrb[0].mxu0
    %v7711 = vpop.f32.mrb[0].mxu0
    %v7712 = vadd.f32 %v7615, %v7711
    %v7713 = vpop.f32.mrb[0].mxu0
    %7714 = vmatprep.mubr.bf16.mxu0 %v6796
    %7715 = vmatmul.mubr.bf16.gmra.mrb[0].mxu0 %v6772
    %v7716 = vpop.f32.mrb[0].mxu0
    %v7717 = vadd.f32 %v7620, %v7716
    %v7718 = vpop.f32.mrb[0].mxu0
    %v7719 = vpop.f32.mrb[0].mxu0
    %v7720 = vadd.f32 %v7623, %v7719
    %v7721 = vpop.f32.mrb[0].mxu0
    %7722 = vmatprep.mubr.bf16.mxu0 %v6797
    %7723 = vmatmul.mubr.bf16.gmra.mrb[0].mxu0 %v6773
    %v7724 = vpop.f32.mrb[0].mxu0
    %v7725 = vadd.f32 %v7628, %v7724
    %v7726 = vpop.f32.mrb[0].mxu0
    %v7727 = vpop.f32.mrb[0].mxu0
    %v7728 = vadd.f32 %v7631, %v7727
    %v7729 = vpop.f32.mrb[0].mxu0
    %7730 = vmatprep.mubr.bf16.mxu0 %v6798
    %7731 = vmatmul.mubr.bf16.gmra.mrb[0].mxu0 %v6774
    %v7732 = vpop.f32.mrb[0].mxu0
    %v7733 = vadd.f32 %v7636, %v7732
    %v7734 = vpop.f32.mrb[0].mxu0
    %v7735 = vpop.f32.mrb[0].mxu0
    %v7736 = vadd.f32 %v7639, %v7735
    %v7737 = vpop.f32.mrb[0].mxu0
    %7738 = vmatprep.mubr.bf16.mxu0 %v6799
    %7739 = vmatmul.mubr.bf16.gmra.mrb[0].mxu0 %v6775
    %v7740 = vpop.f32.mrb[0].mxu0
    %v7741 = vadd.f32 %v7644, %v7740
    %v7742 = vpop.f32.mrb[0].mxu0
    %v7743 = vpop.f32.mrb[0].mxu0
    %v7744 = vadd.f32 %v7647, %v7743
    %v7745 = vpop.f32.mrb[0].mxu0
    %7746 = vdwg.mxu0
    %7747 = vmatprep.subr.bf16.mxu0 0
    %7748 = vmatpush1.bf16.msra.mxu0 %v7360
    %7749 = vmatprep.subr.bf16.mxu0 0
    %7750 = vmatpush1.bf16.msra.mxu0 %v7361
    %7751 = vmatprep.subr.bf16.mxu0 0
    %7752 = vmatpush1.bf16.msra.mxu0 %v7362
    %7753 = vmatprep.subr.bf16.mxu0 0
    %7754 = vmatpush1.bf16.msra.mxu0 %v7363
    %7755 = vmatprep.subr.bf16.mxu0 0
    %7756 = vmatpush1.bf16.msra.mxu0 %v7364
    %7757 = vmatprep.subr.bf16.mxu0 0
    %7758 = vmatpush1.bf16.msra.mxu0 %v7365
    %7759 = vmatprep.subr.bf16.mxu0 0
    %7760 = vmatpush1.bf16.msra.mxu0 %v7366
    %7761 = vmatprep.subr.bf16.mxu0 0
    %7762 = vmatpush1.bf16.msra.mxu0 %v7367
    %7763 = vmatprep.subr.bf16.mxu0 0
    %7764 = vmatpush1.bf16.msra.mxu0 %v7368
    %7765 = vmatprep.subr.bf16.mxu0 0
    %7766 = vmatpush1.bf16.msra.mxu0 %v7369
    %7767 = vmatprep.subr.bf16.mxu0 0
    %7768 = vmatpush1.bf16.msra.mxu0 %v7370
    %7769 = vmatprep.subr.bf16.mxu0 0
    %7770 = vmatpush1.bf16.msra.mxu0 %v7371
    %7771 = vmatprep.subr.bf16.mxu0 0
    %7772 = vmatpush1.bf16.msra.mxu0 %v7372
    %7773 = vmatprep.subr.bf16.mxu0 0
    %7774 = vmatpush1.bf16.msra.mxu0 %v7373
    %7775 = vmatprep.subr.bf16.mxu0 0
    %7776 = vmatpush1.bf16.msra.mxu0 %v7374
    %7777 = vmatprep.subr.bf16.mxu0 0
    %7778 = vmatpush1.bf16.msra.mxu0 %v7375
    %7779 = vmatprep.mubr.bf16.mxu0 %v6841
    %7780 = vmatmul.mubr.bf16.gmra.mrb[0].mxu0 %v6817
    %v7781 = vpop.f32.mrb[0].mxu0
    %v7782 = vadd.f32 %v7685, %v7781
    %v7783 = vpop.f32.mrb[0].mxu0
    %v7784 = vpop.f32.mrb[0].mxu0
    %v7785 = vadd.f32 %v7688, %v7784
    %v7786 = vpop.f32.mrb[0].mxu0
    %7787 = vmatprep.mubr.bf16.mxu0 %v6842
    %7788 = vmatmul.mubr.bf16.gmra.mrb[0].mxu0 %v6818
    %v7789 = vpop.f32.mrb[0].mxu0
    %v7790 = vadd.f32 %v7693, %v7789
    %v7791 = vpop.f32.mrb[0].mxu0
    %v7792 = vpop.f32.mrb[0].mxu0
    %v7793 = vadd.f32 %v7696, %v7792
    %v7794 = vpop.f32.mrb[0].mxu0
    %7795 = vmatprep.mubr.bf16.mxu0 %v6843
    %7796 = vmatmul.mubr.bf16.gmra.mrb[0].mxu0 %v6819
    %v7797 = vpop.f32.mrb[0].mxu0
    %v7798 = vadd.f32 %v7701, %v7797
    %v7799 = vpop.f32.mrb[0].mxu0
    %v7800 = vpop.f32.mrb[0].mxu0
    %v7801 = vadd.f32 %v7704, %v7800
    %v7802 = vpop.f32.mrb[0].mxu0
    %7803 = vmatprep.mubr.bf16.mxu0 %v6844
    %7804 = vmatmul.mubr.bf16.gmra.mrb[0].mxu0 %v6820
    %v7805 = vpop.f32.mrb[0].mxu0
    %v7806 = vadd.f32 %v7709, %v7805
    %v7807 = vpop.f32.mrb[0].mxu0
    %v7808 = vpop.f32.mrb[0].mxu0
    %v7809 = vadd.f32 %v7712, %v7808
    %v7810 = vpop.f32.mrb[0].mxu0
    %7811 = vmatprep.mubr.bf16.mxu0 %v6845
    %7812 = vmatmul.mubr.bf16.gmra.mrb[0].mxu0 %v6821
    %v7813 = vpop.f32.mrb[0].mxu0
    %v7814 = vadd.f32 %v7717, %v7813
    %v7815 = vpop.f32.mrb[0].mxu0
    %v7816 = vpop.f32.mrb[0].mxu0
    %v7817 = vadd.f32 %v7720, %v7816
    %v7818 = vpop.f32.mrb[0].mxu0
    %7819 = vmatprep.mubr.bf16.mxu0 %v6846
    %7820 = vmatmul.mubr.bf16.gmra.mrb[0].mxu0 %v6822
    %v7821 = vpop.f32.mrb[0].mxu0
    %v7822 = vadd.f32 %v7725, %v7821
    %v7823 = vpop.f32.mrb[0].mxu0
    %v7824 = vpop.f32.mrb[0].mxu0
    %v7825 = vadd.f32 %v7728, %v7824
    %v7826 = vpop.f32.mrb[0].mxu0
    %7827 = vmatprep.mubr.bf16.mxu0 %v6847
    %7828 = vmatmul.mubr.bf16.gmra.mrb[0].mxu0 %v6823
    %v7829 = vpop.f32.mrb[0].mxu0
    %v7830 = vadd.f32 %v7733, %v7829
    %v7831 = vpop.f32.mrb[0].mxu0
    %v7832 = vpop.f32.mrb[0].mxu0
    %v7833 = vadd.f32 %v7736, %v7832
    %v7834 = vpop.f32.mrb[0].mxu0
    %7835 = vmatprep.mubr.bf16.mxu0 %v6848
    %7836 = vmatmul.mubr.bf16.gmra.mrb[0].mxu0 %v6824
    %v7837 = vpop.f32.mrb[0].mxu0
    %v7838 = vadd.f32 %v7741, %v7837
    %v7839 = vpop.f32.mrb[0].mxu0
    %v7840 = vpop.f32.mrb[0].mxu0
    %v7841 = vadd.f32 %v7744, %v7840
    %v7842 = vpop.f32.mrb[0].mxu0
    %7843 = vdwg.mxu0
    %7844 = vmatprep.subr.bf16.mxu0 0
    %7845 = vmatpush1.bf16.msra.mxu0 %v7376
    %7846 = vmatprep.subr.bf16.mxu0 0
    %7847 = vmatpush1.bf16.msra.mxu0 %v7377
    %7848 = vmatprep.subr.bf16.mxu0 0
    %7849 = vmatpush1.bf16.msra.mxu0 %v7378
    %7850 = vmatprep.subr.bf16.mxu0 0
    %7851 = vmatpush1.bf16.msra.mxu0 %v7379
    %7852 = vmatprep.subr.bf16.mxu0 0
    %7853 = vmatpush1.bf16.msra.mxu0 %v7380
    %7854 = vmatprep.subr.bf16.mxu0 0
    %7855 = vmatpush1.bf16.msra.mxu0 %v7381
    %7856 = vmatprep.subr.bf16.mxu0 0
    %7857 = vmatpush1.bf16.msra.mxu0 %v7382
    %7858 = vmatprep.subr.bf16.mxu0 0
    %7859 = vmatpush1.bf16.msra.mxu0 %v7383
    %7860 = vmatprep.subr.bf16.mxu0 0
    %7861 = vmatpush1.bf16.msra.mxu0 0
    %7862 = vmatprep.subr.bf16.mxu0 0
    %7863 = vmatpush1.bf16.msra.mxu0 0
    %7864 = vmatprep.subr.bf16.mxu0 0
    %7865 = vmatpush1.bf16.msra.mxu0 0
    %7866 = vmatprep.subr.bf16.mxu0 0
    %7867 = vmatpush1.bf16.msra.mxu0 0
    %7868 = vmatprep.subr.bf16.mxu0 0
    %7869 = vmatpush1.bf16.msra.mxu0 0
    %7870 = vmatprep.subr.bf16.mxu0 0
    %7871 = vmatpush1.bf16.msra.mxu0 0
    %7872 = vmatprep.subr.bf16.mxu0 0
    %7873 = vmatpush1.bf16.msra.mxu0 0
    %7874 = vmatprep.subr.bf16.mxu0 0
    %7875 = vmatpush1.bf16.msra.mxu0 0
    %7876 = vmatprep.mubr.bf16.mxu0 0
    %7877 = vmatmul.mubr.bf16.gmra.mrb[0].mxu0 %v6865
    %v7878 = vpop.f32.mrb[0].mxu0
    %v7879 = vadd.f32 %v7782, %v7878
    %v7880 = vpop.f32.mrb[0].mxu0
    %v7881 = vpop.f32.mrb[0].mxu0
    %v7882 = vadd.f32 %v7785, %v7881
    %v7883 = vpop.f32.mrb[0].mxu0
    %7884 = vmatprep.mubr.bf16.mxu0 0
    %7885 = vmatmul.mubr.bf16.gmra.mrb[0].mxu0 %v6866
    %v7886 = vpop.f32.mrb[0].mxu0
    %v7887 = vadd.f32 %v7790, %v7886
    %v7888 = vpop.f32.mrb[0].mxu0
    %v7889 = vpop.f32.mrb[0].mxu0
    %v7890 = vadd.f32 %v7793, %v7889
    %v7891 = vpop.f32.mrb[0].mxu0
    %7892 = vmatprep.mubr.bf16.mxu0 0
    %7893 = vmatmul.mubr.bf16.gmra.mrb[0].mxu0 %v6867
    %v7894 = vpop.f32.mrb[0].mxu0
    %v7895 = vadd.f32 %v7798, %v7894
    %v7896 = vpop.f32.mrb[0].mxu0
    %v7897 = vpop.f32.mrb[0].mxu0
    %v7898 = vadd.f32 %v7801, %v7897
    %v7899 = vpop.f32.mrb[0].mxu0
    %7900 = vmatprep.mubr.bf16.mxu0 0
    %7901 = vmatmul.mubr.bf16.gmra.mrb[0].mxu0 %v6868
    %v7902 = vpop.f32.mrb[0].mxu0
    %v7903 = vadd.f32 %v7806, %v7902
    %v7904 = vpop.f32.mrb[0].mxu0
    %v7905 = vpop.f32.mrb[0].mxu0
    %v7906 = vadd.f32 %v7809, %v7905
    %v7907 = vpop.f32.mrb[0].mxu0
    %7908 = vmatprep.mubr.bf16.mxu0 0
    %7909 = vmatmul.mubr.bf16.gmra.mrb[0].mxu0 %v6869
    %v7910 = vpop.f32.mrb[0].mxu0
    %v7911 = vadd.f32 %v7814, %v7910
    %v7912 = vpop.f32.mrb[0].mxu0
    %v7913 = vpop.f32.mrb[0].mxu0
    %v7914 = vadd.f32 %v7817, %v7913
    %v7915 = vpop.f32.mrb[0].mxu0
    %7916 = vmatprep.mubr.bf16.mxu0 0
    %7917 = vmatmul.mubr.bf16.gmra.mrb[0].mxu0 %v6870
    %v7918 = vpop.f32.mrb[0].mxu0
    %v7919 = vadd.f32 %v7822, %v7918
    %v7920 = vpop.f32.mrb[0].mxu0
    %v7921 = vpop.f32.mrb[0].mxu0
    %v7922 = vadd.f32 %v7825, %v7921
    %v7923 = vpop.f32.mrb[0].mxu0
    %7924 = vmatprep.mubr.bf16.mxu0 0
    %7925 = vmatmul.mubr.bf16.gmra.mrb[0].mxu0 %v6871
    %v7926 = vpop.f32.mrb[0].mxu0
    %v7927 = vadd.f32 %v7830, %v7926
    %v7928 = vpop.f32.mrb[0].mxu0
    %v7929 = vpop.f32.mrb[0].mxu0
    %v7930 = vadd.f32 %v7833, %v7929
    %v7931 = vpop.f32.mrb[0].mxu0
    %7932 = vmatprep.mubr.bf16.mxu0 0
    %7933 = vmatmul.mubr.bf16.gmra.mrb[0].mxu0 %v6872
    %v7934 = vpop.f32.mrb[0].mxu0
    %v7935 = vadd.f32 %v7838, %v7934
    %v7936 = vpop.f32.mrb[0].mxu0
    %v7937 = vpop.f32.mrb[0].mxu0
    %v7938 = vadd.f32 %v7841, %v7937
    %v7939 = vpop.f32.mrb[0].mxu0
    %7940 = vdwg.mxu0
    %v7941 = vmax.f32 %v7879, 0.0
    %v7942 = vmax.f32 %v7882, 0.0
    %v7943 = vmax.f32 %v7887, 0.0
    %v7944 = vmax.f32 %v7890, 0.0
    %v7945 = vmax.f32 %v7895, 0.0
    %v7946 = vmax.f32 %v7898, 0.0
    %v7947 = vmax.f32 %v7903, 0.0
    %v7948 = vmax.f32 %v7906, 0.0
    %v7949 = vmax.f32 %v7911, 0.0
    %v7950 = vmax.f32 %v7914, 0.0
    %v7951 = vmax.f32 %v7919, 0.0
    %v7952 = vmax.f32 %v7922, 0.0
    %v7953 = vmax.f32 %v7927, 0.0
    %v7954 = vmax.f32 %v7930, 0.0
    %v7955 = vmax.f32 %v7935, 0.0
    %v7956 = vmax.f32 %v7938, 0.0
    %7957 = vst [vmem:[#allocation6] sm:$0xff] 0.0
    %7958 = vst [vmem:[#allocation6 + $0x8] sm:$0x3] 0.0
    %7959 = vst [vmem:[#allocation6 + $0x10] sm:$0xff] 0.0
    %7960 = vst [vmem:[#allocation6 + $0x18] sm:$0x3] 0.0
    %7961 = vst [vmem:[#allocation6 + $0x20] sm:$0xff] 0.0
    %7962 = vst [vmem:[#allocation6 + $0x28] sm:$0x3] 0.0
    %7963 = vst [vmem:[#allocation6 + $0x30] sm:$0xff] 0.0
    %7964 = vst [vmem:[#allocation6 + $0x38] sm:$0x3] 0.0
    %7965 = vst [vmem:[#allocation6 + $0x40] sm:$0xff] 0.0
    %7966 = vst [vmem:[#allocation6 + $0x48] sm:$0x3] 0.0
    %7967 = vst [vmem:[#allocation6 + $0x50] sm:$0xff] 0.0
    %7968 = vst [vmem:[#allocation6 + $0x58] sm:$0x3] 0.0
    %7969 = vst [vmem:[#allocation6 + $0x60] sm:$0xff] 0.0
    %7970 = vst [vmem:[#allocation6 + $0x68] sm:$0x3] 0.0
    %7971 = vst [vmem:[#allocation6 + $0x70] sm:$0xff] 0.0
    %7972 = vst [vmem:[#allocation6 + $0x78] sm:$0x3] 0.0
    %7973 = vst [vmem:[#allocation6 + $0x80] sm:$0xff] 0.0
    %7974 = vst [vmem:[#allocation6 + $0x88] sm:$0x3] 0.0
    %7975 = vst [vmem:[#allocation6 + $0x90] sm:$0xff] 0.0
    %7976 = vst [vmem:[#allocation6 + $0x98] sm:$0x3] 0.0
    %7977 = vst [vmem:[#allocation6 + $0xa0] sm:$0xff] 0.0
    %7978 = vst [vmem:[#allocation6 + $0xa8] sm:$0x3] 0.0
    %7979 = vst [vmem:[#allocation6 + $0xb0] sm:$0xff] 0.0
    %7980 = vst [vmem:[#allocation6 + $0xb8] sm:$0x3] 0.0
    %7981 = vst [vmem:[#allocation6 + $0xc0] sm:$0xff] 0.0
    %7982 = vst [vmem:[#allocation6 + $0xc8] sm:$0x3] 0.0
    %7983 = vst [vmem:[#allocation6 + $0xd0] sm:$0xff] 0.0
    %7984 = vst [vmem:[#allocation6 + $0xd8] sm:$0x3] 0.0
    %7985 = vst [vmem:[#allocation6 + $0xe0] sm:$0xff] 0.0
    %7986 = vst [vmem:[#allocation6 + $0xe8] sm:$0x3] 0.0
    %7987 = vst [vmem:[#allocation6 + $0xf0] sm:$0xff] 0.0
    %7988 = vst [vmem:[#allocation6 + $0xf8] sm:$0x3] 0.0
    %7989 = vst [vmem:[#allocation6 + $0x100] sm:$0xff] 0.0
    %7990 = vst [vmem:[#allocation6 + $0x108] sm:$0x3] 0.0
    %7991 = vst [vmem:[#allocation6 + $0x110] sm:$0xff] 0.0
    %7992 = vst [vmem:[#allocation6 + $0x118] sm:$0x3] 0.0
    %7993 = vst [vmem:[#allocation6 + $0x120] sm:$0xff] 0.0
    %7994 = vst [vmem:[#allocation6 + $0x128] sm:$0x3] 0.0
    %7995 = vst [vmem:[#allocation6 + $0x130] sm:$0xff] 0.0
    %7996 = vst [vmem:[#allocation6 + $0x138] sm:$0x3] 0.0
    %s7997 = scalar_lea.vmem [#allocation6], 16
    %7998 = vst [vmem:[%s7997 + $0x1] sm:$0xff] %v7941
    %7999 = vst [vmem:[%s7997 + $0x11] sm:$0xff] %v7942
    %8000 = vst [vmem:[%s7997 + $0x21] sm:$0xff] %v7943
    %8001 = vst [vmem:[%s7997 + $0x31] sm:$0xff] %v7944
    %8002 = vst [vmem:[%s7997 + $0x41] sm:$0xff] %v7945
    %8003 = vst [vmem:[%s7997 + $0x51] sm:$0xff] %v7946
    %8004 = vst [vmem:[%s7997 + $0x61] sm:$0xff] %v7947
    %8005 = vst [vmem:[%s7997 + $0x71] sm:$0xff] %v7948
    %8006 = vst [vmem:[%s7997 + $0xa1] sm:$0xff] %v7949
    %8007 = vst [vmem:[%s7997 + $0xb1] sm:$0xff] %v7950
    %8008 = vst [vmem:[%s7997 + $0xc1] sm:$0xff] %v7951
    %8009 = vst [vmem:[%s7997 + $0xd1] sm:$0xff] %v7952
    %8010 = vst [vmem:[%s7997 + $0xe1] sm:$0xff] %v7953
    %8011 = vst [vmem:[%s7997 + $0xf1] sm:$0xff] %v7954
    %8012 = vst [vmem:[%s7997 + $0x101] sm:$0xff] %v7955
    %8013 = vst [vmem:[%s7997 + $0x111] sm:$0xff] %v7956
    %v8014 = vld [vmem:[#allocation6] sm:$0xff]
    %v8015 = vld [vmem:[#allocation6 + $0x10] sm:$0xff]
    %v8016 = vld [vmem:[#allocation6 + $0x20] sm:$0xff]
    %v8017 = vld [vmem:[#allocation6 + $0x30] sm:$0xff]
    %v8018 = vld [vmem:[#allocation6 + $0x40] sm:$0xff]
    %v8019 = vld [vmem:[#allocation6 + $0x50] sm:$0xff]
    %v8020 = vld [vmem:[#allocation6 + $0x60] sm:$0xff]
    %v8021 = vld [vmem:[#allocation6 + $0x70] sm:$0xff]
    %v8022 = vld [vmem:[#allocation6 + $0xa0] sm:$0xff]
    %v8023 = vld [vmem:[#allocation6 + $0xb0] sm:$0xff]
    %v8024 = vld [vmem:[#allocation6 + $0xc0] sm:$0xff]
    %v8025 = vld [vmem:[#allocation6 + $0xd0] sm:$0xff]
    %v8026 = vld [vmem:[#allocation6 + $0xe0] sm:$0xff]
    %v8027 = vld [vmem:[#allocation6 + $0xf0] sm:$0xff]
    %v8028 = vld [vmem:[#allocation6 + $0x100] sm:$0xff]
    %v8029 = vld [vmem:[#allocation6 + $0x110] sm:$0xff]
    %v8030 = vpack.c.bf16 %v8015, %v8014
    %v8031 = vpack.c.bf16 %v8017, %v8016
    %v8032 = vpack.c.bf16 %v8019, %v8018
    %v8033 = vpack.c.bf16 %v8021, %v8020
    %v8034 = vpack.c.bf16 %v8023, %v8022
    %v8035 = vpack.c.bf16 %v8025, %v8024
    %v8036 = vpack.c.bf16 %v8027, %v8026
    %v8037 = vpack.c.bf16 %v8029, %v8028
    %v8038 = vld [vmem:[#allocation6 + $0x1] sm:$0xff]
    %v8039 = vld [vmem:[#allocation6 + $0x11] sm:$0xff]
    %v8040 = vld [vmem:[#allocation6 + $0x21] sm:$0xff]
    %v8041 = vld [vmem:[#allocation6 + $0x31] sm:$0xff]
    %v8042 = vld [vmem:[#allocation6 + $0x41] sm:$0xff]
    %v8043 = vld [vmem:[#allocation6 + $0x51] sm:$0xff]
    %v8044 = vld [vmem:[#allocation6 + $0x61] sm:$0xff]
    %v8045 = vld [vmem:[#allocation6 + $0x71] sm:$0xff]
    %v8046 = vld [vmem:[#allocation6 + $0xa1] sm:$0xff]
    %v8047 = vld [vmem:[#allocation6 + $0xb1] sm:$0xff]
    %v8048 = vld [vmem:[#allocation6 + $0xc1] sm:$0xff]
    %v8049 = vld [vmem:[#allocation6 + $0xd1] sm:$0xff]
    %v8050 = vld [vmem:[#allocation6 + $0xe1] sm:$0xff]
    %v8051 = vld [vmem:[#allocation6 + $0xf1] sm:$0xff]
    %v8052 = vld [vmem:[#allocation6 + $0x101] sm:$0xff]
    %v8053 = vld [vmem:[#allocation6 + $0x111] sm:$0xff]
    %v8054 = vpack.c.bf16 %v8039, %v8038
    %v8055 = vpack.c.bf16 %v8041, %v8040
    %v8056 = vpack.c.bf16 %v8043, %v8042
    %v8057 = vpack.c.bf16 %v8045, %v8044
    %v8058 = vpack.c.bf16 %v8047, %v8046
    %v8059 = vpack.c.bf16 %v8049, %v8048
    %v8060 = vpack.c.bf16 %v8051, %v8050
    %v8061 = vpack.c.bf16 %v8053, %v8052
    %v8062 = vld [vmem:[#allocation6 + $0x2] sm:$0xff]
    %v8063 = vld [vmem:[#allocation6 + $0x12] sm:$0xff]
    %v8064 = vld [vmem:[#allocation6 + $0x22] sm:$0xff]
    %v8065 = vld [vmem:[#allocation6 + $0x32] sm:$0xff]
    %v8066 = vld [vmem:[#allocation6 + $0x42] sm:$0xff]
    %v8067 = vld [vmem:[#allocation6 + $0x52] sm:$0xff]
    %v8068 = vld [vmem:[#allocation6 + $0x62] sm:$0xff]
    %v8069 = vld [vmem:[#allocation6 + $0x72] sm:$0xff]
    %v8070 = vld [vmem:[#allocation6 + $0xa2] sm:$0xff]
    %v8071 = vld [vmem:[#allocation6 + $0xb2] sm:$0xff]
    %v8072 = vld [vmem:[#allocation6 + $0xc2] sm:$0xff]
    %v8073 = vld [vmem:[#allocation6 + $0xd2] sm:$0xff]
    %v8074 = vld [vmem:[#allocation6 + $0xe2] sm:$0xff]
    %v8075 = vld [vmem:[#allocation6 + $0xf2] sm:$0xff]
    %v8076 = vld [vmem:[#allocation6 + $0x102] sm:$0xff]
    %v8077 = vld [vmem:[#allocation6 + $0x112] sm:$0xff]
    %v8078 = vpack.c.bf16 %v8063, %v8062
    %v8079 = vpack.c.bf16 %v8065, %v8064
    %v8080 = vpack.c.bf16 %v8067, %v8066
    %v8081 = vpack.c.bf16 %v8069, %v8068
    %v8082 = vpack.c.bf16 %v8071, %v8070
    %v8083 = vpack.c.bf16 %v8073, %v8072
    %v8084 = vpack.c.bf16 %v8075, %v8074
    %v8085 = vpack.c.bf16 %v8077, %v8076
    %v8086 = vld [vmem:[%s7997] sm:$0xff]
    %v8087 = vld [vmem:[%s7997 + $0x10] sm:$0xff]
    %v8088 = vld [vmem:[%s7997 + $0x20] sm:$0xff]
    %v8089 = vld [vmem:[%s7997 + $0x30] sm:$0xff]
    %v8090 = vld [vmem:[%s7997 + $0x40] sm:$0xff]
    %v8091 = vld [vmem:[%s7997 + $0x50] sm:$0xff]
    %v8092 = vld [vmem:[%s7997 + $0x60] sm:$0xff]
    %v8093 = vld [vmem:[%s7997 + $0x70] sm:$0xff]
    %v8094 = vld [vmem:[%s7997 + $0xa0] sm:$0xff]
    %v8095 = vld [vmem:[%s7997 + $0xb0] sm:$0xff]
    %v8096 = vld [vmem:[%s7997 + $0xc0] sm:$0xff]
    %v8097 = vld [vmem:[%s7997 + $0xd0] sm:$0xff]
    %v8098 = vld [vmem:[%s7997 + $0xe0] sm:$0xff]
    %v8099 = vld [vmem:[%s7997 + $0xf0] sm:$0xff]
    %v8100 = vld [vmem:[%s7997 + $0x100] sm:$0xff]
    %v8101 = vld [vmem:[%s7997 + $0x110] sm:$0xff]
    %v8102 = vpack.c.bf16 %v8087, %v8086
    %v8103 = vpack.c.bf16 %v8089, %v8088
    %v8104 = vpack.c.bf16 %v8091, %v8090
    %v8105 = vpack.c.bf16 %v8093, %v8092
    %v8106 = vpack.c.bf16 %v8095, %v8094
    %v8107 = vpack.c.bf16 %v8097, %v8096
    %v8108 = vpack.c.bf16 %v8099, %v8098
    %v8109 = vpack.c.bf16 %v8101, %v8100
    %v8110 = vld [vmem:[%s7997 + $0x1] sm:$0xff]
    %v8111 = vld [vmem:[%s7997 + $0x11] sm:$0xff]
    %v8112 = vld [vmem:[%s7997 + $0x21] sm:$0xff]
    %v8113 = vld [vmem:[%s7997 + $0x31] sm:$0xff]
    %v8114 = vld [vmem:[%s7997 + $0x41] sm:$0xff]
    %v8115 = vld [vmem:[%s7997 + $0x51] sm:$0xff]
    %v8116 = vld [vmem:[%s7997 + $0x61] sm:$0xff]
    %v8117 = vld [vmem:[%s7997 + $0x71] sm:$0xff]
    %v8118 = vld [vmem:[%s7997 + $0xa1] sm:$0xff]
    %v8119 = vld [vmem:[%s7997 + $0xb1] sm:$0xff]
    %v8120 = vld [vmem:[%s7997 + $0xc1] sm:$0xff]
    %v8121 = vld [vmem:[%s7997 + $0xd1] sm:$0xff]
    %v8122 = vld [vmem:[%s7997 + $0xe1] sm:$0xff]
    %v8123 = vld [vmem:[%s7997 + $0xf1] sm:$0xff]
    %v8124 = vld [vmem:[%s7997 + $0x101] sm:$0xff]
    %v8125 = vld [vmem:[%s7997 + $0x111] sm:$0xff]
    %v8126 = vpack.c.bf16 %v8111, %v8110
    %v8127 = vpack.c.bf16 %v8113, %v8112
    %v8128 = vpack.c.bf16 %v8115, %v8114
    %v8129 = vpack.c.bf16 %v8117, %v8116
    %v8130 = vpack.c.bf16 %v8119, %v8118
    %v8131 = vpack.c.bf16 %v8121, %v8120
    %v8132 = vpack.c.bf16 %v8123, %v8122
    %v8133 = vpack.c.bf16 %v8125, %v8124
    %v8134 = vld [vmem:[%s7997 + $0x2] sm:$0xff]
    %v8135 = vld [vmem:[%s7997 + $0x12] sm:$0xff]
    %v8136 = vld [vmem:[%s7997 + $0x22] sm:$0xff]
    %v8137 = vld [vmem:[%s7997 + $0x32] sm:$0xff]
    %v8138 = vld [vmem:[%s7997 + $0x42] sm:$0xff]
    %v8139 = vld [vmem:[%s7997 + $0x52] sm:$0xff]
    %v8140 = vld [vmem:[%s7997 + $0x62] sm:$0xff]
    %v8141 = vld [vmem:[%s7997 + $0x72] sm:$0xff]
    %v8142 = vld [vmem:[%s7997 + $0xa2] sm:$0xff]
    %v8143 = vld [vmem:[%s7997 + $0xb2] sm:$0xff]
    %v8144 = vld [vmem:[%s7997 + $0xc2] sm:$0xff]
    %v8145 = vld [vmem:[%s7997 + $0xd2] sm:$0xff]
    %v8146 = vld [vmem:[%s7997 + $0xe2] sm:$0xff]
    %v8147 = vld [vmem:[%s7997 + $0xf2] sm:$0xff]
    %v8148 = vld [vmem:[%s7997 + $0x102] sm:$0xff]
    %v8149 = vld [vmem:[%s7997 + $0x112] sm:$0xff]
    %v8150 = vpack.c.bf16 %v8135, %v8134
    %v8151 = vpack.c.bf16 %v8137, %v8136
    %v8152 = vpack.c.bf16 %v8139, %v8138
    %v8153 = vpack.c.bf16 %v8141, %v8140
    %v8154 = vpack.c.bf16 %v8143, %v8142
    %v8155 = vpack.c.bf16 %v8145, %v8144
    %v8156 = vpack.c.bf16 %v8147, %v8146
    %v8157 = vpack.c.bf16 %v8149, %v8148
    %s8158 = scalar_lea.vmem [#allocation6], 32
    %v8159 = vld [vmem:[%s8158] sm:$0xff]
    %v8160 = vld [vmem:[%s8158 + $0x10] sm:$0xff]
    %v8161 = vld [vmem:[%s8158 + $0x20] sm:$0xff]
    %v8162 = vld [vmem:[%s8158 + $0x30] sm:$0xff]
    %v8163 = vld [vmem:[%s8158 + $0x40] sm:$0xff]
    %v8164 = vld [vmem:[%s8158 + $0x50] sm:$0xff]
    %v8165 = vld [vmem:[%s8158 + $0x60] sm:$0xff]
    %v8166 = vld [vmem:[%s8158 + $0x70] sm:$0xff]
    %v8167 = vld [vmem:[%s8158 + $0xa0] sm:$0xff]
    %v8168 = vld [vmem:[%s8158 + $0xb0] sm:$0xff]
    %v8169 = vld [vmem:[%s8158 + $0xc0] sm:$0xff]
    %v8170 = vld [vmem:[%s8158 + $0xd0] sm:$0xff]
    %v8171 = vld [vmem:[%s8158 + $0xe0] sm:$0xff]
    %v8172 = vld [vmem:[%s8158 + $0xf0] sm:$0xff]
    %v8173 = vld [vmem:[%s8158 + $0x100] sm:$0xff]
    %v8174 = vld [vmem:[%s8158 + $0x110] sm:$0xff]
    %v8175 = vpack.c.bf16 %v8160, %v8159
    %v8176 = vpack.c.bf16 %v8162, %v8161
    %v8177 = vpack.c.bf16 %v8164, %v8163
    %v8178 = vpack.c.bf16 %v8166, %v8165
    %v8179 = vpack.c.bf16 %v8168, %v8167
    %v8180 = vpack.c.bf16 %v8170, %v8169
    %v8181 = vpack.c.bf16 %v8172, %v8171
    %v8182 = vpack.c.bf16 %v8174, %v8173
    %v8183 = vld [vmem:[%s8158 + $0x1] sm:$0xff]
    %v8184 = vld [vmem:[%s8158 + $0x11] sm:$0xff]
    %v8185 = vld [vmem:[%s8158 + $0x21] sm:$0xff]
    %v8186 = vld [vmem:[%s8158 + $0x31] sm:$0xff]
    %v8187 = vld [vmem:[%s8158 + $0x41] sm:$0xff]
    %v8188 = vld [vmem:[%s8158 + $0x51] sm:$0xff]
    %v8189 = vld [vmem:[%s8158 + $0x61] sm:$0xff]
    %v8190 = vld [vmem:[%s8158 + $0x71] sm:$0xff]
    %v8191 = vld [vmem:[%s8158 + $0xa1] sm:$0xff]
    %v8192 = vld [vmem:[%s8158 + $0xb1] sm:$0xff]
    %v8193 = vld [vmem:[%s8158 + $0xc1] sm:$0xff]
    %v8194 = vld [vmem:[%s8158 + $0xd1] sm:$0xff]
    %v8195 = vld [vmem:[%s8158 + $0xe1] sm:$0xff]
    %v8196 = vld [vmem:[%s8158 + $0xf1] sm:$0xff]
    %v8197 = vld [vmem:[%s8158 + $0x101] sm:$0xff]
    %v8198 = vld [vmem:[%s8158 + $0x111] sm:$0xff]
    %v8199 = vpack.c.bf16 %v8184, %v8183
    %v8200 = vpack.c.bf16 %v8186, %v8185
    %v8201 = vpack.c.bf16 %v8188, %v8187
    %v8202 = vpack.c.bf16 %v8190, %v8189
    %v8203 = vpack.c.bf16 %v8192, %v8191
    %v8204 = vpack.c.bf16 %v8194, %v8193
    %v8205 = vpack.c.bf16 %v8196, %v8195
    %v8206 = vpack.c.bf16 %v8198, %v8197
    %v8207 = vld [vmem:[%s8158 + $0x2] sm:$0xff]
    %v8208 = vld [vmem:[%s8158 + $0x12] sm:$0xff]
    %v8209 = vld [vmem:[%s8158 + $0x22] sm:$0xff]
    %v8210 = vld [vmem:[%s8158 + $0x32] sm:$0xff]
    %v8211 = vld [vmem:[%s8158 + $0x42] sm:$0xff]
    %v8212 = vld [vmem:[%s8158 + $0x52] sm:$0xff]
    %v8213 = vld [vmem:[%s8158 + $0x62] sm:$0xff]
    %v8214 = vld [vmem:[%s8158 + $0x72] sm:$0xff]
    %v8215 = vld [vmem:[%s8158 + $0xa2] sm:$0xff]
    %v8216 = vld [vmem:[%s8158 + $0xb2] sm:$0xff]
    %v8217 = vld [vmem:[%s8158 + $0xc2] sm:$0xff]
    %v8218 = vld [vmem:[%s8158 + $0xd2] sm:$0xff]
    %v8219 = vld [vmem:[%s8158 + $0xe2] sm:$0xff]
    %v8220 = vld [vmem:[%s8158 + $0xf2] sm:$0xff]
    %v8221 = vld [vmem:[%s8158 + $0x102] sm:$0xff]
    %v8222 = vld [vmem:[%s8158 + $0x112] sm:$0xff]
    %v8223 = vpack.c.bf16 %v8208, %v8207
    %v8224 = vpack.c.bf16 %v8210, %v8209
    %v8225 = vpack.c.bf16 %v8212, %v8211
    %v8226 = vpack.c.bf16 %v8214, %v8213
    %v8227 = vpack.c.bf16 %v8216, %v8215
    %v8228 = vpack.c.bf16 %v8218, %v8217
    %v8229 = vpack.c.bf16 %v8220, %v8219
    %v8230 = vpack.c.bf16 %v8222, %v8221
    %v8231 = vld [vmem:[%s7] sm:$0xf]
    %v8232 = vld [vmem:[%s7 + $0x4] sm:$0xf]
    %v8233 = vld [vmem:[%s7 + $0x8] sm:$0xf]
    %v8234 = vld [vmem:[%s7 + $0xc] sm:$0xf]
    %v8235 = vld [vmem:[%s7 + $0x10] sm:$0xf]
    %v8236 = vld [vmem:[%s7 + $0x14] sm:$0xf]
    %v8237 = vld [vmem:[%s7 + $0x18] sm:$0xf]
    %v8238 = vld [vmem:[%s7 + $0x1c] sm:$0xf]
    %v8239 = vld [vmem:[%s7 + $0x20] sm:$0xf]
    %v8240 = vld [vmem:[%s7 + $0x24] sm:$0xf]
    %v8241 = vld [vmem:[%s7 + $0x28] sm:$0xf]
    %v8242 = vld [vmem:[%s7 + $0x2c] sm:$0xf]
    %v8243 = vld [vmem:[%s7 + $0x30] sm:$0xf]
    %v8244 = vld [vmem:[%s7 + $0x34] sm:$0xf]
    %v8245 = vld [vmem:[%s7 + $0x38] sm:$0xf]
    %v8246 = vld [vmem:[%s7 + $0x3c] sm:$0xf]
    %v8247 = vld [vmem:[%s7 + $0x40] sm:$0xf]
    %v8248 = vld [vmem:[%s7 + $0x44] sm:$0xf]
    %v8249 = vld [vmem:[%s7 + $0x48] sm:$0xf]
    %v8250 = vld [vmem:[%s7 + $0x4c] sm:$0xf]
    %v8251 = vld [vmem:[%s7 + $0x50] sm:$0xf]
    %v8252 = vld [vmem:[%s7 + $0x54] sm:$0xf]
    %v8253 = vld [vmem:[%s7 + $0x58] sm:$0xf]
    %v8254 = vld [vmem:[%s7 + $0x5c] sm:$0xf]
    %v8255 = vld [vmem:[%s7 + $0x60] sm:$0xf]
    %v8256 = vld [vmem:[%s7 + $0x64] sm:$0xf]
    %v8257 = vld [vmem:[%s7 + $0x68] sm:$0xf]
    %v8258 = vld [vmem:[%s7 + $0x6c] sm:$0xf]
    %v8259 = vld [vmem:[%s7 + $0x70] sm:$0xf]
    %v8260 = vld [vmem:[%s7 + $0x74] sm:$0xf]
    %v8261 = vld [vmem:[%s7 + $0x78] sm:$0xf]
    %v8262 = vld [vmem:[%s7 + $0x7c] sm:$0xf]
    %v8263 = vld [vmem:[%s7 + $0x80] sm:$0xf]
    %v8264 = vld [vmem:[%s7 + $0x84] sm:$0xf]
    %v8265 = vld [vmem:[%s7 + $0x88] sm:$0xf]
    %v8266 = vld [vmem:[%s7 + $0x8c] sm:$0xf]
    %v8267 = vld [vmem:[%s7 + $0x90] sm:$0xf]
    %v8268 = vld [vmem:[%s7 + $0x94] sm:$0xf]
    %v8269 = vld [vmem:[%s7 + $0x98] sm:$0xf]
    %v8270 = vld [vmem:[%s7 + $0x9c] sm:$0xf]
    %v8271 = vld [vmem:[%s7 + $0xa0] sm:$0xf]
    %v8272 = vld [vmem:[%s7 + $0xa4] sm:$0xf]
    %v8273 = vld [vmem:[%s7 + $0xa8] sm:$0xf]
    %v8274 = vld [vmem:[%s7 + $0xac] sm:$0xf]
    %v8275 = vld [vmem:[%s7 + $0xb0] sm:$0xf]
    %v8276 = vld [vmem:[%s7 + $0xb4] sm:$0xf]
    %v8277 = vld [vmem:[%s7 + $0xb8] sm:$0xf]
    %v8278 = vld [vmem:[%s7 + $0xbc] sm:$0xf]
    %v8279 = vld [vmem:[%s7 + $0xc0] sm:$0xf]
    %v8280 = vld [vmem:[%s7 + $0xc4] sm:$0xf]
    %v8281 = vld [vmem:[%s7 + $0xc8] sm:$0xf]
    %v8282 = vld [vmem:[%s7 + $0xcc] sm:$0xf]
    %v8283 = vld [vmem:[%s7 + $0xd0] sm:$0xf]
    %v8284 = vld [vmem:[%s7 + $0xd4] sm:$0xf]
    %v8285 = vld [vmem:[%s7 + $0xd8] sm:$0xf]
    %v8286 = vld [vmem:[%s7 + $0xdc] sm:$0xf]
    %v8287 = vld [vmem:[%s7 + $0xe0] sm:$0xf]
    %v8288 = vld [vmem:[%s7 + $0xe4] sm:$0xf]
    %v8289 = vld [vmem:[%s7 + $0xe8] sm:$0xf]
    %v8290 = vld [vmem:[%s7 + $0xec] sm:$0xf]
    %v8291 = vld [vmem:[%s7 + $0xf0] sm:$0xf]
    %v8292 = vld [vmem:[%s7 + $0xf4] sm:$0xf]
    %v8293 = vld [vmem:[%s7 + $0xf8] sm:$0xf]
    %v8294 = vld [vmem:[%s7 + $0xfc] sm:$0xf]
    %v8295 = vld [vmem:[%s7 + $0x100] sm:$0xf]
    %v8296 = vld [vmem:[%s7 + $0x104] sm:$0xf]
    %v8297 = vld [vmem:[%s7 + $0x108] sm:$0xf]
    %v8298 = vld [vmem:[%s7 + $0x10c] sm:$0xf]
    %v8299 = vld [vmem:[%s7 + $0x110] sm:$0xf]
    %v8300 = vld [vmem:[%s7 + $0x114] sm:$0xf]
    %v8301 = vld [vmem:[%s7 + $0x118] sm:$0xf]
    %v8302 = vld [vmem:[%s7 + $0x11c] sm:$0xf]
    %v8303 = vld [vmem:[%s7 + $0x120] sm:$0xf]
    %v8304 = vld [vmem:[%s7 + $0x124] sm:$0xf]
    %v8305 = vld [vmem:[%s7 + $0x128] sm:$0xf]
    %v8306 = vld [vmem:[%s7 + $0x12c] sm:$0xf]
    %v8307 = vld [vmem:[%s7 + $0x130] sm:$0xf]
    %v8308 = vld [vmem:[%s7 + $0x134] sm:$0xf]
    %v8309 = vld [vmem:[%s7 + $0x138] sm:$0xf]
    %v8310 = vld [vmem:[%s7 + $0x13c] sm:$0xf]
    %v8311 = vld [vmem:[%s7 + $0x140] sm:$0xf]
    %v8312 = vld [vmem:[%s7 + $0x144] sm:$0xf]
    %v8313 = vld [vmem:[%s7 + $0x148] sm:$0xf]
    %v8314 = vld [vmem:[%s7 + $0x14c] sm:$0xf]
    %v8315 = vld [vmem:[%s7 + $0x150] sm:$0xf]
    %v8316 = vld [vmem:[%s7 + $0x154] sm:$0xf]
    %v8317 = vld [vmem:[%s7 + $0x158] sm:$0xf]
    %v8318 = vld [vmem:[%s7 + $0x15c] sm:$0xf]
    %v8319 = vld [vmem:[%s7 + $0x160] sm:$0xf]
    %v8320 = vld [vmem:[%s7 + $0x164] sm:$0xf]
    %v8321 = vld [vmem:[%s7 + $0x168] sm:$0xf]
    %v8322 = vld [vmem:[%s7 + $0x16c] sm:$0xf]
    %v8323 = vld [vmem:[%s7 + $0x170] sm:$0xf]
    %v8324 = vld [vmem:[%s7 + $0x174] sm:$0xf]
    %v8325 = vld [vmem:[%s7 + $0x178] sm:$0xf]
    %v8326 = vld [vmem:[%s7 + $0x17c] sm:$0xf]
    %v8327 = vld [vmem:[%s7 + $0x180] sm:$0xf]
    %v8328 = vld [vmem:[%s7 + $0x184] sm:$0xf]
    %v8329 = vld [vmem:[%s7 + $0x188] sm:$0xf]
    %v8330 = vld [vmem:[%s7 + $0x18c] sm:$0xf]
    %v8331 = vld [vmem:[%s7 + $0x190] sm:$0xf]
    %v8332 = vld [vmem:[%s7 + $0x194] sm:$0xf]
    %v8333 = vld [vmem:[%s7 + $0x198] sm:$0xf]
    %v8334 = vld [vmem:[%s7 + $0x19c] sm:$0xf]
    %v8335 = vld [vmem:[%s7 + $0x1a0] sm:$0xf]
    %v8336 = vld [vmem:[%s7 + $0x1a4] sm:$0xf]
    %v8337 = vld [vmem:[%s7 + $0x1a8] sm:$0xf]
    %v8338 = vld [vmem:[%s7 + $0x1ac] sm:$0xf]
    %v8339 = vld [vmem:[%s7 + $0x1b0] sm:$0xf]
    %v8340 = vld [vmem:[%s7 + $0x1b4] sm:$0xf]
    %v8341 = vld [vmem:[%s7 + $0x1b8] sm:$0xf]
    %v8342 = vld [vmem:[%s7 + $0x1bc] sm:$0xf]
    %v8343 = vld [vmem:[%s7 + $0x1c0] sm:$0xf]
    %v8344 = vld [vmem:[%s7 + $0x1c4] sm:$0xf]
    %v8345 = vld [vmem:[%s7 + $0x1c8] sm:$0xf]
    %v8346 = vld [vmem:[%s7 + $0x1cc] sm:$0xf]
    %v8347 = vld [vmem:[%s7 + $0x1d0] sm:$0xf]
    %v8348 = vld [vmem:[%s7 + $0x1d4] sm:$0xf]
    %v8349 = vld [vmem:[%s7 + $0x1d8] sm:$0xf]
    %v8350 = vld [vmem:[%s7 + $0x1dc] sm:$0xf]
    %v8351 = vld [vmem:[%s7 + $0x1e0] sm:$0xf]
    %v8352 = vld [vmem:[%s7 + $0x1e4] sm:$0xf]
    %v8353 = vld [vmem:[%s7 + $0x1e8] sm:$0xf]
    %v8354 = vld [vmem:[%s7 + $0x1ec] sm:$0xf]
    %v8355 = vld [vmem:[%s7 + $0x1f0] sm:$0xf]
    %v8356 = vld [vmem:[%s7 + $0x1f4] sm:$0xf]
    %v8357 = vld [vmem:[%s7 + $0x1f8] sm:$0xf]
    %v8358 = vld [vmem:[%s7 + $0x1fc] sm:$0xf]
    %v8359 = vld [vmem:[%s7 + $0x200] sm:$0xf]
    %v8360 = vld [vmem:[%s7 + $0x204] sm:$0xf]
    %v8361 = vld [vmem:[%s7 + $0x208] sm:$0xf]
    %v8362 = vld [vmem:[%s7 + $0x20c] sm:$0xf]
    %v8363 = vld [vmem:[%s7 + $0x210] sm:$0xf]
    %v8364 = vld [vmem:[%s7 + $0x214] sm:$0xf]
    %v8365 = vld [vmem:[%s7 + $0x218] sm:$0xf]
    %v8366 = vld [vmem:[%s7 + $0x21c] sm:$0xf]
    %v8367 = vld [vmem:[%s7 + $0x220] sm:$0xf]
    %v8368 = vld [vmem:[%s7 + $0x224] sm:$0xf]
    %v8369 = vld [vmem:[%s7 + $0x228] sm:$0xf]
    %v8370 = vld [vmem:[%s7 + $0x22c] sm:$0xf]
    %v8371 = vld [vmem:[%s7 + $0x230] sm:$0xf]
    %v8372 = vld [vmem:[%s7 + $0x234] sm:$0xf]
    %v8373 = vld [vmem:[%s7 + $0x238] sm:$0xf]
    %v8374 = vld [vmem:[%s7 + $0x23c] sm:$0xf]
    %v8375 = vld [vmem:[%s8] sm:$0x1]
    %v8377 = vlaneseq
    %v8378 = vshrl.u32 %v8377, 7
    %v8379 = vsub.s32 0, %v8378
    %v8380 = vrot.slane %v8375, %v8379
    %v8526 = vunpack.c.l.b16 %v8231
    %v8527 = vunpack.c.l.b16 %v8232
    %v8528 = vunpack.c.l.b16 %v8233
    %v8529 = vunpack.c.l.b16 %v8234
    %v8530 = vunpack.c.l.b16 %v8235
    %v8531 = vunpack.c.l.b16 %v8236
    %v8532 = vunpack.c.l.b16 %v8237
    %v8533 = vunpack.c.l.b16 %v8238
    %v8534 = vunpack.c.l.b16 %v8239
    %v8535 = vunpack.c.l.b16 %v8240
    %v8536 = vunpack.c.l.b16 %v8241
    %v8537 = vunpack.c.l.b16 %v8242
    %v8538 = vunpack.c.l.b16 %v8243
    %v8539 = vunpack.c.l.b16 %v8244
    %v8540 = vunpack.c.l.b16 %v8245
    %v8541 = vunpack.c.l.b16 %v8246
    %v8542 = vunpack.c.l.b16 %v8247
    %v8543 = vunpack.c.l.b16 %v8248
    %v8544 = vunpack.c.l.b16 %v8249
    %v8545 = vunpack.c.l.b16 %v8250
    %v8546 = vunpack.c.l.b16 %v8251
    %v8547 = vunpack.c.l.b16 %v8252
    %v8548 = vunpack.c.l.b16 %v8253
    %v8549 = vunpack.c.l.b16 %v8254
    %v8550 = vunpack.c.l.b16 %v8255
    %v8551 = vunpack.c.l.b16 %v8256
    %v8552 = vunpack.c.l.b16 %v8257
    %v8553 = vunpack.c.l.b16 %v8258
    %v8554 = vunpack.c.l.b16 %v8259
    %v8555 = vunpack.c.l.b16 %v8260
    %v8556 = vunpack.c.l.b16 %v8261
    %v8557 = vunpack.c.l.b16 %v8262
    %v8558 = vunpack.c.l.b16 %v8263
    %v8559 = vunpack.c.l.b16 %v8264
    %v8560 = vunpack.c.l.b16 %v8265
    %v8561 = vunpack.c.l.b16 %v8266
    %v8562 = vunpack.c.l.b16 %v8267
    %v8563 = vunpack.c.l.b16 %v8268
    %v8564 = vunpack.c.l.b16 %v8269
    %v8565 = vunpack.c.l.b16 %v8270
    %v8566 = vunpack.c.l.b16 %v8271
    %v8567 = vunpack.c.l.b16 %v8272
    %v8568 = vunpack.c.l.b16 %v8273
    %v8569 = vunpack.c.l.b16 %v8274
    %v8570 = vunpack.c.l.b16 %v8275
    %v8571 = vunpack.c.l.b16 %v8276
    %v8572 = vunpack.c.l.b16 %v8277
    %v8573 = vunpack.c.l.b16 %v8278
    %v8574 = vunpack.c.l.b16 %v8279
    %v8575 = vunpack.c.l.b16 %v8280
    %v8576 = vunpack.c.l.b16 %v8281
    %v8577 = vunpack.c.l.b16 %v8282
    %v8578 = vunpack.c.l.b16 %v8283
    %v8579 = vunpack.c.l.b16 %v8284
    %v8580 = vunpack.c.l.b16 %v8285
    %v8581 = vunpack.c.l.b16 %v8286
    %v8582 = vunpack.c.l.b16 %v8287
    %v8583 = vunpack.c.l.b16 %v8288
    %v8584 = vunpack.c.l.b16 %v8289
    %v8585 = vunpack.c.l.b16 %v8290
    %v8586 = vunpack.c.l.b16 %v8291
    %v8587 = vunpack.c.l.b16 %v8292
    %v8588 = vunpack.c.l.b16 %v8293
    %v8589 = vunpack.c.l.b16 %v8294
    %v8590 = vunpack.c.l.b16 %v8295
    %v8591 = vunpack.c.l.b16 %v8296
    %v8592 = vunpack.c.l.b16 %v8297
    %v8593 = vunpack.c.l.b16 %v8298
    %v8594 = vunpack.c.l.b16 %v8299
    %v8595 = vunpack.c.l.b16 %v8300
    %v8596 = vunpack.c.l.b16 %v8301
    %v8597 = vunpack.c.l.b16 %v8302
    %v8598 = vunpack.c.l.b16 %v8303
    %v8599 = vunpack.c.l.b16 %v8304
    %v8600 = vunpack.c.l.b16 %v8305
    %v8601 = vunpack.c.l.b16 %v8306
    %v8602 = vunpack.c.l.b16 %v8307
    %v8603 = vunpack.c.l.b16 %v8308
    %v8604 = vunpack.c.l.b16 %v8309
    %v8605 = vunpack.c.l.b16 %v8310
    %v8606 = vunpack.c.l.b16 %v8311
    %v8607 = vunpack.c.l.b16 %v8312
    %v8608 = vunpack.c.l.b16 %v8313
    %v8609 = vunpack.c.l.b16 %v8314
    %v8610 = vunpack.c.l.b16 %v8315
    %v8611 = vunpack.c.l.b16 %v8316
    %v8612 = vunpack.c.l.b16 %v8317
    %v8613 = vunpack.c.l.b16 %v8318
    %v8614 = vunpack.c.l.b16 %v8319
    %v8615 = vunpack.c.l.b16 %v8320
    %v8616 = vunpack.c.l.b16 %v8321
    %v8617 = vunpack.c.l.b16 %v8322
    %v8618 = vunpack.c.l.b16 %v8323
    %v8619 = vunpack.c.l.b16 %v8324
    %v8620 = vunpack.c.l.b16 %v8325
    %v8621 = vunpack.c.l.b16 %v8326
    %v8622 = vunpack.c.l.b16 %v8327
    %v8623 = vunpack.c.l.b16 %v8328
    %v8624 = vunpack.c.l.b16 %v8329
    %v8625 = vunpack.c.l.b16 %v8330
    %v8626 = vunpack.c.l.b16 %v8331
    %v8627 = vunpack.c.l.b16 %v8332
    %v8628 = vunpack.c.l.b16 %v8333
    %v8629 = vunpack.c.l.b16 %v8334
    %v8630 = vunpack.c.l.b16 %v8335
    %v8631 = vunpack.c.l.b16 %v8336
    %v8632 = vunpack.c.l.b16 %v8337
    %v8633 = vunpack.c.l.b16 %v8338
    %v8634 = vunpack.c.l.b16 %v8339
    %v8635 = vunpack.c.l.b16 %v8340
    %v8636 = vunpack.c.l.b16 %v8341
    %v8637 = vunpack.c.l.b16 %v8342
    %v8638 = vunpack.c.l.b16 %v8343
    %v8639 = vunpack.c.l.b16 %v8344
    %v8640 = vunpack.c.l.b16 %v8345
    %v8641 = vunpack.c.l.b16 %v8346
    %v8642 = vunpack.c.l.b16 %v8347
    %v8643 = vunpack.c.l.b16 %v8348
    %v8644 = vunpack.c.l.b16 %v8349
    %v8645 = vunpack.c.l.b16 %v8350
    %v8646 = vunpack.c.l.b16 %v8351
    %v8647 = vunpack.c.l.b16 %v8352
    %v8648 = vunpack.c.l.b16 %v8353
    %v8649 = vunpack.c.l.b16 %v8354
    %v8650 = vunpack.c.l.b16 %v8355
    %v8651 = vunpack.c.l.b16 %v8356
    %v8652 = vunpack.c.l.b16 %v8357
    %v8653 = vunpack.c.l.b16 %v8358
    %v8654 = vunpack.c.l.b16 %v8359
    %v8655 = vunpack.c.l.b16 %v8360
    %v8656 = vunpack.c.l.b16 %v8361
    %v8657 = vunpack.c.l.b16 %v8362
    %v8658 = vunpack.c.l.b16 %v8363
    %v8659 = vunpack.c.l.b16 %v8364
    %v8660 = vunpack.c.l.b16 %v8365
    %v8661 = vunpack.c.l.b16 %v8366
    %v8662 = vunpack.c.l.b16 %v8367
    %v8663 = vunpack.c.l.b16 %v8368
    %v8664 = vunpack.c.l.b16 %v8369
    %v8665 = vunpack.c.l.b16 %v8370
    %v8666 = vunpack.c.l.b16 %v8371
    %v8667 = vunpack.c.l.b16 %v8372
    %v8668 = vunpack.c.l.b16 %v8373
    %v8669 = vunpack.c.l.b16 %v8374
    %v8670 = vpack.c.b16 %v8527, %v8526
    %v8671 = vpack.c.b16 %v8529, %v8528
    %v8672 = vpack.c.b16 %v8531, %v8530
    %v8673 = vpack.c.b16 %v8533, %v8532
    %v8674 = vpack.c.b16 %v8535, %v8534
    %v8675 = vpack.c.b16 %v8537, %v8536
    %v8676 = vpack.c.b16 %v8539, %v8538
    %v8677 = vpack.c.b16 %v8541, %v8540
    %v8678 = vpack.c.b16 %v8543, %v8542
    %v8679 = vpack.c.b16 %v8545, %v8544
    %v8680 = vpack.c.b16 %v8547, %v8546
    %v8681 = vpack.c.b16 %v8549, %v8548
    %v8682 = vpack.c.b16 %v8551, %v8550
    %v8683 = vpack.c.b16 %v8553, %v8552
    %v8684 = vpack.c.b16 %v8555, %v8554
    %v8685 = vpack.c.b16 %v8557, %v8556
    %v8686 = vpack.c.b16 %v8559, %v8558
    %v8687 = vpack.c.b16 %v8561, %v8560
    %v8688 = vpack.c.b16 %v8563, %v8562
    %v8689 = vpack.c.b16 %v8565, %v8564
    %v8690 = vpack.c.b16 %v8567, %v8566
    %v8691 = vpack.c.b16 %v8569, %v8568
    %v8692 = vpack.c.b16 %v8571, %v8570
    %v8693 = vpack.c.b16 %v8573, %v8572
    %v8694 = vpack.c.b16 %v8575, %v8574
    %v8695 = vpack.c.b16 %v8577, %v8576
    %v8696 = vpack.c.b16 %v8579, %v8578
    %v8697 = vpack.c.b16 %v8581, %v8580
    %v8698 = vpack.c.b16 %v8583, %v8582
    %v8699 = vpack.c.b16 %v8585, %v8584
    %v8700 = vpack.c.b16 %v8587, %v8586
    %v8701 = vpack.c.b16 %v8589, %v8588
    %v8702 = vpack.c.b16 %v8591, %v8590
    %v8703 = vpack.c.b16 %v8593, %v8592
    %v8704 = vpack.c.b16 %v8595, %v8594
    %v8705 = vpack.c.b16 %v8597, %v8596
    %v8706 = vpack.c.b16 %v8599, %v8598
    %v8707 = vpack.c.b16 %v8601, %v8600
    %v8708 = vpack.c.b16 %v8603, %v8602
    %v8709 = vpack.c.b16 %v8605, %v8604
    %v8710 = vpack.c.b16 %v8607, %v8606
    %v8711 = vpack.c.b16 %v8609, %v8608
    %v8712 = vpack.c.b16 %v8611, %v8610
    %v8713 = vpack.c.b16 %v8613, %v8612
    %v8714 = vpack.c.b16 %v8615, %v8614
    %v8715 = vpack.c.b16 %v8617, %v8616
    %v8716 = vpack.c.b16 %v8619, %v8618
    %v8717 = vpack.c.b16 %v8621, %v8620
    %v8718 = vpack.c.b16 %v8623, %v8622
    %v8719 = vpack.c.b16 %v8625, %v8624
    %v8720 = vpack.c.b16 %v8627, %v8626
    %v8721 = vpack.c.b16 %v8629, %v8628
    %v8722 = vpack.c.b16 %v8631, %v8630
    %v8723 = vpack.c.b16 %v8633, %v8632
    %v8724 = vpack.c.b16 %v8635, %v8634
    %v8725 = vpack.c.b16 %v8637, %v8636
    %v8726 = vpack.c.b16 %v8639, %v8638
    %v8727 = vpack.c.b16 %v8641, %v8640
    %v8728 = vpack.c.b16 %v8643, %v8642
    %v8729 = vpack.c.b16 %v8645, %v8644
    %v8730 = vpack.c.b16 %v8647, %v8646
    %v8731 = vpack.c.b16 %v8649, %v8648
    %v8732 = vpack.c.b16 %v8651, %v8650
    %v8733 = vpack.c.b16 %v8653, %v8652
    %v8734 = vpack.c.b16 %v8655, %v8654
    %v8735 = vpack.c.b16 %v8657, %v8656
    %v8736 = vpack.c.b16 %v8659, %v8658
    %v8737 = vpack.c.b16 %v8661, %v8660
    %v8738 = vpack.c.b16 %v8663, %v8662
    %v8739 = vpack.c.b16 %v8665, %v8664
    %v8740 = vpack.c.b16 %v8667, %v8666
    %v8741 = vpack.c.b16 %v8669, %v8668
    %8814 = vmatprep.subr.bf16.mxu0 0
    %8815 = vmatpush1.bf16.msra.mxu0 %v8670
    %8816 = vmatprep.subr.bf16.mxu0 0
    %8817 = vmatpush1.bf16.msra.mxu0 %v8671
    %8818 = vmatprep.subr.bf16.mxu0 0
    %8819 = vmatpush1.bf16.msra.mxu0 %v8672
    %8820 = vmatprep.subr.bf16.mxu0 0
    %8821 = vmatpush1.bf16.msra.mxu0 %v8673
    %8822 = vmatprep.subr.bf16.mxu0 0
    %8823 = vmatpush1.bf16.msra.mxu0 %v8674
    %8824 = vmatprep.subr.bf16.mxu0 0
    %8825 = vmatpush1.bf16.msra.mxu0 %v8675
    %8826 = vmatprep.subr.bf16.mxu0 0
    %8827 = vmatpush1.bf16.msra.mxu0 %v8676
    %8828 = vmatprep.subr.bf16.mxu0 0
    %8829 = vmatpush1.bf16.msra.mxu0 %v8677
    %8830 = vmatprep.subr.bf16.mxu0 0
    %8831 = vmatpush1.bf16.msra.mxu0 %v8678
    %8832 = vmatprep.subr.bf16.mxu0 0
    %8833 = vmatpush1.bf16.msra.mxu0 %v8679
    %8834 = vmatprep.subr.bf16.mxu0 0
    %8835 = vmatpush1.bf16.msra.mxu0 %v8680
    %8836 = vmatprep.subr.bf16.mxu0 0
    %8837 = vmatpush1.bf16.msra.mxu0 %v8681
    %8838 = vmatprep.subr.bf16.mxu0 0
    %8839 = vmatpush1.bf16.msra.mxu0 %v8682
    %8840 = vmatprep.subr.bf16.mxu0 0
    %8841 = vmatpush1.bf16.msra.mxu0 %v8683
    %8842 = vmatprep.subr.bf16.mxu0 0
    %8843 = vmatpush1.bf16.msra.mxu0 %v8684
    %8844 = vmatprep.subr.bf16.mxu0 0
    %8845 = vmatpush1.bf16.msra.mxu0 %v8685
    %8846 = vmatprep.mubr.bf16.mxu0 %v8054
    %8847 = vmatmul.mubr.bf16.gmra.mrb[0].mxu0 %v8030
    %v8848 = vpop.f32.mrb[0].mxu0
    %v8849 = vadd.f32 %v8380, %v8848
    %v8850 = vpop.f32.mrb[0].mxu0
    %v8851 = vpop.f32.mrb[0].mxu0
    %v8852 = vadd.f32 %v8380, %v8851
    %v8853 = vpop.f32.mrb[0].mxu0
    %8854 = vmatprep.mubr.bf16.mxu0 %v8055
    %8855 = vmatmul.mubr.bf16.gmra.mrb[0].mxu0 %v8031
    %v8856 = vpop.f32.mrb[0].mxu0
    %v8857 = vadd.f32 %v8380, %v8856
    %v8858 = vpop.f32.mrb[0].mxu0
    %v8859 = vpop.f32.mrb[0].mxu0
    %v8860 = vadd.f32 %v8380, %v8859
    %v8861 = vpop.f32.mrb[0].mxu0
    %8862 = vmatprep.mubr.bf16.mxu0 %v8056
    %8863 = vmatmul.mubr.bf16.gmra.mrb[0].mxu0 %v8032
    %v8864 = vpop.f32.mrb[0].mxu0
    %v8865 = vadd.f32 %v8380, %v8864
    %v8866 = vpop.f32.mrb[0].mxu0
    %v8867 = vpop.f32.mrb[0].mxu0
    %v8868 = vadd.f32 %v8380, %v8867
    %v8869 = vpop.f32.mrb[0].mxu0
    %8870 = vmatprep.mubr.bf16.mxu0 %v8057
    %8871 = vmatmul.mubr.bf16.gmra.mrb[0].mxu0 %v8033
    %v8872 = vpop.f32.mrb[0].mxu0
    %v8873 = vadd.f32 %v8380, %v8872
    %v8874 = vpop.f32.mrb[0].mxu0
    %v8875 = vpop.f32.mrb[0].mxu0
    %v8876 = vadd.f32 %v8380, %v8875
    %v8877 = vpop.f32.mrb[0].mxu0
    %8878 = vmatprep.mubr.bf16.mxu0 %v8058
    %8879 = vmatmul.mubr.bf16.gmra.mrb[0].mxu0 %v8034
    %v8880 = vpop.f32.mrb[0].mxu0
    %v8881 = vadd.f32 %v8380, %v8880
    %v8882 = vpop.f32.mrb[0].mxu0
    %v8883 = vpop.f32.mrb[0].mxu0
    %v8884 = vadd.f32 %v8380, %v8883
    %v8885 = vpop.f32.mrb[0].mxu0
    %8886 = vmatprep.mubr.bf16.mxu0 %v8059
    %8887 = vmatmul.mubr.bf16.gmra.mrb[0].mxu0 %v8035
    %v8888 = vpop.f32.mrb[0].mxu0
    %v8889 = vadd.f32 %v8380, %v8888
    %v8890 = vpop.f32.mrb[0].mxu0
    %v8891 = vpop.f32.mrb[0].mxu0
    %v8892 = vadd.f32 %v8380, %v8891
    %v8893 = vpop.f32.mrb[0].mxu0
    %8894 = vmatprep.mubr.bf16.mxu0 %v8060
    %8895 = vmatmul.mubr.bf16.gmra.mrb[0].mxu0 %v8036
    %v8896 = vpop.f32.mrb[0].mxu0
    %v8897 = vadd.f32 %v8380, %v8896
    %v8898 = vpop.f32.mrb[0].mxu0
    %v8899 = vpop.f32.mrb[0].mxu0
    %v8900 = vadd.f32 %v8380, %v8899
    %v8901 = vpop.f32.mrb[0].mxu0
    %8902 = vmatprep.mubr.bf16.mxu0 %v8061
    %8903 = vmatmul.mubr.bf16.gmra.mrb[0].mxu0 %v8037
    %v8904 = vpop.f32.mrb[0].mxu0
    %v8905 = vadd.f32 %v8380, %v8904
    %v8906 = vpop.f32.mrb[0].mxu0
    %v8907 = vpop.f32.mrb[0].mxu0
    %v8908 = vadd.f32 %v8380, %v8907
    %v8909 = vpop.f32.mrb[0].mxu0
    %8910 = vdwg.mxu0
    %8911 = vmatprep.subr.bf16.mxu0 0
    %8912 = vmatpush1.bf16.msra.mxu0 %v8686
    %8913 = vmatprep.subr.bf16.mxu0 0
    %8914 = vmatpush1.bf16.msra.mxu0 %v8687
    %8915 = vmatprep.subr.bf16.mxu0 0
    %8916 = vmatpush1.bf16.msra.mxu0 %v8688
    %8917 = vmatprep.subr.bf16.mxu0 0
    %8918 = vmatpush1.bf16.msra.mxu0 %v8689
    %8919 = vmatprep.subr.bf16.mxu0 0
    %8920 = vmatpush1.bf16.msra.mxu0 %v8690
    %8921 = vmatprep.subr.bf16.mxu0 0
    %8922 = vmatpush1.bf16.msra.mxu0 %v8691
    %8923 = vmatprep.subr.bf16.mxu0 0
    %8924 = vmatpush1.bf16.msra.mxu0 %v8692
    %8925 = vmatprep.subr.bf16.mxu0 0
    %8926 = vmatpush1.bf16.msra.mxu0 %v8693
    %8927 = vmatprep.subr.bf16.mxu0 0
    %8928 = vmatpush1.bf16.msra.mxu0 %v8694
    %8929 = vmatprep.subr.bf16.mxu0 0
    %8930 = vmatpush1.bf16.msra.mxu0 %v8695
    %8931 = vmatprep.subr.bf16.mxu0 0
    %8932 = vmatpush1.bf16.msra.mxu0 %v8696
    %8933 = vmatprep.subr.bf16.mxu0 0
    %8934 = vmatpush1.bf16.msra.mxu0 %v8697
    %8935 = vmatprep.subr.bf16.mxu0 0
    %8936 = vmatpush1.bf16.msra.mxu0 %v8698
    %8937 = vmatprep.subr.bf16.mxu0 0
    %8938 = vmatpush1.bf16.msra.mxu0 %v8699
    %8939 = vmatprep.subr.bf16.mxu0 0
    %8940 = vmatpush1.bf16.msra.mxu0 %v8700
    %8941 = vmatprep.subr.bf16.mxu0 0
    %8942 = vmatpush1.bf16.msra.mxu0 %v8701
    %8943 = vmatprep.mubr.bf16.mxu0 %v8102
    %8944 = vmatmul.mubr.bf16.gmra.mrb[0].mxu0 %v8078
    %v8945 = vpop.f32.mrb[0].mxu0
    %v8946 = vadd.f32 %v8849, %v8945
    %v8947 = vpop.f32.mrb[0].mxu0
    %v8948 = vpop.f32.mrb[0].mxu0
    %v8949 = vadd.f32 %v8852, %v8948
    %v8950 = vpop.f32.mrb[0].mxu0
    %8951 = vmatprep.mubr.bf16.mxu0 %v8103
    %8952 = vmatmul.mubr.bf16.gmra.mrb[0].mxu0 %v8079
    %v8953 = vpop.f32.mrb[0].mxu0
    %v8954 = vadd.f32 %v8857, %v8953
    %v8955 = vpop.f32.mrb[0].mxu0
    %v8956 = vpop.f32.mrb[0].mxu0
    %v8957 = vadd.f32 %v8860, %v8956
    %v8958 = vpop.f32.mrb[0].mxu0
    %8959 = vmatprep.mubr.bf16.mxu0 %v8104
    %8960 = vmatmul.mubr.bf16.gmra.mrb[0].mxu0 %v8080
    %v8961 = vpop.f32.mrb[0].mxu0
    %v8962 = vadd.f32 %v8865, %v8961
    %v8963 = vpop.f32.mrb[0].mxu0
    %v8964 = vpop.f32.mrb[0].mxu0
    %v8965 = vadd.f32 %v8868, %v8964
    %v8966 = vpop.f32.mrb[0].mxu0
    %8967 = vmatprep.mubr.bf16.mxu0 %v8105
    %8968 = vmatmul.mubr.bf16.gmra.mrb[0].mxu0 %v8081
    %v8969 = vpop.f32.mrb[0].mxu0
    %v8970 = vadd.f32 %v8873, %v8969
    %v8971 = vpop.f32.mrb[0].mxu0
    %v8972 = vpop.f32.mrb[0].mxu0
    %v8973 = vadd.f32 %v8876, %v8972
    %v8974 = vpop.f32.mrb[0].mxu0
    %8975 = vmatprep.mubr.bf16.mxu0 %v8106
    %8976 = vmatmul.mubr.bf16.gmra.mrb[0].mxu0 %v8082
    %v8977 = vpop.f32.mrb[0].mxu0
    %v8978 = vadd.f32 %v8881, %v8977
    %v8979 = vpop.f32.mrb[0].mxu0
    %v8980 = vpop.f32.mrb[0].mxu0
    %v8981 = vadd.f32 %v8884, %v8980
    %v8982 = vpop.f32.mrb[0].mxu0
    %8983 = vmatprep.mubr.bf16.mxu0 %v8107
    %8984 = vmatmul.mubr.bf16.gmra.mrb[0].mxu0 %v8083
    %v8985 = vpop.f32.mrb[0].mxu0
    %v8986 = vadd.f32 %v8889, %v8985
    %v8987 = vpop.f32.mrb[0].mxu0
    %v8988 = vpop.f32.mrb[0].mxu0
    %v8989 = vadd.f32 %v8892, %v8988
    %v8990 = vpop.f32.mrb[0].mxu0
    %8991 = vmatprep.mubr.bf16.mxu0 %v8108
    %8992 = vmatmul.mubr.bf16.gmra.mrb[0].mxu0 %v8084
    %v8993 = vpop.f32.mrb[0].mxu0
    %v8994 = vadd.f32 %v8897, %v8993
    %v8995 = vpop.f32.mrb[0].mxu0
    %v8996 = vpop.f32.mrb[0].mxu0
    %v8997 = vadd.f32 %v8900, %v8996
    %v8998 = vpop.f32.mrb[0].mxu0
    %8999 = vmatprep.mubr.bf16.mxu0 %v8109
    %9000 = vmatmul.mubr.bf16.gmra.mrb[0].mxu0 %v8085
    %v9001 = vpop.f32.mrb[0].mxu0
    %v9002 = vadd.f32 %v8905, %v9001
    %v9003 = vpop.f32.mrb[0].mxu0
    %v9004 = vpop.f32.mrb[0].mxu0
    %v9005 = vadd.f32 %v8908, %v9004
    %v9006 = vpop.f32.mrb[0].mxu0
    %9007 = vdwg.mxu0
    %9008 = vmatprep.subr.bf16.mxu0 0
    %9009 = vmatpush1.bf16.msra.mxu0 %v8702
    %9010 = vmatprep.subr.bf16.mxu0 0
    %9011 = vmatpush1.bf16.msra.mxu0 %v8703
    %9012 = vmatprep.subr.bf16.mxu0 0
    %9013 = vmatpush1.bf16.msra.mxu0 %v8704
    %9014 = vmatprep.subr.bf16.mxu0 0
    %9015 = vmatpush1.bf16.msra.mxu0 %v8705
    %9016 = vmatprep.subr.bf16.mxu0 0
    %9017 = vmatpush1.bf16.msra.mxu0 %v8706
    %9018 = vmatprep.subr.bf16.mxu0 0
    %9019 = vmatpush1.bf16.msra.mxu0 %v8707
    %9020 = vmatprep.subr.bf16.mxu0 0
    %9021 = vmatpush1.bf16.msra.mxu0 %v8708
    %9022 = vmatprep.subr.bf16.mxu0 0
    %9023 = vmatpush1.bf16.msra.mxu0 %v8709
    %9024 = vmatprep.subr.bf16.mxu0 0
    %9025 = vmatpush1.bf16.msra.mxu0 %v8710
    %9026 = vmatprep.subr.bf16.mxu0 0
    %9027 = vmatpush1.bf16.msra.mxu0 %v8711
    %9028 = vmatprep.subr.bf16.mxu0 0
    %9029 = vmatpush1.bf16.msra.mxu0 %v8712
    %9030 = vmatprep.subr.bf16.mxu0 0
    %9031 = vmatpush1.bf16.msra.mxu0 %v8713
    %9032 = vmatprep.subr.bf16.mxu0 0
    %9033 = vmatpush1.bf16.msra.mxu0 %v8714
    %9034 = vmatprep.subr.bf16.mxu0 0
    %9035 = vmatpush1.bf16.msra.mxu0 %v8715
    %9036 = vmatprep.subr.bf16.mxu0 0
    %9037 = vmatpush1.bf16.msra.mxu0 %v8716
    %9038 = vmatprep.subr.bf16.mxu0 0
    %9039 = vmatpush1.bf16.msra.mxu0 %v8717
    %9040 = vmatprep.mubr.bf16.mxu0 %v8150
    %9041 = vmatmul.mubr.bf16.gmra.mrb[0].mxu0 %v8126
    %v9042 = vpop.f32.mrb[0].mxu0
    %v9043 = vadd.f32 %v8946, %v9042
    %v9044 = vpop.f32.mrb[0].mxu0
    %v9045 = vpop.f32.mrb[0].mxu0
    %v9046 = vadd.f32 %v8949, %v9045
    %v9047 = vpop.f32.mrb[0].mxu0
    %9048 = vmatprep.mubr.bf16.mxu0 %v8151
    %9049 = vmatmul.mubr.bf16.gmra.mrb[0].mxu0 %v8127
    %v9050 = vpop.f32.mrb[0].mxu0
    %v9051 = vadd.f32 %v8954, %v9050
    %v9052 = vpop.f32.mrb[0].mxu0
    %v9053 = vpop.f32.mrb[0].mxu0
    %v9054 = vadd.f32 %v8957, %v9053
    %v9055 = vpop.f32.mrb[0].mxu0
    %9056 = vmatprep.mubr.bf16.mxu0 %v8152
    %9057 = vmatmul.mubr.bf16.gmra.mrb[0].mxu0 %v8128
    %v9058 = vpop.f32.mrb[0].mxu0
    %v9059 = vadd.f32 %v8962, %v9058
    %v9060 = vpop.f32.mrb[0].mxu0
    %v9061 = vpop.f32.mrb[0].mxu0
    %v9062 = vadd.f32 %v8965, %v9061
    %v9063 = vpop.f32.mrb[0].mxu0
    %9064 = vmatprep.mubr.bf16.mxu0 %v8153
    %9065 = vmatmul.mubr.bf16.gmra.mrb[0].mxu0 %v8129
    %v9066 = vpop.f32.mrb[0].mxu0
    %v9067 = vadd.f32 %v8970, %v9066
    %v9068 = vpop.f32.mrb[0].mxu0
    %v9069 = vpop.f32.mrb[0].mxu0
    %v9070 = vadd.f32 %v8973, %v9069
    %v9071 = vpop.f32.mrb[0].mxu0
    %9072 = vmatprep.mubr.bf16.mxu0 %v8154
    %9073 = vmatmul.mubr.bf16.gmra.mrb[0].mxu0 %v8130
    %v9074 = vpop.f32.mrb[0].mxu0
    %v9075 = vadd.f32 %v8978, %v9074
    %v9076 = vpop.f32.mrb[0].mxu0
    %v9077 = vpop.f32.mrb[0].mxu0
    %v9078 = vadd.f32 %v8981, %v9077
    %v9079 = vpop.f32.mrb[0].mxu0
    %9080 = vmatprep.mubr.bf16.mxu0 %v8155
    %9081 = vmatmul.mubr.bf16.gmra.mrb[0].mxu0 %v8131
    %v9082 = vpop.f32.mrb[0].mxu0
    %v9083 = vadd.f32 %v8986, %v9082
    %v9084 = vpop.f32.mrb[0].mxu0
    %v9085 = vpop.f32.mrb[0].mxu0
    %v9086 = vadd.f32 %v8989, %v9085
    %v9087 = vpop.f32.mrb[0].mxu0
    %9088 = vmatprep.mubr.bf16.mxu0 %v8156
    %9089 = vmatmul.mubr.bf16.gmra.mrb[0].mxu0 %v8132
    %v9090 = vpop.f32.mrb[0].mxu0
    %v9091 = vadd.f32 %v8994, %v9090
    %v9092 = vpop.f32.mrb[0].mxu0
    %v9093 = vpop.f32.mrb[0].mxu0
    %v9094 = vadd.f32 %v8997, %v9093
    %v9095 = vpop.f32.mrb[0].mxu0
    %9096 = vmatprep.mubr.bf16.mxu0 %v8157
    %9097 = vmatmul.mubr.bf16.gmra.mrb[0].mxu0 %v8133
    %v9098 = vpop.f32.mrb[0].mxu0
    %v9099 = vadd.f32 %v9002, %v9098
    %v9100 = vpop.f32.mrb[0].mxu0
    %v9101 = vpop.f32.mrb[0].mxu0
    %v9102 = vadd.f32 %v9005, %v9101
    %v9103 = vpop.f32.mrb[0].mxu0
    %9104 = vdwg.mxu0
    %9105 = vmatprep.subr.bf16.mxu0 0
    %9106 = vmatpush1.bf16.msra.mxu0 %v8718
    %9107 = vmatprep.subr.bf16.mxu0 0
    %9108 = vmatpush1.bf16.msra.mxu0 %v8719
    %9109 = vmatprep.subr.bf16.mxu0 0
    %9110 = vmatpush1.bf16.msra.mxu0 %v8720
    %9111 = vmatprep.subr.bf16.mxu0 0
    %9112 = vmatpush1.bf16.msra.mxu0 %v8721
    %9113 = vmatprep.subr.bf16.mxu0 0
    %9114 = vmatpush1.bf16.msra.mxu0 %v8722
    %9115 = vmatprep.subr.bf16.mxu0 0
    %9116 = vmatpush1.bf16.msra.mxu0 %v8723
    %9117 = vmatprep.subr.bf16.mxu0 0
    %9118 = vmatpush1.bf16.msra.mxu0 %v8724
    %9119 = vmatprep.subr.bf16.mxu0 0
    %9120 = vmatpush1.bf16.msra.mxu0 %v8725
    %9121 = vmatprep.subr.bf16.mxu0 0
    %9122 = vmatpush1.bf16.msra.mxu0 %v8726
    %9123 = vmatprep.subr.bf16.mxu0 0
    %9124 = vmatpush1.bf16.msra.mxu0 %v8727
    %9125 = vmatprep.subr.bf16.mxu0 0
    %9126 = vmatpush1.bf16.msra.mxu0 %v8728
    %9127 = vmatprep.subr.bf16.mxu0 0
    %9128 = vmatpush1.bf16.msra.mxu0 %v8729
    %9129 = vmatprep.subr.bf16.mxu0 0
    %9130 = vmatpush1.bf16.msra.mxu0 %v8730
    %9131 = vmatprep.subr.bf16.mxu0 0
    %9132 = vmatpush1.bf16.msra.mxu0 %v8731
    %9133 = vmatprep.subr.bf16.mxu0 0
    %9134 = vmatpush1.bf16.msra.mxu0 %v8732
    %9135 = vmatprep.subr.bf16.mxu0 0
    %9136 = vmatpush1.bf16.msra.mxu0 %v8733
    %9137 = vmatprep.mubr.bf16.mxu0 %v8199
    %9138 = vmatmul.mubr.bf16.gmra.mrb[0].mxu0 %v8175
    %v9139 = vpop.f32.mrb[0].mxu0
    %v9140 = vadd.f32 %v9043, %v9139
    %v9141 = vpop.f32.mrb[0].mxu0
    %v9142 = vpop.f32.mrb[0].mxu0
    %v9143 = vadd.f32 %v9046, %v9142
    %v9144 = vpop.f32.mrb[0].mxu0
    %9145 = vmatprep.mubr.bf16.mxu0 %v8200
    %9146 = vmatmul.mubr.bf16.gmra.mrb[0].mxu0 %v8176
    %v9147 = vpop.f32.mrb[0].mxu0
    %v9148 = vadd.f32 %v9051, %v9147
    %v9149 = vpop.f32.mrb[0].mxu0
    %v9150 = vpop.f32.mrb[0].mxu0
    %v9151 = vadd.f32 %v9054, %v9150
    %v9152 = vpop.f32.mrb[0].mxu0
    %9153 = vmatprep.mubr.bf16.mxu0 %v8201
    %9154 = vmatmul.mubr.bf16.gmra.mrb[0].mxu0 %v8177
    %v9155 = vpop.f32.mrb[0].mxu0
    %v9156 = vadd.f32 %v9059, %v9155
    %v9157 = vpop.f32.mrb[0].mxu0
    %v9158 = vpop.f32.mrb[0].mxu0
    %v9159 = vadd.f32 %v9062, %v9158
    %v9160 = vpop.f32.mrb[0].mxu0
    %9161 = vmatprep.mubr.bf16.mxu0 %v8202
    %9162 = vmatmul.mubr.bf16.gmra.mrb[0].mxu0 %v8178
    %v9163 = vpop.f32.mrb[0].mxu0
    %v9164 = vadd.f32 %v9067, %v9163
    %v9165 = vpop.f32.mrb[0].mxu0
    %v9166 = vpop.f32.mrb[0].mxu0
    %v9167 = vadd.f32 %v9070, %v9166
    %v9168 = vpop.f32.mrb[0].mxu0
    %9169 = vmatprep.mubr.bf16.mxu0 %v8203
    %9170 = vmatmul.mubr.bf16.gmra.mrb[0].mxu0 %v8179
    %v9171 = vpop.f32.mrb[0].mxu0
    %v9172 = vadd.f32 %v9075, %v9171
    %v9173 = vpop.f32.mrb[0].mxu0
    %v9174 = vpop.f32.mrb[0].mxu0
    %v9175 = vadd.f32 %v9078, %v9174
    %v9176 = vpop.f32.mrb[0].mxu0
    %9177 = vmatprep.mubr.bf16.mxu0 %v8204
    %9178 = vmatmul.mubr.bf16.gmra.mrb[0].mxu0 %v8180
    %v9179 = vpop.f32.mrb[0].mxu0
    %v9180 = vadd.f32 %v9083, %v9179
    %v9181 = vpop.f32.mrb[0].mxu0
    %v9182 = vpop.f32.mrb[0].mxu0
    %v9183 = vadd.f32 %v9086, %v9182
    %v9184 = vpop.f32.mrb[0].mxu0
    %9185 = vmatprep.mubr.bf16.mxu0 %v8205
    %9186 = vmatmul.mubr.bf16.gmra.mrb[0].mxu0 %v8181
    %v9187 = vpop.f32.mrb[0].mxu0
    %v9188 = vadd.f32 %v9091, %v9187
    %v9189 = vpop.f32.mrb[0].mxu0
    %v9190 = vpop.f32.mrb[0].mxu0
    %v9191 = vadd.f32 %v9094, %v9190
    %v9192 = vpop.f32.mrb[0].mxu0
    %9193 = vmatprep.mubr.bf16.mxu0 %v8206
    %9194 = vmatmul.mubr.bf16.gmra.mrb[0].mxu0 %v8182
    %v9195 = vpop.f32.mrb[0].mxu0
    %v9196 = vadd.f32 %v9099, %v9195
    %v9197 = vpop.f32.mrb[0].mxu0
    %v9198 = vpop.f32.mrb[0].mxu0
    %v9199 = vadd.f32 %v9102, %v9198
    %v9200 = vpop.f32.mrb[0].mxu0
    %9201 = vdwg.mxu0
    %9202 = vmatprep.subr.bf16.mxu0 0
    %9203 = vmatpush1.bf16.msra.mxu0 %v8734
    %9204 = vmatprep.subr.bf16.mxu0 0
    %9205 = vmatpush1.bf16.msra.mxu0 %v8735
    %9206 = vmatprep.subr.bf16.mxu0 0
    %9207 = vmatpush1.bf16.msra.mxu0 %v8736
    %9208 = vmatprep.subr.bf16.mxu0 0
    %9209 = vmatpush1.bf16.msra.mxu0 %v8737
    %9210 = vmatprep.subr.bf16.mxu0 0
    %9211 = vmatpush1.bf16.msra.mxu0 %v8738
    %9212 = vmatprep.subr.bf16.mxu0 0
    %9213 = vmatpush1.bf16.msra.mxu0 %v8739
    %9214 = vmatprep.subr.bf16.mxu0 0
    %9215 = vmatpush1.bf16.msra.mxu0 %v8740
    %9216 = vmatprep.subr.bf16.mxu0 0
    %9217 = vmatpush1.bf16.msra.mxu0 %v8741
    %9218 = vmatprep.subr.bf16.mxu0 0
    %9219 = vmatpush1.bf16.msra.mxu0 0
    %9220 = vmatprep.subr.bf16.mxu0 0
    %9221 = vmatpush1.bf16.msra.mxu0 0
    %9222 = vmatprep.subr.bf16.mxu0 0
    %9223 = vmatpush1.bf16.msra.mxu0 0
    %9224 = vmatprep.subr.bf16.mxu0 0
    %9225 = vmatpush1.bf16.msra.mxu0 0
    %9226 = vmatprep.subr.bf16.mxu0 0
    %9227 = vmatpush1.bf16.msra.mxu0 0
    %9228 = vmatprep.subr.bf16.mxu0 0
    %9229 = vmatpush1.bf16.msra.mxu0 0
    %9230 = vmatprep.subr.bf16.mxu0 0
    %9231 = vmatpush1.bf16.msra.mxu0 0
    %9232 = vmatprep.subr.bf16.mxu0 0
    %9233 = vmatpush1.bf16.msra.mxu0 0
    %9234 = vmatprep.mubr.bf16.mxu0 0
    %9235 = vmatmul.mubr.bf16.gmra.mrb[0].mxu0 %v8223
    %v9236 = vpop.f32.mrb[0].mxu0
    %v9237 = vadd.f32 %v9140, %v9236
    %v9238 = vpop.f32.mrb[0].mxu0
    %v9239 = vpop.f32.mrb[0].mxu0
    %v9240 = vadd.f32 %v9143, %v9239
    %v9241 = vpop.f32.mrb[0].mxu0
    %9242 = vmatprep.mubr.bf16.mxu0 0
    %9243 = vmatmul.mubr.bf16.gmra.mrb[0].mxu0 %v8224
    %v9244 = vpop.f32.mrb[0].mxu0
    %v9245 = vadd.f32 %v9148, %v9244
    %v9246 = vpop.f32.mrb[0].mxu0
    %v9247 = vpop.f32.mrb[0].mxu0
    %v9248 = vadd.f32 %v9151, %v9247
    %v9249 = vpop.f32.mrb[0].mxu0
    %9250 = vmatprep.mubr.bf16.mxu0 0
    %9251 = vmatmul.mubr.bf16.gmra.mrb[0].mxu0 %v8225
    %v9252 = vpop.f32.mrb[0].mxu0
    %v9253 = vadd.f32 %v9156, %v9252
    %v9254 = vpop.f32.mrb[0].mxu0
    %v9255 = vpop.f32.mrb[0].mxu0
    %v9256 = vadd.f32 %v9159, %v9255
    %v9257 = vpop.f32.mrb[0].mxu0
    %9258 = vmatprep.mubr.bf16.mxu0 0
    %9259 = vmatmul.mubr.bf16.gmra.mrb[0].mxu0 %v8226
    %v9260 = vpop.f32.mrb[0].mxu0
    %v9261 = vadd.f32 %v9164, %v9260
    %v9262 = vpop.f32.mrb[0].mxu0
    %v9263 = vpop.f32.mrb[0].mxu0
    %v9264 = vadd.f32 %v9167, %v9263
    %v9265 = vpop.f32.mrb[0].mxu0
    %9266 = vmatprep.mubr.bf16.mxu0 0
    %9267 = vmatmul.mubr.bf16.gmra.mrb[0].mxu0 %v8227
    %v9268 = vpop.f32.mrb[0].mxu0
    %v9269 = vadd.f32 %v9172, %v9268
    %v9270 = vpop.f32.mrb[0].mxu0
    %v9271 = vpop.f32.mrb[0].mxu0
    %v9272 = vadd.f32 %v9175, %v9271
    %v9273 = vpop.f32.mrb[0].mxu0
    %9274 = vmatprep.mubr.bf16.mxu0 0
    %9275 = vmatmul.mubr.bf16.gmra.mrb[0].mxu0 %v8228
    %v9276 = vpop.f32.mrb[0].mxu0
    %v9277 = vadd.f32 %v9180, %v9276
    %v9278 = vpop.f32.mrb[0].mxu0
    %v9279 = vpop.f32.mrb[0].mxu0
    %v9280 = vadd.f32 %v9183, %v9279
    %v9281 = vpop.f32.mrb[0].mxu0
    %9282 = vmatprep.mubr.bf16.mxu0 0
    %9283 = vmatmul.mubr.bf16.gmra.mrb[0].mxu0 %v8229
    %v9284 = vpop.f32.mrb[0].mxu0
    %v9285 = vadd.f32 %v9188, %v9284
    %v9286 = vpop.f32.mrb[0].mxu0
    %v9287 = vpop.f32.mrb[0].mxu0
    %v9288 = vadd.f32 %v9191, %v9287
    %v9289 = vpop.f32.mrb[0].mxu0
    %9290 = vmatprep.mubr.bf16.mxu0 0
    %9291 = vmatmul.mubr.bf16.gmra.mrb[0].mxu0 %v8230
    %v9292 = vpop.f32.mrb[0].mxu0
    %v9293 = vadd.f32 %v9196, %v9292
    %v9294 = vpop.f32.mrb[0].mxu0
    %v9295 = vpop.f32.mrb[0].mxu0
    %v9296 = vadd.f32 %v9199, %v9295
    %v9297 = vpop.f32.mrb[0].mxu0
    %9298 = vdwg.mxu0
    %v9299 = vmax.f32 %v9237, 0.0
    %v9300 = vmax.f32 %v9240, 0.0
    %v9301 = vmax.f32 %v9245, 0.0
    %v9302 = vmax.f32 %v9248, 0.0
    %v9303 = vmax.f32 %v9253, 0.0
    %v9304 = vmax.f32 %v9256, 0.0
    %v9305 = vmax.f32 %v9261, 0.0
    %v9306 = vmax.f32 %v9264, 0.0
    %v9307 = vmax.f32 %v9269, 0.0
    %v9308 = vmax.f32 %v9272, 0.0
    %v9309 = vmax.f32 %v9277, 0.0
    %v9310 = vmax.f32 %v9280, 0.0
    %v9311 = vmax.f32 %v9285, 0.0
    %v9312 = vmax.f32 %v9288, 0.0
    %v9313 = vmax.f32 %v9293, 0.0
    %v9314 = vmax.f32 %v9296, 0.0
    %9315 = vst [vmem:[#allocation7] sm:$0xff] %v9299
    %9316 = vst [vmem:[#allocation7 + $0x8] sm:$0xff] %v9300
    %9317 = vst [vmem:[#allocation7 + $0x10] sm:$0xff] %v9301
    %9318 = vst [vmem:[#allocation7 + $0x18] sm:$0xff] %v9302
    %9319 = vst [vmem:[#allocation7 + $0x20] sm:$0xff] %v9303
    %9320 = vst [vmem:[#allocation7 + $0x28] sm:$0xff] %v9304
    %9321 = vst [vmem:[#allocation7 + $0x30] sm:$0xff] %v9305
    %9322 = vst [vmem:[#allocation7 + $0x38] sm:$0xff] %v9306
    %9323 = vst [vmem:[#allocation7 + $0x40] sm:$0xff] %v9307
    %9324 = vst [vmem:[#allocation7 + $0x48] sm:$0xff] %v9308
    %9325 = vst [vmem:[#allocation7 + $0x50] sm:$0xff] %v9309
    %9326 = vst [vmem:[#allocation7 + $0x58] sm:$0xff] %v9310
    %9327 = vst [vmem:[#allocation7 + $0x60] sm:$0xff] %v9311
    %9328 = vst [vmem:[#allocation7 + $0x68] sm:$0xff] %v9312
    %9329 = vst [vmem:[#allocation7 + $0x70] sm:$0xff] %v9313
    %9330 = vst [vmem:[#allocation7 + $0x78] sm:$0xff] %v9314
    // Predicated region
    $region38: #{vgg16_head_forward.1} parent=1 // pred_check
      _
    $region39: #{vgg16_head_forward.1} parent=1 // pred_check_branch
      %9332 = sbr.rel (0) target = $region41
    $region40: #{vgg16_head_forward.1} parent=1 // pred_region
      %s9334 = ssub.s32 2048, 2048
      %9335 = vsyncadd [#allocation8], %s9334
      %s9336 = sshll.u32 [#allocation7], 4
      %s9337 = int_to_ptr.vmem [resolvable:$true] %s9336
      %9342 = dma.vmem_to_hbm [thread:$0]  %s9337, 2048, %s9, [#allocation8], 128, 128, 8
    $region41: #{vgg16_head_forward.1} parent=1 // pred_fallthru
      _
    // Predicated region
    $region42: #{vgg16_head_forward.1} parent=1 // pred_check
      _
    $region43: #{vgg16_head_forward.1} parent=1 // pred_check_branch
      %9344 = sbr.rel (0) target = $region45
    $region44: #{vgg16_head_forward.1} parent=1 // pred_region
      %9345 = dma.done [#allocation8], 2048
    $region45: #{vgg16_head_forward.1} parent=1 // pred_fallthru
      _
    %9346 = vsyncpa [#allocation8], 1

</llo_original>
